<compile_context>
chip_gen: v5e
topology: v5e:2x2
jax: 0.10.0
libtpu: 0.0.40
codegen_flags: <defaults>
</compile_context>

<pallas_src>
import functools

import jax
import jax.numpy as jnp
from jax.experimental import pallas as pl
from jax.experimental.pallas import tpu as pltpu

Z_DIM = 100
Z_PAD = 128            # 100 -> 128 (one full lane tile)
HIDDEN_DIM = 256
IMAGE_SIZE = 28 * 28   # 784
OUT_PAD = 896          # 784 -> 7 * 128 (lane-aligned RHS for the layer-3 matmul)


# ---------------------------------------------------------------------------
# Chip detection (used only to pick bm / epilogue precision; safe fallbacks).
# ---------------------------------------------------------------------------
def _device_kind():
    try:
        return jax.devices()[0].device_kind.lower()
    except Exception:
        return ""


def _num_tensorcores():
    # v7x has 2 TensorCores per chip; v5e/v6e have 1.
    return 2 if "v7" in _device_kind() else 1


def _default_bf16_epilogue():
    # v5e has no bf16 VPU/EUP -> keep the epilogue in f32 there.
    return "v5" not in _device_kind()


def _choose_bm(B):
    """One grid step per TensorCore, batch-rows rounded to the 8-sublane tile,
    capped at 1024 rows (VMEM stays well under every generation's budget)."""
    bm = pl.cdiv(B, _num_tensorcores())
    bm = min(max(bm, 8), 1024)
    return ((bm + 7) // 8) * 8


# ---------------------------------------------------------------------------
# Kernel
# ---------------------------------------------------------------------------
def generator_kernel(z_ref, w1_ref, b1_ref, w2_ref, b2_ref, w3_ref, b3_ref,
                     o_ref, *, bf16_epilogue):
    # Layer 1: Linear(128 -> 256) + ReLU.  bf16 operands, f32 MXU accumulation.
    h1 = jnp.dot(z_ref[...], w1_ref[...], preferred_element_type=jnp.float32)
    h1 = jnp.maximum(h1 + b1_ref[...], 0.0)

    # Layer 2: Linear(256 -> 256) + ReLU.
    h2 = jnp.dot(h1.astype(jnp.bfloat16), w2_ref[...],
                 preferred_element_type=jnp.float32)
    h2 = jnp.maximum(h2 + b2_ref[...], 0.0)

    # Layer 3: Linear(256 -> 896) matmul (lane-aligned RHS), then drop the
    # zero-padded columns before the bias/tanh epilogue and the store.
    h3 = jnp.dot(h2.astype(jnp.bfloat16), w3_ref[...],
                 preferred_element_type=jnp.float32)
    h3 = h3[:, :IMAGE_SIZE] + b3_ref[...]
    if bf16_epilogue:
        # bf16 tanh + bf16 store (v6e/v7x: bf16 EUP/VPU, 2 rows per vreg).
        o_ref[...] = jnp.tanh(h3.astype(jnp.bfloat16))
    else:
        # v5e: tanh in f32, cast only for the store.
        o_ref[...] = jnp.tanh(h3).astype(o_ref.dtype)


# ---------------------------------------------------------------------------
# One-time parameter layout (do this at init, NOT per forward call)
# ---------------------------------------------------------------------------
def prepare_params(params):
    """Pad + cast the weights once. Padded rows/cols are zero, so they are
    neutral in the dot products."""
    w1 = jnp.pad(params["w1"], ((0, Z_PAD - Z_DIM), (0, 0))).astype(jnp.bfloat16)
    w2 = params["w2"].astype(jnp.bfloat16)
    w3 = jnp.pad(params["w3"], ((0, 0), (0, OUT_PAD - IMAGE_SIZE))).astype(jnp.bfloat16)
    return {
        "w1": w1, "b1": params["b1"],
        "w2": w2, "b2": params["b2"],
        "w3": w3, "b3": params["b3"],   # b3 stays (1, 784): output is 784-wide
    }


# ---------------------------------------------------------------------------
# Forward
# ---------------------------------------------------------------------------
def generator_forward(z, prep, *, bm=None, bf16_epilogue=None):
    """z: (B, Z_DIM) f32.  prep: output of prepare_params().  Returns (B, 784) bf16."""
    B = z.shape[0]
    if bm is None:
        bm = _choose_bm(B)
    if bf16_epilogue is None:
        bf16_epilogue = _default_bf16_epilogue()
    B_pad = pl.cdiv(B, bm) * bm

    # Single-pass pad + cast of the activation input (bf16 MXU operand,
    # lane-dense 100 -> 128). Padded batch rows / z columns are zero.
    z_p = jnp.pad(z, ((0, B_pad - B), (0, Z_PAD - Z_DIM))).astype(jnp.bfloat16)

    w1, b1 = prep["w1"], prep["b1"]
    w2, b2 = prep["w2"], prep["b2"]
    w3, b3 = prep["w3"], prep["b3"]

    grid = (B_pad // bm,)
    # Weights/biases: one resident block covering the whole array.
    full = lambda a: pl.BlockSpec(a.shape, lambda i: (0, 0))

    flops = 2 * B_pad * (Z_PAD * HIDDEN_DIM
                         + HIDDEN_DIM * HIDDEN_DIM
                         + HIDDEN_DIM * OUT_PAD)
    transcendentals = B_pad * IMAGE_SIZE  # tanh
    bytes_accessed = ((w1.size + w2.size + w3.size) * 2          # bf16 weights
                      + (b1.size + b2.size + b3.size) * 4        # f32 biases
                      + B_pad * Z_PAD * 2                        # bf16 input
                      + B_pad * IMAGE_SIZE * 2)                  # bf16 output

    kernel = functools.partial(generator_kernel, bf16_epilogue=bf16_epilogue)

    out = pl.pallas_call(
        kernel,
        out_shape=jax.ShapeDtypeStruct((B_pad, IMAGE_SIZE), jnp.bfloat16),
        grid_spec=pltpu.PrefetchScalarGridSpec(
            num_scalar_prefetch=0,
            grid=grid,
            in_specs=[
                pl.BlockSpec((bm, Z_PAD), lambda i: (i, 0)),   # z batch tile
                full(w1), full(b1),
                full(w2), full(b2),
                full(w3), full(b3),
            ],
            # 784 == full last dim of the output array, so this block shape is
            # legal; only the last 16-lane chunk per row is a masked store.
            out_specs=pl.BlockSpec((bm, IMAGE_SIZE), lambda i: (i, 0)),
        ),
        compiler_params=pltpu.CompilerParams(
            dimension_semantics=("parallel",),   # shards grid across TCs on v7x
        ),
        cost_estimate=pl.CostEstimate(
            flops=flops,
            transcendentals=transcendentals,
            bytes_accessed=bytes_accessed,
        ),
    )(z_p, w1, b1, w2, b2, w3, b3)

    if B_pad != B:
        out = out[:B]
    return out


# ---------------------------------------------------------------------------
# Init / reference
# ---------------------------------------------------------------------------
def init_params(key):
    """PyTorch nn.Linear default init: U(-1/sqrt(in), 1/sqrt(in)).
    Weights stored already transposed as (in_features, out_features)."""
    ks = jax.random.split(key, 6)

    def linear(kw, kb, fan_in, fan_out):
        bound = 1.0 / jnp.sqrt(fan_in)
        w = jax.random.uniform(kw, (fan_in, fan_out), jnp.float32, -bound, bound)
        b = jax.random.uniform(kb, (1, fan_out), jnp.float32, -bound, bound)
        return w, b

    w1, b1 = linear(ks[0], ks[1], Z_DIM, HIDDEN_DIM)
    w2, b2 = linear(ks[2], ks[3], HIDDEN_DIM, HIDDEN_DIM)
    w3, b3 = linear(ks[4], ks[5], HIDDEN_DIM, IMAGE_SIZE)
    return {"w1": w1, "b1": b1, "w2": w2, "b2": b2, "w3": w3, "b3": b3}


def reference_forward(z, p):
    h1 = jnp.maximum(z @ p["w1"] + p["b1"], 0.0)
    h2 = jnp.maximum(h1 @ p["w2"] + p["b2"], 0.0)
    return jnp.tanh(h2 @ p["w3"] + p["b3"])


if __name__ == "__main__":
    key = jax.random.PRNGKey(0)
    k_params, k_z = jax.random.split(key)
    params = init_params(k_params)
    prep = prepare_params(params)   # one-time layout (pad + bf16 cast), reused every call

    B = 512  # grid=2 on dual-TC v7x (bm=256), grid=1 on v5e/v6e (bm=512)
    z = jax.random.normal(k_z, (B, Z_DIM), jnp.float32)

    out = generator_forward(z, prep)
    out = jax.block_until_ready(out)

    ref = reference_forward(z, params)
    assert out.shape == (B, IMAGE_SIZE), out.shape
    # bf16 matmul operands + bf16 output -> small deviation from pure-f32 ref.
    err = float(jnp.max(jnp.abs(out.astype(jnp.float32) - ref)))
    assert err < 4e-2, err

    print("KERNEL_OK")
</pallas_src>

<mosaic_0001>
module attributes {stable_mosaic.version = 11 : i64} {
  func.func @generator_kernel(%arg0: i32, %arg1: memref<512x128xbf16, #tpu.memory_space<vmem>>, %arg2: memref<128x256xbf16, #tpu.memory_space<vmem>>, %arg3: memref<1x256xf32, #tpu.memory_space<vmem>>, %arg4: memref<256x256xbf16, #tpu.memory_space<vmem>>, %arg5: memref<1x256xf32, #tpu.memory_space<vmem>>, %arg6: memref<256x896xbf16, #tpu.memory_space<vmem>>, %arg7: memref<1x784xf32, #tpu.memory_space<vmem>>, %arg8: memref<512x784xbf16, #tpu.memory_space<vmem>>) attributes {dimension_semantics = [#tpu.dimension_semantics<parallel>], iteration_bounds = array<i64: 1>, scalar_prefetch = 0 : i64, scratch_operands = 0 : i64, tpu.core_type = #tpu.core_type<tc>, window_params = [{transform_indices = @transform_0, window_bounds = array<i64: 512, 128>}, {pipeline_mode = #tpu.pipeline_mode<synchronous>, transform_indices = @transform_1, window_bounds = array<i64: 128, 256>}, {pipeline_mode = #tpu.pipeline_mode<synchronous>, transform_indices = @transform_2, window_bounds = array<i64: 1, 256>}, {pipeline_mode = #tpu.pipeline_mode<synchronous>, transform_indices = @transform_3, window_bounds = array<i64: 256, 256>}, {pipeline_mode = #tpu.pipeline_mode<synchronous>, transform_indices = @transform_4, window_bounds = array<i64: 1, 256>}, {pipeline_mode = #tpu.pipeline_mode<synchronous>, transform_indices = @transform_5, window_bounds = array<i64: 256, 896>}, {pipeline_mode = #tpu.pipeline_mode<synchronous>, transform_indices = @transform_6, window_bounds = array<i64: 1, 784>}, {transform_indices = @transform_7, window_bounds = array<i64: 512, 784>}]} {
    %c0 = arith.constant 0 : index
    %c0_0 = arith.constant 0 : index
    %0 = vector.load %arg1[%c0, %c0_0] : memref<512x128xbf16, #tpu.memory_space<vmem>>, vector<512x128xbf16>
    %c0_1 = arith.constant 0 : index
    %c0_2 = arith.constant 0 : index
    %1 = vector.load %arg2[%c0_1, %c0_2] : memref<128x256xbf16, #tpu.memory_space<vmem>>, vector<128x256xbf16>
    %cst = arith.constant dense<0.000000e+00> : vector<512x256xf32>
    %2 = tpu.matmul %0, %1, %cst {dimension_numbers = #tpu.dot_dimension_numbers<[1], [0], [0], [1], [0, 0, 1, 1], [], []>} : vector<512x128xbf16>, vector<128x256xbf16>, vector<512x256xf32> -> vector<512x256xf32>
    %c0_3 = arith.constant 0 : index
    %c0_4 = arith.constant 0 : index
    %3 = vector.load %arg3[%c0_3, %c0_4] : memref<1x256xf32, #tpu.memory_space<vmem>>, vector<1x256xf32>
    %4 = vector.broadcast %3 : vector<1x256xf32> to vector<512x256xf32>
    %5 = arith.addf %2, %4 : vector<512x256xf32>
    %cst_5 = arith.constant 0.000000e+00 : f32
    %6 = vector.broadcast %cst_5 : f32 to vector<512x256xf32>
    %7 = arith.maximumf %5, %6 : vector<512x256xf32>
    %8 = arith.truncf %7 : vector<512x256xf32> to vector<512x256xbf16>
    %c0_6 = arith.constant 0 : index
    %c0_7 = arith.constant 0 : index
    %9 = vector.load %arg4[%c0_6, %c0_7] : memref<256x256xbf16, #tpu.memory_space<vmem>>, vector<256x256xbf16>
    %cst_8 = arith.constant dense<0.000000e+00> : vector<512x256xf32>
    %10 = tpu.matmul %8, %9, %cst_8 {dimension_numbers = #tpu.dot_dimension_numbers<[1], [0], [0], [1], [0, 0, 1, 1], [], []>} : vector<512x256xbf16>, vector<256x256xbf16>, vector<512x256xf32> -> vector<512x256xf32>
    %c0_9 = arith.constant 0 : index
    %c0_10 = arith.constant 0 : index
    %11 = vector.load %arg5[%c0_9, %c0_10] : memref<1x256xf32, #tpu.memory_space<vmem>>, vector<1x256xf32>
    %12 = vector.broadcast %11 : vector<1x256xf32> to vector<512x256xf32>
    %13 = arith.addf %10, %12 : vector<512x256xf32>
    %cst_11 = arith.constant 0.000000e+00 : f32
    %14 = vector.broadcast %cst_11 : f32 to vector<512x256xf32>
    %15 = arith.maximumf %13, %14 : vector<512x256xf32>
    %16 = arith.truncf %15 : vector<512x256xf32> to vector<512x256xbf16>
    %c0_12 = arith.constant 0 : index
    %c0_13 = arith.constant 0 : index
    %17 = vector.load %arg6[%c0_12, %c0_13] : memref<256x896xbf16, #tpu.memory_space<vmem>>, vector<256x896xbf16>
    %cst_14 = arith.constant dense<0.000000e+00> : vector<512x896xf32>
    %18 = tpu.matmul %16, %17, %cst_14 {dimension_numbers = #tpu.dot_dimension_numbers<[1], [0], [0], [1], [0, 0, 1, 1], [], []>} : vector<512x256xbf16>, vector<256x896xbf16>, vector<512x896xf32> -> vector<512x896xf32>
    %19 = vector.extract_strided_slice %18 {offsets = [0, 0], sizes = [512, 784], strides = [1, 1]} : vector<512x896xf32> to vector<512x784xf32>
    %c0_15 = arith.constant 0 : index
    %c0_16 = arith.constant 0 : index
    %20 = vector.load %arg7[%c0_15, %c0_16] : memref<1x784xf32, #tpu.memory_space<vmem>>, vector<1x784xf32>
    %21 = vector.broadcast %20 : vector<1x784xf32> to vector<512x784xf32>
    %22 = arith.addf %19, %21 : vector<512x784xf32>
    %23 = arith.truncf %22 : vector<512x784xf32> to vector<512x784xbf16>
    %24 = math.tanh %23 : vector<512x784xbf16>
    %c0_17 = arith.constant 0 : index
    %c0_18 = arith.constant 0 : index
    %25 = vector.load %arg8[%c0_17, %c0_18] : memref<512x784xbf16, #tpu.memory_space<vmem>>, vector<512x784xbf16>
    tpu.vector_store %arg8[%c0_17, %c0_18], %24 {strides = array<i32>} : memref<512x784xbf16, #tpu.memory_space<vmem>>, vector<512x784xbf16>,
    return
  }
  func.func @transform_0(%arg0: i32) -> (i32, i32) {
    %c0_i32 = arith.constant 0 : i32
    %c0_i32_0 = arith.constant 0 : i32
    return %arg0, %c0_i32 : i32, i32
  }
  func.func @transform_1(%arg0: i32) -> (i32, i32) {
    %c0_i32 = arith.constant 0 : i32
    %c0_i32_0 = arith.constant 0 : i32
    %c0_i32_1 = arith.constant 0 : i32
    return %c0_i32, %c0_i32_0 : i32, i32
  }
  func.func @transform_2(%arg0: i32) -> (i32, i32) {
    %c0_i32 = arith.constant 0 : i32
    %c0_i32_0 = arith.constant 0 : i32
    %c0_i32_1 = arith.constant 0 : i32
    return %c0_i32, %c0_i32_0 : i32, i32
  }
  func.func @transform_3(%arg0: i32) -> (i32, i32) {
    %c0_i32 = arith.constant 0 : i32
    %c0_i32_0 = arith.constant 0 : i32
    %c0_i32_1 = arith.constant 0 : i32
    return %c0_i32, %c0_i32_0 : i32, i32
  }
  func.func @transform_4(%arg0: i32) -> (i32, i32) {
    %c0_i32 = arith.constant 0 : i32
    %c0_i32_0 = arith.constant 0 : i32
    %c0_i32_1 = arith.constant 0 : i32
    return %c0_i32, %c0_i32_0 : i32, i32
  }
  func.func @transform_5(%arg0: i32) -> (i32, i32) {
    %c0_i32 = arith.constant 0 : i32
    %c0_i32_0 = arith.constant 0 : i32
    %c0_i32_1 = arith.constant 0 : i32
    return %c0_i32, %c0_i32_0 : i32, i32
  }
  func.func @transform_6(%arg0: i32) -> (i32, i32) {
    %c0_i32 = arith.constant 0 : i32
    %c0_i32_0 = arith.constant 0 : i32
    %c0_i32_1 = arith.constant 0 : i32
    return %c0_i32, %c0_i32_0 : i32, i32
  }
  func.func @transform_7(%arg0: i32) -> (i32, i32) {
    %c0_i32 = arith.constant 0 : i32
    %c0_i32_0 = arith.constant 0 : i32
    return %arg0, %c0_i32 : i32, i32
  }
}

</mosaic_0001>

<llo_original>
// kernel: tpu_custom_call.1
$region0: #{tpu_custom_call.1}
  #allocation0 [shape = 'u32[]', space=smem, size = 0x4, offset = 0x4, fixed_abs, tag = 'smem constant byte address 0x4 - core index']
  #allocation1 [shape = 'u32[72,128]{1,0:T(1,128)}', space=vmem, size = 0x9000, scoped, tag = 'internal scratch']
  %s0 = inlined_call_operand.hbm [shape: bf16[512,128], index: 0, kind: input, shape index: {}]
  %s1 = inlined_call_operand.hbm [shape: bf16[128,256], index: 1, kind: input, shape index: {}]
  %s2 = inlined_call_operand.hbm [shape: f32[1,256], index: 2, kind: input, shape index: {}]
  %s3 = inlined_call_operand.hbm [shape: bf16[256,256], index: 3, kind: input, shape index: {}]
  %s4 = inlined_call_operand.vmem [shape: f32[1,256], index: 4, kind: input, shape index: {}]
  %s5 = inlined_call_operand.hbm [shape: bf16[256,896], index: 5, kind: input, shape index: {}]
  %s6 = inlined_call_operand.hbm [shape: f32[1,784], index: 6, kind: input, shape index: {}]
  %s7 = inlined_call_operand.vmem [shape: bf16[512,784], index: 7, kind: output, shape index: {}]
  %s8 = sld [smem:[#allocation0]]
  $region62: #{tpu_custom_call.1} parent=0
    _
  %s10 = ssub.s32 1, %s8
  %s11 = scalar_select 0, %s10, %s8
  $region1: #{tpu_custom_call.1} parent=0
    #allocation2 [shape = 'u8[131072]{0}', space=vmem, size = 0x20000, scoped, tag = 'input window, operand 0, single buffered']
    #allocation3 [shape = 's32[1]{0}', space=sflag, size = 0x4, scoped, tag = 'scoped memory for tpu_custom_call.1']
    #allocation4 [shape = 'u8[65536]{0}', space=vmem, size = 0x10000, scoped, tag = 'input window, operand 1, single buffered']
    #allocation5 [shape = 's32[1]{0}', space=sflag, size = 0x4, scoped, tag = 'scoped memory for tpu_custom_call.1']
    #allocation6 [shape = 'u8[1024]{0}', space=vmem, size = 0x400, scoped, tag = 'input window, operand 2, single buffered']
    #allocation7 [shape = 'u8[131072]{0}', space=vmem, size = 0x20000, scoped, tag = 'input window, operand 3, single buffered']
    #allocation8 [shape = 's32[1]{0}', space=sflag, size = 0x4, scoped, tag = 'scoped memory for tpu_custom_call.1']
    #allocation9 [shape = 'u8[458752]{0}', space=vmem, size = 0x70000, scoped, tag = 'input window, operand 5, single buffered']
    #allocation10 [shape = 'u8[3584]{0}', space=vmem, size = 0x1000, scoped, tag = 'input window, operand 6, single buffered']
    #allocation11 [shape = 's32[1]{0}', space=sflag, size = 0x4, scoped, tag = 'scoped memory for tpu_custom_call.1']
    %12 = vsyncpa [#allocation3], 0
    %13 = vsyncpa [#allocation5], 0
    %14 = vsyncpa [#allocation8], 0
    %15 = vsyncpa [#allocation11], 0
    // Predicated region
    $region2: #{tpu_custom_call.1} parent=1 // pred_check
      _
    $region3: #{tpu_custom_call.1} parent=1 // pred_check_branch
      %17 = sbr.rel (0) target = $region5
    $region4: #{tpu_custom_call.1} parent=1 // pred_region
      %19 = vsyncadd [#allocation3], 0
      %s20 = sshll.u32 %s0, 4
      %s21 = int_to_ptr.hbm [resolvable:$true] %s20
      %s22 = sshll.u32 [#allocation2], 4
      %s23 = int_to_ptr.vmem [resolvable:$true] %s22
      %28 = dma.hbm_to_vmem [thread:$0]  %s21, 4096, %s23, [#allocation3], 64, 64, 4
    $region5: #{tpu_custom_call.1} parent=1 // pred_fallthru
      _
    // Predicated region
    $region6: #{tpu_custom_call.1} parent=1 // pred_check
      _
    $region7: #{tpu_custom_call.1} parent=1 // pred_check_branch
      %30 = sbr.rel (0) target = $region9
    $region8: #{tpu_custom_call.1} parent=1 // pred_region
      %32 = vsyncadd [#allocation5], 0
      %s33 = sshll.u32 %s1, 4
      %s34 = int_to_ptr.hbm [resolvable:$true] %s33
      %s35 = sshll.u32 [#allocation4], 4
      %s36 = int_to_ptr.vmem [resolvable:$true] %s35
      %41 = dma.hbm_to_vmem [thread:$0]  %s34, 2048, %s36, [#allocation5], 128, 128, 8
    $region9: #{tpu_custom_call.1} parent=1 // pred_fallthru
      _
    // Predicated region
    $region10: #{tpu_custom_call.1} parent=1 // pred_check
      _
    $region11: #{tpu_custom_call.1} parent=1 // pred_check_branch
      %43 = sbr.rel (0) target = $region13
    $region12: #{tpu_custom_call.1} parent=1 // pred_region
      %45 = vsyncadd [#allocation5], 0
      %s47 = sshll.u32 %s2, 4
      %s48 = int_to_ptr.hbm [resolvable:$true] %s47
      %s49 = sshll.u32 [#allocation6], 4
      %s50 = int_to_ptr.vmem [resolvable:$true] %s49
      %52 = dma.hbm_to_vmem [thread:$0]  %s48, 32, %s50, [#allocation5]
    $region13: #{tpu_custom_call.1} parent=1 // pred_fallthru
      _
    // Predicated region
    $region14: #{tpu_custom_call.1} parent=1 // pred_check
      _
    $region15: #{tpu_custom_call.1} parent=1 // pred_check_branch
      %54 = sbr.rel (0) target = $region17
    $region16: #{tpu_custom_call.1} parent=1 // pred_region
      %56 = vsyncadd [#allocation8], 0
      %s57 = sshll.u32 %s3, 4
      %s58 = int_to_ptr.hbm [resolvable:$true] %s57
      %s59 = sshll.u32 [#allocation7], 4
      %s60 = int_to_ptr.vmem [resolvable:$true] %s59
      %65 = dma.hbm_to_vmem [thread:$0]  %s58, 4096, %s60, [#allocation8], 128, 128, 8
    $region17: #{tpu_custom_call.1} parent=1 // pred_fallthru
      _
    // Predicated region
    $region18: #{tpu_custom_call.1} parent=1 // pred_check
      _
    $region19: #{tpu_custom_call.1} parent=1 // pred_check_branch
      %67 = sbr.rel (0) target = $region21
    $region20: #{tpu_custom_call.1} parent=1 // pred_region
      _
    $region21: #{tpu_custom_call.1} parent=1 // pred_fallthru
      _
    // Predicated region
    $region22: #{tpu_custom_call.1} parent=1 // pred_check
      _
    $region23: #{tpu_custom_call.1} parent=1 // pred_check_branch
      %69 = sbr.rel (0) target = $region25
    $region24: #{tpu_custom_call.1} parent=1 // pred_region
      %71 = vsyncadd [#allocation8], 0
      %s72 = sshll.u32 %s5, 4
      %s73 = int_to_ptr.hbm [resolvable:$true] %s72
      %s74 = sshll.u32 [#allocation9], 4
      %s75 = int_to_ptr.vmem [resolvable:$true] %s74
      %80 = dma.hbm_to_vmem [thread:$0]  %s73, 14336, %s75, [#allocation8], 448, 448, 28
    $region25: #{tpu_custom_call.1} parent=1 // pred_fallthru
      _
    // Predicated region
    $region26: #{tpu_custom_call.1} parent=1 // pred_check
      _
    $region27: #{tpu_custom_call.1} parent=1 // pred_check_branch
      %82 = sbr.rel (0) target = $region29
    $region28: #{tpu_custom_call.1} parent=1 // pred_region
      %84 = vsyncadd [#allocation11], 0
      %s86 = sshll.u32 %s6, 4
      %s87 = int_to_ptr.hbm [resolvable:$true] %s86
      %s88 = sshll.u32 [#allocation10], 4
      %s89 = int_to_ptr.vmem [resolvable:$true] %s88
      %91 = dma.hbm_to_vmem [thread:$0]  %s87, 112, %s89, [#allocation11]
    $region29: #{tpu_custom_call.1} parent=1 // pred_fallthru
      _
    // Predicated region
    $region30: #{tpu_custom_call.1} parent=1 // pred_check
      _
    $region31: #{tpu_custom_call.1} parent=1 // pred_check_branch
      %93 = sbr.rel (0) target = $region33
    $region32: #{tpu_custom_call.1} parent=1 // pred_region
      %95 = dma.done [#allocation3], 4096
    $region33: #{tpu_custom_call.1} parent=1 // pred_fallthru
      _
    // Predicated region
    $region34: #{tpu_custom_call.1} parent=1 // pred_check
      _
    $region35: #{tpu_custom_call.1} parent=1 // pred_check_branch
      %97 = sbr.rel (0) target = $region37
    $region36: #{tpu_custom_call.1} parent=1 // pred_region
      %99 = dma.done [#allocation5], 2048
    $region37: #{tpu_custom_call.1} parent=1 // pred_fallthru
      _
    // Predicated region
    $region38: #{tpu_custom_call.1} parent=1 // pred_check
      _
    $region39: #{tpu_custom_call.1} parent=1 // pred_check_branch
      %101 = sbr.rel (0) target = $region41
    $region40: #{tpu_custom_call.1} parent=1 // pred_region
      %103 = dma.done [#allocation5], 32
    $region41: #{tpu_custom_call.1} parent=1 // pred_fallthru
      _
    // Predicated region
    $region42: #{tpu_custom_call.1} parent=1 // pred_check
      _
    $region43: #{tpu_custom_call.1} parent=1 // pred_check_branch
      %105 = sbr.rel (0) target = $region45
    $region44: #{tpu_custom_call.1} parent=1 // pred_region
      %107 = dma.done [#allocation8], 4096
    $region45: #{tpu_custom_call.1} parent=1 // pred_fallthru
      _
    // Predicated region
    $region46: #{tpu_custom_call.1} parent=1 // pred_check
      _
    $region47: #{tpu_custom_call.1} parent=1 // pred_check_branch
      %109 = sbr.rel (0) target = $region49
    $region48: #{tpu_custom_call.1} parent=1 // pred_region
      %111 = dma.done [#allocation8], 14336
    $region49: #{tpu_custom_call.1} parent=1 // pred_fallthru
      _
    // Predicated region
    $region50: #{tpu_custom_call.1} parent=1 // pred_check
      _
    $region51: #{tpu_custom_call.1} parent=1 // pred_check_branch
      %113 = sbr.rel (0) target = $region53
    $region52: #{tpu_custom_call.1} parent=1 // pred_region
      %115 = dma.done [#allocation11], 112
    $region53: #{tpu_custom_call.1} parent=1 // pred_fallthru
      _
    %v116 = vld [vmem:[#allocation2] sm:$0xf]
    %v117 = vld [vmem:[#allocation2 + $0x4] sm:$0xf]
    %v118 = vld [vmem:[#allocation2 + $0x8] sm:$0xf]
    %v119 = vld [vmem:[#allocation2 + $0xc] sm:$0xf]
    %v120 = vld [vmem:[#allocation2 + $0x10] sm:$0xf]
    %v121 = vld [vmem:[#allocation2 + $0x14] sm:$0xf]
    %v122 = vld [vmem:[#allocation2 + $0x18] sm:$0xf]
    %v123 = vld [vmem:[#allocation2 + $0x1c] sm:$0xf]
    %v124 = vld [vmem:[#allocation2 + $0x20] sm:$0xf]
    %v125 = vld [vmem:[#allocation2 + $0x24] sm:$0xf]
    %v126 = vld [vmem:[#allocation2 + $0x28] sm:$0xf]
    %v127 = vld [vmem:[#allocation2 + $0x2c] sm:$0xf]
    %v128 = vld [vmem:[#allocation2 + $0x30] sm:$0xf]
    %v129 = vld [vmem:[#allocation2 + $0x34] sm:$0xf]
    %v130 = vld [vmem:[#allocation2 + $0x38] sm:$0xf]
    %v131 = vld [vmem:[#allocation2 + $0x3c] sm:$0xf]
    %v132 = vld [vmem:[#allocation2 + $0x40] sm:$0xf]
    %v133 = vld [vmem:[#allocation2 + $0x44] sm:$0xf]
    %v134 = vld [vmem:[#allocation2 + $0x48] sm:$0xf]
    %v135 = vld [vmem:[#allocation2 + $0x4c] sm:$0xf]
    %v136 = vld [vmem:[#allocation2 + $0x50] sm:$0xf]
    %v137 = vld [vmem:[#allocation2 + $0x54] sm:$0xf]
    %v138 = vld [vmem:[#allocation2 + $0x58] sm:$0xf]
    %v139 = vld [vmem:[#allocation2 + $0x5c] sm:$0xf]
    %v140 = vld [vmem:[#allocation2 + $0x60] sm:$0xf]
    %v141 = vld [vmem:[#allocation2 + $0x64] sm:$0xf]
    %v142 = vld [vmem:[#allocation2 + $0x68] sm:$0xf]
    %v143 = vld [vmem:[#allocation2 + $0x6c] sm:$0xf]
    %v144 = vld [vmem:[#allocation2 + $0x70] sm:$0xf]
    %v145 = vld [vmem:[#allocation2 + $0x74] sm:$0xf]
    %v146 = vld [vmem:[#allocation2 + $0x78] sm:$0xf]
    %v147 = vld [vmem:[#allocation2 + $0x7c] sm:$0xf]
    %v148 = vld [vmem:[#allocation2 + $0x80] sm:$0xf]
    %v149 = vld [vmem:[#allocation2 + $0x84] sm:$0xf]
    %v150 = vld [vmem:[#allocation2 + $0x88] sm:$0xf]
    %v151 = vld [vmem:[#allocation2 + $0x8c] sm:$0xf]
    %v152 = vld [vmem:[#allocation2 + $0x90] sm:$0xf]
    %v153 = vld [vmem:[#allocation2 + $0x94] sm:$0xf]
    %v154 = vld [vmem:[#allocation2 + $0x98] sm:$0xf]
    %v155 = vld [vmem:[#allocation2 + $0x9c] sm:$0xf]
    %v156 = vld [vmem:[#allocation2 + $0xa0] sm:$0xf]
    %v157 = vld [vmem:[#allocation2 + $0xa4] sm:$0xf]
    %v158 = vld [vmem:[#allocation2 + $0xa8] sm:$0xf]
    %v159 = vld [vmem:[#allocation2 + $0xac] sm:$0xf]
    %v160 = vld [vmem:[#allocation2 + $0xb0] sm:$0xf]
    %v161 = vld [vmem:[#allocation2 + $0xb4] sm:$0xf]
    %v162 = vld [vmem:[#allocation2 + $0xb8] sm:$0xf]
    %v163 = vld [vmem:[#allocation2 + $0xbc] sm:$0xf]
    %v164 = vld [vmem:[#allocation2 + $0xc0] sm:$0xf]
    %v165 = vld [vmem:[#allocation2 + $0xc4] sm:$0xf]
    %v166 = vld [vmem:[#allocation2 + $0xc8] sm:$0xf]
    %v167 = vld [vmem:[#allocation2 + $0xcc] sm:$0xf]
    %v168 = vld [vmem:[#allocation2 + $0xd0] sm:$0xf]
    %v169 = vld [vmem:[#allocation2 + $0xd4] sm:$0xf]
    %v170 = vld [vmem:[#allocation2 + $0xd8] sm:$0xf]
    %v171 = vld [vmem:[#allocation2 + $0xdc] sm:$0xf]
    %v172 = vld [vmem:[#allocation2 + $0xe0] sm:$0xf]
    %v173 = vld [vmem:[#allocation2 + $0xe4] sm:$0xf]
    %v174 = vld [vmem:[#allocation2 + $0xe8] sm:$0xf]
    %v175 = vld [vmem:[#allocation2 + $0xec] sm:$0xf]
    %v176 = vld [vmem:[#allocation2 + $0xf0] sm:$0xf]
    %v177 = vld [vmem:[#allocation2 + $0xf4] sm:$0xf]
    %v178 = vld [vmem:[#allocation2 + $0xf8] sm:$0xf]
    %v179 = vld [vmem:[#allocation2 + $0xfc] sm:$0xf]
    %v180 = vld [vmem:[#allocation4] sm:$0xff]
    %v181 = vld [vmem:[#allocation4 + $0x8] sm:$0xff]
    %v182 = vld [vmem:[#allocation4 + $0x10] sm:$0xff]
    %v183 = vld [vmem:[#allocation4 + $0x18] sm:$0xff]
    %v184 = vld [vmem:[#allocation4 + $0x20] sm:$0xff]
    %v185 = vld [vmem:[#allocation4 + $0x28] sm:$0xff]
    %v186 = vld [vmem:[#allocation4 + $0x30] sm:$0xff]
    %v187 = vld [vmem:[#allocation4 + $0x38] sm:$0xff]
    %v188 = vld [vmem:[#allocation4 + $0x40] sm:$0xff]
    %v189 = vld [vmem:[#allocation4 + $0x48] sm:$0xff]
    %v190 = vld [vmem:[#allocation4 + $0x50] sm:$0xff]
    %v191 = vld [vmem:[#allocation4 + $0x58] sm:$0xff]
    %v192 = vld [vmem:[#allocation4 + $0x60] sm:$0xff]
    %v193 = vld [vmem:[#allocation4 + $0x68] sm:$0xff]
    %v194 = vld [vmem:[#allocation4 + $0x70] sm:$0xff]
    %v195 = vld [vmem:[#allocation4 + $0x78] sm:$0xff]
    %v196 = vld [vmem:[#allocation6] sm:$0x3]
    %v198 = vperm.slane %v196, 0
    %v199 = vperm.slane %v196, 1
    %v266 = vunpack.c.l.b16 %v116
    %v267 = vunpack.c.l.b16 %v117
    %v268 = vunpack.c.l.b16 %v118
    %v269 = vunpack.c.l.b16 %v119
    %v270 = vunpack.c.l.b16 %v120
    %v271 = vunpack.c.l.b16 %v121
    %v272 = vunpack.c.l.b16 %v122
    %v273 = vunpack.c.l.b16 %v123
    %v274 = vunpack.c.l.b16 %v124
    %v275 = vunpack.c.l.b16 %v125
    %v276 = vunpack.c.l.b16 %v126
    %v277 = vunpack.c.l.b16 %v127
    %v278 = vunpack.c.l.b16 %v128
    %v279 = vunpack.c.l.b16 %v129
    %v280 = vunpack.c.l.b16 %v130
    %v281 = vunpack.c.l.b16 %v131
    %v282 = vunpack.c.l.b16 %v132
    %v283 = vunpack.c.l.b16 %v133
    %v284 = vunpack.c.l.b16 %v134
    %v285 = vunpack.c.l.b16 %v135
    %v286 = vunpack.c.l.b16 %v136
    %v287 = vunpack.c.l.b16 %v137
    %v288 = vunpack.c.l.b16 %v138
    %v289 = vunpack.c.l.b16 %v139
    %v290 = vunpack.c.l.b16 %v140
    %v291 = vunpack.c.l.b16 %v141
    %v292 = vunpack.c.l.b16 %v142
    %v293 = vunpack.c.l.b16 %v143
    %v294 = vunpack.c.l.b16 %v144
    %v295 = vunpack.c.l.b16 %v145
    %v296 = vunpack.c.l.b16 %v146
    %v297 = vunpack.c.l.b16 %v147
    %v298 = vunpack.c.l.b16 %v148
    %v299 = vunpack.c.l.b16 %v149
    %v300 = vunpack.c.l.b16 %v150
    %v301 = vunpack.c.l.b16 %v151
    %v302 = vunpack.c.l.b16 %v152
    %v303 = vunpack.c.l.b16 %v153
    %v304 = vunpack.c.l.b16 %v154
    %v305 = vunpack.c.l.b16 %v155
    %v306 = vunpack.c.l.b16 %v156
    %v307 = vunpack.c.l.b16 %v157
    %v308 = vunpack.c.l.b16 %v158
    %v309 = vunpack.c.l.b16 %v159
    %v310 = vunpack.c.l.b16 %v160
    %v311 = vunpack.c.l.b16 %v161
    %v312 = vunpack.c.l.b16 %v162
    %v313 = vunpack.c.l.b16 %v163
    %v314 = vunpack.c.l.b16 %v164
    %v315 = vunpack.c.l.b16 %v165
    %v316 = vunpack.c.l.b16 %v166
    %v317 = vunpack.c.l.b16 %v167
    %v318 = vunpack.c.l.b16 %v168
    %v319 = vunpack.c.l.b16 %v169
    %v320 = vunpack.c.l.b16 %v170
    %v321 = vunpack.c.l.b16 %v171
    %v322 = vunpack.c.l.b16 %v172
    %v323 = vunpack.c.l.b16 %v173
    %v324 = vunpack.c.l.b16 %v174
    %v325 = vunpack.c.l.b16 %v175
    %v326 = vunpack.c.l.b16 %v176
    %v327 = vunpack.c.l.b16 %v177
    %v328 = vunpack.c.l.b16 %v178
    %v329 = vunpack.c.l.b16 %v179
    %v330 = vpack.c.b16 %v267, %v266
    %v331 = vpack.c.b16 %v269, %v268
    %v332 = vpack.c.b16 %v271, %v270
    %v333 = vpack.c.b16 %v273, %v272
    %v334 = vpack.c.b16 %v275, %v274
    %v335 = vpack.c.b16 %v277, %v276
    %v336 = vpack.c.b16 %v279, %v278
    %v337 = vpack.c.b16 %v281, %v280
    %v338 = vpack.c.b16 %v283, %v282
    %v339 = vpack.c.b16 %v285, %v284
    %v340 = vpack.c.b16 %v287, %v286
    %v341 = vpack.c.b16 %v289, %v288
    %v342 = vpack.c.b16 %v291, %v290
    %v343 = vpack.c.b16 %v293, %v292
    %v344 = vpack.c.b16 %v295, %v294
    %v345 = vpack.c.b16 %v297, %v296
    %v346 = vpack.c.b16 %v299, %v298
    %v347 = vpack.c.b16 %v301, %v300
    %v348 = vpack.c.b16 %v303, %v302
    %v349 = vpack.c.b16 %v305, %v304
    %v350 = vpack.c.b16 %v307, %v306
    %v351 = vpack.c.b16 %v309, %v308
    %v352 = vpack.c.b16 %v311, %v310
    %v353 = vpack.c.b16 %v313, %v312
    %v354 = vpack.c.b16 %v315, %v314
    %v355 = vpack.c.b16 %v317, %v316
    %v356 = vpack.c.b16 %v319, %v318
    %v357 = vpack.c.b16 %v321, %v320
    %v358 = vpack.c.b16 %v323, %v322
    %v359 = vpack.c.b16 %v325, %v324
    %v360 = vpack.c.b16 %v327, %v326
    %v361 = vpack.c.b16 %v329, %v328
    %v410 = vunpack.c.l.b16 %v180
    %v411 = vunpack.c.h.b16 %v180
    %v412 = vunpack.c.l.b16 %v181
    %v413 = vunpack.c.h.b16 %v181
    %v414 = vunpack.c.l.b16 %v182
    %v415 = vunpack.c.h.b16 %v182
    %v416 = vunpack.c.l.b16 %v183
    %v417 = vunpack.c.h.b16 %v183
    %v418 = vunpack.c.l.b16 %v184
    %v419 = vunpack.c.h.b16 %v184
    %v420 = vunpack.c.l.b16 %v185
    %v421 = vunpack.c.h.b16 %v185
    %v422 = vunpack.c.l.b16 %v186
    %v423 = vunpack.c.h.b16 %v186
    %v424 = vunpack.c.l.b16 %v187
    %v425 = vunpack.c.h.b16 %v187
    %v426 = vunpack.c.l.b16 %v188
    %v427 = vunpack.c.h.b16 %v188
    %v428 = vunpack.c.l.b16 %v189
    %v429 = vunpack.c.h.b16 %v189
    %v430 = vunpack.c.l.b16 %v190
    %v431 = vunpack.c.h.b16 %v190
    %v432 = vunpack.c.l.b16 %v191
    %v433 = vunpack.c.h.b16 %v191
    %v434 = vunpack.c.l.b16 %v192
    %v435 = vunpack.c.h.b16 %v192
    %v436 = vunpack.c.l.b16 %v193
    %v437 = vunpack.c.h.b16 %v193
    %v438 = vunpack.c.l.b16 %v194
    %v439 = vunpack.c.h.b16 %v194
    %v440 = vunpack.c.l.b16 %v195
    %v441 = vunpack.c.h.b16 %v195
    %v442 = vpack.c.b16 %v412, %v410
    %v443 = vpack.c.b16 %v413, %v411
    %v444 = vpack.c.b16 %v416, %v414
    %v445 = vpack.c.b16 %v417, %v415
    %v446 = vpack.c.b16 %v420, %v418
    %v447 = vpack.c.b16 %v421, %v419
    %v448 = vpack.c.b16 %v424, %v422
    %v449 = vpack.c.b16 %v425, %v423
    %v450 = vpack.c.b16 %v428, %v426
    %v451 = vpack.c.b16 %v429, %v427
    %v452 = vpack.c.b16 %v432, %v430
    %v453 = vpack.c.b16 %v433, %v431
    %v454 = vpack.c.b16 %v436, %v434
    %v455 = vpack.c.b16 %v437, %v435
    %v456 = vpack.c.b16 %v440, %v438
    %v457 = vpack.c.b16 %v441, %v439
    %474 = vmatpush.bf16.msra.mxu0 %v456
    %475 = vmatpush.bf16.msra.mxu0 %v454
    %476 = vmatpush.bf16.msra.mxu0 %v452
    %477 = vmatpush.bf16.msra.mxu0 %v450
    %478 = vmatpush.bf16.msra.mxu0 %v448
    %479 = vmatpush.bf16.msra.mxu0 %v446
    %480 = vmatpush.bf16.msra.mxu0 %v444
    %481 = vmatpush.bf16.msra.mxu0 %v442
    %482 = vmatmul.bf16.gmra.mxu0 %v330
    %v483 = vpop.f32.mrf.mxu0
    %v484 = vadd.f32 %v198, %v483
    %v485 = vpop.f32.mrf.mxu0
    %v486 = vadd.f32 %v198, %v485
    %487 = vmatmul.bf16.gmra.mxu0 %v331
    %v488 = vpop.f32.mrf.mxu0
    %v489 = vadd.f32 %v198, %v488
    %v490 = vpop.f32.mrf.mxu0
    %v491 = vadd.f32 %v198, %v490
    %492 = vmatmul.bf16.gmra.mxu0 %v332
    %v493 = vpop.f32.mrf.mxu0
    %v494 = vadd.f32 %v198, %v493
    %v495 = vpop.f32.mrf.mxu0
    %v496 = vadd.f32 %v198, %v495
    %497 = vmatmul.bf16.gmra.mxu0 %v333
    %v498 = vpop.f32.mrf.mxu0
    %v499 = vadd.f32 %v198, %v498
    %v500 = vpop.f32.mrf.mxu0
    %v501 = vadd.f32 %v198, %v500
    %502 = vmatmul.bf16.gmra.mxu0 %v334
    %v503 = vpop.f32.mrf.mxu0
    %v504 = vadd.f32 %v198, %v503
    %v505 = vpop.f32.mrf.mxu0
    %v506 = vadd.f32 %v198, %v505
    %507 = vmatmul.bf16.gmra.mxu0 %v335
    %v508 = vpop.f32.mrf.mxu0
    %v509 = vadd.f32 %v198, %v508
    %v510 = vpop.f32.mrf.mxu0
    %v511 = vadd.f32 %v198, %v510
    %512 = vmatmul.bf16.gmra.mxu0 %v336
    %v513 = vpop.f32.mrf.mxu0
    %v514 = vadd.f32 %v198, %v513
    %v515 = vpop.f32.mrf.mxu0
    %v516 = vadd.f32 %v198, %v515
    %517 = vmatmul.bf16.gmra.mxu0 %v337
    %v518 = vpop.f32.mrf.mxu0
    %v519 = vadd.f32 %v198, %v518
    %v520 = vpop.f32.mrf.mxu0
    %v521 = vadd.f32 %v198, %v520
    %522 = vmatmul.bf16.gmra.mxu0 %v338
    %v523 = vpop.f32.mrf.mxu0
    %v524 = vadd.f32 %v198, %v523
    %v525 = vpop.f32.mrf.mxu0
    %v526 = vadd.f32 %v198, %v525
    %527 = vmatmul.bf16.gmra.mxu0 %v339
    %v528 = vpop.f32.mrf.mxu0
    %v529 = vadd.f32 %v198, %v528
    %v530 = vpop.f32.mrf.mxu0
    %v531 = vadd.f32 %v198, %v530
    %532 = vmatmul.bf16.gmra.mxu0 %v340
    %v533 = vpop.f32.mrf.mxu0
    %v534 = vadd.f32 %v198, %v533
    %v535 = vpop.f32.mrf.mxu0
    %v536 = vadd.f32 %v198, %v535
    %537 = vmatmul.bf16.gmra.mxu0 %v341
    %v538 = vpop.f32.mrf.mxu0
    %v539 = vadd.f32 %v198, %v538
    %v540 = vpop.f32.mrf.mxu0
    %v541 = vadd.f32 %v198, %v540
    %542 = vmatmul.bf16.gmra.mxu0 %v342
    %v543 = vpop.f32.mrf.mxu0
    %v544 = vadd.f32 %v198, %v543
    %v545 = vpop.f32.mrf.mxu0
    %v546 = vadd.f32 %v198, %v545
    %547 = vmatmul.bf16.gmra.mxu0 %v343
    %v548 = vpop.f32.mrf.mxu0
    %v549 = vadd.f32 %v198, %v548
    %v550 = vpop.f32.mrf.mxu0
    %v551 = vadd.f32 %v198, %v550
    %552 = vmatmul.bf16.gmra.mxu0 %v344
    %v553 = vpop.f32.mrf.mxu0
    %v554 = vadd.f32 %v198, %v553
    %v555 = vpop.f32.mrf.mxu0
    %v556 = vadd.f32 %v198, %v555
    %557 = vmatmul.bf16.gmra.mxu0 %v345
    %v558 = vpop.f32.mrf.mxu0
    %v559 = vadd.f32 %v198, %v558
    %v560 = vpop.f32.mrf.mxu0
    %v561 = vadd.f32 %v198, %v560
    %562 = vmatmul.bf16.gmra.mxu0 %v346
    %v563 = vpop.f32.mrf.mxu0
    %v564 = vadd.f32 %v198, %v563
    %v565 = vpop.f32.mrf.mxu0
    %v566 = vadd.f32 %v198, %v565
    %567 = vmatmul.bf16.gmra.mxu0 %v347
    %v568 = vpop.f32.mrf.mxu0
    %v569 = vadd.f32 %v198, %v568
    %v570 = vpop.f32.mrf.mxu0
    %v571 = vadd.f32 %v198, %v570
    %572 = vmatmul.bf16.gmra.mxu0 %v348
    %v573 = vpop.f32.mrf.mxu0
    %v574 = vadd.f32 %v198, %v573
    %v575 = vpop.f32.mrf.mxu0
    %v576 = vadd.f32 %v198, %v575
    %577 = vmatmul.bf16.gmra.mxu0 %v349
    %v578 = vpop.f32.mrf.mxu0
    %v579 = vadd.f32 %v198, %v578
    %v580 = vpop.f32.mrf.mxu0
    %v581 = vadd.f32 %v198, %v580
    %582 = vmatmul.bf16.gmra.mxu0 %v350
    %v583 = vpop.f32.mrf.mxu0
    %v584 = vadd.f32 %v198, %v583
    %v585 = vpop.f32.mrf.mxu0
    %v586 = vadd.f32 %v198, %v585
    %587 = vmatmul.bf16.gmra.mxu0 %v351
    %v588 = vpop.f32.mrf.mxu0
    %v589 = vadd.f32 %v198, %v588
    %v590 = vpop.f32.mrf.mxu0
    %v591 = vadd.f32 %v198, %v590
    %592 = vmatmul.bf16.gmra.mxu0 %v352
    %v593 = vpop.f32.mrf.mxu0
    %v594 = vadd.f32 %v198, %v593
    %v595 = vpop.f32.mrf.mxu0
    %v596 = vadd.f32 %v198, %v595
    %597 = vmatmul.bf16.gmra.mxu0 %v353
    %v598 = vpop.f32.mrf.mxu0
    %v599 = vadd.f32 %v198, %v598
    %v600 = vpop.f32.mrf.mxu0
    %v601 = vadd.f32 %v198, %v600
    %602 = vmatmul.bf16.gmra.mxu0 %v354
    %v603 = vpop.f32.mrf.mxu0
    %v604 = vadd.f32 %v198, %v603
    %v605 = vpop.f32.mrf.mxu0
    %v606 = vadd.f32 %v198, %v605
    %607 = vmatmul.bf16.gmra.mxu0 %v355
    %v608 = vpop.f32.mrf.mxu0
    %v609 = vadd.f32 %v198, %v608
    %v610 = vpop.f32.mrf.mxu0
    %v611 = vadd.f32 %v198, %v610
    %612 = vmatmul.bf16.gmra.mxu0 %v356
    %v613 = vpop.f32.mrf.mxu0
    %v614 = vadd.f32 %v198, %v613
    %v615 = vpop.f32.mrf.mxu0
    %v616 = vadd.f32 %v198, %v615
    %617 = vmatmul.bf16.gmra.mxu0 %v357
    %v618 = vpop.f32.mrf.mxu0
    %v619 = vadd.f32 %v198, %v618
    %v620 = vpop.f32.mrf.mxu0
    %v621 = vadd.f32 %v198, %v620
    %622 = vmatmul.bf16.gmra.mxu0 %v358
    %v623 = vpop.f32.mrf.mxu0
    %v624 = vadd.f32 %v198, %v623
    %v625 = vpop.f32.mrf.mxu0
    %v626 = vadd.f32 %v198, %v625
    %627 = vmatmul.bf16.gmra.mxu0 %v359
    %v628 = vpop.f32.mrf.mxu0
    %v629 = vadd.f32 %v198, %v628
    %v630 = vpop.f32.mrf.mxu0
    %v631 = vadd.f32 %v198, %v630
    %632 = vmatmul.bf16.gmra.mxu0 %v360
    %v633 = vpop.f32.mrf.mxu0
    %v634 = vadd.f32 %v198, %v633
    %v635 = vpop.f32.mrf.mxu0
    %v636 = vadd.f32 %v198, %v635
    %637 = vmatmul.bf16.gmra.mxu0 %v361
    %v638 = vpop.f32.mrf.mxu0
    %v639 = vadd.f32 %v198, %v638
    %v640 = vpop.f32.mrf.mxu0
    %v641 = vadd.f32 %v198, %v640
    %642 = vdwg.mxu0
    %643 = vmatpush.bf16.msra.mxu0 %v457
    %644 = vmatpush.bf16.msra.mxu0 %v455
    %645 = vmatpush.bf16.msra.mxu0 %v453
    %646 = vmatpush.bf16.msra.mxu0 %v451
    %647 = vmatpush.bf16.msra.mxu0 %v449
    %648 = vmatpush.bf16.msra.mxu0 %v447
    %649 = vmatpush.bf16.msra.mxu0 %v445
    %650 = vmatpush.bf16.msra.mxu0 %v443
    %651 = vmatmul.bf16.gmra.mxu0 %v330
    %v652 = vpop.f32.mrf.mxu0
    %v653 = vadd.f32 %v199, %v652
    %v654 = vpop.f32.mrf.mxu0
    %v655 = vadd.f32 %v199, %v654
    %656 = vmatmul.bf16.gmra.mxu0 %v331
    %v657 = vpop.f32.mrf.mxu0
    %v658 = vadd.f32 %v199, %v657
    %v659 = vpop.f32.mrf.mxu0
    %v660 = vadd.f32 %v199, %v659
    %661 = vmatmul.bf16.gmra.mxu0 %v332
    %v662 = vpop.f32.mrf.mxu0
    %v663 = vadd.f32 %v199, %v662
    %v664 = vpop.f32.mrf.mxu0
    %v665 = vadd.f32 %v199, %v664
    %666 = vmatmul.bf16.gmra.mxu0 %v333
    %v667 = vpop.f32.mrf.mxu0
    %v668 = vadd.f32 %v199, %v667
    %v669 = vpop.f32.mrf.mxu0
    %v670 = vadd.f32 %v199, %v669
    %671 = vmatmul.bf16.gmra.mxu0 %v334
    %v672 = vpop.f32.mrf.mxu0
    %v673 = vadd.f32 %v199, %v672
    %v674 = vpop.f32.mrf.mxu0
    %v675 = vadd.f32 %v199, %v674
    %676 = vmatmul.bf16.gmra.mxu0 %v335
    %v677 = vpop.f32.mrf.mxu0
    %v678 = vadd.f32 %v199, %v677
    %v679 = vpop.f32.mrf.mxu0
    %v680 = vadd.f32 %v199, %v679
    %681 = vmatmul.bf16.gmra.mxu0 %v336
    %v682 = vpop.f32.mrf.mxu0
    %v683 = vadd.f32 %v199, %v682
    %v684 = vpop.f32.mrf.mxu0
    %v685 = vadd.f32 %v199, %v684
    %686 = vmatmul.bf16.gmra.mxu0 %v337
    %v687 = vpop.f32.mrf.mxu0
    %v688 = vadd.f32 %v199, %v687
    %v689 = vpop.f32.mrf.mxu0
    %v690 = vadd.f32 %v199, %v689
    %691 = vmatmul.bf16.gmra.mxu0 %v338
    %v692 = vpop.f32.mrf.mxu0
    %v693 = vadd.f32 %v199, %v692
    %v694 = vpop.f32.mrf.mxu0
    %v695 = vadd.f32 %v199, %v694
    %696 = vmatmul.bf16.gmra.mxu0 %v339
    %v697 = vpop.f32.mrf.mxu0
    %v698 = vadd.f32 %v199, %v697
    %v699 = vpop.f32.mrf.mxu0
    %v700 = vadd.f32 %v199, %v699
    %701 = vmatmul.bf16.gmra.mxu0 %v340
    %v702 = vpop.f32.mrf.mxu0
    %v703 = vadd.f32 %v199, %v702
    %v704 = vpop.f32.mrf.mxu0
    %v705 = vadd.f32 %v199, %v704
    %706 = vmatmul.bf16.gmra.mxu0 %v341
    %v707 = vpop.f32.mrf.mxu0
    %v708 = vadd.f32 %v199, %v707
    %v709 = vpop.f32.mrf.mxu0
    %v710 = vadd.f32 %v199, %v709
    %711 = vmatmul.bf16.gmra.mxu0 %v342
    %v712 = vpop.f32.mrf.mxu0
    %v713 = vadd.f32 %v199, %v712
    %v714 = vpop.f32.mrf.mxu0
    %v715 = vadd.f32 %v199, %v714
    %716 = vmatmul.bf16.gmra.mxu0 %v343
    %v717 = vpop.f32.mrf.mxu0
    %v718 = vadd.f32 %v199, %v717
    %v719 = vpop.f32.mrf.mxu0
    %v720 = vadd.f32 %v199, %v719
    %721 = vmatmul.bf16.gmra.mxu0 %v344
    %v722 = vpop.f32.mrf.mxu0
    %v723 = vadd.f32 %v199, %v722
    %v724 = vpop.f32.mrf.mxu0
    %v725 = vadd.f32 %v199, %v724
    %726 = vmatmul.bf16.gmra.mxu0 %v345
    %v727 = vpop.f32.mrf.mxu0
    %v728 = vadd.f32 %v199, %v727
    %v729 = vpop.f32.mrf.mxu0
    %v730 = vadd.f32 %v199, %v729
    %731 = vmatmul.bf16.gmra.mxu0 %v346
    %v732 = vpop.f32.mrf.mxu0
    %v733 = vadd.f32 %v199, %v732
    %v734 = vpop.f32.mrf.mxu0
    %v735 = vadd.f32 %v199, %v734
    %736 = vmatmul.bf16.gmra.mxu0 %v347
    %v737 = vpop.f32.mrf.mxu0
    %v738 = vadd.f32 %v199, %v737
    %v739 = vpop.f32.mrf.mxu0
    %v740 = vadd.f32 %v199, %v739
    %741 = vmatmul.bf16.gmra.mxu0 %v348
    %v742 = vpop.f32.mrf.mxu0
    %v743 = vadd.f32 %v199, %v742
    %v744 = vpop.f32.mrf.mxu0
    %v745 = vadd.f32 %v199, %v744
    %746 = vmatmul.bf16.gmra.mxu0 %v349
    %v747 = vpop.f32.mrf.mxu0
    %v748 = vadd.f32 %v199, %v747
    %v749 = vpop.f32.mrf.mxu0
    %v750 = vadd.f32 %v199, %v749
    %751 = vmatmul.bf16.gmra.mxu0 %v350
    %v752 = vpop.f32.mrf.mxu0
    %v753 = vadd.f32 %v199, %v752
    %v754 = vpop.f32.mrf.mxu0
    %v755 = vadd.f32 %v199, %v754
    %756 = vmatmul.bf16.gmra.mxu0 %v351
    %v757 = vpop.f32.mrf.mxu0
    %v758 = vadd.f32 %v199, %v757
    %v759 = vpop.f32.mrf.mxu0
    %v760 = vadd.f32 %v199, %v759
    %761 = vmatmul.bf16.gmra.mxu0 %v352
    %v762 = vpop.f32.mrf.mxu0
    %v763 = vadd.f32 %v199, %v762
    %v764 = vpop.f32.mrf.mxu0
    %v765 = vadd.f32 %v199, %v764
    %766 = vmatmul.bf16.gmra.mxu0 %v353
    %v767 = vpop.f32.mrf.mxu0
    %v768 = vadd.f32 %v199, %v767
    %v769 = vpop.f32.mrf.mxu0
    %v770 = vadd.f32 %v199, %v769
    %771 = vmatmul.bf16.gmra.mxu0 %v354
    %v772 = vpop.f32.mrf.mxu0
    %v773 = vadd.f32 %v199, %v772
    %v774 = vpop.f32.mrf.mxu0
    %v775 = vadd.f32 %v199, %v774
    %776 = vmatmul.bf16.gmra.mxu0 %v355
    %v777 = vpop.f32.mrf.mxu0
    %v778 = vadd.f32 %v199, %v777
    %v779 = vpop.f32.mrf.mxu0
    %v780 = vadd.f32 %v199, %v779
    %781 = vmatmul.bf16.gmra.mxu0 %v356
    %v782 = vpop.f32.mrf.mxu0
    %v783 = vadd.f32 %v199, %v782
    %v784 = vpop.f32.mrf.mxu0
    %v785 = vadd.f32 %v199, %v784
    %786 = vmatmul.bf16.gmra.mxu0 %v357
    %v787 = vpop.f32.mrf.mxu0
    %v788 = vadd.f32 %v199, %v787
    %v789 = vpop.f32.mrf.mxu0
    %v790 = vadd.f32 %v199, %v789
    %791 = vmatmul.bf16.gmra.mxu0 %v358
    %v792 = vpop.f32.mrf.mxu0
    %v793 = vadd.f32 %v199, %v792
    %v794 = vpop.f32.mrf.mxu0
    %v795 = vadd.f32 %v199, %v794
    %796 = vmatmul.bf16.gmra.mxu0 %v359
    %v797 = vpop.f32.mrf.mxu0
    %v798 = vadd.f32 %v199, %v797
    %v799 = vpop.f32.mrf.mxu0
    %v800 = vadd.f32 %v199, %v799
    %801 = vmatmul.bf16.gmra.mxu0 %v360
    %v802 = vpop.f32.mrf.mxu0
    %v803 = vadd.f32 %v199, %v802
    %v804 = vpop.f32.mrf.mxu0
    %v805 = vadd.f32 %v199, %v804
    %806 = vmatmul.bf16.gmra.mxu0 %v361
    %v807 = vpop.f32.mrf.mxu0
    %v808 = vadd.f32 %v199, %v807
    %v809 = vpop.f32.mrf.mxu0
    %v810 = vadd.f32 %v199, %v809
    %811 = vdwg.mxu0
    %v812 = vmax.f32 %v484, 0.0
    %v813 = vmax.f32 %v653, 0.0
    %v814 = vmax.f32 %v486, 0.0
    %v815 = vmax.f32 %v655, 0.0
    %v816 = vmax.f32 %v489, 0.0
    %v817 = vmax.f32 %v658, 0.0
    %v818 = vmax.f32 %v491, 0.0
    %v819 = vmax.f32 %v660, 0.0
    %v820 = vmax.f32 %v494, 0.0
    %v821 = vmax.f32 %v663, 0.0
    %v822 = vmax.f32 %v496, 0.0
    %v823 = vmax.f32 %v665, 0.0
    %v824 = vmax.f32 %v499, 0.0
    %v825 = vmax.f32 %v668, 0.0
    %v826 = vmax.f32 %v501, 0.0
    %v827 = vmax.f32 %v670, 0.0
    %v828 = vmax.f32 %v504, 0.0
    %v829 = vmax.f32 %v673, 0.0
    %v830 = vmax.f32 %v506, 0.0
    %v831 = vmax.f32 %v675, 0.0
    %v832 = vmax.f32 %v509, 0.0
    %v833 = vmax.f32 %v678, 0.0
    %v834 = vmax.f32 %v511, 0.0
    %v835 = vmax.f32 %v680, 0.0
    %v836 = vmax.f32 %v514, 0.0
    %v837 = vmax.f32 %v683, 0.0
    %v838 = vmax.f32 %v516, 0.0
    %v839 = vmax.f32 %v685, 0.0
    %v840 = vmax.f32 %v519, 0.0
    %v841 = vmax.f32 %v688, 0.0
    %v842 = vmax.f32 %v521, 0.0
    %v843 = vmax.f32 %v690, 0.0
    %v844 = vmax.f32 %v524, 0.0
    %v845 = vmax.f32 %v693, 0.0
    %v846 = vmax.f32 %v526, 0.0
    %v847 = vmax.f32 %v695, 0.0
    %v848 = vmax.f32 %v529, 0.0
    %v849 = vmax.f32 %v698, 0.0
    %v850 = vmax.f32 %v531, 0.0
    %v851 = vmax.f32 %v700, 0.0
    %v852 = vmax.f32 %v534, 0.0
    %v853 = vmax.f32 %v703, 0.0
    %v854 = vmax.f32 %v536, 0.0
    %v855 = vmax.f32 %v705, 0.0
    %v856 = vmax.f32 %v539, 0.0
    %v857 = vmax.f32 %v708, 0.0
    %v858 = vmax.f32 %v541, 0.0
    %v859 = vmax.f32 %v710, 0.0
    %v860 = vmax.f32 %v544, 0.0
    %v861 = vmax.f32 %v713, 0.0
    %v862 = vmax.f32 %v546, 0.0
    %v863 = vmax.f32 %v715, 0.0
    %v864 = vmax.f32 %v549, 0.0
    %v865 = vmax.f32 %v718, 0.0
    %v866 = vmax.f32 %v551, 0.0
    %v867 = vmax.f32 %v720, 0.0
    %v868 = vmax.f32 %v554, 0.0
    %v869 = vmax.f32 %v723, 0.0
    %v870 = vmax.f32 %v556, 0.0
    %v871 = vmax.f32 %v725, 0.0
    %v872 = vmax.f32 %v559, 0.0
    %v873 = vmax.f32 %v728, 0.0
    %v874 = vmax.f32 %v561, 0.0
    %v875 = vmax.f32 %v730, 0.0
    %v876 = vmax.f32 %v564, 0.0
    %v877 = vmax.f32 %v733, 0.0
    %v878 = vmax.f32 %v566, 0.0
    %v879 = vmax.f32 %v735, 0.0
    %v880 = vmax.f32 %v569, 0.0
    %v881 = vmax.f32 %v738, 0.0
    %v882 = vmax.f32 %v571, 0.0
    %v883 = vmax.f32 %v740, 0.0
    %v884 = vmax.f32 %v574, 0.0
    %v885 = vmax.f32 %v743, 0.0
    %v886 = vmax.f32 %v576, 0.0
    %v887 = vmax.f32 %v745, 0.0
    %v888 = vmax.f32 %v579, 0.0
    %v889 = vmax.f32 %v748, 0.0
    %v890 = vmax.f32 %v581, 0.0
    %v891 = vmax.f32 %v750, 0.0
    %v892 = vmax.f32 %v584, 0.0
    %v893 = vmax.f32 %v753, 0.0
    %v894 = vmax.f32 %v586, 0.0
    %v895 = vmax.f32 %v755, 0.0
    %v896 = vmax.f32 %v589, 0.0
    %v897 = vmax.f32 %v758, 0.0
    %v898 = vmax.f32 %v591, 0.0
    %v899 = vmax.f32 %v760, 0.0
    %v900 = vmax.f32 %v594, 0.0
    %v901 = vmax.f32 %v763, 0.0
    %v902 = vmax.f32 %v596, 0.0
    %v903 = vmax.f32 %v765, 0.0
    %v904 = vmax.f32 %v599, 0.0
    %v905 = vmax.f32 %v768, 0.0
    %v906 = vmax.f32 %v601, 0.0
    %v907 = vmax.f32 %v770, 0.0
    %v908 = vmax.f32 %v604, 0.0
    %v909 = vmax.f32 %v773, 0.0
    %v910 = vmax.f32 %v606, 0.0
    %v911 = vmax.f32 %v775, 0.0
    %v912 = vmax.f32 %v609, 0.0
    %v913 = vmax.f32 %v778, 0.0
    %v914 = vmax.f32 %v611, 0.0
    %v915 = vmax.f32 %v780, 0.0
    %v916 = vmax.f32 %v614, 0.0
    %v917 = vmax.f32 %v783, 0.0
    %v918 = vmax.f32 %v616, 0.0
    %v919 = vmax.f32 %v785, 0.0
    %v920 = vmax.f32 %v619, 0.0
    %v921 = vmax.f32 %v788, 0.0
    %v922 = vmax.f32 %v621, 0.0
    %v923 = vmax.f32 %v790, 0.0
    %v924 = vmax.f32 %v624, 0.0
    %v925 = vmax.f32 %v793, 0.0
    %v926 = vmax.f32 %v626, 0.0
    %v927 = vmax.f32 %v795, 0.0
    %v928 = vmax.f32 %v629, 0.0
    %v929 = vmax.f32 %v798, 0.0
    %v930 = vmax.f32 %v631, 0.0
    %v931 = vmax.f32 %v800, 0.0
    %v932 = vmax.f32 %v634, 0.0
    %v933 = vmax.f32 %v803, 0.0
    %v934 = vmax.f32 %v636, 0.0
    %v935 = vmax.f32 %v805, 0.0
    %v936 = vmax.f32 %v639, 0.0
    %v937 = vmax.f32 %v808, 0.0
    %v938 = vmax.f32 %v641, 0.0
    %v939 = vmax.f32 %v810, 0.0
    %v940 = vpack.c.bf16 %v814, %v812
    %v941 = vpack.c.bf16 %v815, %v813
    %v942 = vpack.c.bf16 %v818, %v816
    %v943 = vpack.c.bf16 %v819, %v817
    %v944 = vpack.c.bf16 %v822, %v820
    %v945 = vpack.c.bf16 %v823, %v821
    %v946 = vpack.c.bf16 %v826, %v824
    %v947 = vpack.c.bf16 %v827, %v825
    %v948 = vpack.c.bf16 %v830, %v828
    %v949 = vpack.c.bf16 %v831, %v829
    %v950 = vpack.c.bf16 %v834, %v832
    %v951 = vpack.c.bf16 %v835, %v833
    %v952 = vpack.c.bf16 %v838, %v836
    %v953 = vpack.c.bf16 %v839, %v837
    %v954 = vpack.c.bf16 %v842, %v840
    %v955 = vpack.c.bf16 %v843, %v841
    %v956 = vpack.c.bf16 %v846, %v844
    %v957 = vpack.c.bf16 %v847, %v845
    %v958 = vpack.c.bf16 %v850, %v848
    %v959 = vpack.c.bf16 %v851, %v849
    %v960 = vpack.c.bf16 %v854, %v852
    %v961 = vpack.c.bf16 %v855, %v853
    %v962 = vpack.c.bf16 %v858, %v856
    %v963 = vpack.c.bf16 %v859, %v857
    %v964 = vpack.c.bf16 %v862, %v860
    %v965 = vpack.c.bf16 %v863, %v861
    %v966 = vpack.c.bf16 %v866, %v864
    %v967 = vpack.c.bf16 %v867, %v865
    %v968 = vpack.c.bf16 %v870, %v868
    %v969 = vpack.c.bf16 %v871, %v869
    %v970 = vpack.c.bf16 %v874, %v872
    %v971 = vpack.c.bf16 %v875, %v873
    %v972 = vpack.c.bf16 %v878, %v876
    %v973 = vpack.c.bf16 %v879, %v877
    %v974 = vpack.c.bf16 %v882, %v880
    %v975 = vpack.c.bf16 %v883, %v881
    %v976 = vpack.c.bf16 %v886, %v884
    %v977 = vpack.c.bf16 %v887, %v885
    %v978 = vpack.c.bf16 %v890, %v888
    %v979 = vpack.c.bf16 %v891, %v889
    %v980 = vpack.c.bf16 %v894, %v892
    %v981 = vpack.c.bf16 %v895, %v893
    %v982 = vpack.c.bf16 %v898, %v896
    %v983 = vpack.c.bf16 %v899, %v897
    %v984 = vpack.c.bf16 %v902, %v900
    %v985 = vpack.c.bf16 %v903, %v901
    %v986 = vpack.c.bf16 %v906, %v904
    %v987 = vpack.c.bf16 %v907, %v905
    %v988 = vpack.c.bf16 %v910, %v908
    %v989 = vpack.c.bf16 %v911, %v909
    %v990 = vpack.c.bf16 %v914, %v912
    %v991 = vpack.c.bf16 %v915, %v913
    %v992 = vpack.c.bf16 %v918, %v916
    %v993 = vpack.c.bf16 %v919, %v917
    %v994 = vpack.c.bf16 %v922, %v920
    %v995 = vpack.c.bf16 %v923, %v921
    %v996 = vpack.c.bf16 %v926, %v924
    %v997 = vpack.c.bf16 %v927, %v925
    %v998 = vpack.c.bf16 %v930, %v928
    %v999 = vpack.c.bf16 %v931, %v929
    %v1000 = vpack.c.bf16 %v934, %v932
    %v1001 = vpack.c.bf16 %v935, %v933
    %v1002 = vpack.c.bf16 %v938, %v936
    %v1003 = vpack.c.bf16 %v939, %v937
    %v1004 = vld [vmem:[#allocation7] sm:$0xff]
    %v1005 = vld [vmem:[#allocation7 + $0x8] sm:$0xff]
    %v1006 = vld [vmem:[#allocation7 + $0x10] sm:$0xff]
    %v1007 = vld [vmem:[#allocation7 + $0x18] sm:$0xff]
    %v1008 = vld [vmem:[#allocation7 + $0x20] sm:$0xff]
    %v1009 = vld [vmem:[#allocation7 + $0x28] sm:$0xff]
    %v1010 = vld [vmem:[#allocation7 + $0x30] sm:$0xff]
    %v1011 = vld [vmem:[#allocation7 + $0x38] sm:$0xff]
    %v1012 = vld [vmem:[#allocation7 + $0x40] sm:$0xff]
    %v1013 = vld [vmem:[#allocation7 + $0x48] sm:$0xff]
    %v1014 = vld [vmem:[#allocation7 + $0x50] sm:$0xff]
    %v1015 = vld [vmem:[#allocation7 + $0x58] sm:$0xff]
    %v1016 = vld [vmem:[#allocation7 + $0x60] sm:$0xff]
    %v1017 = vld [vmem:[#allocation7 + $0x68] sm:$0xff]
    %v1018 = vld [vmem:[#allocation7 + $0x70] sm:$0xff]
    %v1019 = vld [vmem:[#allocation7 + $0x78] sm:$0xff]
    %v1020 = vld [vmem:[#allocation7 + $0x80] sm:$0xff]
    %v1021 = vld [vmem:[#allocation7 + $0x88] sm:$0xff]
    %v1022 = vld [vmem:[#allocation7 + $0x90] sm:$0xff]
    %v1023 = vld [vmem:[#allocation7 + $0x98] sm:$0xff]
    %v1024 = vld [vmem:[#allocation7 + $0xa0] sm:$0xff]
    %v1025 = vld [vmem:[#allocation7 + $0xa8] sm:$0xff]
    %v1026 = vld [vmem:[#allocation7 + $0xb0] sm:$0xff]
    %v1027 = vld [vmem:[#allocation7 + $0xb8] sm:$0xff]
    %v1028 = vld [vmem:[#allocation7 + $0xc0] sm:$0xff]
    %v1029 = vld [vmem:[#allocation7 + $0xc8] sm:$0xff]
    %v1030 = vld [vmem:[#allocation7 + $0xd0] sm:$0xff]
    %v1031 = vld [vmem:[#allocation7 + $0xd8] sm:$0xff]
    %v1032 = vld [vmem:[#allocation7 + $0xe0] sm:$0xff]
    %v1033 = vld [vmem:[#allocation7 + $0xe8] sm:$0xff]
    %v1034 = vld [vmem:[#allocation7 + $0xf0] sm:$0xff]
    %v1035 = vld [vmem:[#allocation7 + $0xf8] sm:$0xff]
    %v1036 = vld [vmem:[%s4] sm:$0x3]
    %v1038 = vperm.slane %v1036, 0
    %v1039 = vperm.slane %v1036, 1
    %v1074 = vunpack.c.l.b16 %v1004
    %v1075 = vunpack.c.h.b16 %v1004
    %v1076 = vunpack.c.l.b16 %v1005
    %v1077 = vunpack.c.h.b16 %v1005
    %v1078 = vunpack.c.l.b16 %v1006
    %v1079 = vunpack.c.h.b16 %v1006
    %v1080 = vunpack.c.l.b16 %v1007
    %v1081 = vunpack.c.h.b16 %v1007
    %v1082 = vunpack.c.l.b16 %v1008
    %v1083 = vunpack.c.h.b16 %v1008
    %v1084 = vunpack.c.l.b16 %v1009
    %v1085 = vunpack.c.h.b16 %v1009
    %v1086 = vunpack.c.l.b16 %v1010
    %v1087 = vunpack.c.h.b16 %v1010
    %v1088 = vunpack.c.l.b16 %v1011
    %v1089 = vunpack.c.h.b16 %v1011
    %v1090 = vunpack.c.l.b16 %v1012
    %v1091 = vunpack.c.h.b16 %v1012
    %v1092 = vunpack.c.l.b16 %v1013
    %v1093 = vunpack.c.h.b16 %v1013
    %v1094 = vunpack.c.l.b16 %v1014
    %v1095 = vunpack.c.h.b16 %v1014
    %v1096 = vunpack.c.l.b16 %v1015
    %v1097 = vunpack.c.h.b16 %v1015
    %v1098 = vunpack.c.l.b16 %v1016
    %v1099 = vunpack.c.h.b16 %v1016
    %v1100 = vunpack.c.l.b16 %v1017
    %v1101 = vunpack.c.h.b16 %v1017
    %v1102 = vunpack.c.l.b16 %v1018
    %v1103 = vunpack.c.h.b16 %v1018
    %v1104 = vunpack.c.l.b16 %v1019
    %v1105 = vunpack.c.h.b16 %v1019
    %v1106 = vunpack.c.l.b16 %v1020
    %v1107 = vunpack.c.h.b16 %v1020
    %v1108 = vunpack.c.l.b16 %v1021
    %v1109 = vunpack.c.h.b16 %v1021
    %v1110 = vunpack.c.l.b16 %v1022
    %v1111 = vunpack.c.h.b16 %v1022
    %v1112 = vunpack.c.l.b16 %v1023
    %v1113 = vunpack.c.h.b16 %v1023
    %v1114 = vunpack.c.l.b16 %v1024
    %v1115 = vunpack.c.h.b16 %v1024
    %v1116 = vunpack.c.l.b16 %v1025
    %v1117 = vunpack.c.h.b16 %v1025
    %v1118 = vunpack.c.l.b16 %v1026
    %v1119 = vunpack.c.h.b16 %v1026
    %v1120 = vunpack.c.l.b16 %v1027
    %v1121 = vunpack.c.h.b16 %v1027
    %v1122 = vunpack.c.l.b16 %v1028
    %v1123 = vunpack.c.h.b16 %v1028
    %v1124 = vunpack.c.l.b16 %v1029
    %v1125 = vunpack.c.h.b16 %v1029
    %v1126 = vunpack.c.l.b16 %v1030
    %v1127 = vunpack.c.h.b16 %v1030
    %v1128 = vunpack.c.l.b16 %v1031
    %v1129 = vunpack.c.h.b16 %v1031
    %v1130 = vunpack.c.l.b16 %v1032
    %v1131 = vunpack.c.h.b16 %v1032
    %v1132 = vunpack.c.l.b16 %v1033
    %v1133 = vunpack.c.h.b16 %v1033
    %v1134 = vunpack.c.l.b16 %v1034
    %v1135 = vunpack.c.h.b16 %v1034
    %v1136 = vunpack.c.l.b16 %v1035
    %v1137 = vunpack.c.h.b16 %v1035
    %v1138 = vpack.c.b16 %v1076, %v1074
    %v1139 = vpack.c.b16 %v1077, %v1075
    %v1140 = vpack.c.b16 %v1080, %v1078
    %v1141 = vpack.c.b16 %v1081, %v1079
    %v1142 = vpack.c.b16 %v1084, %v1082
    %v1143 = vpack.c.b16 %v1085, %v1083
    %v1144 = vpack.c.b16 %v1088, %v1086
    %v1145 = vpack.c.b16 %v1089, %v1087
    %v1146 = vpack.c.b16 %v1092, %v1090
    %v1147 = vpack.c.b16 %v1093, %v1091
    %v1148 = vpack.c.b16 %v1096, %v1094
    %v1149 = vpack.c.b16 %v1097, %v1095
    %v1150 = vpack.c.b16 %v1100, %v1098
    %v1151 = vpack.c.b16 %v1101, %v1099
    %v1152 = vpack.c.b16 %v1104, %v1102
    %v1153 = vpack.c.b16 %v1105, %v1103
    %v1154 = vpack.c.b16 %v1108, %v1106
    %v1155 = vpack.c.b16 %v1109, %v1107
    %v1156 = vpack.c.b16 %v1112, %v1110
    %v1157 = vpack.c.b16 %v1113, %v1111
    %v1158 = vpack.c.b16 %v1116, %v1114
    %v1159 = vpack.c.b16 %v1117, %v1115
    %v1160 = vpack.c.b16 %v1120, %v1118
    %v1161 = vpack.c.b16 %v1121, %v1119
    %v1162 = vpack.c.b16 %v1124, %v1122
    %v1163 = vpack.c.b16 %v1125, %v1123
    %v1164 = vpack.c.b16 %v1128, %v1126
    %v1165 = vpack.c.b16 %v1129, %v1127
    %v1166 = vpack.c.b16 %v1132, %v1130
    %v1167 = vpack.c.b16 %v1133, %v1131
    %v1168 = vpack.c.b16 %v1136, %v1134
    %v1169 = vpack.c.b16 %v1137, %v1135
    %1202 = vmatpush.bf16.msra.mxu0 %v1152
    %1203 = vmatpush.bf16.msra.mxu0 %v1150
    %1204 = vmatpush.bf16.msra.mxu0 %v1148
    %1205 = vmatpush.bf16.msra.mxu0 %v1146
    %1206 = vmatpush.bf16.msra.mxu0 %v1144
    %1207 = vmatpush.bf16.msra.mxu0 %v1142
    %1208 = vmatpush.bf16.msra.mxu0 %v1140
    %1209 = vmatpush.bf16.msra.mxu0 %v1138
    %1210 = vmatmul.bf16.gmra.mxu0 %v940
    %v1211 = vpop.f32.mrf.mxu0
    %v1212 = vadd.f32 %v1038, %v1211
    %v1213 = vpop.f32.mrf.mxu0
    %v1214 = vadd.f32 %v1038, %v1213
    %1215 = vmatmul.bf16.gmra.mxu0 %v942
    %v1216 = vpop.f32.mrf.mxu0
    %v1217 = vadd.f32 %v1038, %v1216
    %v1218 = vpop.f32.mrf.mxu0
    %v1219 = vadd.f32 %v1038, %v1218
    %1220 = vmatmul.bf16.gmra.mxu0 %v944
    %v1221 = vpop.f32.mrf.mxu0
    %v1222 = vadd.f32 %v1038, %v1221
    %v1223 = vpop.f32.mrf.mxu0
    %v1224 = vadd.f32 %v1038, %v1223
    %1225 = vmatmul.bf16.gmra.mxu0 %v946
    %v1226 = vpop.f32.mrf.mxu0
    %v1227 = vadd.f32 %v1038, %v1226
    %v1228 = vpop.f32.mrf.mxu0
    %v1229 = vadd.f32 %v1038, %v1228
    %1230 = vmatmul.bf16.gmra.mxu0 %v948
    %v1231 = vpop.f32.mrf.mxu0
    %v1232 = vadd.f32 %v1038, %v1231
    %v1233 = vpop.f32.mrf.mxu0
    %v1234 = vadd.f32 %v1038, %v1233
    %1235 = vmatmul.bf16.gmra.mxu0 %v950
    %v1236 = vpop.f32.mrf.mxu0
    %v1237 = vadd.f32 %v1038, %v1236
    %v1238 = vpop.f32.mrf.mxu0
    %v1239 = vadd.f32 %v1038, %v1238
    %1240 = vmatmul.bf16.gmra.mxu0 %v952
    %v1241 = vpop.f32.mrf.mxu0
    %v1242 = vadd.f32 %v1038, %v1241
    %v1243 = vpop.f32.mrf.mxu0
    %v1244 = vadd.f32 %v1038, %v1243
    %1245 = vmatmul.bf16.gmra.mxu0 %v954
    %v1246 = vpop.f32.mrf.mxu0
    %v1247 = vadd.f32 %v1038, %v1246
    %v1248 = vpop.f32.mrf.mxu0
    %v1249 = vadd.f32 %v1038, %v1248
    %1250 = vmatmul.bf16.gmra.mxu0 %v956
    %v1251 = vpop.f32.mrf.mxu0
    %v1252 = vadd.f32 %v1038, %v1251
    %v1253 = vpop.f32.mrf.mxu0
    %v1254 = vadd.f32 %v1038, %v1253
    %1255 = vmatmul.bf16.gmra.mxu0 %v958
    %v1256 = vpop.f32.mrf.mxu0
    %v1257 = vadd.f32 %v1038, %v1256
    %v1258 = vpop.f32.mrf.mxu0
    %v1259 = vadd.f32 %v1038, %v1258
    %1260 = vmatmul.bf16.gmra.mxu0 %v960
    %v1261 = vpop.f32.mrf.mxu0
    %v1262 = vadd.f32 %v1038, %v1261
    %v1263 = vpop.f32.mrf.mxu0
    %v1264 = vadd.f32 %v1038, %v1263
    %1265 = vmatmul.bf16.gmra.mxu0 %v962
    %v1266 = vpop.f32.mrf.mxu0
    %v1267 = vadd.f32 %v1038, %v1266
    %v1268 = vpop.f32.mrf.mxu0
    %v1269 = vadd.f32 %v1038, %v1268
    %1270 = vmatmul.bf16.gmra.mxu0 %v964
    %v1271 = vpop.f32.mrf.mxu0
    %v1272 = vadd.f32 %v1038, %v1271
    %v1273 = vpop.f32.mrf.mxu0
    %v1274 = vadd.f32 %v1038, %v1273
    %1275 = vmatmul.bf16.gmra.mxu0 %v966
    %v1276 = vpop.f32.mrf.mxu0
    %v1277 = vadd.f32 %v1038, %v1276
    %v1278 = vpop.f32.mrf.mxu0
    %v1279 = vadd.f32 %v1038, %v1278
    %1280 = vmatmul.bf16.gmra.mxu0 %v968
    %v1281 = vpop.f32.mrf.mxu0
    %v1282 = vadd.f32 %v1038, %v1281
    %v1283 = vpop.f32.mrf.mxu0
    %v1284 = vadd.f32 %v1038, %v1283
    %1285 = vmatmul.bf16.gmra.mxu0 %v970
    %v1286 = vpop.f32.mrf.mxu0
    %v1287 = vadd.f32 %v1038, %v1286
    %v1288 = vpop.f32.mrf.mxu0
    %v1289 = vadd.f32 %v1038, %v1288
    %1290 = vmatmul.bf16.gmra.mxu0 %v972
    %v1291 = vpop.f32.mrf.mxu0
    %v1292 = vadd.f32 %v1038, %v1291
    %v1293 = vpop.f32.mrf.mxu0
    %v1294 = vadd.f32 %v1038, %v1293
    %1295 = vmatmul.bf16.gmra.mxu0 %v974
    %v1296 = vpop.f32.mrf.mxu0
    %v1297 = vadd.f32 %v1038, %v1296
    %v1298 = vpop.f32.mrf.mxu0
    %v1299 = vadd.f32 %v1038, %v1298
    %1300 = vmatmul.bf16.gmra.mxu0 %v976
    %v1301 = vpop.f32.mrf.mxu0
    %v1302 = vadd.f32 %v1038, %v1301
    %v1303 = vpop.f32.mrf.mxu0
    %v1304 = vadd.f32 %v1038, %v1303
    %1305 = vmatmul.bf16.gmra.mxu0 %v978
    %v1306 = vpop.f32.mrf.mxu0
    %v1307 = vadd.f32 %v1038, %v1306
    %v1308 = vpop.f32.mrf.mxu0
    %v1309 = vadd.f32 %v1038, %v1308
    %1310 = vmatmul.bf16.gmra.mxu0 %v980
    %v1311 = vpop.f32.mrf.mxu0
    %v1312 = vadd.f32 %v1038, %v1311
    %v1313 = vpop.f32.mrf.mxu0
    %v1314 = vadd.f32 %v1038, %v1313
    %1315 = vmatmul.bf16.gmra.mxu0 %v982
    %v1316 = vpop.f32.mrf.mxu0
    %v1317 = vadd.f32 %v1038, %v1316
    %v1318 = vpop.f32.mrf.mxu0
    %v1319 = vadd.f32 %v1038, %v1318
    %1320 = vmatmul.bf16.gmra.mxu0 %v984
    %v1321 = vpop.f32.mrf.mxu0
    %v1322 = vadd.f32 %v1038, %v1321
    %v1323 = vpop.f32.mrf.mxu0
    %v1324 = vadd.f32 %v1038, %v1323
    %1325 = vmatmul.bf16.gmra.mxu0 %v986
    %v1326 = vpop.f32.mrf.mxu0
    %v1327 = vadd.f32 %v1038, %v1326
    %v1328 = vpop.f32.mrf.mxu0
    %v1329 = vadd.f32 %v1038, %v1328
    %1330 = vmatmul.bf16.gmra.mxu0 %v988
    %v1331 = vpop.f32.mrf.mxu0
    %v1332 = vadd.f32 %v1038, %v1331
    %v1333 = vpop.f32.mrf.mxu0
    %v1334 = vadd.f32 %v1038, %v1333
    %1335 = vmatmul.bf16.gmra.mxu0 %v990
    %v1336 = vpop.f32.mrf.mxu0
    %v1337 = vadd.f32 %v1038, %v1336
    %v1338 = vpop.f32.mrf.mxu0
    %v1339 = vadd.f32 %v1038, %v1338
    %1340 = vmatmul.bf16.gmra.mxu0 %v992
    %v1341 = vpop.f32.mrf.mxu0
    %v1342 = vadd.f32 %v1038, %v1341
    %v1343 = vpop.f32.mrf.mxu0
    %v1344 = vadd.f32 %v1038, %v1343
    %1345 = vmatmul.bf16.gmra.mxu0 %v994
    %v1346 = vpop.f32.mrf.mxu0
    %v1347 = vadd.f32 %v1038, %v1346
    %v1348 = vpop.f32.mrf.mxu0
    %v1349 = vadd.f32 %v1038, %v1348
    %1350 = vmatmul.bf16.gmra.mxu0 %v996
    %v1351 = vpop.f32.mrf.mxu0
    %v1352 = vadd.f32 %v1038, %v1351
    %v1353 = vpop.f32.mrf.mxu0
    %v1354 = vadd.f32 %v1038, %v1353
    %1355 = vmatmul.bf16.gmra.mxu0 %v998
    %v1356 = vpop.f32.mrf.mxu0
    %v1357 = vadd.f32 %v1038, %v1356
    %v1358 = vpop.f32.mrf.mxu0
    %v1359 = vadd.f32 %v1038, %v1358
    %1360 = vmatmul.bf16.gmra.mxu0 %v1000
    %v1361 = vpop.f32.mrf.mxu0
    %v1362 = vadd.f32 %v1038, %v1361
    %v1363 = vpop.f32.mrf.mxu0
    %v1364 = vadd.f32 %v1038, %v1363
    %1365 = vmatmul.bf16.gmra.mxu0 %v1002
    %v1366 = vpop.f32.mrf.mxu0
    %v1367 = vadd.f32 %v1038, %v1366
    %v1368 = vpop.f32.mrf.mxu0
    %v1369 = vadd.f32 %v1038, %v1368
    %1370 = vdwg.mxu0
    %1371 = vmatpush.bf16.msra.mxu0 %v1168
    %1372 = vmatpush.bf16.msra.mxu0 %v1166
    %1373 = vmatpush.bf16.msra.mxu0 %v1164
    %1374 = vmatpush.bf16.msra.mxu0 %v1162
    %1375 = vmatpush.bf16.msra.mxu0 %v1160
    %1376 = vmatpush.bf16.msra.mxu0 %v1158
    %1377 = vmatpush.bf16.msra.mxu0 %v1156
    %1378 = vmatpush.bf16.msra.mxu0 %v1154
    %1379 = vmatmul.bf16.gmra.mxu0 %v941
    %v1380 = vpop.f32.mrf.mxu0
    %v1381 = vadd.f32 %v1212, %v1380
    %v1382 = vpop.f32.mrf.mxu0
    %v1383 = vadd.f32 %v1214, %v1382
    %1384 = vmatmul.bf16.gmra.mxu0 %v943
    %v1385 = vpop.f32.mrf.mxu0
    %v1386 = vadd.f32 %v1217, %v1385
    %v1387 = vpop.f32.mrf.mxu0
    %v1388 = vadd.f32 %v1219, %v1387
    %1389 = vmatmul.bf16.gmra.mxu0 %v945
    %v1390 = vpop.f32.mrf.mxu0
    %v1391 = vadd.f32 %v1222, %v1390
    %v1392 = vpop.f32.mrf.mxu0
    %v1393 = vadd.f32 %v1224, %v1392
    %1394 = vmatmul.bf16.gmra.mxu0 %v947
    %v1395 = vpop.f32.mrf.mxu0
    %v1396 = vadd.f32 %v1227, %v1395
    %v1397 = vpop.f32.mrf.mxu0
    %v1398 = vadd.f32 %v1229, %v1397
    %1399 = vmatmul.bf16.gmra.mxu0 %v949
    %v1400 = vpop.f32.mrf.mxu0
    %v1401 = vadd.f32 %v1232, %v1400
    %v1402 = vpop.f32.mrf.mxu0
    %v1403 = vadd.f32 %v1234, %v1402
    %1404 = vmatmul.bf16.gmra.mxu0 %v951
    %v1405 = vpop.f32.mrf.mxu0
    %v1406 = vadd.f32 %v1237, %v1405
    %v1407 = vpop.f32.mrf.mxu0
    %v1408 = vadd.f32 %v1239, %v1407
    %1409 = vmatmul.bf16.gmra.mxu0 %v953
    %v1410 = vpop.f32.mrf.mxu0
    %v1411 = vadd.f32 %v1242, %v1410
    %v1412 = vpop.f32.mrf.mxu0
    %v1413 = vadd.f32 %v1244, %v1412
    %1414 = vmatmul.bf16.gmra.mxu0 %v955
    %v1415 = vpop.f32.mrf.mxu0
    %v1416 = vadd.f32 %v1247, %v1415
    %v1417 = vpop.f32.mrf.mxu0
    %v1418 = vadd.f32 %v1249, %v1417
    %1419 = vmatmul.bf16.gmra.mxu0 %v957
    %v1420 = vpop.f32.mrf.mxu0
    %v1421 = vadd.f32 %v1252, %v1420
    %v1422 = vpop.f32.mrf.mxu0
    %v1423 = vadd.f32 %v1254, %v1422
    %1424 = vmatmul.bf16.gmra.mxu0 %v959
    %v1425 = vpop.f32.mrf.mxu0
    %v1426 = vadd.f32 %v1257, %v1425
    %v1427 = vpop.f32.mrf.mxu0
    %v1428 = vadd.f32 %v1259, %v1427
    %1429 = vmatmul.bf16.gmra.mxu0 %v961
    %v1430 = vpop.f32.mrf.mxu0
    %v1431 = vadd.f32 %v1262, %v1430
    %v1432 = vpop.f32.mrf.mxu0
    %v1433 = vadd.f32 %v1264, %v1432
    %1434 = vmatmul.bf16.gmra.mxu0 %v963
    %v1435 = vpop.f32.mrf.mxu0
    %v1436 = vadd.f32 %v1267, %v1435
    %v1437 = vpop.f32.mrf.mxu0
    %v1438 = vadd.f32 %v1269, %v1437
    %1439 = vmatmul.bf16.gmra.mxu0 %v965
    %v1440 = vpop.f32.mrf.mxu0
    %v1441 = vadd.f32 %v1272, %v1440
    %v1442 = vpop.f32.mrf.mxu0
    %v1443 = vadd.f32 %v1274, %v1442
    %1444 = vmatmul.bf16.gmra.mxu0 %v967
    %v1445 = vpop.f32.mrf.mxu0
    %v1446 = vadd.f32 %v1277, %v1445
    %v1447 = vpop.f32.mrf.mxu0
    %v1448 = vadd.f32 %v1279, %v1447
    %1449 = vmatmul.bf16.gmra.mxu0 %v969
    %v1450 = vpop.f32.mrf.mxu0
    %v1451 = vadd.f32 %v1282, %v1450
    %v1452 = vpop.f32.mrf.mxu0
    %v1453 = vadd.f32 %v1284, %v1452
    %1454 = vmatmul.bf16.gmra.mxu0 %v971
    %v1455 = vpop.f32.mrf.mxu0
    %v1456 = vadd.f32 %v1287, %v1455
    %v1457 = vpop.f32.mrf.mxu0
    %v1458 = vadd.f32 %v1289, %v1457
    %1459 = vmatmul.bf16.gmra.mxu0 %v973
    %v1460 = vpop.f32.mrf.mxu0
    %v1461 = vadd.f32 %v1292, %v1460
    %v1462 = vpop.f32.mrf.mxu0
    %v1463 = vadd.f32 %v1294, %v1462
    %1464 = vmatmul.bf16.gmra.mxu0 %v975
    %v1465 = vpop.f32.mrf.mxu0
    %v1466 = vadd.f32 %v1297, %v1465
    %v1467 = vpop.f32.mrf.mxu0
    %v1468 = vadd.f32 %v1299, %v1467
    %1469 = vmatmul.bf16.gmra.mxu0 %v977
    %v1470 = vpop.f32.mrf.mxu0
    %v1471 = vadd.f32 %v1302, %v1470
    %v1472 = vpop.f32.mrf.mxu0
    %v1473 = vadd.f32 %v1304, %v1472
    %1474 = vmatmul.bf16.gmra.mxu0 %v979
    %v1475 = vpop.f32.mrf.mxu0
    %v1476 = vadd.f32 %v1307, %v1475
    %v1477 = vpop.f32.mrf.mxu0
    %v1478 = vadd.f32 %v1309, %v1477
    %1479 = vmatmul.bf16.gmra.mxu0 %v981
    %v1480 = vpop.f32.mrf.mxu0
    %v1481 = vadd.f32 %v1312, %v1480
    %v1482 = vpop.f32.mrf.mxu0
    %v1483 = vadd.f32 %v1314, %v1482
    %1484 = vmatmul.bf16.gmra.mxu0 %v983
    %v1485 = vpop.f32.mrf.mxu0
    %v1486 = vadd.f32 %v1317, %v1485
    %v1487 = vpop.f32.mrf.mxu0
    %v1488 = vadd.f32 %v1319, %v1487
    %1489 = vmatmul.bf16.gmra.mxu0 %v985
    %v1490 = vpop.f32.mrf.mxu0
    %v1491 = vadd.f32 %v1322, %v1490
    %v1492 = vpop.f32.mrf.mxu0
    %v1493 = vadd.f32 %v1324, %v1492
    %1494 = vmatmul.bf16.gmra.mxu0 %v987
    %v1495 = vpop.f32.mrf.mxu0
    %v1496 = vadd.f32 %v1327, %v1495
    %v1497 = vpop.f32.mrf.mxu0
    %v1498 = vadd.f32 %v1329, %v1497
    %1499 = vmatmul.bf16.gmra.mxu0 %v989
    %v1500 = vpop.f32.mrf.mxu0
    %v1501 = vadd.f32 %v1332, %v1500
    %v1502 = vpop.f32.mrf.mxu0
    %v1503 = vadd.f32 %v1334, %v1502
    %1504 = vmatmul.bf16.gmra.mxu0 %v991
    %v1505 = vpop.f32.mrf.mxu0
    %v1506 = vadd.f32 %v1337, %v1505
    %v1507 = vpop.f32.mrf.mxu0
    %v1508 = vadd.f32 %v1339, %v1507
    %1509 = vmatmul.bf16.gmra.mxu0 %v993
    %v1510 = vpop.f32.mrf.mxu0
    %v1511 = vadd.f32 %v1342, %v1510
    %v1512 = vpop.f32.mrf.mxu0
    %v1513 = vadd.f32 %v1344, %v1512
    %1514 = vmatmul.bf16.gmra.mxu0 %v995
    %v1515 = vpop.f32.mrf.mxu0
    %v1516 = vadd.f32 %v1347, %v1515
    %v1517 = vpop.f32.mrf.mxu0
    %v1518 = vadd.f32 %v1349, %v1517
    %1519 = vmatmul.bf16.gmra.mxu0 %v997
    %v1520 = vpop.f32.mrf.mxu0
    %v1521 = vadd.f32 %v1352, %v1520
    %v1522 = vpop.f32.mrf.mxu0
    %v1523 = vadd.f32 %v1354, %v1522
    %1524 = vmatmul.bf16.gmra.mxu0 %v999
    %v1525 = vpop.f32.mrf.mxu0
    %v1526 = vadd.f32 %v1357, %v1525
    %v1527 = vpop.f32.mrf.mxu0
    %v1528 = vadd.f32 %v1359, %v1527
    %1529 = vmatmul.bf16.gmra.mxu0 %v1001
    %v1530 = vpop.f32.mrf.mxu0
    %v1531 = vadd.f32 %v1362, %v1530
    %v1532 = vpop.f32.mrf.mxu0
    %v1533 = vadd.f32 %v1364, %v1532
    %1534 = vmatmul.bf16.gmra.mxu0 %v1003
    %v1535 = vpop.f32.mrf.mxu0
    %v1536 = vadd.f32 %v1367, %v1535
    %v1537 = vpop.f32.mrf.mxu0
    %v1538 = vadd.f32 %v1369, %v1537
    %1539 = vdwg.mxu0
    %1540 = vmatpush.bf16.msra.mxu0 %v1153
    %1541 = vmatpush.bf16.msra.mxu0 %v1151
    %1542 = vmatpush.bf16.msra.mxu0 %v1149
    %1543 = vmatpush.bf16.msra.mxu0 %v1147
    %1544 = vmatpush.bf16.msra.mxu0 %v1145
    %1545 = vmatpush.bf16.msra.mxu0 %v1143
    %1546 = vmatpush.bf16.msra.mxu0 %v1141
    %1547 = vmatpush.bf16.msra.mxu0 %v1139
    %1548 = vmatmul.bf16.gmra.mxu0 %v940
    %v1549 = vpop.f32.mrf.mxu0
    %v1550 = vadd.f32 %v1039, %v1549
    %v1551 = vpop.f32.mrf.mxu0
    %v1552 = vadd.f32 %v1039, %v1551
    %1553 = vmatmul.bf16.gmra.mxu0 %v942
    %v1554 = vpop.f32.mrf.mxu0
    %v1555 = vadd.f32 %v1039, %v1554
    %v1556 = vpop.f32.mrf.mxu0
    %v1557 = vadd.f32 %v1039, %v1556
    %1558 = vmatmul.bf16.gmra.mxu0 %v944
    %v1559 = vpop.f32.mrf.mxu0
    %v1560 = vadd.f32 %v1039, %v1559
    %v1561 = vpop.f32.mrf.mxu0
    %v1562 = vadd.f32 %v1039, %v1561
    %1563 = vmatmul.bf16.gmra.mxu0 %v946
    %v1564 = vpop.f32.mrf.mxu0
    %v1565 = vadd.f32 %v1039, %v1564
    %v1566 = vpop.f32.mrf.mxu0
    %v1567 = vadd.f32 %v1039, %v1566
    %1568 = vmatmul.bf16.gmra.mxu0 %v948
    %v1569 = vpop.f32.mrf.mxu0
    %v1570 = vadd.f32 %v1039, %v1569
    %v1571 = vpop.f32.mrf.mxu0
    %v1572 = vadd.f32 %v1039, %v1571
    %1573 = vmatmul.bf16.gmra.mxu0 %v950
    %v1574 = vpop.f32.mrf.mxu0
    %v1575 = vadd.f32 %v1039, %v1574
    %v1576 = vpop.f32.mrf.mxu0
    %v1577 = vadd.f32 %v1039, %v1576
    %1578 = vmatmul.bf16.gmra.mxu0 %v952
    %v1579 = vpop.f32.mrf.mxu0
    %v1580 = vadd.f32 %v1039, %v1579
    %v1581 = vpop.f32.mrf.mxu0
    %v1582 = vadd.f32 %v1039, %v1581
    %1583 = vmatmul.bf16.gmra.mxu0 %v954
    %v1584 = vpop.f32.mrf.mxu0
    %v1585 = vadd.f32 %v1039, %v1584
    %v1586 = vpop.f32.mrf.mxu0
    %v1587 = vadd.f32 %v1039, %v1586
    %1588 = vmatmul.bf16.gmra.mxu0 %v956
    %v1589 = vpop.f32.mrf.mxu0
    %v1590 = vadd.f32 %v1039, %v1589
    %v1591 = vpop.f32.mrf.mxu0
    %v1592 = vadd.f32 %v1039, %v1591
    %1593 = vmatmul.bf16.gmra.mxu0 %v958
    %v1594 = vpop.f32.mrf.mxu0
    %v1595 = vadd.f32 %v1039, %v1594
    %v1596 = vpop.f32.mrf.mxu0
    %v1597 = vadd.f32 %v1039, %v1596
    %1598 = vmatmul.bf16.gmra.mxu0 %v960
    %v1599 = vpop.f32.mrf.mxu0
    %v1600 = vadd.f32 %v1039, %v1599
    %v1601 = vpop.f32.mrf.mxu0
    %v1602 = vadd.f32 %v1039, %v1601
    %1603 = vmatmul.bf16.gmra.mxu0 %v962
    %v1604 = vpop.f32.mrf.mxu0
    %v1605 = vadd.f32 %v1039, %v1604
    %v1606 = vpop.f32.mrf.mxu0
    %v1607 = vadd.f32 %v1039, %v1606
    %1608 = vmatmul.bf16.gmra.mxu0 %v964
    %v1609 = vpop.f32.mrf.mxu0
    %v1610 = vadd.f32 %v1039, %v1609
    %v1611 = vpop.f32.mrf.mxu0
    %v1612 = vadd.f32 %v1039, %v1611
    %1613 = vmatmul.bf16.gmra.mxu0 %v966
    %v1614 = vpop.f32.mrf.mxu0
    %v1615 = vadd.f32 %v1039, %v1614
    %v1616 = vpop.f32.mrf.mxu0
    %v1617 = vadd.f32 %v1039, %v1616
    %1618 = vmatmul.bf16.gmra.mxu0 %v968
    %v1619 = vpop.f32.mrf.mxu0
    %v1620 = vadd.f32 %v1039, %v1619
    %v1621 = vpop.f32.mrf.mxu0
    %v1622 = vadd.f32 %v1039, %v1621
    %1623 = vmatmul.bf16.gmra.mxu0 %v970
    %v1624 = vpop.f32.mrf.mxu0
    %v1625 = vadd.f32 %v1039, %v1624
    %v1626 = vpop.f32.mrf.mxu0
    %v1627 = vadd.f32 %v1039, %v1626
    %1628 = vmatmul.bf16.gmra.mxu0 %v972
    %v1629 = vpop.f32.mrf.mxu0
    %v1630 = vadd.f32 %v1039, %v1629
    %v1631 = vpop.f32.mrf.mxu0
    %v1632 = vadd.f32 %v1039, %v1631
    %1633 = vmatmul.bf16.gmra.mxu0 %v974
    %v1634 = vpop.f32.mrf.mxu0
    %v1635 = vadd.f32 %v1039, %v1634
    %v1636 = vpop.f32.mrf.mxu0
    %v1637 = vadd.f32 %v1039, %v1636
    %1638 = vmatmul.bf16.gmra.mxu0 %v976
    %v1639 = vpop.f32.mrf.mxu0
    %v1640 = vadd.f32 %v1039, %v1639
    %v1641 = vpop.f32.mrf.mxu0
    %v1642 = vadd.f32 %v1039, %v1641
    %1643 = vmatmul.bf16.gmra.mxu0 %v978
    %v1644 = vpop.f32.mrf.mxu0
    %v1645 = vadd.f32 %v1039, %v1644
    %v1646 = vpop.f32.mrf.mxu0
    %v1647 = vadd.f32 %v1039, %v1646
    %1648 = vmatmul.bf16.gmra.mxu0 %v980
    %v1649 = vpop.f32.mrf.mxu0
    %v1650 = vadd.f32 %v1039, %v1649
    %v1651 = vpop.f32.mrf.mxu0
    %v1652 = vadd.f32 %v1039, %v1651
    %1653 = vmatmul.bf16.gmra.mxu0 %v982
    %v1654 = vpop.f32.mrf.mxu0
    %v1655 = vadd.f32 %v1039, %v1654
    %v1656 = vpop.f32.mrf.mxu0
    %v1657 = vadd.f32 %v1039, %v1656
    %1658 = vmatmul.bf16.gmra.mxu0 %v984
    %v1659 = vpop.f32.mrf.mxu0
    %v1660 = vadd.f32 %v1039, %v1659
    %v1661 = vpop.f32.mrf.mxu0
    %v1662 = vadd.f32 %v1039, %v1661
    %1663 = vmatmul.bf16.gmra.mxu0 %v986
    %v1664 = vpop.f32.mrf.mxu0
    %v1665 = vadd.f32 %v1039, %v1664
    %v1666 = vpop.f32.mrf.mxu0
    %v1667 = vadd.f32 %v1039, %v1666
    %1668 = vmatmul.bf16.gmra.mxu0 %v988
    %v1669 = vpop.f32.mrf.mxu0
    %v1670 = vadd.f32 %v1039, %v1669
    %v1671 = vpop.f32.mrf.mxu0
    %v1672 = vadd.f32 %v1039, %v1671
    %1673 = vmatmul.bf16.gmra.mxu0 %v990
    %v1674 = vpop.f32.mrf.mxu0
    %v1675 = vadd.f32 %v1039, %v1674
    %v1676 = vpop.f32.mrf.mxu0
    %v1677 = vadd.f32 %v1039, %v1676
    %1678 = vmatmul.bf16.gmra.mxu0 %v992
    %v1679 = vpop.f32.mrf.mxu0
    %v1680 = vadd.f32 %v1039, %v1679
    %v1681 = vpop.f32.mrf.mxu0
    %v1682 = vadd.f32 %v1039, %v1681
    %1683 = vmatmul.bf16.gmra.mxu0 %v994
    %v1684 = vpop.f32.mrf.mxu0
    %v1685 = vadd.f32 %v1039, %v1684
    %v1686 = vpop.f32.mrf.mxu0
    %v1687 = vadd.f32 %v1039, %v1686
    %1688 = vmatmul.bf16.gmra.mxu0 %v996
    %v1689 = vpop.f32.mrf.mxu0
    %v1690 = vadd.f32 %v1039, %v1689
    %v1691 = vpop.f32.mrf.mxu0
    %v1692 = vadd.f32 %v1039, %v1691
    %1693 = vmatmul.bf16.gmra.mxu0 %v998
    %v1694 = vpop.f32.mrf.mxu0
    %v1695 = vadd.f32 %v1039, %v1694
    %v1696 = vpop.f32.mrf.mxu0
    %v1697 = vadd.f32 %v1039, %v1696
    %1698 = vmatmul.bf16.gmra.mxu0 %v1000
    %v1699 = vpop.f32.mrf.mxu0
    %v1700 = vadd.f32 %v1039, %v1699
    %v1701 = vpop.f32.mrf.mxu0
    %v1702 = vadd.f32 %v1039, %v1701
    %1703 = vmatmul.bf16.gmra.mxu0 %v1002
    %v1704 = vpop.f32.mrf.mxu0
    %v1705 = vadd.f32 %v1039, %v1704
    %v1706 = vpop.f32.mrf.mxu0
    %v1707 = vadd.f32 %v1039, %v1706
    %1708 = vdwg.mxu0
    %1709 = vmatpush.bf16.msra.mxu0 %v1169
    %1710 = vmatpush.bf16.msra.mxu0 %v1167
    %1711 = vmatpush.bf16.msra.mxu0 %v1165
    %1712 = vmatpush.bf16.msra.mxu0 %v1163
    %1713 = vmatpush.bf16.msra.mxu0 %v1161
    %1714 = vmatpush.bf16.msra.mxu0 %v1159
    %1715 = vmatpush.bf16.msra.mxu0 %v1157
    %1716 = vmatpush.bf16.msra.mxu0 %v1155
    %1717 = vmatmul.bf16.gmra.mxu0 %v941
    %v1718 = vpop.f32.mrf.mxu0
    %v1719 = vadd.f32 %v1550, %v1718
    %v1720 = vpop.f32.mrf.mxu0
    %v1721 = vadd.f32 %v1552, %v1720
    %1722 = vmatmul.bf16.gmra.mxu0 %v943
    %v1723 = vpop.f32.mrf.mxu0
    %v1724 = vadd.f32 %v1555, %v1723
    %v1725 = vpop.f32.mrf.mxu0
    %v1726 = vadd.f32 %v1557, %v1725
    %1727 = vmatmul.bf16.gmra.mxu0 %v945
    %v1728 = vpop.f32.mrf.mxu0
    %v1729 = vadd.f32 %v1560, %v1728
    %v1730 = vpop.f32.mrf.mxu0
    %v1731 = vadd.f32 %v1562, %v1730
    %1732 = vmatmul.bf16.gmra.mxu0 %v947
    %v1733 = vpop.f32.mrf.mxu0
    %v1734 = vadd.f32 %v1565, %v1733
    %v1735 = vpop.f32.mrf.mxu0
    %v1736 = vadd.f32 %v1567, %v1735
    %1737 = vmatmul.bf16.gmra.mxu0 %v949
    %v1738 = vpop.f32.mrf.mxu0
    %v1739 = vadd.f32 %v1570, %v1738
    %v1740 = vpop.f32.mrf.mxu0
    %v1741 = vadd.f32 %v1572, %v1740
    %1742 = vmatmul.bf16.gmra.mxu0 %v951
    %v1743 = vpop.f32.mrf.mxu0
    %v1744 = vadd.f32 %v1575, %v1743
    %v1745 = vpop.f32.mrf.mxu0
    %v1746 = vadd.f32 %v1577, %v1745
    %1747 = vmatmul.bf16.gmra.mxu0 %v953
    %v1748 = vpop.f32.mrf.mxu0
    %v1749 = vadd.f32 %v1580, %v1748
    %v1750 = vpop.f32.mrf.mxu0
    %v1751 = vadd.f32 %v1582, %v1750
    %1752 = vmatmul.bf16.gmra.mxu0 %v955
    %v1753 = vpop.f32.mrf.mxu0
    %v1754 = vadd.f32 %v1585, %v1753
    %v1755 = vpop.f32.mrf.mxu0
    %v1756 = vadd.f32 %v1587, %v1755
    %1757 = vmatmul.bf16.gmra.mxu0 %v957
    %v1758 = vpop.f32.mrf.mxu0
    %v1759 = vadd.f32 %v1590, %v1758
    %v1760 = vpop.f32.mrf.mxu0
    %v1761 = vadd.f32 %v1592, %v1760
    %1762 = vmatmul.bf16.gmra.mxu0 %v959
    %v1763 = vpop.f32.mrf.mxu0
    %v1764 = vadd.f32 %v1595, %v1763
    %v1765 = vpop.f32.mrf.mxu0
    %v1766 = vadd.f32 %v1597, %v1765
    %1767 = vmatmul.bf16.gmra.mxu0 %v961
    %v1768 = vpop.f32.mrf.mxu0
    %v1769 = vadd.f32 %v1600, %v1768
    %v1770 = vpop.f32.mrf.mxu0
    %v1771 = vadd.f32 %v1602, %v1770
    %1772 = vmatmul.bf16.gmra.mxu0 %v963
    %v1773 = vpop.f32.mrf.mxu0
    %v1774 = vadd.f32 %v1605, %v1773
    %v1775 = vpop.f32.mrf.mxu0
    %v1776 = vadd.f32 %v1607, %v1775
    %1777 = vmatmul.bf16.gmra.mxu0 %v965
    %v1778 = vpop.f32.mrf.mxu0
    %v1779 = vadd.f32 %v1610, %v1778
    %v1780 = vpop.f32.mrf.mxu0
    %v1781 = vadd.f32 %v1612, %v1780
    %1782 = vmatmul.bf16.gmra.mxu0 %v967
    %v1783 = vpop.f32.mrf.mxu0
    %v1784 = vadd.f32 %v1615, %v1783
    %v1785 = vpop.f32.mrf.mxu0
    %v1786 = vadd.f32 %v1617, %v1785
    %1787 = vmatmul.bf16.gmra.mxu0 %v969
    %v1788 = vpop.f32.mrf.mxu0
    %v1789 = vadd.f32 %v1620, %v1788
    %v1790 = vpop.f32.mrf.mxu0
    %v1791 = vadd.f32 %v1622, %v1790
    %1792 = vmatmul.bf16.gmra.mxu0 %v971
    %v1793 = vpop.f32.mrf.mxu0
    %v1794 = vadd.f32 %v1625, %v1793
    %v1795 = vpop.f32.mrf.mxu0
    %v1796 = vadd.f32 %v1627, %v1795
    %1797 = vmatmul.bf16.gmra.mxu0 %v973
    %v1798 = vpop.f32.mrf.mxu0
    %v1799 = vadd.f32 %v1630, %v1798
    %v1800 = vpop.f32.mrf.mxu0
    %v1801 = vadd.f32 %v1632, %v1800
    %1802 = vmatmul.bf16.gmra.mxu0 %v975
    %v1803 = vpop.f32.mrf.mxu0
    %v1804 = vadd.f32 %v1635, %v1803
    %v1805 = vpop.f32.mrf.mxu0
    %v1806 = vadd.f32 %v1637, %v1805
    %1807 = vmatmul.bf16.gmra.mxu0 %v977
    %v1808 = vpop.f32.mrf.mxu0
    %v1809 = vadd.f32 %v1640, %v1808
    %v1810 = vpop.f32.mrf.mxu0
    %v1811 = vadd.f32 %v1642, %v1810
    %1812 = vmatmul.bf16.gmra.mxu0 %v979
    %v1813 = vpop.f32.mrf.mxu0
    %v1814 = vadd.f32 %v1645, %v1813
    %v1815 = vpop.f32.mrf.mxu0
    %v1816 = vadd.f32 %v1647, %v1815
    %1817 = vmatmul.bf16.gmra.mxu0 %v981
    %v1818 = vpop.f32.mrf.mxu0
    %v1819 = vadd.f32 %v1650, %v1818
    %v1820 = vpop.f32.mrf.mxu0
    %v1821 = vadd.f32 %v1652, %v1820
    %1822 = vmatmul.bf16.gmra.mxu0 %v983
    %v1823 = vpop.f32.mrf.mxu0
    %v1824 = vadd.f32 %v1655, %v1823
    %v1825 = vpop.f32.mrf.mxu0
    %v1826 = vadd.f32 %v1657, %v1825
    %1827 = vmatmul.bf16.gmra.mxu0 %v985
    %v1828 = vpop.f32.mrf.mxu0
    %v1829 = vadd.f32 %v1660, %v1828
    %v1830 = vpop.f32.mrf.mxu0
    %v1831 = vadd.f32 %v1662, %v1830
    %1832 = vmatmul.bf16.gmra.mxu0 %v987
    %v1833 = vpop.f32.mrf.mxu0
    %v1834 = vadd.f32 %v1665, %v1833
    %v1835 = vpop.f32.mrf.mxu0
    %v1836 = vadd.f32 %v1667, %v1835
    %1837 = vmatmul.bf16.gmra.mxu0 %v989
    %v1838 = vpop.f32.mrf.mxu0
    %v1839 = vadd.f32 %v1670, %v1838
    %v1840 = vpop.f32.mrf.mxu0
    %v1841 = vadd.f32 %v1672, %v1840
    %1842 = vmatmul.bf16.gmra.mxu0 %v991
    %v1843 = vpop.f32.mrf.mxu0
    %v1844 = vadd.f32 %v1675, %v1843
    %v1845 = vpop.f32.mrf.mxu0
    %v1846 = vadd.f32 %v1677, %v1845
    %1847 = vmatmul.bf16.gmra.mxu0 %v993
    %v1848 = vpop.f32.mrf.mxu0
    %v1849 = vadd.f32 %v1680, %v1848
    %v1850 = vpop.f32.mrf.mxu0
    %v1851 = vadd.f32 %v1682, %v1850
    %1852 = vmatmul.bf16.gmra.mxu0 %v995
    %v1853 = vpop.f32.mrf.mxu0
    %v1854 = vadd.f32 %v1685, %v1853
    %v1855 = vpop.f32.mrf.mxu0
    %v1856 = vadd.f32 %v1687, %v1855
    %1857 = vmatmul.bf16.gmra.mxu0 %v997
    %v1858 = vpop.f32.mrf.mxu0
    %v1859 = vadd.f32 %v1690, %v1858
    %v1860 = vpop.f32.mrf.mxu0
    %v1861 = vadd.f32 %v1692, %v1860
    %1862 = vmatmul.bf16.gmra.mxu0 %v999
    %v1863 = vpop.f32.mrf.mxu0
    %v1864 = vadd.f32 %v1695, %v1863
    %v1865 = vpop.f32.mrf.mxu0
    %v1866 = vadd.f32 %v1697, %v1865
    %1867 = vmatmul.bf16.gmra.mxu0 %v1001
    %v1868 = vpop.f32.mrf.mxu0
    %v1869 = vadd.f32 %v1700, %v1868
    %v1870 = vpop.f32.mrf.mxu0
    %v1871 = vadd.f32 %v1702, %v1870
    %1872 = vmatmul.bf16.gmra.mxu0 %v1003
    %v1873 = vpop.f32.mrf.mxu0
    %v1874 = vadd.f32 %v1705, %v1873
    %v1875 = vpop.f32.mrf.mxu0
    %v1876 = vadd.f32 %v1707, %v1875
    %1877 = vdwg.mxu0
    %v1878 = vmax.f32 %v1381, 0.0
    %v1879 = vmax.f32 %v1719, 0.0
    %v1880 = vmax.f32 %v1383, 0.0
    %v1881 = vmax.f32 %v1721, 0.0
    %v1882 = vmax.f32 %v1386, 0.0
    %v1883 = vmax.f32 %v1724, 0.0
    %v1884 = vmax.f32 %v1388, 0.0
    %v1885 = vmax.f32 %v1726, 0.0
    %v1886 = vmax.f32 %v1391, 0.0
    %v1887 = vmax.f32 %v1729, 0.0
    %v1888 = vmax.f32 %v1393, 0.0
    %v1889 = vmax.f32 %v1731, 0.0
    %v1890 = vmax.f32 %v1396, 0.0
    %v1891 = vmax.f32 %v1734, 0.0
    %v1892 = vmax.f32 %v1398, 0.0
    %v1893 = vmax.f32 %v1736, 0.0
    %v1894 = vmax.f32 %v1401, 0.0
    %v1895 = vmax.f32 %v1739, 0.0
    %v1896 = vmax.f32 %v1403, 0.0
    %v1897 = vmax.f32 %v1741, 0.0
    %v1898 = vmax.f32 %v1406, 0.0
    %v1899 = vmax.f32 %v1744, 0.0
    %v1900 = vmax.f32 %v1408, 0.0
    %v1901 = vmax.f32 %v1746, 0.0
    %v1902 = vmax.f32 %v1411, 0.0
    %v1903 = vmax.f32 %v1749, 0.0
    %v1904 = vmax.f32 %v1413, 0.0
    %v1905 = vmax.f32 %v1751, 0.0
    %v1906 = vmax.f32 %v1416, 0.0
    %v1907 = vmax.f32 %v1754, 0.0
    %v1908 = vmax.f32 %v1418, 0.0
    %v1909 = vmax.f32 %v1756, 0.0
    %v1910 = vmax.f32 %v1421, 0.0
    %v1911 = vmax.f32 %v1759, 0.0
    %v1912 = vmax.f32 %v1423, 0.0
    %v1913 = vmax.f32 %v1761, 0.0
    %v1914 = vmax.f32 %v1426, 0.0
    %v1915 = vmax.f32 %v1764, 0.0
    %v1916 = vmax.f32 %v1428, 0.0
    %v1917 = vmax.f32 %v1766, 0.0
    %v1918 = vmax.f32 %v1431, 0.0
    %v1919 = vmax.f32 %v1769, 0.0
    %v1920 = vmax.f32 %v1433, 0.0
    %v1921 = vmax.f32 %v1771, 0.0
    %v1922 = vmax.f32 %v1436, 0.0
    %v1923 = vmax.f32 %v1774, 0.0
    %v1924 = vmax.f32 %v1438, 0.0
    %v1925 = vmax.f32 %v1776, 0.0
    %v1926 = vmax.f32 %v1441, 0.0
    %v1927 = vmax.f32 %v1779, 0.0
    %v1928 = vmax.f32 %v1443, 0.0
    %v1929 = vmax.f32 %v1781, 0.0
    %v1930 = vmax.f32 %v1446, 0.0
    %v1931 = vmax.f32 %v1784, 0.0
    %v1932 = vmax.f32 %v1448, 0.0
    %v1933 = vmax.f32 %v1786, 0.0
    %v1934 = vmax.f32 %v1451, 0.0
    %v1935 = vmax.f32 %v1789, 0.0
    %v1936 = vmax.f32 %v1453, 0.0
    %v1937 = vmax.f32 %v1791, 0.0
    %v1938 = vmax.f32 %v1456, 0.0
    %v1939 = vmax.f32 %v1794, 0.0
    %v1940 = vmax.f32 %v1458, 0.0
    %v1941 = vmax.f32 %v1796, 0.0
    %v1942 = vmax.f32 %v1461, 0.0
    %v1943 = vmax.f32 %v1799, 0.0
    %v1944 = vmax.f32 %v1463, 0.0
    %v1945 = vmax.f32 %v1801, 0.0
    %v1946 = vmax.f32 %v1466, 0.0
    %v1947 = vmax.f32 %v1804, 0.0
    %v1948 = vmax.f32 %v1468, 0.0
    %v1949 = vmax.f32 %v1806, 0.0
    %v1950 = vmax.f32 %v1471, 0.0
    %v1951 = vmax.f32 %v1809, 0.0
    %v1952 = vmax.f32 %v1473, 0.0
    %v1953 = vmax.f32 %v1811, 0.0
    %v1954 = vmax.f32 %v1476, 0.0
    %v1955 = vmax.f32 %v1814, 0.0
    %v1956 = vmax.f32 %v1478, 0.0
    %v1957 = vmax.f32 %v1816, 0.0
    %v1958 = vmax.f32 %v1481, 0.0
    %v1959 = vmax.f32 %v1819, 0.0
    %v1960 = vmax.f32 %v1483, 0.0
    %v1961 = vmax.f32 %v1821, 0.0
    %v1962 = vmax.f32 %v1486, 0.0
    %v1963 = vmax.f32 %v1824, 0.0
    %v1964 = vmax.f32 %v1488, 0.0
    %v1965 = vmax.f32 %v1826, 0.0
    %v1966 = vmax.f32 %v1491, 0.0
    %v1967 = vmax.f32 %v1829, 0.0
    %v1968 = vmax.f32 %v1493, 0.0
    %v1969 = vmax.f32 %v1831, 0.0
    %v1970 = vmax.f32 %v1496, 0.0
    %v1971 = vmax.f32 %v1834, 0.0
    %v1972 = vmax.f32 %v1498, 0.0
    %v1973 = vmax.f32 %v1836, 0.0
    %v1974 = vmax.f32 %v1501, 0.0
    %v1975 = vmax.f32 %v1839, 0.0
    %v1976 = vmax.f32 %v1503, 0.0
    %v1977 = vmax.f32 %v1841, 0.0
    %v1978 = vmax.f32 %v1506, 0.0
    %v1979 = vmax.f32 %v1844, 0.0
    %v1980 = vmax.f32 %v1508, 0.0
    %v1981 = vmax.f32 %v1846, 0.0
    %v1982 = vmax.f32 %v1511, 0.0
    %v1983 = vmax.f32 %v1849, 0.0
    %v1984 = vmax.f32 %v1513, 0.0
    %v1985 = vmax.f32 %v1851, 0.0
    %v1986 = vmax.f32 %v1516, 0.0
    %v1987 = vmax.f32 %v1854, 0.0
    %v1988 = vmax.f32 %v1518, 0.0
    %v1989 = vmax.f32 %v1856, 0.0
    %v1990 = vmax.f32 %v1521, 0.0
    %v1991 = vmax.f32 %v1859, 0.0
    %v1992 = vmax.f32 %v1523, 0.0
    %v1993 = vmax.f32 %v1861, 0.0
    %v1994 = vmax.f32 %v1526, 0.0
    %v1995 = vmax.f32 %v1864, 0.0
    %v1996 = vmax.f32 %v1528, 0.0
    %v1997 = vmax.f32 %v1866, 0.0
    %v1998 = vmax.f32 %v1531, 0.0
    %v1999 = vmax.f32 %v1869, 0.0
    %v2000 = vmax.f32 %v1533, 0.0
    %v2001 = vmax.f32 %v1871, 0.0
    %v2002 = vmax.f32 %v1536, 0.0
    %v2003 = vmax.f32 %v1874, 0.0
    %v2004 = vmax.f32 %v1538, 0.0
    %v2005 = vmax.f32 %v1876, 0.0
    %v2006 = vpack.c.bf16 %v1880, %v1878
    %v2007 = vpack.c.bf16 %v1881, %v1879
    %v2008 = vpack.c.bf16 %v1884, %v1882
    %v2009 = vpack.c.bf16 %v1885, %v1883
    %v2010 = vpack.c.bf16 %v1888, %v1886
    %v2011 = vpack.c.bf16 %v1889, %v1887
    %v2012 = vpack.c.bf16 %v1892, %v1890
    %v2013 = vpack.c.bf16 %v1893, %v1891
    %v2014 = vpack.c.bf16 %v1896, %v1894
    %v2015 = vpack.c.bf16 %v1897, %v1895
    %v2016 = vpack.c.bf16 %v1900, %v1898
    %v2017 = vpack.c.bf16 %v1901, %v1899
    %v2018 = vpack.c.bf16 %v1904, %v1902
    %v2019 = vpack.c.bf16 %v1905, %v1903
    %v2020 = vpack.c.bf16 %v1908, %v1906
    %v2021 = vpack.c.bf16 %v1909, %v1907
    %v2022 = vpack.c.bf16 %v1912, %v1910
    %v2023 = vpack.c.bf16 %v1913, %v1911
    %v2024 = vpack.c.bf16 %v1916, %v1914
    %v2025 = vpack.c.bf16 %v1917, %v1915
    %v2026 = vpack.c.bf16 %v1920, %v1918
    %v2027 = vpack.c.bf16 %v1921, %v1919
    %v2028 = vpack.c.bf16 %v1924, %v1922
    %v2029 = vpack.c.bf16 %v1925, %v1923
    %v2030 = vpack.c.bf16 %v1928, %v1926
    %v2031 = vpack.c.bf16 %v1929, %v1927
    %v2032 = vpack.c.bf16 %v1932, %v1930
    %v2033 = vpack.c.bf16 %v1933, %v1931
    %v2034 = vpack.c.bf16 %v1936, %v1934
    %v2035 = vpack.c.bf16 %v1937, %v1935
    %v2036 = vpack.c.bf16 %v1940, %v1938
    %v2037 = vpack.c.bf16 %v1941, %v1939
    %v2038 = vpack.c.bf16 %v1944, %v1942
    %v2039 = vpack.c.bf16 %v1945, %v1943
    %v2040 = vpack.c.bf16 %v1948, %v1946
    %v2041 = vpack.c.bf16 %v1949, %v1947
    %v2042 = vpack.c.bf16 %v1952, %v1950
    %v2043 = vpack.c.bf16 %v1953, %v1951
    %v2044 = vpack.c.bf16 %v1956, %v1954
    %v2045 = vpack.c.bf16 %v1957, %v1955
    %v2046 = vpack.c.bf16 %v1960, %v1958
    %v2047 = vpack.c.bf16 %v1961, %v1959
    %v2048 = vpack.c.bf16 %v1964, %v1962
    %v2049 = vpack.c.bf16 %v1965, %v1963
    %v2050 = vpack.c.bf16 %v1968, %v1966
    %v2051 = vpack.c.bf16 %v1969, %v1967
    %v2052 = vpack.c.bf16 %v1972, %v1970
    %v2053 = vpack.c.bf16 %v1973, %v1971
    %v2054 = vpack.c.bf16 %v1976, %v1974
    %v2055 = vpack.c.bf16 %v1977, %v1975
    %v2056 = vpack.c.bf16 %v1980, %v1978
    %v2057 = vpack.c.bf16 %v1981, %v1979
    %v2058 = vpack.c.bf16 %v1984, %v1982
    %v2059 = vpack.c.bf16 %v1985, %v1983
    %v2060 = vpack.c.bf16 %v1988, %v1986
    %v2061 = vpack.c.bf16 %v1989, %v1987
    %v2062 = vpack.c.bf16 %v1992, %v1990
    %v2063 = vpack.c.bf16 %v1993, %v1991
    %v2064 = vpack.c.bf16 %v1996, %v1994
    %v2065 = vpack.c.bf16 %v1997, %v1995
    %v2066 = vpack.c.bf16 %v2000, %v1998
    %v2067 = vpack.c.bf16 %v2001, %v1999
    %v2068 = vpack.c.bf16 %v2004, %v2002
    %v2069 = vpack.c.bf16 %v2005, %v2003
    %v2070 = vld [vmem:[#allocation9] sm:$0xff]
    %v2071 = vld [vmem:[#allocation9 + $0x8] sm:$0xff]
    %v2072 = vld [vmem:[#allocation9 + $0x10] sm:$0xff]
    %v2073 = vld [vmem:[#allocation9 + $0x18] sm:$0xf]
    %v2074 = vld [vmem:[#allocation9 + $0x1c] sm:$0xff]
    %v2075 = vld [vmem:[#allocation9 + $0x24] sm:$0xff]
    %v2076 = vld [vmem:[#allocation9 + $0x2c] sm:$0xff]
    %v2077 = vld [vmem:[#allocation9 + $0x34] sm:$0xf]
    %v2078 = vld [vmem:[#allocation9 + $0x38] sm:$0xff]
    %v2079 = vld [vmem:[#allocation9 + $0x40] sm:$0xff]
    %v2080 = vld [vmem:[#allocation9 + $0x48] sm:$0xff]
    %v2081 = vld [vmem:[#allocation9 + $0x50] sm:$0xf]
    %v2082 = vld [vmem:[#allocation9 + $0x54] sm:$0xff]
    %v2083 = vld [vmem:[#allocation9 + $0x5c] sm:$0xff]
    %v2084 = vld [vmem:[#allocation9 + $0x64] sm:$0xff]
    %v2085 = vld [vmem:[#allocation9 + $0x6c] sm:$0xf]
    %v2086 = vld [vmem:[#allocation9 + $0x70] sm:$0xff]
    %v2087 = vld [vmem:[#allocation9 + $0x78] sm:$0xff]
    %v2088 = vld [vmem:[#allocation9 + $0x80] sm:$0xff]
    %v2089 = vld [vmem:[#allocation9 + $0x88] sm:$0xf]
    %v2090 = vld [vmem:[#allocation9 + $0x8c] sm:$0xff]
    %v2091 = vld [vmem:[#allocation9 + $0x94] sm:$0xff]
    %v2092 = vld [vmem:[#allocation9 + $0x9c] sm:$0xff]
    %v2093 = vld [vmem:[#allocation9 + $0xa4] sm:$0xf]
    %v2094 = vld [vmem:[#allocation9 + $0xa8] sm:$0xff]
    %v2095 = vld [vmem:[#allocation9 + $0xb0] sm:$0xff]
    %v2096 = vld [vmem:[#allocation9 + $0xb8] sm:$0xff]
    %v2097 = vld [vmem:[#allocation9 + $0xc0] sm:$0xf]
    %v2098 = vld [vmem:[#allocation9 + $0xc4] sm:$0xff]
    %v2099 = vld [vmem:[#allocation9 + $0xcc] sm:$0xff]
    %v2100 = vld [vmem:[#allocation9 + $0xd4] sm:$0xff]
    %v2101 = vld [vmem:[#allocation9 + $0xdc] sm:$0xf]
    %v2102 = vld [vmem:[#allocation9 + $0xe0] sm:$0xff]
    %v2103 = vld [vmem:[#allocation9 + $0xe8] sm:$0xff]
    %v2104 = vld [vmem:[#allocation9 + $0xf0] sm:$0xff]
    %v2105 = vld [vmem:[#allocation9 + $0xf8] sm:$0xf]
    %v2106 = vld [vmem:[#allocation9 + $0xfc] sm:$0xff]
    %v2107 = vld [vmem:[#allocation9 + $0x104] sm:$0xff]
    %v2108 = vld [vmem:[#allocation9 + $0x10c] sm:$0xff]
    %v2109 = vld [vmem:[#allocation9 + $0x114] sm:$0xf]
    %v2110 = vld [vmem:[#allocation9 + $0x118] sm:$0xff]
    %v2111 = vld [vmem:[#allocation9 + $0x120] sm:$0xff]
    %v2112 = vld [vmem:[#allocation9 + $0x128] sm:$0xff]
    %v2113 = vld [vmem:[#allocation9 + $0x130] sm:$0xf]
    %v2114 = vld [vmem:[#allocation9 + $0x134] sm:$0xff]
    %v2115 = vld [vmem:[#allocation9 + $0x13c] sm:$0xff]
    %v2116 = vld [vmem:[#allocation9 + $0x144] sm:$0xff]
    %v2117 = vld [vmem:[#allocation9 + $0x14c] sm:$0xf]
    %v2118 = vld [vmem:[#allocation9 + $0x150] sm:$0xff]
    %v2119 = vld [vmem:[#allocation9 + $0x158] sm:$0xff]
    %v2120 = vld [vmem:[#allocation9 + $0x160] sm:$0xff]
    %v2121 = vld [vmem:[#allocation9 + $0x168] sm:$0xf]
    %v2122 = vld [vmem:[#allocation9 + $0x16c] sm:$0xff]
    %v2123 = vld [vmem:[#allocation9 + $0x174] sm:$0xff]
    %v2124 = vld [vmem:[#allocation9 + $0x17c] sm:$0xff]
    %v2125 = vld [vmem:[#allocation9 + $0x184] sm:$0xf]
    %v2126 = vld [vmem:[#allocation9 + $0x188] sm:$0xff]
    %v2127 = vld [vmem:[#allocation9 + $0x190] sm:$0xff]
    %v2128 = vld [vmem:[#allocation9 + $0x198] sm:$0xff]
    %v2129 = vld [vmem:[#allocation9 + $0x1a0] sm:$0xf]
    %v2130 = vld [vmem:[#allocation9 + $0x1a4] sm:$0xff]
    %v2131 = vld [vmem:[#allocation9 + $0x1ac] sm:$0xff]
    %v2132 = vld [vmem:[#allocation9 + $0x1b4] sm:$0xff]
    %v2133 = vld [vmem:[#allocation9 + $0x1bc] sm:$0xf]
    %v2134 = vld [vmem:[#allocation9 + $0x1c0] sm:$0xff]
    %v2135 = vld [vmem:[#allocation9 + $0x1c8] sm:$0xff]
    %v2136 = vld [vmem:[#allocation9 + $0x1d0] sm:$0xff]
    %v2137 = vld [vmem:[#allocation9 + $0x1d8] sm:$0xf]
    %v2138 = vld [vmem:[#allocation9 + $0x1dc] sm:$0xff]
    %v2139 = vld [vmem:[#allocation9 + $0x1e4] sm:$0xff]
    %v2140 = vld [vmem:[#allocation9 + $0x1ec] sm:$0xff]
    %v2141 = vld [vmem:[#allocation9 + $0x1f4] sm:$0xf]
    %v2142 = vld [vmem:[#allocation9 + $0x1f8] sm:$0xff]
    %v2143 = vld [vmem:[#allocation9 + $0x200] sm:$0xff]
    %v2144 = vld [vmem:[#allocation9 + $0x208] sm:$0xff]
    %v2145 = vld [vmem:[#allocation9 + $0x210] sm:$0xf]
    %v2146 = vld [vmem:[#allocation9 + $0x214] sm:$0xff]
    %v2147 = vld [vmem:[#allocation9 + $0x21c] sm:$0xff]
    %v2148 = vld [vmem:[#allocation9 + $0x224] sm:$0xff]
    %v2149 = vld [vmem:[#allocation9 + $0x22c] sm:$0xf]
    %v2150 = vld [vmem:[#allocation9 + $0x230] sm:$0xff]
    %v2151 = vld [vmem:[#allocation9 + $0x238] sm:$0xff]
    %v2152 = vld [vmem:[#allocation9 + $0x240] sm:$0xff]
    %v2153 = vld [vmem:[#allocation9 + $0x248] sm:$0xf]
    %v2154 = vld [vmem:[#allocation9 + $0x24c] sm:$0xff]
    %v2155 = vld [vmem:[#allocation9 + $0x254] sm:$0xff]
    %v2156 = vld [vmem:[#allocation9 + $0x25c] sm:$0xff]
    %v2157 = vld [vmem:[#allocation9 + $0x264] sm:$0xf]
    %v2158 = vld [vmem:[#allocation9 + $0x268] sm:$0xff]
    %v2159 = vld [vmem:[#allocation9 + $0x270] sm:$0xff]
    %v2160 = vld [vmem:[#allocation9 + $0x278] sm:$0xff]
    %v2161 = vld [vmem:[#allocation9 + $0x280] sm:$0xf]
    %v2162 = vld [vmem:[#allocation9 + $0x284] sm:$0xff]
    %v2163 = vld [vmem:[#allocation9 + $0x28c] sm:$0xff]
    %v2164 = vld [vmem:[#allocation9 + $0x294] sm:$0xff]
    %v2165 = vld [vmem:[#allocation9 + $0x29c] sm:$0xf]
    %v2166 = vld [vmem:[#allocation9 + $0x2a0] sm:$0xff]
    %v2167 = vld [vmem:[#allocation9 + $0x2a8] sm:$0xff]
    %v2168 = vld [vmem:[#allocation9 + $0x2b0] sm:$0xff]
    %v2169 = vld [vmem:[#allocation9 + $0x2b8] sm:$0xf]
    %v2170 = vld [vmem:[#allocation9 + $0x2bc] sm:$0xff]
    %v2171 = vld [vmem:[#allocation9 + $0x2c4] sm:$0xff]
    %v2172 = vld [vmem:[#allocation9 + $0x2cc] sm:$0xff]
    %v2173 = vld [vmem:[#allocation9 + $0x2d4] sm:$0xf]
    %v2174 = vld [vmem:[#allocation9 + $0x2d8] sm:$0xff]
    %v2175 = vld [vmem:[#allocation9 + $0x2e0] sm:$0xff]
    %v2176 = vld [vmem:[#allocation9 + $0x2e8] sm:$0xff]
    %v2177 = vld [vmem:[#allocation9 + $0x2f0] sm:$0xf]
    %v2178 = vld [vmem:[#allocation9 + $0x2f4] sm:$0xff]
    %v2179 = vld [vmem:[#allocation9 + $0x2fc] sm:$0xff]
    %v2180 = vld [vmem:[#allocation9 + $0x304] sm:$0xff]
    %v2181 = vld [vmem:[#allocation9 + $0x30c] sm:$0xf]
    %v2182 = vld [vmem:[#allocation9 + $0x310] sm:$0xff]
    %v2183 = vld [vmem:[#allocation9 + $0x318] sm:$0xff]
    %v2184 = vld [vmem:[#allocation9 + $0x320] sm:$0xff]
    %v2185 = vld [vmem:[#allocation9 + $0x328] sm:$0xf]
    %v2186 = vld [vmem:[#allocation9 + $0x32c] sm:$0xff]
    %v2187 = vld [vmem:[#allocation9 + $0x334] sm:$0xff]
    %v2188 = vld [vmem:[#allocation9 + $0x33c] sm:$0xff]
    %v2189 = vld [vmem:[#allocation9 + $0x344] sm:$0xf]
    %v2190 = vld [vmem:[#allocation9 + $0x348] sm:$0xff]
    %v2191 = vld [vmem:[#allocation9 + $0x350] sm:$0xff]
    %v2192 = vld [vmem:[#allocation9 + $0x358] sm:$0xff]
    %v2193 = vld [vmem:[#allocation9 + $0x360] sm:$0xf]
    %v2194 = vld [vmem:[#allocation9 + $0x364] sm:$0xff]
    %v2195 = vld [vmem:[#allocation9 + $0x36c] sm:$0xff]
    %v2196 = vld [vmem:[#allocation9 + $0x374] sm:$0xff]
    %v2197 = vld [vmem:[#allocation9 + $0x37c] sm:$0xf]
    %v2326 = vunpack.c.l.b16 %v2070
    %v2327 = vunpack.c.h.b16 %v2070
    %v2328 = vunpack.c.l.b16 %v2071
    %v2329 = vunpack.c.h.b16 %v2071
    %v2330 = vunpack.c.l.b16 %v2072
    %v2331 = vunpack.c.h.b16 %v2072
    %v2332 = vunpack.c.l.b16 %v2073
    %v2333 = vunpack.c.l.b16 %v2074
    %v2334 = vunpack.c.h.b16 %v2074
    %v2335 = vunpack.c.l.b16 %v2075
    %v2336 = vunpack.c.h.b16 %v2075
    %v2337 = vunpack.c.l.b16 %v2076
    %v2338 = vunpack.c.h.b16 %v2076
    %v2339 = vunpack.c.l.b16 %v2077
    %v2340 = vunpack.c.l.b16 %v2078
    %v2341 = vunpack.c.h.b16 %v2078
    %v2342 = vunpack.c.l.b16 %v2079
    %v2343 = vunpack.c.h.b16 %v2079
    %v2344 = vunpack.c.l.b16 %v2080
    %v2345 = vunpack.c.h.b16 %v2080
    %v2346 = vunpack.c.l.b16 %v2081
    %v2347 = vunpack.c.l.b16 %v2082
    %v2348 = vunpack.c.h.b16 %v2082
    %v2349 = vunpack.c.l.b16 %v2083
    %v2350 = vunpack.c.h.b16 %v2083
    %v2351 = vunpack.c.l.b16 %v2084
    %v2352 = vunpack.c.h.b16 %v2084
    %v2353 = vunpack.c.l.b16 %v2085
    %v2354 = vunpack.c.l.b16 %v2086
    %v2355 = vunpack.c.h.b16 %v2086
    %v2356 = vunpack.c.l.b16 %v2087
    %v2357 = vunpack.c.h.b16 %v2087
    %v2358 = vunpack.c.l.b16 %v2088
    %v2359 = vunpack.c.h.b16 %v2088
    %v2360 = vunpack.c.l.b16 %v2089
    %v2361 = vunpack.c.l.b16 %v2090
    %v2362 = vunpack.c.h.b16 %v2090
    %v2363 = vunpack.c.l.b16 %v2091
    %v2364 = vunpack.c.h.b16 %v2091
    %v2365 = vunpack.c.l.b16 %v2092
    %v2366 = vunpack.c.h.b16 %v2092
    %v2367 = vunpack.c.l.b16 %v2093
    %v2368 = vunpack.c.l.b16 %v2094
    %v2369 = vunpack.c.h.b16 %v2094
    %v2370 = vunpack.c.l.b16 %v2095
    %v2371 = vunpack.c.h.b16 %v2095
    %v2372 = vunpack.c.l.b16 %v2096
    %v2373 = vunpack.c.h.b16 %v2096
    %v2374 = vunpack.c.l.b16 %v2097
    %v2375 = vunpack.c.l.b16 %v2098
    %v2376 = vunpack.c.h.b16 %v2098
    %v2377 = vunpack.c.l.b16 %v2099
    %v2378 = vunpack.c.h.b16 %v2099
    %v2379 = vunpack.c.l.b16 %v2100
    %v2380 = vunpack.c.h.b16 %v2100
    %v2381 = vunpack.c.l.b16 %v2101
    %v2382 = vunpack.c.l.b16 %v2102
    %v2383 = vunpack.c.h.b16 %v2102
    %v2384 = vunpack.c.l.b16 %v2103
    %v2385 = vunpack.c.h.b16 %v2103
    %v2386 = vunpack.c.l.b16 %v2104
    %v2387 = vunpack.c.h.b16 %v2104
    %v2388 = vunpack.c.l.b16 %v2105
    %v2389 = vunpack.c.l.b16 %v2106
    %v2390 = vunpack.c.h.b16 %v2106
    %v2391 = vunpack.c.l.b16 %v2107
    %v2392 = vunpack.c.h.b16 %v2107
    %v2393 = vunpack.c.l.b16 %v2108
    %v2394 = vunpack.c.h.b16 %v2108
    %v2395 = vunpack.c.l.b16 %v2109
    %v2396 = vunpack.c.l.b16 %v2110
    %v2397 = vunpack.c.h.b16 %v2110
    %v2398 = vunpack.c.l.b16 %v2111
    %v2399 = vunpack.c.h.b16 %v2111
    %v2400 = vunpack.c.l.b16 %v2112
    %v2401 = vunpack.c.h.b16 %v2112
    %v2402 = vunpack.c.l.b16 %v2113
    %v2403 = vunpack.c.l.b16 %v2114
    %v2404 = vunpack.c.h.b16 %v2114
    %v2405 = vunpack.c.l.b16 %v2115
    %v2406 = vunpack.c.h.b16 %v2115
    %v2407 = vunpack.c.l.b16 %v2116
    %v2408 = vunpack.c.h.b16 %v2116
    %v2409 = vunpack.c.l.b16 %v2117
    %v2410 = vunpack.c.l.b16 %v2118
    %v2411 = vunpack.c.h.b16 %v2118
    %v2412 = vunpack.c.l.b16 %v2119
    %v2413 = vunpack.c.h.b16 %v2119
    %v2414 = vunpack.c.l.b16 %v2120
    %v2415 = vunpack.c.h.b16 %v2120
    %v2416 = vunpack.c.l.b16 %v2121
    %v2417 = vunpack.c.l.b16 %v2122
    %v2418 = vunpack.c.h.b16 %v2122
    %v2419 = vunpack.c.l.b16 %v2123
    %v2420 = vunpack.c.h.b16 %v2123
    %v2421 = vunpack.c.l.b16 %v2124
    %v2422 = vunpack.c.h.b16 %v2124
    %v2423 = vunpack.c.l.b16 %v2125
    %v2424 = vunpack.c.l.b16 %v2126
    %v2425 = vunpack.c.h.b16 %v2126
    %v2426 = vunpack.c.l.b16 %v2127
    %v2427 = vunpack.c.h.b16 %v2127
    %v2428 = vunpack.c.l.b16 %v2128
    %v2429 = vunpack.c.h.b16 %v2128
    %v2430 = vunpack.c.l.b16 %v2129
    %v2431 = vunpack.c.l.b16 %v2130
    %v2432 = vunpack.c.h.b16 %v2130
    %v2433 = vunpack.c.l.b16 %v2131
    %v2434 = vunpack.c.h.b16 %v2131
    %v2435 = vunpack.c.l.b16 %v2132
    %v2436 = vunpack.c.h.b16 %v2132
    %v2437 = vunpack.c.l.b16 %v2133
    %v2438 = vunpack.c.l.b16 %v2134
    %v2439 = vunpack.c.h.b16 %v2134
    %v2440 = vunpack.c.l.b16 %v2135
    %v2441 = vunpack.c.h.b16 %v2135
    %v2442 = vunpack.c.l.b16 %v2136
    %v2443 = vunpack.c.h.b16 %v2136
    %v2444 = vunpack.c.l.b16 %v2137
    %v2445 = vunpack.c.l.b16 %v2138
    %v2446 = vunpack.c.h.b16 %v2138
    %v2447 = vunpack.c.l.b16 %v2139
    %v2448 = vunpack.c.h.b16 %v2139
    %v2449 = vunpack.c.l.b16 %v2140
    %v2450 = vunpack.c.h.b16 %v2140
    %v2451 = vunpack.c.l.b16 %v2141
    %v2452 = vunpack.c.l.b16 %v2142
    %v2453 = vunpack.c.h.b16 %v2142
    %v2454 = vunpack.c.l.b16 %v2143
    %v2455 = vunpack.c.h.b16 %v2143
    %v2456 = vunpack.c.l.b16 %v2144
    %v2457 = vunpack.c.h.b16 %v2144
    %v2458 = vunpack.c.l.b16 %v2145
    %v2459 = vunpack.c.l.b16 %v2146
    %v2460 = vunpack.c.h.b16 %v2146
    %v2461 = vunpack.c.l.b16 %v2147
    %v2462 = vunpack.c.h.b16 %v2147
    %v2463 = vunpack.c.l.b16 %v2148
    %v2464 = vunpack.c.h.b16 %v2148
    %v2465 = vunpack.c.l.b16 %v2149
    %v2466 = vunpack.c.l.b16 %v2150
    %v2467 = vunpack.c.h.b16 %v2150
    %v2468 = vunpack.c.l.b16 %v2151
    %v2469 = vunpack.c.h.b16 %v2151
    %v2470 = vunpack.c.l.b16 %v2152
    %v2471 = vunpack.c.h.b16 %v2152
    %v2472 = vunpack.c.l.b16 %v2153
    %v2473 = vunpack.c.l.b16 %v2154
    %v2474 = vunpack.c.h.b16 %v2154
    %v2475 = vunpack.c.l.b16 %v2155
    %v2476 = vunpack.c.h.b16 %v2155
    %v2477 = vunpack.c.l.b16 %v2156
    %v2478 = vunpack.c.h.b16 %v2156
    %v2479 = vunpack.c.l.b16 %v2157
    %v2480 = vunpack.c.l.b16 %v2158
    %v2481 = vunpack.c.h.b16 %v2158
    %v2482 = vunpack.c.l.b16 %v2159
    %v2483 = vunpack.c.h.b16 %v2159
    %v2484 = vunpack.c.l.b16 %v2160
    %v2485 = vunpack.c.h.b16 %v2160
    %v2486 = vunpack.c.l.b16 %v2161
    %v2487 = vunpack.c.l.b16 %v2162
    %v2488 = vunpack.c.h.b16 %v2162
    %v2489 = vunpack.c.l.b16 %v2163
    %v2490 = vunpack.c.h.b16 %v2163
    %v2491 = vunpack.c.l.b16 %v2164
    %v2492 = vunpack.c.h.b16 %v2164
    %v2493 = vunpack.c.l.b16 %v2165
    %v2494 = vunpack.c.l.b16 %v2166
    %v2495 = vunpack.c.h.b16 %v2166
    %v2496 = vunpack.c.l.b16 %v2167
    %v2497 = vunpack.c.h.b16 %v2167
    %v2498 = vunpack.c.l.b16 %v2168
    %v2499 = vunpack.c.h.b16 %v2168
    %v2500 = vunpack.c.l.b16 %v2169
    %v2501 = vunpack.c.l.b16 %v2170
    %v2502 = vunpack.c.h.b16 %v2170
    %v2503 = vunpack.c.l.b16 %v2171
    %v2504 = vunpack.c.h.b16 %v2171
    %v2505 = vunpack.c.l.b16 %v2172
    %v2506 = vunpack.c.h.b16 %v2172
    %v2507 = vunpack.c.l.b16 %v2173
    %v2508 = vunpack.c.l.b16 %v2174
    %v2509 = vunpack.c.h.b16 %v2174
    %v2510 = vunpack.c.l.b16 %v2175
    %v2511 = vunpack.c.h.b16 %v2175
    %v2512 = vunpack.c.l.b16 %v2176
    %v2513 = vunpack.c.h.b16 %v2176
    %v2514 = vunpack.c.l.b16 %v2177
    %v2515 = vunpack.c.l.b16 %v2178
    %v2516 = vunpack.c.h.b16 %v2178
    %v2517 = vunpack.c.l.b16 %v2179
    %v2518 = vunpack.c.h.b16 %v2179
    %v2519 = vunpack.c.l.b16 %v2180
    %v2520 = vunpack.c.h.b16 %v2180
    %v2521 = vunpack.c.l.b16 %v2181
    %v2522 = vunpack.c.l.b16 %v2182
    %v2523 = vunpack.c.h.b16 %v2182
    %v2524 = vunpack.c.l.b16 %v2183
    %v2525 = vunpack.c.h.b16 %v2183
    %v2526 = vunpack.c.l.b16 %v2184
    %v2527 = vunpack.c.h.b16 %v2184
    %v2528 = vunpack.c.l.b16 %v2185
    %v2529 = vunpack.c.l.b16 %v2186
    %v2530 = vunpack.c.h.b16 %v2186
    %v2531 = vunpack.c.l.b16 %v2187
    %v2532 = vunpack.c.h.b16 %v2187
    %v2533 = vunpack.c.l.b16 %v2188
    %v2534 = vunpack.c.h.b16 %v2188
    %v2535 = vunpack.c.l.b16 %v2189
    %v2536 = vunpack.c.l.b16 %v2190
    %v2537 = vunpack.c.h.b16 %v2190
    %v2538 = vunpack.c.l.b16 %v2191
    %v2539 = vunpack.c.h.b16 %v2191
    %v2540 = vunpack.c.l.b16 %v2192
    %v2541 = vunpack.c.h.b16 %v2192
    %v2542 = vunpack.c.l.b16 %v2193
    %v2543 = vunpack.c.l.b16 %v2194
    %v2544 = vunpack.c.h.b16 %v2194
    %v2545 = vunpack.c.l.b16 %v2195
    %v2546 = vunpack.c.h.b16 %v2195
    %v2547 = vunpack.c.l.b16 %v2196
    %v2548 = vunpack.c.h.b16 %v2196
    %v2549 = vunpack.c.l.b16 %v2197
    %v2550 = vpack.c.b16 %v2333, %v2326
    %v2551 = vpack.c.b16 %v2334, %v2327
    %v2552 = vpack.c.b16 %v2335, %v2328
    %v2553 = vpack.c.b16 %v2336, %v2329
    %v2554 = vpack.c.b16 %v2337, %v2330
    %v2555 = vpack.c.b16 %v2338, %v2331
    %v2556 = vpack.c.b16 %v2339, %v2332
    %v2557 = vpack.c.b16 %v2347, %v2340
    %v2558 = vpack.c.b16 %v2348, %v2341
    %v2559 = vpack.c.b16 %v2349, %v2342
    %v2560 = vpack.c.b16 %v2350, %v2343
    %v2561 = vpack.c.b16 %v2351, %v2344
    %v2562 = vpack.c.b16 %v2352, %v2345
    %v2563 = vpack.c.b16 %v2353, %v2346
    %v2564 = vpack.c.b16 %v2361, %v2354
    %v2565 = vpack.c.b16 %v2362, %v2355
    %v2566 = vpack.c.b16 %v2363, %v2356
    %v2567 = vpack.c.b16 %v2364, %v2357
    %v2568 = vpack.c.b16 %v2365, %v2358
    %v2569 = vpack.c.b16 %v2366, %v2359
    %v2570 = vpack.c.b16 %v2367, %v2360
    %v2571 = vpack.c.b16 %v2375, %v2368
    %v2572 = vpack.c.b16 %v2376, %v2369
    %v2573 = vpack.c.b16 %v2377, %v2370
    %v2574 = vpack.c.b16 %v2378, %v2371
    %v2575 = vpack.c.b16 %v2379, %v2372
    %v2576 = vpack.c.b16 %v2380, %v2373
    %v2577 = vpack.c.b16 %v2381, %v2374
    %v2578 = vpack.c.b16 %v2389, %v2382
    %v2579 = vpack.c.b16 %v2390, %v2383
    %v2580 = vpack.c.b16 %v2391, %v2384
    %v2581 = vpack.c.b16 %v2392, %v2385
    %v2582 = vpack.c.b16 %v2393, %v2386
    %v2583 = vpack.c.b16 %v2394, %v2387
    %v2584 = vpack.c.b16 %v2395, %v2388
    %v2585 = vpack.c.b16 %v2403, %v2396
    %v2586 = vpack.c.b16 %v2404, %v2397
    %v2587 = vpack.c.b16 %v2405, %v2398
    %v2588 = vpack.c.b16 %v2406, %v2399
    %v2589 = vpack.c.b16 %v2407, %v2400
    %v2590 = vpack.c.b16 %v2408, %v2401
    %v2591 = vpack.c.b16 %v2409, %v2402
    %v2592 = vpack.c.b16 %v2417, %v2410
    %v2593 = vpack.c.b16 %v2418, %v2411
    %v2594 = vpack.c.b16 %v2419, %v2412
    %v2595 = vpack.c.b16 %v2420, %v2413
    %v2596 = vpack.c.b16 %v2421, %v2414
    %v2597 = vpack.c.b16 %v2422, %v2415
    %v2598 = vpack.c.b16 %v2423, %v2416
    %v2599 = vpack.c.b16 %v2431, %v2424
    %v2600 = vpack.c.b16 %v2432, %v2425
    %v2601 = vpack.c.b16 %v2433, %v2426
    %v2602 = vpack.c.b16 %v2434, %v2427
    %v2603 = vpack.c.b16 %v2435, %v2428
    %v2604 = vpack.c.b16 %v2436, %v2429
    %v2605 = vpack.c.b16 %v2437, %v2430
    %v2606 = vpack.c.b16 %v2445, %v2438
    %v2607 = vpack.c.b16 %v2446, %v2439
    %v2608 = vpack.c.b16 %v2447, %v2440
    %v2609 = vpack.c.b16 %v2448, %v2441
    %v2610 = vpack.c.b16 %v2449, %v2442
    %v2611 = vpack.c.b16 %v2450, %v2443
    %v2612 = vpack.c.b16 %v2451, %v2444
    %v2613 = vpack.c.b16 %v2459, %v2452
    %v2614 = vpack.c.b16 %v2460, %v2453
    %v2615 = vpack.c.b16 %v2461, %v2454
    %v2616 = vpack.c.b16 %v2462, %v2455
    %v2617 = vpack.c.b16 %v2463, %v2456
    %v2618 = vpack.c.b16 %v2464, %v2457
    %v2619 = vpack.c.b16 %v2465, %v2458
    %v2620 = vpack.c.b16 %v2473, %v2466
    %v2621 = vpack.c.b16 %v2474, %v2467
    %v2622 = vpack.c.b16 %v2475, %v2468
    %v2623 = vpack.c.b16 %v2476, %v2469
    %v2624 = vpack.c.b16 %v2477, %v2470
    %v2625 = vpack.c.b16 %v2478, %v2471
    %v2626 = vpack.c.b16 %v2479, %v2472
    %v2627 = vpack.c.b16 %v2487, %v2480
    %v2628 = vpack.c.b16 %v2488, %v2481
    %v2629 = vpack.c.b16 %v2489, %v2482
    %v2630 = vpack.c.b16 %v2490, %v2483
    %v2631 = vpack.c.b16 %v2491, %v2484
    %v2632 = vpack.c.b16 %v2492, %v2485
    %v2633 = vpack.c.b16 %v2493, %v2486
    %v2634 = vpack.c.b16 %v2501, %v2494
    %v2635 = vpack.c.b16 %v2502, %v2495
    %v2636 = vpack.c.b16 %v2503, %v2496
    %v2637 = vpack.c.b16 %v2504, %v2497
    %v2638 = vpack.c.b16 %v2505, %v2498
    %v2639 = vpack.c.b16 %v2506, %v2499
    %v2640 = vpack.c.b16 %v2507, %v2500
    %v2641 = vpack.c.b16 %v2515, %v2508
    %v2642 = vpack.c.b16 %v2516, %v2509
    %v2643 = vpack.c.b16 %v2517, %v2510
    %v2644 = vpack.c.b16 %v2518, %v2511
    %v2645 = vpack.c.b16 %v2519, %v2512
    %v2646 = vpack.c.b16 %v2520, %v2513
    %v2647 = vpack.c.b16 %v2521, %v2514
    %v2648 = vpack.c.b16 %v2529, %v2522
    %v2649 = vpack.c.b16 %v2530, %v2523
    %v2650 = vpack.c.b16 %v2531, %v2524
    %v2651 = vpack.c.b16 %v2532, %v2525
    %v2652 = vpack.c.b16 %v2533, %v2526
    %v2653 = vpack.c.b16 %v2534, %v2527
    %v2654 = vpack.c.b16 %v2535, %v2528
    %v2655 = vpack.c.b16 %v2543, %v2536
    %v2656 = vpack.c.b16 %v2544, %v2537
    %v2657 = vpack.c.b16 %v2545, %v2538
    %v2658 = vpack.c.b16 %v2546, %v2539
    %v2659 = vpack.c.b16 %v2547, %v2540
    %v2660 = vpack.c.b16 %v2548, %v2541
    %v2661 = vpack.c.b16 %v2549, %v2542
    %2774 = vmatpush.bf16.msra.mxu0 %v2599
    %2775 = vmatpush.bf16.msra.mxu0 %v2592
    %2776 = vmatpush.bf16.msra.mxu0 %v2585
    %2777 = vmatpush.bf16.msra.mxu0 %v2578
    %2778 = vmatpush.bf16.msra.mxu0 %v2571
    %2779 = vmatpush.bf16.msra.mxu0 %v2564
    %2780 = vmatpush.bf16.msra.mxu0 %v2557
    %2781 = vmatpush.bf16.msra.mxu0 %v2550
    %2782 = vmatmul.bf16.gmra.mxu0 %v2006
    %v2783 = vpop.f32.mrf.mxu0
    %v2784 = vadd.f32 0.0, %v2783
    %v2785 = vpop.f32.mrf.mxu0
    %v2786 = vadd.f32 0.0, %v2785
    %2787 = vmatmul.bf16.gmra.mxu0 %v2008
    %v2788 = vpop.f32.mrf.mxu0
    %v2789 = vadd.f32 0.0, %v2788
    %v2790 = vpop.f32.mrf.mxu0
    %v2791 = vadd.f32 0.0, %v2790
    %2792 = vmatmul.bf16.gmra.mxu0 %v2010
    %v2793 = vpop.f32.mrf.mxu0
    %v2794 = vadd.f32 0.0, %v2793
    %v2795 = vpop.f32.mrf.mxu0
    %v2796 = vadd.f32 0.0, %v2795
    %2797 = vmatmul.bf16.gmra.mxu0 %v2012
    %v2798 = vpop.f32.mrf.mxu0
    %v2799 = vadd.f32 0.0, %v2798
    %v2800 = vpop.f32.mrf.mxu0
    %v2801 = vadd.f32 0.0, %v2800
    %2802 = vmatmul.bf16.gmra.mxu0 %v2014
    %v2803 = vpop.f32.mrf.mxu0
    %v2804 = vadd.f32 0.0, %v2803
    %v2805 = vpop.f32.mrf.mxu0
    %v2806 = vadd.f32 0.0, %v2805
    %2807 = vmatmul.bf16.gmra.mxu0 %v2016
    %v2808 = vpop.f32.mrf.mxu0
    %v2809 = vadd.f32 0.0, %v2808
    %v2810 = vpop.f32.mrf.mxu0
    %v2811 = vadd.f32 0.0, %v2810
    %2812 = vmatmul.bf16.gmra.mxu0 %v2018
    %v2813 = vpop.f32.mrf.mxu0
    %v2814 = vadd.f32 0.0, %v2813
    %v2815 = vpop.f32.mrf.mxu0
    %v2816 = vadd.f32 0.0, %v2815
    %2817 = vmatmul.bf16.gmra.mxu0 %v2020
    %v2818 = vpop.f32.mrf.mxu0
    %v2819 = vadd.f32 0.0, %v2818
    %v2820 = vpop.f32.mrf.mxu0
    %v2821 = vadd.f32 0.0, %v2820
    %2822 = vmatmul.bf16.gmra.mxu0 %v2022
    %v2823 = vpop.f32.mrf.mxu0
    %v2824 = vadd.f32 0.0, %v2823
    %v2825 = vpop.f32.mrf.mxu0
    %v2826 = vadd.f32 0.0, %v2825
    %2827 = vmatmul.bf16.gmra.mxu0 %v2024
    %v2828 = vpop.f32.mrf.mxu0
    %v2829 = vadd.f32 0.0, %v2828
    %v2830 = vpop.f32.mrf.mxu0
    %v2831 = vadd.f32 0.0, %v2830
    %2832 = vmatmul.bf16.gmra.mxu0 %v2026
    %v2833 = vpop.f32.mrf.mxu0
    %v2834 = vadd.f32 0.0, %v2833
    %v2835 = vpop.f32.mrf.mxu0
    %v2836 = vadd.f32 0.0, %v2835
    %2837 = vmatmul.bf16.gmra.mxu0 %v2028
    %v2838 = vpop.f32.mrf.mxu0
    %v2839 = vadd.f32 0.0, %v2838
    %v2840 = vpop.f32.mrf.mxu0
    %v2841 = vadd.f32 0.0, %v2840
    %2842 = vmatmul.bf16.gmra.mxu0 %v2030
    %v2843 = vpop.f32.mrf.mxu0
    %v2844 = vadd.f32 0.0, %v2843
    %v2845 = vpop.f32.mrf.mxu0
    %v2846 = vadd.f32 0.0, %v2845
    %2847 = vmatmul.bf16.gmra.mxu0 %v2032
    %v2848 = vpop.f32.mrf.mxu0
    %v2849 = vadd.f32 0.0, %v2848
    %v2850 = vpop.f32.mrf.mxu0
    %v2851 = vadd.f32 0.0, %v2850
    %2852 = vmatmul.bf16.gmra.mxu0 %v2034
    %v2853 = vpop.f32.mrf.mxu0
    %v2854 = vadd.f32 0.0, %v2853
    %v2855 = vpop.f32.mrf.mxu0
    %v2856 = vadd.f32 0.0, %v2855
    %2857 = vmatmul.bf16.gmra.mxu0 %v2036
    %v2858 = vpop.f32.mrf.mxu0
    %v2859 = vadd.f32 0.0, %v2858
    %v2860 = vpop.f32.mrf.mxu0
    %v2861 = vadd.f32 0.0, %v2860
    %2862 = vmatmul.bf16.gmra.mxu0 %v2038
    %v2863 = vpop.f32.mrf.mxu0
    %v2864 = vadd.f32 0.0, %v2863
    %v2865 = vpop.f32.mrf.mxu0
    %v2866 = vadd.f32 0.0, %v2865
    %2867 = vmatmul.bf16.gmra.mxu0 %v2040
    %v2868 = vpop.f32.mrf.mxu0
    %v2869 = vadd.f32 0.0, %v2868
    %v2870 = vpop.f32.mrf.mxu0
    %v2871 = vadd.f32 0.0, %v2870
    %2872 = vmatmul.bf16.gmra.mxu0 %v2042
    %v2873 = vpop.f32.mrf.mxu0
    %v2874 = vadd.f32 0.0, %v2873
    %v2875 = vpop.f32.mrf.mxu0
    %v2876 = vadd.f32 0.0, %v2875
    %2877 = vmatmul.bf16.gmra.mxu0 %v2044
    %v2878 = vpop.f32.mrf.mxu0
    %v2879 = vadd.f32 0.0, %v2878
    %v2880 = vpop.f32.mrf.mxu0
    %v2881 = vadd.f32 0.0, %v2880
    %2882 = vmatmul.bf16.gmra.mxu0 %v2046
    %v2883 = vpop.f32.mrf.mxu0
    %v2884 = vadd.f32 0.0, %v2883
    %v2885 = vpop.f32.mrf.mxu0
    %v2886 = vadd.f32 0.0, %v2885
    %2887 = vmatmul.bf16.gmra.mxu0 %v2048
    %v2888 = vpop.f32.mrf.mxu0
    %v2889 = vadd.f32 0.0, %v2888
    %v2890 = vpop.f32.mrf.mxu0
    %v2891 = vadd.f32 0.0, %v2890
    %2892 = vmatmul.bf16.gmra.mxu0 %v2050
    %v2893 = vpop.f32.mrf.mxu0
    %v2894 = vadd.f32 0.0, %v2893
    %v2895 = vpop.f32.mrf.mxu0
    %v2896 = vadd.f32 0.0, %v2895
    %2897 = vmatmul.bf16.gmra.mxu0 %v2052
    %v2898 = vpop.f32.mrf.mxu0
    %v2899 = vadd.f32 0.0, %v2898
    %v2900 = vpop.f32.mrf.mxu0
    %v2901 = vadd.f32 0.0, %v2900
    %2902 = vmatmul.bf16.gmra.mxu0 %v2054
    %v2903 = vpop.f32.mrf.mxu0
    %v2904 = vadd.f32 0.0, %v2903
    %v2905 = vpop.f32.mrf.mxu0
    %v2906 = vadd.f32 0.0, %v2905
    %2907 = vmatmul.bf16.gmra.mxu0 %v2056
    %v2908 = vpop.f32.mrf.mxu0
    %v2909 = vadd.f32 0.0, %v2908
    %v2910 = vpop.f32.mrf.mxu0
    %v2911 = vadd.f32 0.0, %v2910
    %2912 = vmatmul.bf16.gmra.mxu0 %v2058
    %v2913 = vpop.f32.mrf.mxu0
    %v2914 = vadd.f32 0.0, %v2913
    %v2915 = vpop.f32.mrf.mxu0
    %v2916 = vadd.f32 0.0, %v2915
    %2917 = vmatmul.bf16.gmra.mxu0 %v2060
    %v2918 = vpop.f32.mrf.mxu0
    %v2919 = vadd.f32 0.0, %v2918
    %v2920 = vpop.f32.mrf.mxu0
    %v2921 = vadd.f32 0.0, %v2920
    %2922 = vmatmul.bf16.gmra.mxu0 %v2062
    %v2923 = vpop.f32.mrf.mxu0
    %v2924 = vadd.f32 0.0, %v2923
    %v2925 = vpop.f32.mrf.mxu0
    %v2926 = vadd.f32 0.0, %v2925
    %2927 = vmatmul.bf16.gmra.mxu0 %v2064
    %v2928 = vpop.f32.mrf.mxu0
    %v2929 = vadd.f32 0.0, %v2928
    %v2930 = vpop.f32.mrf.mxu0
    %v2931 = vadd.f32 0.0, %v2930
    %2932 = vmatmul.bf16.gmra.mxu0 %v2066
    %v2933 = vpop.f32.mrf.mxu0
    %v2934 = vadd.f32 0.0, %v2933
    %v2935 = vpop.f32.mrf.mxu0
    %v2936 = vadd.f32 0.0, %v2935
    %2937 = vmatmul.bf16.gmra.mxu0 %v2068
    %v2938 = vpop.f32.mrf.mxu0
    %v2939 = vadd.f32 0.0, %v2938
    %v2940 = vpop.f32.mrf.mxu0
    %v2941 = vadd.f32 0.0, %v2940
    %2942 = vdwg.mxu0
    %2943 = vmatpush.bf16.msra.mxu0 %v2655
    %2944 = vmatpush.bf16.msra.mxu0 %v2648
    %2945 = vmatpush.bf16.msra.mxu0 %v2641
    %2946 = vmatpush.bf16.msra.mxu0 %v2634
    %2947 = vmatpush.bf16.msra.mxu0 %v2627
    %2948 = vmatpush.bf16.msra.mxu0 %v2620
    %2949 = vmatpush.bf16.msra.mxu0 %v2613
    %2950 = vmatpush.bf16.msra.mxu0 %v2606
    %2951 = vmatmul.bf16.gmra.mxu0 %v2007
    %v2952 = vpop.f32.mrf.mxu0
    %v2953 = vadd.f32 %v2784, %v2952
    %v2954 = vpop.f32.mrf.mxu0
    %v2955 = vadd.f32 %v2786, %v2954
    %2956 = vmatmul.bf16.gmra.mxu0 %v2009
    %v2957 = vpop.f32.mrf.mxu0
    %v2958 = vadd.f32 %v2789, %v2957
    %v2959 = vpop.f32.mrf.mxu0
    %v2960 = vadd.f32 %v2791, %v2959
    %2961 = vmatmul.bf16.gmra.mxu0 %v2011
    %v2962 = vpop.f32.mrf.mxu0
    %v2963 = vadd.f32 %v2794, %v2962
    %v2964 = vpop.f32.mrf.mxu0
    %v2965 = vadd.f32 %v2796, %v2964
    %2966 = vmatmul.bf16.gmra.mxu0 %v2013
    %v2967 = vpop.f32.mrf.mxu0
    %v2968 = vadd.f32 %v2799, %v2967
    %v2969 = vpop.f32.mrf.mxu0
    %v2970 = vadd.f32 %v2801, %v2969
    %2971 = vmatmul.bf16.gmra.mxu0 %v2015
    %v2972 = vpop.f32.mrf.mxu0
    %v2973 = vadd.f32 %v2804, %v2972
    %v2974 = vpop.f32.mrf.mxu0
    %v2975 = vadd.f32 %v2806, %v2974
    %2976 = vmatmul.bf16.gmra.mxu0 %v2017
    %v2977 = vpop.f32.mrf.mxu0
    %v2978 = vadd.f32 %v2809, %v2977
    %v2979 = vpop.f32.mrf.mxu0
    %v2980 = vadd.f32 %v2811, %v2979
    %2981 = vmatmul.bf16.gmra.mxu0 %v2019
    %v2982 = vpop.f32.mrf.mxu0
    %v2983 = vadd.f32 %v2814, %v2982
    %v2984 = vpop.f32.mrf.mxu0
    %v2985 = vadd.f32 %v2816, %v2984
    %2986 = vmatmul.bf16.gmra.mxu0 %v2021
    %v2987 = vpop.f32.mrf.mxu0
    %v2988 = vadd.f32 %v2819, %v2987
    %v2989 = vpop.f32.mrf.mxu0
    %v2990 = vadd.f32 %v2821, %v2989
    %2991 = vmatmul.bf16.gmra.mxu0 %v2023
    %v2992 = vpop.f32.mrf.mxu0
    %v2993 = vadd.f32 %v2824, %v2992
    %v2994 = vpop.f32.mrf.mxu0
    %v2995 = vadd.f32 %v2826, %v2994
    %2996 = vmatmul.bf16.gmra.mxu0 %v2025
    %v2997 = vpop.f32.mrf.mxu0
    %v2998 = vadd.f32 %v2829, %v2997
    %v2999 = vpop.f32.mrf.mxu0
    %v3000 = vadd.f32 %v2831, %v2999
    %3001 = vmatmul.bf16.gmra.mxu0 %v2027
    %v3002 = vpop.f32.mrf.mxu0
    %v3003 = vadd.f32 %v2834, %v3002
    %v3004 = vpop.f32.mrf.mxu0
    %v3005 = vadd.f32 %v2836, %v3004
    %3006 = vmatmul.bf16.gmra.mxu0 %v2029
    %v3007 = vpop.f32.mrf.mxu0
    %v3008 = vadd.f32 %v2839, %v3007
    %v3009 = vpop.f32.mrf.mxu0
    %v3010 = vadd.f32 %v2841, %v3009
    %3011 = vmatmul.bf16.gmra.mxu0 %v2031
    %v3012 = vpop.f32.mrf.mxu0
    %v3013 = vadd.f32 %v2844, %v3012
    %v3014 = vpop.f32.mrf.mxu0
    %v3015 = vadd.f32 %v2846, %v3014
    %3016 = vmatmul.bf16.gmra.mxu0 %v2033
    %v3017 = vpop.f32.mrf.mxu0
    %v3018 = vadd.f32 %v2849, %v3017
    %v3019 = vpop.f32.mrf.mxu0
    %v3020 = vadd.f32 %v2851, %v3019
    %3021 = vmatmul.bf16.gmra.mxu0 %v2035
    %v3022 = vpop.f32.mrf.mxu0
    %v3023 = vadd.f32 %v2854, %v3022
    %v3024 = vpop.f32.mrf.mxu0
    %v3025 = vadd.f32 %v2856, %v3024
    %3026 = vmatmul.bf16.gmra.mxu0 %v2037
    %v3027 = vpop.f32.mrf.mxu0
    %v3028 = vadd.f32 %v2859, %v3027
    %v3029 = vpop.f32.mrf.mxu0
    %v3030 = vadd.f32 %v2861, %v3029
    %3031 = vmatmul.bf16.gmra.mxu0 %v2039
    %v3032 = vpop.f32.mrf.mxu0
    %v3033 = vadd.f32 %v2864, %v3032
    %v3034 = vpop.f32.mrf.mxu0
    %v3035 = vadd.f32 %v2866, %v3034
    %3036 = vmatmul.bf16.gmra.mxu0 %v2041
    %v3037 = vpop.f32.mrf.mxu0
    %v3038 = vadd.f32 %v2869, %v3037
    %v3039 = vpop.f32.mrf.mxu0
    %v3040 = vadd.f32 %v2871, %v3039
    %3041 = vmatmul.bf16.gmra.mxu0 %v2043
    %v3042 = vpop.f32.mrf.mxu0
    %v3043 = vadd.f32 %v2874, %v3042
    %v3044 = vpop.f32.mrf.mxu0
    %v3045 = vadd.f32 %v2876, %v3044
    %3046 = vmatmul.bf16.gmra.mxu0 %v2045
    %v3047 = vpop.f32.mrf.mxu0
    %v3048 = vadd.f32 %v2879, %v3047
    %v3049 = vpop.f32.mrf.mxu0
    %v3050 = vadd.f32 %v2881, %v3049
    %3051 = vmatmul.bf16.gmra.mxu0 %v2047
    %v3052 = vpop.f32.mrf.mxu0
    %v3053 = vadd.f32 %v2884, %v3052
    %v3054 = vpop.f32.mrf.mxu0
    %v3055 = vadd.f32 %v2886, %v3054
    %3056 = vmatmul.bf16.gmra.mxu0 %v2049
    %v3057 = vpop.f32.mrf.mxu0
    %v3058 = vadd.f32 %v2889, %v3057
    %v3059 = vpop.f32.mrf.mxu0
    %v3060 = vadd.f32 %v2891, %v3059
    %3061 = vmatmul.bf16.gmra.mxu0 %v2051
    %v3062 = vpop.f32.mrf.mxu0
    %v3063 = vadd.f32 %v2894, %v3062
    %v3064 = vpop.f32.mrf.mxu0
    %v3065 = vadd.f32 %v2896, %v3064
    %3066 = vmatmul.bf16.gmra.mxu0 %v2053
    %v3067 = vpop.f32.mrf.mxu0
    %v3068 = vadd.f32 %v2899, %v3067
    %v3069 = vpop.f32.mrf.mxu0
    %v3070 = vadd.f32 %v2901, %v3069
    %3071 = vmatmul.bf16.gmra.mxu0 %v2055
    %v3072 = vpop.f32.mrf.mxu0
    %v3073 = vadd.f32 %v2904, %v3072
    %v3074 = vpop.f32.mrf.mxu0
    %v3075 = vadd.f32 %v2906, %v3074
    %3076 = vmatmul.bf16.gmra.mxu0 %v2057
    %v3077 = vpop.f32.mrf.mxu0
    %v3078 = vadd.f32 %v2909, %v3077
    %v3079 = vpop.f32.mrf.mxu0
    %v3080 = vadd.f32 %v2911, %v3079
    %3081 = vmatmul.bf16.gmra.mxu0 %v2059
    %v3082 = vpop.f32.mrf.mxu0
    %v3083 = vadd.f32 %v2914, %v3082
    %v3084 = vpop.f32.mrf.mxu0
    %v3085 = vadd.f32 %v2916, %v3084
    %3086 = vmatmul.bf16.gmra.mxu0 %v2061
    %v3087 = vpop.f32.mrf.mxu0
    %v3088 = vadd.f32 %v2919, %v3087
    %v3089 = vpop.f32.mrf.mxu0
    %v3090 = vadd.f32 %v2921, %v3089
    %3091 = vmatmul.bf16.gmra.mxu0 %v2063
    %v3092 = vpop.f32.mrf.mxu0
    %v3093 = vadd.f32 %v2924, %v3092
    %v3094 = vpop.f32.mrf.mxu0
    %v3095 = vadd.f32 %v2926, %v3094
    %3096 = vmatmul.bf16.gmra.mxu0 %v2065
    %v3097 = vpop.f32.mrf.mxu0
    %v3098 = vadd.f32 %v2929, %v3097
    %v3099 = vpop.f32.mrf.mxu0
    %v3100 = vadd.f32 %v2931, %v3099
    %3101 = vmatmul.bf16.gmra.mxu0 %v2067
    %v3102 = vpop.f32.mrf.mxu0
    %v3103 = vadd.f32 %v2934, %v3102
    %v3104 = vpop.f32.mrf.mxu0
    %v3105 = vadd.f32 %v2936, %v3104
    %3106 = vmatmul.bf16.gmra.mxu0 %v2069
    %v3107 = vpop.f32.mrf.mxu0
    %v3108 = vadd.f32 %v2939, %v3107
    %v3109 = vpop.f32.mrf.mxu0
    %v3110 = vadd.f32 %v2941, %v3109
    %3111 = vdwg.mxu0
    %3112 = vmatpush.bf16.msra.mxu0 %v2600
    %3113 = vmatpush.bf16.msra.mxu0 %v2593
    %3114 = vmatpush.bf16.msra.mxu0 %v2586
    %3115 = vmatpush.bf16.msra.mxu0 %v2579
    %3116 = vmatpush.bf16.msra.mxu0 %v2572
    %3117 = vmatpush.bf16.msra.mxu0 %v2565
    %3118 = vmatpush.bf16.msra.mxu0 %v2558
    %3119 = vmatpush.bf16.msra.mxu0 %v2551
    %3120 = vmatmul.bf16.gmra.mxu0 %v2006
    %v3121 = vpop.f32.mrf.mxu0
    %v3122 = vadd.f32 0.0, %v3121
    %v3123 = vpop.f32.mrf.mxu0
    %v3124 = vadd.f32 0.0, %v3123
    %3125 = vmatmul.bf16.gmra.mxu0 %v2008
    %v3126 = vpop.f32.mrf.mxu0
    %v3127 = vadd.f32 0.0, %v3126
    %v3128 = vpop.f32.mrf.mxu0
    %v3129 = vadd.f32 0.0, %v3128
    %3130 = vmatmul.bf16.gmra.mxu0 %v2010
    %v3131 = vpop.f32.mrf.mxu0
    %v3132 = vadd.f32 0.0, %v3131
    %v3133 = vpop.f32.mrf.mxu0
    %v3134 = vadd.f32 0.0, %v3133
    %3135 = vmatmul.bf16.gmra.mxu0 %v2012
    %v3136 = vpop.f32.mrf.mxu0
    %v3137 = vadd.f32 0.0, %v3136
    %v3138 = vpop.f32.mrf.mxu0
    %v3139 = vadd.f32 0.0, %v3138
    %3140 = vmatmul.bf16.gmra.mxu0 %v2014
    %v3141 = vpop.f32.mrf.mxu0
    %v3142 = vadd.f32 0.0, %v3141
    %v3143 = vpop.f32.mrf.mxu0
    %v3144 = vadd.f32 0.0, %v3143
    %3145 = vmatmul.bf16.gmra.mxu0 %v2016
    %v3146 = vpop.f32.mrf.mxu0
    %v3147 = vadd.f32 0.0, %v3146
    %v3148 = vpop.f32.mrf.mxu0
    %v3149 = vadd.f32 0.0, %v3148
    %3150 = vmatmul.bf16.gmra.mxu0 %v2018
    %v3151 = vpop.f32.mrf.mxu0
    %v3152 = vadd.f32 0.0, %v3151
    %v3153 = vpop.f32.mrf.mxu0
    %v3154 = vadd.f32 0.0, %v3153
    %3155 = vmatmul.bf16.gmra.mxu0 %v2020
    %v3156 = vpop.f32.mrf.mxu0
    %v3157 = vadd.f32 0.0, %v3156
    %v3158 = vpop.f32.mrf.mxu0
    %v3159 = vadd.f32 0.0, %v3158
    %3160 = vmatmul.bf16.gmra.mxu0 %v2022
    %v3161 = vpop.f32.mrf.mxu0
    %v3162 = vadd.f32 0.0, %v3161
    %v3163 = vpop.f32.mrf.mxu0
    %v3164 = vadd.f32 0.0, %v3163
    %3165 = vmatmul.bf16.gmra.mxu0 %v2024
    %v3166 = vpop.f32.mrf.mxu0
    %v3167 = vadd.f32 0.0, %v3166
    %v3168 = vpop.f32.mrf.mxu0
    %v3169 = vadd.f32 0.0, %v3168
    %3170 = vmatmul.bf16.gmra.mxu0 %v2026
    %v3171 = vpop.f32.mrf.mxu0
    %v3172 = vadd.f32 0.0, %v3171
    %v3173 = vpop.f32.mrf.mxu0
    %v3174 = vadd.f32 0.0, %v3173
    %3175 = vmatmul.bf16.gmra.mxu0 %v2028
    %v3176 = vpop.f32.mrf.mxu0
    %v3177 = vadd.f32 0.0, %v3176
    %v3178 = vpop.f32.mrf.mxu0
    %v3179 = vadd.f32 0.0, %v3178
    %3180 = vmatmul.bf16.gmra.mxu0 %v2030
    %v3181 = vpop.f32.mrf.mxu0
    %v3182 = vadd.f32 0.0, %v3181
    %v3183 = vpop.f32.mrf.mxu0
    %v3184 = vadd.f32 0.0, %v3183
    %3185 = vmatmul.bf16.gmra.mxu0 %v2032
    %v3186 = vpop.f32.mrf.mxu0
    %v3187 = vadd.f32 0.0, %v3186
    %v3188 = vpop.f32.mrf.mxu0
    %v3189 = vadd.f32 0.0, %v3188
    %3190 = vmatmul.bf16.gmra.mxu0 %v2034
    %v3191 = vpop.f32.mrf.mxu0
    %v3192 = vadd.f32 0.0, %v3191
    %v3193 = vpop.f32.mrf.mxu0
    %v3194 = vadd.f32 0.0, %v3193
    %3195 = vmatmul.bf16.gmra.mxu0 %v2036
    %v3196 = vpop.f32.mrf.mxu0
    %v3197 = vadd.f32 0.0, %v3196
    %v3198 = vpop.f32.mrf.mxu0
    %v3199 = vadd.f32 0.0, %v3198
    %3200 = vmatmul.bf16.gmra.mxu0 %v2038
    %v3201 = vpop.f32.mrf.mxu0
    %v3202 = vadd.f32 0.0, %v3201
    %v3203 = vpop.f32.mrf.mxu0
    %v3204 = vadd.f32 0.0, %v3203
    %3205 = vmatmul.bf16.gmra.mxu0 %v2040
    %v3206 = vpop.f32.mrf.mxu0
    %v3207 = vadd.f32 0.0, %v3206
    %v3208 = vpop.f32.mrf.mxu0
    %v3209 = vadd.f32 0.0, %v3208
    %3210 = vmatmul.bf16.gmra.mxu0 %v2042
    %v3211 = vpop.f32.mrf.mxu0
    %v3212 = vadd.f32 0.0, %v3211
    %v3213 = vpop.f32.mrf.mxu0
    %v3214 = vadd.f32 0.0, %v3213
    %3215 = vmatmul.bf16.gmra.mxu0 %v2044
    %v3216 = vpop.f32.mrf.mxu0
    %v3217 = vadd.f32 0.0, %v3216
    %v3218 = vpop.f32.mrf.mxu0
    %v3219 = vadd.f32 0.0, %v3218
    %3220 = vmatmul.bf16.gmra.mxu0 %v2046
    %v3221 = vpop.f32.mrf.mxu0
    %v3222 = vadd.f32 0.0, %v3221
    %v3223 = vpop.f32.mrf.mxu0
    %v3224 = vadd.f32 0.0, %v3223
    %3225 = vmatmul.bf16.gmra.mxu0 %v2048
    %v3226 = vpop.f32.mrf.mxu0
    %v3227 = vadd.f32 0.0, %v3226
    %v3228 = vpop.f32.mrf.mxu0
    %v3229 = vadd.f32 0.0, %v3228
    %3230 = vmatmul.bf16.gmra.mxu0 %v2050
    %v3231 = vpop.f32.mrf.mxu0
    %v3232 = vadd.f32 0.0, %v3231
    %v3233 = vpop.f32.mrf.mxu0
    %v3234 = vadd.f32 0.0, %v3233
    %3235 = vmatmul.bf16.gmra.mxu0 %v2052
    %v3236 = vpop.f32.mrf.mxu0
    %v3237 = vadd.f32 0.0, %v3236
    %v3238 = vpop.f32.mrf.mxu0
    %v3239 = vadd.f32 0.0, %v3238
    %3240 = vmatmul.bf16.gmra.mxu0 %v2054
    %v3241 = vpop.f32.mrf.mxu0
    %v3242 = vadd.f32 0.0, %v3241
    %v3243 = vpop.f32.mrf.mxu0
    %v3244 = vadd.f32 0.0, %v3243
    %3245 = vmatmul.bf16.gmra.mxu0 %v2056
    %v3246 = vpop.f32.mrf.mxu0
    %v3247 = vadd.f32 0.0, %v3246
    %v3248 = vpop.f32.mrf.mxu0
    %v3249 = vadd.f32 0.0, %v3248
    %3250 = vmatmul.bf16.gmra.mxu0 %v2058
    %v3251 = vpop.f32.mrf.mxu0
    %v3252 = vadd.f32 0.0, %v3251
    %v3253 = vpop.f32.mrf.mxu0
    %v3254 = vadd.f32 0.0, %v3253
    %3255 = vmatmul.bf16.gmra.mxu0 %v2060
    %v3256 = vpop.f32.mrf.mxu0
    %v3257 = vadd.f32 0.0, %v3256
    %v3258 = vpop.f32.mrf.mxu0
    %v3259 = vadd.f32 0.0, %v3258
    %3260 = vmatmul.bf16.gmra.mxu0 %v2062
    %v3261 = vpop.f32.mrf.mxu0
    %v3262 = vadd.f32 0.0, %v3261
    %v3263 = vpop.f32.mrf.mxu0
    %v3264 = vadd.f32 0.0, %v3263
    %3265 = vmatmul.bf16.gmra.mxu0 %v2064
    %v3266 = vpop.f32.mrf.mxu0
    %v3267 = vadd.f32 0.0, %v3266
    %v3268 = vpop.f32.mrf.mxu0
    %v3269 = vadd.f32 0.0, %v3268
    %3270 = vmatmul.bf16.gmra.mxu0 %v2066
    %v3271 = vpop.f32.mrf.mxu0
    %v3272 = vadd.f32 0.0, %v3271
    %v3273 = vpop.f32.mrf.mxu0
    %v3274 = vadd.f32 0.0, %v3273
    %3275 = vmatmul.bf16.gmra.mxu0 %v2068
    %v3276 = vpop.f32.mrf.mxu0
    %v3277 = vadd.f32 0.0, %v3276
    %v3278 = vpop.f32.mrf.mxu0
    %v3279 = vadd.f32 0.0, %v3278
    %3280 = vdwg.mxu0
    %3281 = vmatpush.bf16.msra.mxu0 %v2656
    %3282 = vmatpush.bf16.msra.mxu0 %v2649
    %3283 = vmatpush.bf16.msra.mxu0 %v2642
    %3284 = vmatpush.bf16.msra.mxu0 %v2635
    %3285 = vmatpush.bf16.msra.mxu0 %v2628
    %3286 = vmatpush.bf16.msra.mxu0 %v2621
    %3287 = vmatpush.bf16.msra.mxu0 %v2614
    %3288 = vmatpush.bf16.msra.mxu0 %v2607
    %3289 = vmatmul.bf16.gmra.mxu0 %v2007
    %v3290 = vpop.f32.mrf.mxu0
    %v3291 = vadd.f32 %v3122, %v3290
    %v3292 = vpop.f32.mrf.mxu0
    %v3293 = vadd.f32 %v3124, %v3292
    %3294 = vmatmul.bf16.gmra.mxu0 %v2009
    %v3295 = vpop.f32.mrf.mxu0
    %v3296 = vadd.f32 %v3127, %v3295
    %v3297 = vpop.f32.mrf.mxu0
    %v3298 = vadd.f32 %v3129, %v3297
    %3299 = vmatmul.bf16.gmra.mxu0 %v2011
    %v3300 = vpop.f32.mrf.mxu0
    %v3301 = vadd.f32 %v3132, %v3300
    %v3302 = vpop.f32.mrf.mxu0
    %v3303 = vadd.f32 %v3134, %v3302
    %3304 = vmatmul.bf16.gmra.mxu0 %v2013
    %v3305 = vpop.f32.mrf.mxu0
    %v3306 = vadd.f32 %v3137, %v3305
    %v3307 = vpop.f32.mrf.mxu0
    %v3308 = vadd.f32 %v3139, %v3307
    %3309 = vmatmul.bf16.gmra.mxu0 %v2015
    %v3310 = vpop.f32.mrf.mxu0
    %v3311 = vadd.f32 %v3142, %v3310
    %v3312 = vpop.f32.mrf.mxu0
    %v3313 = vadd.f32 %v3144, %v3312
    %3314 = vmatmul.bf16.gmra.mxu0 %v2017
    %v3315 = vpop.f32.mrf.mxu0
    %v3316 = vadd.f32 %v3147, %v3315
    %v3317 = vpop.f32.mrf.mxu0
    %v3318 = vadd.f32 %v3149, %v3317
    %3319 = vmatmul.bf16.gmra.mxu0 %v2019
    %v3320 = vpop.f32.mrf.mxu0
    %v3321 = vadd.f32 %v3152, %v3320
    %v3322 = vpop.f32.mrf.mxu0
    %v3323 = vadd.f32 %v3154, %v3322
    %3324 = vmatmul.bf16.gmra.mxu0 %v2021
    %v3325 = vpop.f32.mrf.mxu0
    %v3326 = vadd.f32 %v3157, %v3325
    %v3327 = vpop.f32.mrf.mxu0
    %v3328 = vadd.f32 %v3159, %v3327
    %3329 = vmatmul.bf16.gmra.mxu0 %v2023
    %v3330 = vpop.f32.mrf.mxu0
    %v3331 = vadd.f32 %v3162, %v3330
    %v3332 = vpop.f32.mrf.mxu0
    %v3333 = vadd.f32 %v3164, %v3332
    %3334 = vmatmul.bf16.gmra.mxu0 %v2025
    %v3335 = vpop.f32.mrf.mxu0
    %v3336 = vadd.f32 %v3167, %v3335
    %v3337 = vpop.f32.mrf.mxu0
    %v3338 = vadd.f32 %v3169, %v3337
    %3339 = vmatmul.bf16.gmra.mxu0 %v2027
    %v3340 = vpop.f32.mrf.mxu0
    %v3341 = vadd.f32 %v3172, %v3340
    %v3342 = vpop.f32.mrf.mxu0
    %v3343 = vadd.f32 %v3174, %v3342
    %3344 = vmatmul.bf16.gmra.mxu0 %v2029
    %v3345 = vpop.f32.mrf.mxu0
    %v3346 = vadd.f32 %v3177, %v3345
    %v3347 = vpop.f32.mrf.mxu0
    %v3348 = vadd.f32 %v3179, %v3347
    %3349 = vmatmul.bf16.gmra.mxu0 %v2031
    %v3350 = vpop.f32.mrf.mxu0
    %v3351 = vadd.f32 %v3182, %v3350
    %v3352 = vpop.f32.mrf.mxu0
    %v3353 = vadd.f32 %v3184, %v3352
    %3354 = vmatmul.bf16.gmra.mxu0 %v2033
    %v3355 = vpop.f32.mrf.mxu0
    %v3356 = vadd.f32 %v3187, %v3355
    %v3357 = vpop.f32.mrf.mxu0
    %v3358 = vadd.f32 %v3189, %v3357
    %3359 = vmatmul.bf16.gmra.mxu0 %v2035
    %v3360 = vpop.f32.mrf.mxu0
    %v3361 = vadd.f32 %v3192, %v3360
    %v3362 = vpop.f32.mrf.mxu0
    %v3363 = vadd.f32 %v3194, %v3362
    %3364 = vmatmul.bf16.gmra.mxu0 %v2037
    %v3365 = vpop.f32.mrf.mxu0
    %v3366 = vadd.f32 %v3197, %v3365
    %v3367 = vpop.f32.mrf.mxu0
    %v3368 = vadd.f32 %v3199, %v3367
    %3369 = vmatmul.bf16.gmra.mxu0 %v2039
    %v3370 = vpop.f32.mrf.mxu0
    %v3371 = vadd.f32 %v3202, %v3370
    %v3372 = vpop.f32.mrf.mxu0
    %v3373 = vadd.f32 %v3204, %v3372
    %3374 = vmatmul.bf16.gmra.mxu0 %v2041
    %v3375 = vpop.f32.mrf.mxu0
    %v3376 = vadd.f32 %v3207, %v3375
    %v3377 = vpop.f32.mrf.mxu0
    %v3378 = vadd.f32 %v3209, %v3377
    %3379 = vmatmul.bf16.gmra.mxu0 %v2043
    %v3380 = vpop.f32.mrf.mxu0
    %v3381 = vadd.f32 %v3212, %v3380
    %v3382 = vpop.f32.mrf.mxu0
    %v3383 = vadd.f32 %v3214, %v3382
    %3384 = vmatmul.bf16.gmra.mxu0 %v2045
    %v3385 = vpop.f32.mrf.mxu0
    %v3386 = vadd.f32 %v3217, %v3385
    %v3387 = vpop.f32.mrf.mxu0
    %v3388 = vadd.f32 %v3219, %v3387
    %3389 = vmatmul.bf16.gmra.mxu0 %v2047
    %v3390 = vpop.f32.mrf.mxu0
    %v3391 = vadd.f32 %v3222, %v3390
    %v3392 = vpop.f32.mrf.mxu0
    %v3393 = vadd.f32 %v3224, %v3392
    %3394 = vmatmul.bf16.gmra.mxu0 %v2049
    %v3395 = vpop.f32.mrf.mxu0
    %v3396 = vadd.f32 %v3227, %v3395
    %v3397 = vpop.f32.mrf.mxu0
    %v3398 = vadd.f32 %v3229, %v3397
    %3399 = vmatmul.bf16.gmra.mxu0 %v2051
    %v3400 = vpop.f32.mrf.mxu0
    %v3401 = vadd.f32 %v3232, %v3400
    %v3402 = vpop.f32.mrf.mxu0
    %v3403 = vadd.f32 %v3234, %v3402
    %3404 = vmatmul.bf16.gmra.mxu0 %v2053
    %v3405 = vpop.f32.mrf.mxu0
    %v3406 = vadd.f32 %v3237, %v3405
    %v3407 = vpop.f32.mrf.mxu0
    %v3408 = vadd.f32 %v3239, %v3407
    %3409 = vmatmul.bf16.gmra.mxu0 %v2055
    %v3410 = vpop.f32.mrf.mxu0
    %v3411 = vadd.f32 %v3242, %v3410
    %v3412 = vpop.f32.mrf.mxu0
    %v3413 = vadd.f32 %v3244, %v3412
    %3414 = vmatmul.bf16.gmra.mxu0 %v2057
    %v3415 = vpop.f32.mrf.mxu0
    %v3416 = vadd.f32 %v3247, %v3415
    %v3417 = vpop.f32.mrf.mxu0
    %v3418 = vadd.f32 %v3249, %v3417
    %3419 = vmatmul.bf16.gmra.mxu0 %v2059
    %v3420 = vpop.f32.mrf.mxu0
    %v3421 = vadd.f32 %v3252, %v3420
    %v3422 = vpop.f32.mrf.mxu0
    %v3423 = vadd.f32 %v3254, %v3422
    %3424 = vmatmul.bf16.gmra.mxu0 %v2061
    %v3425 = vpop.f32.mrf.mxu0
    %v3426 = vadd.f32 %v3257, %v3425
    %v3427 = vpop.f32.mrf.mxu0
    %v3428 = vadd.f32 %v3259, %v3427
    %3429 = vmatmul.bf16.gmra.mxu0 %v2063
    %v3430 = vpop.f32.mrf.mxu0
    %v3431 = vadd.f32 %v3262, %v3430
    %v3432 = vpop.f32.mrf.mxu0
    %v3433 = vadd.f32 %v3264, %v3432
    %3434 = vmatmul.bf16.gmra.mxu0 %v2065
    %v3435 = vpop.f32.mrf.mxu0
    %v3436 = vadd.f32 %v3267, %v3435
    %v3437 = vpop.f32.mrf.mxu0
    %v3438 = vadd.f32 %v3269, %v3437
    %3439 = vmatmul.bf16.gmra.mxu0 %v2067
    %v3440 = vpop.f32.mrf.mxu0
    %v3441 = vadd.f32 %v3272, %v3440
    %v3442 = vpop.f32.mrf.mxu0
    %v3443 = vadd.f32 %v3274, %v3442
    %3444 = vmatmul.bf16.gmra.mxu0 %v2069
    %v3445 = vpop.f32.mrf.mxu0
    %v3446 = vadd.f32 %v3277, %v3445
    %v3447 = vpop.f32.mrf.mxu0
    %v3448 = vadd.f32 %v3279, %v3447
    %3449 = vdwg.mxu0
    %3450 = vmatpush.bf16.msra.mxu0 %v2601
    %3451 = vmatpush.bf16.msra.mxu0 %v2594
    %3452 = vmatpush.bf16.msra.mxu0 %v2587
    %3453 = vmatpush.bf16.msra.mxu0 %v2580
    %3454 = vmatpush.bf16.msra.mxu0 %v2573
    %3455 = vmatpush.bf16.msra.mxu0 %v2566
    %3456 = vmatpush.bf16.msra.mxu0 %v2559
    %3457 = vmatpush.bf16.msra.mxu0 %v2552
    %3458 = vmatmul.bf16.gmra.mxu0 %v2006
    %v3459 = vpop.f32.mrf.mxu0
    %v3460 = vadd.f32 0.0, %v3459
    %v3461 = vpop.f32.mrf.mxu0
    %v3462 = vadd.f32 0.0, %v3461
    %3463 = vmatmul.bf16.gmra.mxu0 %v2008
    %v3464 = vpop.f32.mrf.mxu0
    %v3465 = vadd.f32 0.0, %v3464
    %v3466 = vpop.f32.mrf.mxu0
    %v3467 = vadd.f32 0.0, %v3466
    %3468 = vmatmul.bf16.gmra.mxu0 %v2010
    %v3469 = vpop.f32.mrf.mxu0
    %v3470 = vadd.f32 0.0, %v3469
    %v3471 = vpop.f32.mrf.mxu0
    %v3472 = vadd.f32 0.0, %v3471
    %3473 = vmatmul.bf16.gmra.mxu0 %v2012
    %v3474 = vpop.f32.mrf.mxu0
    %v3475 = vadd.f32 0.0, %v3474
    %v3476 = vpop.f32.mrf.mxu0
    %v3477 = vadd.f32 0.0, %v3476
    %3478 = vmatmul.bf16.gmra.mxu0 %v2014
    %v3479 = vpop.f32.mrf.mxu0
    %v3480 = vadd.f32 0.0, %v3479
    %v3481 = vpop.f32.mrf.mxu0
    %v3482 = vadd.f32 0.0, %v3481
    %3483 = vmatmul.bf16.gmra.mxu0 %v2016
    %v3484 = vpop.f32.mrf.mxu0
    %v3485 = vadd.f32 0.0, %v3484
    %v3486 = vpop.f32.mrf.mxu0
    %v3487 = vadd.f32 0.0, %v3486
    %3488 = vmatmul.bf16.gmra.mxu0 %v2018
    %v3489 = vpop.f32.mrf.mxu0
    %v3490 = vadd.f32 0.0, %v3489
    %v3491 = vpop.f32.mrf.mxu0
    %v3492 = vadd.f32 0.0, %v3491
    %3493 = vmatmul.bf16.gmra.mxu0 %v2020
    %v3494 = vpop.f32.mrf.mxu0
    %v3495 = vadd.f32 0.0, %v3494
    %v3496 = vpop.f32.mrf.mxu0
    %v3497 = vadd.f32 0.0, %v3496
    %3498 = vmatmul.bf16.gmra.mxu0 %v2022
    %v3499 = vpop.f32.mrf.mxu0
    %v3500 = vadd.f32 0.0, %v3499
    %v3501 = vpop.f32.mrf.mxu0
    %v3502 = vadd.f32 0.0, %v3501
    %3503 = vmatmul.bf16.gmra.mxu0 %v2024
    %v3504 = vpop.f32.mrf.mxu0
    %v3505 = vadd.f32 0.0, %v3504
    %v3506 = vpop.f32.mrf.mxu0
    %v3507 = vadd.f32 0.0, %v3506
    %3508 = vmatmul.bf16.gmra.mxu0 %v2026
    %v3509 = vpop.f32.mrf.mxu0
    %v3510 = vadd.f32 0.0, %v3509
    %v3511 = vpop.f32.mrf.mxu0
    %v3512 = vadd.f32 0.0, %v3511
    %3513 = vmatmul.bf16.gmra.mxu0 %v2028
    %v3514 = vpop.f32.mrf.mxu0
    %v3515 = vadd.f32 0.0, %v3514
    %v3516 = vpop.f32.mrf.mxu0
    %v3517 = vadd.f32 0.0, %v3516
    %3518 = vmatmul.bf16.gmra.mxu0 %v2030
    %v3519 = vpop.f32.mrf.mxu0
    %v3520 = vadd.f32 0.0, %v3519
    %v3521 = vpop.f32.mrf.mxu0
    %v3522 = vadd.f32 0.0, %v3521
    %3523 = vmatmul.bf16.gmra.mxu0 %v2032
    %v3524 = vpop.f32.mrf.mxu0
    %v3525 = vadd.f32 0.0, %v3524
    %v3526 = vpop.f32.mrf.mxu0
    %v3527 = vadd.f32 0.0, %v3526
    %3528 = vmatmul.bf16.gmra.mxu0 %v2034
    %v3529 = vpop.f32.mrf.mxu0
    %v3530 = vadd.f32 0.0, %v3529
    %v3531 = vpop.f32.mrf.mxu0
    %v3532 = vadd.f32 0.0, %v3531
    %3533 = vmatmul.bf16.gmra.mxu0 %v2036
    %v3534 = vpop.f32.mrf.mxu0
    %v3535 = vadd.f32 0.0, %v3534
    %v3536 = vpop.f32.mrf.mxu0
    %v3537 = vadd.f32 0.0, %v3536
    %3538 = vmatmul.bf16.gmra.mxu0 %v2038
    %v3539 = vpop.f32.mrf.mxu0
    %v3540 = vadd.f32 0.0, %v3539
    %v3541 = vpop.f32.mrf.mxu0
    %v3542 = vadd.f32 0.0, %v3541
    %3543 = vmatmul.bf16.gmra.mxu0 %v2040
    %v3544 = vpop.f32.mrf.mxu0
    %v3545 = vadd.f32 0.0, %v3544
    %v3546 = vpop.f32.mrf.mxu0
    %v3547 = vadd.f32 0.0, %v3546
    %3548 = vmatmul.bf16.gmra.mxu0 %v2042
    %v3549 = vpop.f32.mrf.mxu0
    %v3550 = vadd.f32 0.0, %v3549
    %v3551 = vpop.f32.mrf.mxu0
    %v3552 = vadd.f32 0.0, %v3551
    %3553 = vmatmul.bf16.gmra.mxu0 %v2044
    %v3554 = vpop.f32.mrf.mxu0
    %v3555 = vadd.f32 0.0, %v3554
    %v3556 = vpop.f32.mrf.mxu0
    %v3557 = vadd.f32 0.0, %v3556
    %3558 = vmatmul.bf16.gmra.mxu0 %v2046
    %v3559 = vpop.f32.mrf.mxu0
    %v3560 = vadd.f32 0.0, %v3559
    %v3561 = vpop.f32.mrf.mxu0
    %v3562 = vadd.f32 0.0, %v3561
    %3563 = vmatmul.bf16.gmra.mxu0 %v2048
    %v3564 = vpop.f32.mrf.mxu0
    %v3565 = vadd.f32 0.0, %v3564
    %v3566 = vpop.f32.mrf.mxu0
    %v3567 = vadd.f32 0.0, %v3566
    %3568 = vmatmul.bf16.gmra.mxu0 %v2050
    %v3569 = vpop.f32.mrf.mxu0
    %v3570 = vadd.f32 0.0, %v3569
    %v3571 = vpop.f32.mrf.mxu0
    %v3572 = vadd.f32 0.0, %v3571
    %3573 = vmatmul.bf16.gmra.mxu0 %v2052
    %v3574 = vpop.f32.mrf.mxu0
    %v3575 = vadd.f32 0.0, %v3574
    %v3576 = vpop.f32.mrf.mxu0
    %v3577 = vadd.f32 0.0, %v3576
    %3578 = vmatmul.bf16.gmra.mxu0 %v2054
    %v3579 = vpop.f32.mrf.mxu0
    %v3580 = vadd.f32 0.0, %v3579
    %v3581 = vpop.f32.mrf.mxu0
    %v3582 = vadd.f32 0.0, %v3581
    %3583 = vmatmul.bf16.gmra.mxu0 %v2056
    %v3584 = vpop.f32.mrf.mxu0
    %v3585 = vadd.f32 0.0, %v3584
    %v3586 = vpop.f32.mrf.mxu0
    %v3587 = vadd.f32 0.0, %v3586
    %3588 = vmatmul.bf16.gmra.mxu0 %v2058
    %v3589 = vpop.f32.mrf.mxu0
    %v3590 = vadd.f32 0.0, %v3589
    %v3591 = vpop.f32.mrf.mxu0
    %v3592 = vadd.f32 0.0, %v3591
    %3593 = vmatmul.bf16.gmra.mxu0 %v2060
    %v3594 = vpop.f32.mrf.mxu0
    %v3595 = vadd.f32 0.0, %v3594
    %v3596 = vpop.f32.mrf.mxu0
    %v3597 = vadd.f32 0.0, %v3596
    %3598 = vmatmul.bf16.gmra.mxu0 %v2062
    %v3599 = vpop.f32.mrf.mxu0
    %v3600 = vadd.f32 0.0, %v3599
    %v3601 = vpop.f32.mrf.mxu0
    %v3602 = vadd.f32 0.0, %v3601
    %3603 = vmatmul.bf16.gmra.mxu0 %v2064
    %v3604 = vpop.f32.mrf.mxu0
    %v3605 = vadd.f32 0.0, %v3604
    %v3606 = vpop.f32.mrf.mxu0
    %v3607 = vadd.f32 0.0, %v3606
    %3608 = vmatmul.bf16.gmra.mxu0 %v2066
    %v3609 = vpop.f32.mrf.mxu0
    %v3610 = vadd.f32 0.0, %v3609
    %v3611 = vpop.f32.mrf.mxu0
    %v3612 = vadd.f32 0.0, %v3611
    %3613 = vmatmul.bf16.gmra.mxu0 %v2068
    %v3614 = vpop.f32.mrf.mxu0
    %v3615 = vadd.f32 0.0, %v3614
    %v3616 = vpop.f32.mrf.mxu0
    %v3617 = vadd.f32 0.0, %v3616
    %3618 = vdwg.mxu0
    %3619 = vmatpush.bf16.msra.mxu0 %v2657
    %3620 = vmatpush.bf16.msra.mxu0 %v2650
    %3621 = vmatpush.bf16.msra.mxu0 %v2643
    %3622 = vmatpush.bf16.msra.mxu0 %v2636
    %3623 = vmatpush.bf16.msra.mxu0 %v2629
    %3624 = vmatpush.bf16.msra.mxu0 %v2622
    %3625 = vmatpush.bf16.msra.mxu0 %v2615
    %3626 = vmatpush.bf16.msra.mxu0 %v2608
    %3627 = vmatmul.bf16.gmra.mxu0 %v2007
    %v3628 = vpop.f32.mrf.mxu0
    %v3629 = vadd.f32 %v3460, %v3628
    %v3630 = vpop.f32.mrf.mxu0
    %v3631 = vadd.f32 %v3462, %v3630
    %3632 = vmatmul.bf16.gmra.mxu0 %v2009
    %v3633 = vpop.f32.mrf.mxu0
    %v3634 = vadd.f32 %v3465, %v3633
    %v3635 = vpop.f32.mrf.mxu0
    %v3636 = vadd.f32 %v3467, %v3635
    %3637 = vmatmul.bf16.gmra.mxu0 %v2011
    %v3638 = vpop.f32.mrf.mxu0
    %v3639 = vadd.f32 %v3470, %v3638
    %v3640 = vpop.f32.mrf.mxu0
    %v3641 = vadd.f32 %v3472, %v3640
    %3642 = vmatmul.bf16.gmra.mxu0 %v2013
    %v3643 = vpop.f32.mrf.mxu0
    %v3644 = vadd.f32 %v3475, %v3643
    %v3645 = vpop.f32.mrf.mxu0
    %v3646 = vadd.f32 %v3477, %v3645
    %3647 = vmatmul.bf16.gmra.mxu0 %v2015
    %v3648 = vpop.f32.mrf.mxu0
    %v3649 = vadd.f32 %v3480, %v3648
    %v3650 = vpop.f32.mrf.mxu0
    %v3651 = vadd.f32 %v3482, %v3650
    %3652 = vmatmul.bf16.gmra.mxu0 %v2017
    %v3653 = vpop.f32.mrf.mxu0
    %v3654 = vadd.f32 %v3485, %v3653
    %v3655 = vpop.f32.mrf.mxu0
    %v3656 = vadd.f32 %v3487, %v3655
    %3657 = vmatmul.bf16.gmra.mxu0 %v2019
    %v3658 = vpop.f32.mrf.mxu0
    %v3659 = vadd.f32 %v3490, %v3658
    %v3660 = vpop.f32.mrf.mxu0
    %v3661 = vadd.f32 %v3492, %v3660
    %3662 = vmatmul.bf16.gmra.mxu0 %v2021
    %v3663 = vpop.f32.mrf.mxu0
    %v3664 = vadd.f32 %v3495, %v3663
    %v3665 = vpop.f32.mrf.mxu0
    %v3666 = vadd.f32 %v3497, %v3665
    %3667 = vmatmul.bf16.gmra.mxu0 %v2023
    %v3668 = vpop.f32.mrf.mxu0
    %v3669 = vadd.f32 %v3500, %v3668
    %v3670 = vpop.f32.mrf.mxu0
    %v3671 = vadd.f32 %v3502, %v3670
    %3672 = vmatmul.bf16.gmra.mxu0 %v2025
    %v3673 = vpop.f32.mrf.mxu0
    %v3674 = vadd.f32 %v3505, %v3673
    %v3675 = vpop.f32.mrf.mxu0
    %v3676 = vadd.f32 %v3507, %v3675
    %3677 = vmatmul.bf16.gmra.mxu0 %v2027
    %v3678 = vpop.f32.mrf.mxu0
    %v3679 = vadd.f32 %v3510, %v3678
    %v3680 = vpop.f32.mrf.mxu0
    %v3681 = vadd.f32 %v3512, %v3680
    %3682 = vmatmul.bf16.gmra.mxu0 %v2029
    %v3683 = vpop.f32.mrf.mxu0
    %v3684 = vadd.f32 %v3515, %v3683
    %v3685 = vpop.f32.mrf.mxu0
    %v3686 = vadd.f32 %v3517, %v3685
    %3687 = vmatmul.bf16.gmra.mxu0 %v2031
    %v3688 = vpop.f32.mrf.mxu0
    %v3689 = vadd.f32 %v3520, %v3688
    %v3690 = vpop.f32.mrf.mxu0
    %v3691 = vadd.f32 %v3522, %v3690
    %3692 = vmatmul.bf16.gmra.mxu0 %v2033
    %v3693 = vpop.f32.mrf.mxu0
    %v3694 = vadd.f32 %v3525, %v3693
    %v3695 = vpop.f32.mrf.mxu0
    %v3696 = vadd.f32 %v3527, %v3695
    %3697 = vmatmul.bf16.gmra.mxu0 %v2035
    %v3698 = vpop.f32.mrf.mxu0
    %v3699 = vadd.f32 %v3530, %v3698
    %v3700 = vpop.f32.mrf.mxu0
    %v3701 = vadd.f32 %v3532, %v3700
    %3702 = vmatmul.bf16.gmra.mxu0 %v2037
    %v3703 = vpop.f32.mrf.mxu0
    %v3704 = vadd.f32 %v3535, %v3703
    %v3705 = vpop.f32.mrf.mxu0
    %v3706 = vadd.f32 %v3537, %v3705
    %3707 = vmatmul.bf16.gmra.mxu0 %v2039
    %v3708 = vpop.f32.mrf.mxu0
    %v3709 = vadd.f32 %v3540, %v3708
    %v3710 = vpop.f32.mrf.mxu0
    %v3711 = vadd.f32 %v3542, %v3710
    %3712 = vmatmul.bf16.gmra.mxu0 %v2041
    %v3713 = vpop.f32.mrf.mxu0
    %v3714 = vadd.f32 %v3545, %v3713
    %v3715 = vpop.f32.mrf.mxu0
    %v3716 = vadd.f32 %v3547, %v3715
    %3717 = vmatmul.bf16.gmra.mxu0 %v2043
    %v3718 = vpop.f32.mrf.mxu0
    %v3719 = vadd.f32 %v3550, %v3718
    %v3720 = vpop.f32.mrf.mxu0
    %v3721 = vadd.f32 %v3552, %v3720
    %3722 = vmatmul.bf16.gmra.mxu0 %v2045
    %v3723 = vpop.f32.mrf.mxu0
    %v3724 = vadd.f32 %v3555, %v3723
    %v3725 = vpop.f32.mrf.mxu0
    %v3726 = vadd.f32 %v3557, %v3725
    %3727 = vmatmul.bf16.gmra.mxu0 %v2047
    %v3728 = vpop.f32.mrf.mxu0
    %v3729 = vadd.f32 %v3560, %v3728
    %v3730 = vpop.f32.mrf.mxu0
    %v3731 = vadd.f32 %v3562, %v3730
    %3732 = vmatmul.bf16.gmra.mxu0 %v2049
    %v3733 = vpop.f32.mrf.mxu0
    %v3734 = vadd.f32 %v3565, %v3733
    %v3735 = vpop.f32.mrf.mxu0
    %v3736 = vadd.f32 %v3567, %v3735
    %3737 = vmatmul.bf16.gmra.mxu0 %v2051
    %v3738 = vpop.f32.mrf.mxu0
    %v3739 = vadd.f32 %v3570, %v3738
    %v3740 = vpop.f32.mrf.mxu0
    %v3741 = vadd.f32 %v3572, %v3740
    %3742 = vmatmul.bf16.gmra.mxu0 %v2053
    %v3743 = vpop.f32.mrf.mxu0
    %v3744 = vadd.f32 %v3575, %v3743
    %v3745 = vpop.f32.mrf.mxu0
    %v3746 = vadd.f32 %v3577, %v3745
    %3747 = vmatmul.bf16.gmra.mxu0 %v2055
    %v3748 = vpop.f32.mrf.mxu0
    %v3749 = vadd.f32 %v3580, %v3748
    %v3750 = vpop.f32.mrf.mxu0
    %v3751 = vadd.f32 %v3582, %v3750
    %3752 = vmatmul.bf16.gmra.mxu0 %v2057
    %v3753 = vpop.f32.mrf.mxu0
    %v3754 = vadd.f32 %v3585, %v3753
    %v3755 = vpop.f32.mrf.mxu0
    %v3756 = vadd.f32 %v3587, %v3755
    %3757 = vmatmul.bf16.gmra.mxu0 %v2059
    %v3758 = vpop.f32.mrf.mxu0
    %v3759 = vadd.f32 %v3590, %v3758
    %v3760 = vpop.f32.mrf.mxu0
    %v3761 = vadd.f32 %v3592, %v3760
    %3762 = vmatmul.bf16.gmra.mxu0 %v2061
    %v3763 = vpop.f32.mrf.mxu0
    %v3764 = vadd.f32 %v3595, %v3763
    %v3765 = vpop.f32.mrf.mxu0
    %v3766 = vadd.f32 %v3597, %v3765
    %3767 = vmatmul.bf16.gmra.mxu0 %v2063
    %v3768 = vpop.f32.mrf.mxu0
    %v3769 = vadd.f32 %v3600, %v3768
    %v3770 = vpop.f32.mrf.mxu0
    %v3771 = vadd.f32 %v3602, %v3770
    %3772 = vmatmul.bf16.gmra.mxu0 %v2065
    %v3773 = vpop.f32.mrf.mxu0
    %v3774 = vadd.f32 %v3605, %v3773
    %v3775 = vpop.f32.mrf.mxu0
    %v3776 = vadd.f32 %v3607, %v3775
    %3777 = vmatmul.bf16.gmra.mxu0 %v2067
    %v3778 = vpop.f32.mrf.mxu0
    %v3779 = vadd.f32 %v3610, %v3778
    %v3780 = vpop.f32.mrf.mxu0
    %v3781 = vadd.f32 %v3612, %v3780
    %3782 = vmatmul.bf16.gmra.mxu0 %v2069
    %v3783 = vpop.f32.mrf.mxu0
    %v3784 = vadd.f32 %v3615, %v3783
    %v3785 = vpop.f32.mrf.mxu0
    %v3786 = vadd.f32 %v3617, %v3785
    %3787 = vdwg.mxu0
    %3788 = vmatpush.bf16.msra.mxu0 %v2602
    %3789 = vmatpush.bf16.msra.mxu0 %v2595
    %3790 = vmatpush.bf16.msra.mxu0 %v2588
    %3791 = vmatpush.bf16.msra.mxu0 %v2581
    %3792 = vmatpush.bf16.msra.mxu0 %v2574
    %3793 = vmatpush.bf16.msra.mxu0 %v2567
    %3794 = vmatpush.bf16.msra.mxu0 %v2560
    %3795 = vmatpush.bf16.msra.mxu0 %v2553
    %3796 = vmatmul.bf16.gmra.mxu0 %v2006
    %v3797 = vpop.f32.mrf.mxu0
    %v3798 = vadd.f32 0.0, %v3797
    %v3799 = vpop.f32.mrf.mxu0
    %v3800 = vadd.f32 0.0, %v3799
    %3801 = vmatmul.bf16.gmra.mxu0 %v2008
    %v3802 = vpop.f32.mrf.mxu0
    %v3803 = vadd.f32 0.0, %v3802
    %v3804 = vpop.f32.mrf.mxu0
    %v3805 = vadd.f32 0.0, %v3804
    %3806 = vmatmul.bf16.gmra.mxu0 %v2010
    %v3807 = vpop.f32.mrf.mxu0
    %v3808 = vadd.f32 0.0, %v3807
    %v3809 = vpop.f32.mrf.mxu0
    %v3810 = vadd.f32 0.0, %v3809
    %3811 = vmatmul.bf16.gmra.mxu0 %v2012
    %v3812 = vpop.f32.mrf.mxu0
    %v3813 = vadd.f32 0.0, %v3812
    %v3814 = vpop.f32.mrf.mxu0
    %v3815 = vadd.f32 0.0, %v3814
    %3816 = vmatmul.bf16.gmra.mxu0 %v2014
    %v3817 = vpop.f32.mrf.mxu0
    %v3818 = vadd.f32 0.0, %v3817
    %v3819 = vpop.f32.mrf.mxu0
    %v3820 = vadd.f32 0.0, %v3819
    %3821 = vmatmul.bf16.gmra.mxu0 %v2016
    %v3822 = vpop.f32.mrf.mxu0
    %v3823 = vadd.f32 0.0, %v3822
    %v3824 = vpop.f32.mrf.mxu0
    %v3825 = vadd.f32 0.0, %v3824
    %3826 = vmatmul.bf16.gmra.mxu0 %v2018
    %v3827 = vpop.f32.mrf.mxu0
    %v3828 = vadd.f32 0.0, %v3827
    %v3829 = vpop.f32.mrf.mxu0
    %v3830 = vadd.f32 0.0, %v3829
    %3831 = vmatmul.bf16.gmra.mxu0 %v2020
    %v3832 = vpop.f32.mrf.mxu0
    %v3833 = vadd.f32 0.0, %v3832
    %v3834 = vpop.f32.mrf.mxu0
    %v3835 = vadd.f32 0.0, %v3834
    %3836 = vmatmul.bf16.gmra.mxu0 %v2022
    %v3837 = vpop.f32.mrf.mxu0
    %v3838 = vadd.f32 0.0, %v3837
    %v3839 = vpop.f32.mrf.mxu0
    %v3840 = vadd.f32 0.0, %v3839
    %3841 = vmatmul.bf16.gmra.mxu0 %v2024
    %v3842 = vpop.f32.mrf.mxu0
    %v3843 = vadd.f32 0.0, %v3842
    %v3844 = vpop.f32.mrf.mxu0
    %v3845 = vadd.f32 0.0, %v3844
    %3846 = vmatmul.bf16.gmra.mxu0 %v2026
    %v3847 = vpop.f32.mrf.mxu0
    %v3848 = vadd.f32 0.0, %v3847
    %v3849 = vpop.f32.mrf.mxu0
    %v3850 = vadd.f32 0.0, %v3849
    %3851 = vmatmul.bf16.gmra.mxu0 %v2028
    %v3852 = vpop.f32.mrf.mxu0
    %v3853 = vadd.f32 0.0, %v3852
    %v3854 = vpop.f32.mrf.mxu0
    %v3855 = vadd.f32 0.0, %v3854
    %3856 = vmatmul.bf16.gmra.mxu0 %v2030
    %v3857 = vpop.f32.mrf.mxu0
    %v3858 = vadd.f32 0.0, %v3857
    %v3859 = vpop.f32.mrf.mxu0
    %v3860 = vadd.f32 0.0, %v3859
    %3861 = vmatmul.bf16.gmra.mxu0 %v2032
    %v3862 = vpop.f32.mrf.mxu0
    %v3863 = vadd.f32 0.0, %v3862
    %v3864 = vpop.f32.mrf.mxu0
    %v3865 = vadd.f32 0.0, %v3864
    %3866 = vmatmul.bf16.gmra.mxu0 %v2034
    %v3867 = vpop.f32.mrf.mxu0
    %v3868 = vadd.f32 0.0, %v3867
    %v3869 = vpop.f32.mrf.mxu0
    %v3870 = vadd.f32 0.0, %v3869
    %3871 = vmatmul.bf16.gmra.mxu0 %v2036
    %v3872 = vpop.f32.mrf.mxu0
    %v3873 = vadd.f32 0.0, %v3872
    %v3874 = vpop.f32.mrf.mxu0
    %v3875 = vadd.f32 0.0, %v3874
    %3876 = vmatmul.bf16.gmra.mxu0 %v2038
    %v3877 = vpop.f32.mrf.mxu0
    %v3878 = vadd.f32 0.0, %v3877
    %v3879 = vpop.f32.mrf.mxu0
    %v3880 = vadd.f32 0.0, %v3879
    %3881 = vmatmul.bf16.gmra.mxu0 %v2040
    %v3882 = vpop.f32.mrf.mxu0
    %v3883 = vadd.f32 0.0, %v3882
    %v3884 = vpop.f32.mrf.mxu0
    %v3885 = vadd.f32 0.0, %v3884
    %3886 = vmatmul.bf16.gmra.mxu0 %v2042
    %v3887 = vpop.f32.mrf.mxu0
    %v3888 = vadd.f32 0.0, %v3887
    %v3889 = vpop.f32.mrf.mxu0
    %v3890 = vadd.f32 0.0, %v3889
    %3891 = vmatmul.bf16.gmra.mxu0 %v2044
    %v3892 = vpop.f32.mrf.mxu0
    %v3893 = vadd.f32 0.0, %v3892
    %v3894 = vpop.f32.mrf.mxu0
    %v3895 = vadd.f32 0.0, %v3894
    %3896 = vmatmul.bf16.gmra.mxu0 %v2046
    %v3897 = vpop.f32.mrf.mxu0
    %v3898 = vadd.f32 0.0, %v3897
    %v3899 = vpop.f32.mrf.mxu0
    %v3900 = vadd.f32 0.0, %v3899
    %3901 = vmatmul.bf16.gmra.mxu0 %v2048
    %v3902 = vpop.f32.mrf.mxu0
    %v3903 = vadd.f32 0.0, %v3902
    %v3904 = vpop.f32.mrf.mxu0
    %v3905 = vadd.f32 0.0, %v3904
    %3906 = vmatmul.bf16.gmra.mxu0 %v2050
    %v3907 = vpop.f32.mrf.mxu0
    %v3908 = vadd.f32 0.0, %v3907
    %v3909 = vpop.f32.mrf.mxu0
    %v3910 = vadd.f32 0.0, %v3909
    %3911 = vmatmul.bf16.gmra.mxu0 %v2052
    %v3912 = vpop.f32.mrf.mxu0
    %v3913 = vadd.f32 0.0, %v3912
    %v3914 = vpop.f32.mrf.mxu0
    %v3915 = vadd.f32 0.0, %v3914
    %3916 = vmatmul.bf16.gmra.mxu0 %v2054
    %v3917 = vpop.f32.mrf.mxu0
    %v3918 = vadd.f32 0.0, %v3917
    %v3919 = vpop.f32.mrf.mxu0
    %v3920 = vadd.f32 0.0, %v3919
    %3921 = vmatmul.bf16.gmra.mxu0 %v2056
    %v3922 = vpop.f32.mrf.mxu0
    %v3923 = vadd.f32 0.0, %v3922
    %v3924 = vpop.f32.mrf.mxu0
    %v3925 = vadd.f32 0.0, %v3924
    %3926 = vmatmul.bf16.gmra.mxu0 %v2058
    %v3927 = vpop.f32.mrf.mxu0
    %v3928 = vadd.f32 0.0, %v3927
    %v3929 = vpop.f32.mrf.mxu0
    %v3930 = vadd.f32 0.0, %v3929
    %3931 = vmatmul.bf16.gmra.mxu0 %v2060
    %v3932 = vpop.f32.mrf.mxu0
    %v3933 = vadd.f32 0.0, %v3932
    %v3934 = vpop.f32.mrf.mxu0
    %v3935 = vadd.f32 0.0, %v3934
    %3936 = vmatmul.bf16.gmra.mxu0 %v2062
    %v3937 = vpop.f32.mrf.mxu0
    %v3938 = vadd.f32 0.0, %v3937
    %v3939 = vpop.f32.mrf.mxu0
    %v3940 = vadd.f32 0.0, %v3939
    %3941 = vmatmul.bf16.gmra.mxu0 %v2064
    %v3942 = vpop.f32.mrf.mxu0
    %v3943 = vadd.f32 0.0, %v3942
    %v3944 = vpop.f32.mrf.mxu0
    %v3945 = vadd.f32 0.0, %v3944
    %3946 = vmatmul.bf16.gmra.mxu0 %v2066
    %v3947 = vpop.f32.mrf.mxu0
    %v3948 = vadd.f32 0.0, %v3947
    %v3949 = vpop.f32.mrf.mxu0
    %v3950 = vadd.f32 0.0, %v3949
    %3951 = vmatmul.bf16.gmra.mxu0 %v2068
    %v3952 = vpop.f32.mrf.mxu0
    %v3953 = vadd.f32 0.0, %v3952
    %v3954 = vpop.f32.mrf.mxu0
    %v3955 = vadd.f32 0.0, %v3954
    %3956 = vdwg.mxu0
    %3957 = vmatpush.bf16.msra.mxu0 %v2658
    %3958 = vmatpush.bf16.msra.mxu0 %v2651
    %3959 = vmatpush.bf16.msra.mxu0 %v2644
    %3960 = vmatpush.bf16.msra.mxu0 %v2637
    %3961 = vmatpush.bf16.msra.mxu0 %v2630
    %3962 = vmatpush.bf16.msra.mxu0 %v2623
    %3963 = vmatpush.bf16.msra.mxu0 %v2616
    %3964 = vmatpush.bf16.msra.mxu0 %v2609
    %3965 = vmatmul.bf16.gmra.mxu0 %v2007
    %v3966 = vpop.f32.mrf.mxu0
    %v3967 = vadd.f32 %v3798, %v3966
    %v3968 = vpop.f32.mrf.mxu0
    %v3969 = vadd.f32 %v3800, %v3968
    %3970 = vmatmul.bf16.gmra.mxu0 %v2009
    %v3971 = vpop.f32.mrf.mxu0
    %v3972 = vadd.f32 %v3803, %v3971
    %v3973 = vpop.f32.mrf.mxu0
    %v3974 = vadd.f32 %v3805, %v3973
    %3975 = vmatmul.bf16.gmra.mxu0 %v2011
    %v3976 = vpop.f32.mrf.mxu0
    %v3977 = vadd.f32 %v3808, %v3976
    %v3978 = vpop.f32.mrf.mxu0
    %v3979 = vadd.f32 %v3810, %v3978
    %3980 = vmatmul.bf16.gmra.mxu0 %v2013
    %v3981 = vpop.f32.mrf.mxu0
    %v3982 = vadd.f32 %v3813, %v3981
    %v3983 = vpop.f32.mrf.mxu0
    %v3984 = vadd.f32 %v3815, %v3983
    %3985 = vmatmul.bf16.gmra.mxu0 %v2015
    %v3986 = vpop.f32.mrf.mxu0
    %v3987 = vadd.f32 %v3818, %v3986
    %v3988 = vpop.f32.mrf.mxu0
    %v3989 = vadd.f32 %v3820, %v3988
    %3990 = vmatmul.bf16.gmra.mxu0 %v2017
    %v3991 = vpop.f32.mrf.mxu0
    %v3992 = vadd.f32 %v3823, %v3991
    %v3993 = vpop.f32.mrf.mxu0
    %v3994 = vadd.f32 %v3825, %v3993
    %3995 = vmatmul.bf16.gmra.mxu0 %v2019
    %v3996 = vpop.f32.mrf.mxu0
    %v3997 = vadd.f32 %v3828, %v3996
    %v3998 = vpop.f32.mrf.mxu0
    %v3999 = vadd.f32 %v3830, %v3998
    %4000 = vmatmul.bf16.gmra.mxu0 %v2021
    %v4001 = vpop.f32.mrf.mxu0
    %v4002 = vadd.f32 %v3833, %v4001
    %v4003 = vpop.f32.mrf.mxu0
    %v4004 = vadd.f32 %v3835, %v4003
    %4005 = vmatmul.bf16.gmra.mxu0 %v2023
    %v4006 = vpop.f32.mrf.mxu0
    %v4007 = vadd.f32 %v3838, %v4006
    %v4008 = vpop.f32.mrf.mxu0
    %v4009 = vadd.f32 %v3840, %v4008
    %4010 = vmatmul.bf16.gmra.mxu0 %v2025
    %v4011 = vpop.f32.mrf.mxu0
    %v4012 = vadd.f32 %v3843, %v4011
    %v4013 = vpop.f32.mrf.mxu0
    %v4014 = vadd.f32 %v3845, %v4013
    %4015 = vmatmul.bf16.gmra.mxu0 %v2027
    %v4016 = vpop.f32.mrf.mxu0
    %v4017 = vadd.f32 %v3848, %v4016
    %v4018 = vpop.f32.mrf.mxu0
    %v4019 = vadd.f32 %v3850, %v4018
    %4020 = vmatmul.bf16.gmra.mxu0 %v2029
    %v4021 = vpop.f32.mrf.mxu0
    %v4022 = vadd.f32 %v3853, %v4021
    %v4023 = vpop.f32.mrf.mxu0
    %v4024 = vadd.f32 %v3855, %v4023
    %4025 = vmatmul.bf16.gmra.mxu0 %v2031
    %v4026 = vpop.f32.mrf.mxu0
    %v4027 = vadd.f32 %v3858, %v4026
    %v4028 = vpop.f32.mrf.mxu0
    %v4029 = vadd.f32 %v3860, %v4028
    %4030 = vmatmul.bf16.gmra.mxu0 %v2033
    %v4031 = vpop.f32.mrf.mxu0
    %v4032 = vadd.f32 %v3863, %v4031
    %v4033 = vpop.f32.mrf.mxu0
    %v4034 = vadd.f32 %v3865, %v4033
    %4035 = vmatmul.bf16.gmra.mxu0 %v2035
    %v4036 = vpop.f32.mrf.mxu0
    %v4037 = vadd.f32 %v3868, %v4036
    %v4038 = vpop.f32.mrf.mxu0
    %v4039 = vadd.f32 %v3870, %v4038
    %4040 = vmatmul.bf16.gmra.mxu0 %v2037
    %v4041 = vpop.f32.mrf.mxu0
    %v4042 = vadd.f32 %v3873, %v4041
    %v4043 = vpop.f32.mrf.mxu0
    %v4044 = vadd.f32 %v3875, %v4043
    %4045 = vmatmul.bf16.gmra.mxu0 %v2039
    %v4046 = vpop.f32.mrf.mxu0
    %v4047 = vadd.f32 %v3878, %v4046
    %v4048 = vpop.f32.mrf.mxu0
    %v4049 = vadd.f32 %v3880, %v4048
    %4050 = vmatmul.bf16.gmra.mxu0 %v2041
    %v4051 = vpop.f32.mrf.mxu0
    %v4052 = vadd.f32 %v3883, %v4051
    %v4053 = vpop.f32.mrf.mxu0
    %v4054 = vadd.f32 %v3885, %v4053
    %4055 = vmatmul.bf16.gmra.mxu0 %v2043
    %v4056 = vpop.f32.mrf.mxu0
    %v4057 = vadd.f32 %v3888, %v4056
    %v4058 = vpop.f32.mrf.mxu0
    %v4059 = vadd.f32 %v3890, %v4058
    %4060 = vmatmul.bf16.gmra.mxu0 %v2045
    %v4061 = vpop.f32.mrf.mxu0
    %v4062 = vadd.f32 %v3893, %v4061
    %v4063 = vpop.f32.mrf.mxu0
    %v4064 = vadd.f32 %v3895, %v4063
    %4065 = vmatmul.bf16.gmra.mxu0 %v2047
    %v4066 = vpop.f32.mrf.mxu0
    %v4067 = vadd.f32 %v3898, %v4066
    %v4068 = vpop.f32.mrf.mxu0
    %v4069 = vadd.f32 %v3900, %v4068
    %4070 = vmatmul.bf16.gmra.mxu0 %v2049
    %v4071 = vpop.f32.mrf.mxu0
    %v4072 = vadd.f32 %v3903, %v4071
    %v4073 = vpop.f32.mrf.mxu0
    %v4074 = vadd.f32 %v3905, %v4073
    %4075 = vmatmul.bf16.gmra.mxu0 %v2051
    %v4076 = vpop.f32.mrf.mxu0
    %v4077 = vadd.f32 %v3908, %v4076
    %v4078 = vpop.f32.mrf.mxu0
    %v4079 = vadd.f32 %v3910, %v4078
    %4080 = vmatmul.bf16.gmra.mxu0 %v2053
    %v4081 = vpop.f32.mrf.mxu0
    %v4082 = vadd.f32 %v3913, %v4081
    %v4083 = vpop.f32.mrf.mxu0
    %v4084 = vadd.f32 %v3915, %v4083
    %4085 = vmatmul.bf16.gmra.mxu0 %v2055
    %v4086 = vpop.f32.mrf.mxu0
    %v4087 = vadd.f32 %v3918, %v4086
    %v4088 = vpop.f32.mrf.mxu0
    %v4089 = vadd.f32 %v3920, %v4088
    %4090 = vmatmul.bf16.gmra.mxu0 %v2057
    %v4091 = vpop.f32.mrf.mxu0
    %v4092 = vadd.f32 %v3923, %v4091
    %v4093 = vpop.f32.mrf.mxu0
    %v4094 = vadd.f32 %v3925, %v4093
    %4095 = vmatmul.bf16.gmra.mxu0 %v2059
    %v4096 = vpop.f32.mrf.mxu0
    %v4097 = vadd.f32 %v3928, %v4096
    %v4098 = vpop.f32.mrf.mxu0
    %v4099 = vadd.f32 %v3930, %v4098
    %4100 = vmatmul.bf16.gmra.mxu0 %v2061
    %v4101 = vpop.f32.mrf.mxu0
    %v4102 = vadd.f32 %v3933, %v4101
    %v4103 = vpop.f32.mrf.mxu0
    %v4104 = vadd.f32 %v3935, %v4103
    %4105 = vmatmul.bf16.gmra.mxu0 %v2063
    %v4106 = vpop.f32.mrf.mxu0
    %v4107 = vadd.f32 %v3938, %v4106
    %v4108 = vpop.f32.mrf.mxu0
    %v4109 = vadd.f32 %v3940, %v4108
    %4110 = vmatmul.bf16.gmra.mxu0 %v2065
    %v4111 = vpop.f32.mrf.mxu0
    %v4112 = vadd.f32 %v3943, %v4111
    %v4113 = vpop.f32.mrf.mxu0
    %v4114 = vadd.f32 %v3945, %v4113
    %4115 = vmatmul.bf16.gmra.mxu0 %v2067
    %v4116 = vpop.f32.mrf.mxu0
    %v4117 = vadd.f32 %v3948, %v4116
    %v4118 = vpop.f32.mrf.mxu0
    %v4119 = vadd.f32 %v3950, %v4118
    %4120 = vmatmul.bf16.gmra.mxu0 %v2069
    %v4121 = vpop.f32.mrf.mxu0
    %v4122 = vadd.f32 %v3953, %v4121
    %v4123 = vpop.f32.mrf.mxu0
    %v4124 = vadd.f32 %v3955, %v4123
    %4125 = vdwg.mxu0
    %4126 = vmatpush.bf16.msra.mxu0 %v2603
    %4127 = vmatpush.bf16.msra.mxu0 %v2596
    %4128 = vmatpush.bf16.msra.mxu0 %v2589
    %4129 = vmatpush.bf16.msra.mxu0 %v2582
    %4130 = vmatpush.bf16.msra.mxu0 %v2575
    %4131 = vmatpush.bf16.msra.mxu0 %v2568
    %4132 = vmatpush.bf16.msra.mxu0 %v2561
    %4133 = vmatpush.bf16.msra.mxu0 %v2554
    %4134 = vmatmul.bf16.gmra.mxu0 %v2006
    %v4135 = vpop.f32.mrf.mxu0
    %v4136 = vadd.f32 0.0, %v4135
    %v4137 = vpop.f32.mrf.mxu0
    %v4138 = vadd.f32 0.0, %v4137
    %4139 = vmatmul.bf16.gmra.mxu0 %v2008
    %v4140 = vpop.f32.mrf.mxu0
    %v4141 = vadd.f32 0.0, %v4140
    %v4142 = vpop.f32.mrf.mxu0
    %v4143 = vadd.f32 0.0, %v4142
    %4144 = vmatmul.bf16.gmra.mxu0 %v2010
    %v4145 = vpop.f32.mrf.mxu0
    %v4146 = vadd.f32 0.0, %v4145
    %v4147 = vpop.f32.mrf.mxu0
    %v4148 = vadd.f32 0.0, %v4147
    %4149 = vmatmul.bf16.gmra.mxu0 %v2012
    %v4150 = vpop.f32.mrf.mxu0
    %v4151 = vadd.f32 0.0, %v4150
    %v4152 = vpop.f32.mrf.mxu0
    %v4153 = vadd.f32 0.0, %v4152
    %4154 = vmatmul.bf16.gmra.mxu0 %v2014
    %v4155 = vpop.f32.mrf.mxu0
    %v4156 = vadd.f32 0.0, %v4155
    %v4157 = vpop.f32.mrf.mxu0
    %v4158 = vadd.f32 0.0, %v4157
    %4159 = vmatmul.bf16.gmra.mxu0 %v2016
    %v4160 = vpop.f32.mrf.mxu0
    %v4161 = vadd.f32 0.0, %v4160
    %v4162 = vpop.f32.mrf.mxu0
    %v4163 = vadd.f32 0.0, %v4162
    %4164 = vmatmul.bf16.gmra.mxu0 %v2018
    %v4165 = vpop.f32.mrf.mxu0
    %v4166 = vadd.f32 0.0, %v4165
    %v4167 = vpop.f32.mrf.mxu0
    %v4168 = vadd.f32 0.0, %v4167
    %4169 = vmatmul.bf16.gmra.mxu0 %v2020
    %v4170 = vpop.f32.mrf.mxu0
    %v4171 = vadd.f32 0.0, %v4170
    %v4172 = vpop.f32.mrf.mxu0
    %v4173 = vadd.f32 0.0, %v4172
    %4174 = vmatmul.bf16.gmra.mxu0 %v2022
    %v4175 = vpop.f32.mrf.mxu0
    %v4176 = vadd.f32 0.0, %v4175
    %v4177 = vpop.f32.mrf.mxu0
    %v4178 = vadd.f32 0.0, %v4177
    %4179 = vmatmul.bf16.gmra.mxu0 %v2024
    %v4180 = vpop.f32.mrf.mxu0
    %v4181 = vadd.f32 0.0, %v4180
    %v4182 = vpop.f32.mrf.mxu0
    %v4183 = vadd.f32 0.0, %v4182
    %4184 = vmatmul.bf16.gmra.mxu0 %v2026
    %v4185 = vpop.f32.mrf.mxu0
    %v4186 = vadd.f32 0.0, %v4185
    %v4187 = vpop.f32.mrf.mxu0
    %v4188 = vadd.f32 0.0, %v4187
    %4189 = vmatmul.bf16.gmra.mxu0 %v2028
    %v4190 = vpop.f32.mrf.mxu0
    %v4191 = vadd.f32 0.0, %v4190
    %v4192 = vpop.f32.mrf.mxu0
    %v4193 = vadd.f32 0.0, %v4192
    %4194 = vmatmul.bf16.gmra.mxu0 %v2030
    %v4195 = vpop.f32.mrf.mxu0
    %v4196 = vadd.f32 0.0, %v4195
    %v4197 = vpop.f32.mrf.mxu0
    %v4198 = vadd.f32 0.0, %v4197
    %4199 = vmatmul.bf16.gmra.mxu0 %v2032
    %v4200 = vpop.f32.mrf.mxu0
    %v4201 = vadd.f32 0.0, %v4200
    %v4202 = vpop.f32.mrf.mxu0
    %v4203 = vadd.f32 0.0, %v4202
    %4204 = vmatmul.bf16.gmra.mxu0 %v2034
    %v4205 = vpop.f32.mrf.mxu0
    %v4206 = vadd.f32 0.0, %v4205
    %v4207 = vpop.f32.mrf.mxu0
    %v4208 = vadd.f32 0.0, %v4207
    %4209 = vmatmul.bf16.gmra.mxu0 %v2036
    %v4210 = vpop.f32.mrf.mxu0
    %v4211 = vadd.f32 0.0, %v4210
    %v4212 = vpop.f32.mrf.mxu0
    %v4213 = vadd.f32 0.0, %v4212
    %4214 = vmatmul.bf16.gmra.mxu0 %v2038
    %v4215 = vpop.f32.mrf.mxu0
    %v4216 = vadd.f32 0.0, %v4215
    %v4217 = vpop.f32.mrf.mxu0
    %v4218 = vadd.f32 0.0, %v4217
    %4219 = vmatmul.bf16.gmra.mxu0 %v2040
    %v4220 = vpop.f32.mrf.mxu0
    %v4221 = vadd.f32 0.0, %v4220
    %v4222 = vpop.f32.mrf.mxu0
    %v4223 = vadd.f32 0.0, %v4222
    %4224 = vmatmul.bf16.gmra.mxu0 %v2042
    %v4225 = vpop.f32.mrf.mxu0
    %v4226 = vadd.f32 0.0, %v4225
    %v4227 = vpop.f32.mrf.mxu0
    %v4228 = vadd.f32 0.0, %v4227
    %4229 = vmatmul.bf16.gmra.mxu0 %v2044
    %v4230 = vpop.f32.mrf.mxu0
    %v4231 = vadd.f32 0.0, %v4230
    %v4232 = vpop.f32.mrf.mxu0
    %v4233 = vadd.f32 0.0, %v4232
    %4234 = vmatmul.bf16.gmra.mxu0 %v2046
    %v4235 = vpop.f32.mrf.mxu0
    %v4236 = vadd.f32 0.0, %v4235
    %v4237 = vpop.f32.mrf.mxu0
    %v4238 = vadd.f32 0.0, %v4237
    %4239 = vmatmul.bf16.gmra.mxu0 %v2048
    %v4240 = vpop.f32.mrf.mxu0
    %v4241 = vadd.f32 0.0, %v4240
    %v4242 = vpop.f32.mrf.mxu0
    %v4243 = vadd.f32 0.0, %v4242
    %4244 = vmatmul.bf16.gmra.mxu0 %v2050
    %v4245 = vpop.f32.mrf.mxu0
    %v4246 = vadd.f32 0.0, %v4245
    %v4247 = vpop.f32.mrf.mxu0
    %v4248 = vadd.f32 0.0, %v4247
    %4249 = vmatmul.bf16.gmra.mxu0 %v2052
    %v4250 = vpop.f32.mrf.mxu0
    %v4251 = vadd.f32 0.0, %v4250
    %v4252 = vpop.f32.mrf.mxu0
    %v4253 = vadd.f32 0.0, %v4252
    %4254 = vmatmul.bf16.gmra.mxu0 %v2054
    %v4255 = vpop.f32.mrf.mxu0
    %v4256 = vadd.f32 0.0, %v4255
    %v4257 = vpop.f32.mrf.mxu0
    %v4258 = vadd.f32 0.0, %v4257
    %4259 = vmatmul.bf16.gmra.mxu0 %v2056
    %v4260 = vpop.f32.mrf.mxu0
    %v4261 = vadd.f32 0.0, %v4260
    %v4262 = vpop.f32.mrf.mxu0
    %v4263 = vadd.f32 0.0, %v4262
    %4264 = vmatmul.bf16.gmra.mxu0 %v2058
    %v4265 = vpop.f32.mrf.mxu0
    %v4266 = vadd.f32 0.0, %v4265
    %v4267 = vpop.f32.mrf.mxu0
    %v4268 = vadd.f32 0.0, %v4267
    %4269 = vmatmul.bf16.gmra.mxu0 %v2060
    %v4270 = vpop.f32.mrf.mxu0
    %v4271 = vadd.f32 0.0, %v4270
    %v4272 = vpop.f32.mrf.mxu0
    %v4273 = vadd.f32 0.0, %v4272
    %4274 = vmatmul.bf16.gmra.mxu0 %v2062
    %v4275 = vpop.f32.mrf.mxu0
    %v4276 = vadd.f32 0.0, %v4275
    %v4277 = vpop.f32.mrf.mxu0
    %v4278 = vadd.f32 0.0, %v4277
    %4279 = vmatmul.bf16.gmra.mxu0 %v2064
    %v4280 = vpop.f32.mrf.mxu0
    %v4281 = vadd.f32 0.0, %v4280
    %v4282 = vpop.f32.mrf.mxu0
    %v4283 = vadd.f32 0.0, %v4282
    %4284 = vmatmul.bf16.gmra.mxu0 %v2066
    %v4285 = vpop.f32.mrf.mxu0
    %v4286 = vadd.f32 0.0, %v4285
    %v4287 = vpop.f32.mrf.mxu0
    %v4288 = vadd.f32 0.0, %v4287
    %4289 = vmatmul.bf16.gmra.mxu0 %v2068
    %v4290 = vpop.f32.mrf.mxu0
    %v4291 = vadd.f32 0.0, %v4290
    %v4292 = vpop.f32.mrf.mxu0
    %v4293 = vadd.f32 0.0, %v4292
    %4294 = vdwg.mxu0
    %4295 = vmatpush.bf16.msra.mxu0 %v2659
    %4296 = vmatpush.bf16.msra.mxu0 %v2652
    %4297 = vmatpush.bf16.msra.mxu0 %v2645
    %4298 = vmatpush.bf16.msra.mxu0 %v2638
    %4299 = vmatpush.bf16.msra.mxu0 %v2631
    %4300 = vmatpush.bf16.msra.mxu0 %v2624
    %4301 = vmatpush.bf16.msra.mxu0 %v2617
    %4302 = vmatpush.bf16.msra.mxu0 %v2610
    %4303 = vmatmul.bf16.gmra.mxu0 %v2007
    %v4304 = vpop.f32.mrf.mxu0
    %v4305 = vadd.f32 %v4136, %v4304
    %v4306 = vpop.f32.mrf.mxu0
    %v4307 = vadd.f32 %v4138, %v4306
    %4308 = vmatmul.bf16.gmra.mxu0 %v2009
    %v4309 = vpop.f32.mrf.mxu0
    %v4310 = vadd.f32 %v4141, %v4309
    %v4311 = vpop.f32.mrf.mxu0
    %v4312 = vadd.f32 %v4143, %v4311
    %4313 = vmatmul.bf16.gmra.mxu0 %v2011
    %v4314 = vpop.f32.mrf.mxu0
    %v4315 = vadd.f32 %v4146, %v4314
    %v4316 = vpop.f32.mrf.mxu0
    %v4317 = vadd.f32 %v4148, %v4316
    %4318 = vmatmul.bf16.gmra.mxu0 %v2013
    %v4319 = vpop.f32.mrf.mxu0
    %v4320 = vadd.f32 %v4151, %v4319
    %v4321 = vpop.f32.mrf.mxu0
    %v4322 = vadd.f32 %v4153, %v4321
    %4323 = vmatmul.bf16.gmra.mxu0 %v2015
    %v4324 = vpop.f32.mrf.mxu0
    %v4325 = vadd.f32 %v4156, %v4324
    %v4326 = vpop.f32.mrf.mxu0
    %v4327 = vadd.f32 %v4158, %v4326
    %4328 = vmatmul.bf16.gmra.mxu0 %v2017
    %v4329 = vpop.f32.mrf.mxu0
    %v4330 = vadd.f32 %v4161, %v4329
    %v4331 = vpop.f32.mrf.mxu0
    %v4332 = vadd.f32 %v4163, %v4331
    %4333 = vmatmul.bf16.gmra.mxu0 %v2019
    %v4334 = vpop.f32.mrf.mxu0
    %v4335 = vadd.f32 %v4166, %v4334
    %v4336 = vpop.f32.mrf.mxu0
    %v4337 = vadd.f32 %v4168, %v4336
    %4338 = vmatmul.bf16.gmra.mxu0 %v2021
    %v4339 = vpop.f32.mrf.mxu0
    %v4340 = vadd.f32 %v4171, %v4339
    %v4341 = vpop.f32.mrf.mxu0
    %v4342 = vadd.f32 %v4173, %v4341
    %4343 = vmatmul.bf16.gmra.mxu0 %v2023
    %v4344 = vpop.f32.mrf.mxu0
    %v4345 = vadd.f32 %v4176, %v4344
    %v4346 = vpop.f32.mrf.mxu0
    %v4347 = vadd.f32 %v4178, %v4346
    %4348 = vmatmul.bf16.gmra.mxu0 %v2025
    %v4349 = vpop.f32.mrf.mxu0
    %v4350 = vadd.f32 %v4181, %v4349
    %v4351 = vpop.f32.mrf.mxu0
    %v4352 = vadd.f32 %v4183, %v4351
    %4353 = vmatmul.bf16.gmra.mxu0 %v2027
    %v4354 = vpop.f32.mrf.mxu0
    %v4355 = vadd.f32 %v4186, %v4354
    %v4356 = vpop.f32.mrf.mxu0
    %v4357 = vadd.f32 %v4188, %v4356
    %4358 = vmatmul.bf16.gmra.mxu0 %v2029
    %v4359 = vpop.f32.mrf.mxu0
    %v4360 = vadd.f32 %v4191, %v4359
    %v4361 = vpop.f32.mrf.mxu0
    %v4362 = vadd.f32 %v4193, %v4361
    %4363 = vmatmul.bf16.gmra.mxu0 %v2031
    %v4364 = vpop.f32.mrf.mxu0
    %v4365 = vadd.f32 %v4196, %v4364
    %v4366 = vpop.f32.mrf.mxu0
    %v4367 = vadd.f32 %v4198, %v4366
    %4368 = vmatmul.bf16.gmra.mxu0 %v2033
    %v4369 = vpop.f32.mrf.mxu0
    %v4370 = vadd.f32 %v4201, %v4369
    %v4371 = vpop.f32.mrf.mxu0
    %v4372 = vadd.f32 %v4203, %v4371
    %4373 = vmatmul.bf16.gmra.mxu0 %v2035
    %v4374 = vpop.f32.mrf.mxu0
    %v4375 = vadd.f32 %v4206, %v4374
    %v4376 = vpop.f32.mrf.mxu0
    %v4377 = vadd.f32 %v4208, %v4376
    %4378 = vmatmul.bf16.gmra.mxu0 %v2037
    %v4379 = vpop.f32.mrf.mxu0
    %v4380 = vadd.f32 %v4211, %v4379
    %v4381 = vpop.f32.mrf.mxu0
    %v4382 = vadd.f32 %v4213, %v4381
    %4383 = vmatmul.bf16.gmra.mxu0 %v2039
    %v4384 = vpop.f32.mrf.mxu0
    %v4385 = vadd.f32 %v4216, %v4384
    %v4386 = vpop.f32.mrf.mxu0
    %v4387 = vadd.f32 %v4218, %v4386
    %4388 = vmatmul.bf16.gmra.mxu0 %v2041
    %v4389 = vpop.f32.mrf.mxu0
    %v4390 = vadd.f32 %v4221, %v4389
    %v4391 = vpop.f32.mrf.mxu0
    %v4392 = vadd.f32 %v4223, %v4391
    %4393 = vmatmul.bf16.gmra.mxu0 %v2043
    %v4394 = vpop.f32.mrf.mxu0
    %v4395 = vadd.f32 %v4226, %v4394
    %v4396 = vpop.f32.mrf.mxu0
    %v4397 = vadd.f32 %v4228, %v4396
    %4398 = vmatmul.bf16.gmra.mxu0 %v2045
    %v4399 = vpop.f32.mrf.mxu0
    %v4400 = vadd.f32 %v4231, %v4399
    %v4401 = vpop.f32.mrf.mxu0
    %v4402 = vadd.f32 %v4233, %v4401
    %4403 = vmatmul.bf16.gmra.mxu0 %v2047
    %v4404 = vpop.f32.mrf.mxu0
    %v4405 = vadd.f32 %v4236, %v4404
    %v4406 = vpop.f32.mrf.mxu0
    %v4407 = vadd.f32 %v4238, %v4406
    %4408 = vmatmul.bf16.gmra.mxu0 %v2049
    %v4409 = vpop.f32.mrf.mxu0
    %v4410 = vadd.f32 %v4241, %v4409
    %v4411 = vpop.f32.mrf.mxu0
    %v4412 = vadd.f32 %v4243, %v4411
    %4413 = vmatmul.bf16.gmra.mxu0 %v2051
    %v4414 = vpop.f32.mrf.mxu0
    %v4415 = vadd.f32 %v4246, %v4414
    %v4416 = vpop.f32.mrf.mxu0
    %v4417 = vadd.f32 %v4248, %v4416
    %4418 = vmatmul.bf16.gmra.mxu0 %v2053
    %v4419 = vpop.f32.mrf.mxu0
    %v4420 = vadd.f32 %v4251, %v4419
    %v4421 = vpop.f32.mrf.mxu0
    %v4422 = vadd.f32 %v4253, %v4421
    %4423 = vmatmul.bf16.gmra.mxu0 %v2055
    %v4424 = vpop.f32.mrf.mxu0
    %v4425 = vadd.f32 %v4256, %v4424
    %v4426 = vpop.f32.mrf.mxu0
    %v4427 = vadd.f32 %v4258, %v4426
    %4428 = vmatmul.bf16.gmra.mxu0 %v2057
    %v4429 = vpop.f32.mrf.mxu0
    %v4430 = vadd.f32 %v4261, %v4429
    %v4431 = vpop.f32.mrf.mxu0
    %v4432 = vadd.f32 %v4263, %v4431
    %4433 = vmatmul.bf16.gmra.mxu0 %v2059
    %v4434 = vpop.f32.mrf.mxu0
    %v4435 = vadd.f32 %v4266, %v4434
    %v4436 = vpop.f32.mrf.mxu0
    %v4437 = vadd.f32 %v4268, %v4436
    %4438 = vmatmul.bf16.gmra.mxu0 %v2061
    %v4439 = vpop.f32.mrf.mxu0
    %v4440 = vadd.f32 %v4271, %v4439
    %v4441 = vpop.f32.mrf.mxu0
    %v4442 = vadd.f32 %v4273, %v4441
    %4443 = vmatmul.bf16.gmra.mxu0 %v2063
    %v4444 = vpop.f32.mrf.mxu0
    %v4445 = vadd.f32 %v4276, %v4444
    %v4446 = vpop.f32.mrf.mxu0
    %v4447 = vadd.f32 %v4278, %v4446
    %4448 = vmatmul.bf16.gmra.mxu0 %v2065
    %v4449 = vpop.f32.mrf.mxu0
    %v4450 = vadd.f32 %v4281, %v4449
    %v4451 = vpop.f32.mrf.mxu0
    %v4452 = vadd.f32 %v4283, %v4451
    %4453 = vmatmul.bf16.gmra.mxu0 %v2067
    %v4454 = vpop.f32.mrf.mxu0
    %v4455 = vadd.f32 %v4286, %v4454
    %v4456 = vpop.f32.mrf.mxu0
    %v4457 = vadd.f32 %v4288, %v4456
    %4458 = vmatmul.bf16.gmra.mxu0 %v2069
    %v4459 = vpop.f32.mrf.mxu0
    %v4460 = vadd.f32 %v4291, %v4459
    %v4461 = vpop.f32.mrf.mxu0
    %v4462 = vadd.f32 %v4293, %v4461
    %4463 = vdwg.mxu0
    %4464 = vmatpush.bf16.msra.mxu0 %v2604
    %4465 = vmatpush.bf16.msra.mxu0 %v2597
    %4466 = vmatpush.bf16.msra.mxu0 %v2590
    %4467 = vmatpush.bf16.msra.mxu0 %v2583
    %4468 = vmatpush.bf16.msra.mxu0 %v2576
    %4469 = vmatpush.bf16.msra.mxu0 %v2569
    %4470 = vmatpush.bf16.msra.mxu0 %v2562
    %4471 = vmatpush.bf16.msra.mxu0 %v2555
    %4472 = vmatmul.bf16.gmra.mxu0 %v2006
    %v4473 = vpop.f32.mrf.mxu0
    %v4474 = vadd.f32 0.0, %v4473
    %v4475 = vpop.f32.mrf.mxu0
    %v4476 = vadd.f32 0.0, %v4475
    %4477 = vmatmul.bf16.gmra.mxu0 %v2008
    %v4478 = vpop.f32.mrf.mxu0
    %v4479 = vadd.f32 0.0, %v4478
    %v4480 = vpop.f32.mrf.mxu0
    %v4481 = vadd.f32 0.0, %v4480
    %4482 = vmatmul.bf16.gmra.mxu0 %v2010
    %v4483 = vpop.f32.mrf.mxu0
    %v4484 = vadd.f32 0.0, %v4483
    %v4485 = vpop.f32.mrf.mxu0
    %v4486 = vadd.f32 0.0, %v4485
    %4487 = vmatmul.bf16.gmra.mxu0 %v2012
    %v4488 = vpop.f32.mrf.mxu0
    %v4489 = vadd.f32 0.0, %v4488
    %v4490 = vpop.f32.mrf.mxu0
    %v4491 = vadd.f32 0.0, %v4490
    %4492 = vmatmul.bf16.gmra.mxu0 %v2014
    %v4493 = vpop.f32.mrf.mxu0
    %v4494 = vadd.f32 0.0, %v4493
    %v4495 = vpop.f32.mrf.mxu0
    %v4496 = vadd.f32 0.0, %v4495
    %4497 = vmatmul.bf16.gmra.mxu0 %v2016
    %v4498 = vpop.f32.mrf.mxu0
    %v4499 = vadd.f32 0.0, %v4498
    %v4500 = vpop.f32.mrf.mxu0
    %v4501 = vadd.f32 0.0, %v4500
    %4502 = vmatmul.bf16.gmra.mxu0 %v2018
    %v4503 = vpop.f32.mrf.mxu0
    %v4504 = vadd.f32 0.0, %v4503
    %v4505 = vpop.f32.mrf.mxu0
    %v4506 = vadd.f32 0.0, %v4505
    %4507 = vmatmul.bf16.gmra.mxu0 %v2020
    %v4508 = vpop.f32.mrf.mxu0
    %v4509 = vadd.f32 0.0, %v4508
    %v4510 = vpop.f32.mrf.mxu0
    %v4511 = vadd.f32 0.0, %v4510
    %4512 = vmatmul.bf16.gmra.mxu0 %v2022
    %v4513 = vpop.f32.mrf.mxu0
    %v4514 = vadd.f32 0.0, %v4513
    %v4515 = vpop.f32.mrf.mxu0
    %v4516 = vadd.f32 0.0, %v4515
    %4517 = vmatmul.bf16.gmra.mxu0 %v2024
    %v4518 = vpop.f32.mrf.mxu0
    %v4519 = vadd.f32 0.0, %v4518
    %v4520 = vpop.f32.mrf.mxu0
    %v4521 = vadd.f32 0.0, %v4520
    %4522 = vmatmul.bf16.gmra.mxu0 %v2026
    %v4523 = vpop.f32.mrf.mxu0
    %v4524 = vadd.f32 0.0, %v4523
    %v4525 = vpop.f32.mrf.mxu0
    %v4526 = vadd.f32 0.0, %v4525
    %4527 = vmatmul.bf16.gmra.mxu0 %v2028
    %v4528 = vpop.f32.mrf.mxu0
    %v4529 = vadd.f32 0.0, %v4528
    %v4530 = vpop.f32.mrf.mxu0
    %v4531 = vadd.f32 0.0, %v4530
    %4532 = vmatmul.bf16.gmra.mxu0 %v2030
    %v4533 = vpop.f32.mrf.mxu0
    %v4534 = vadd.f32 0.0, %v4533
    %v4535 = vpop.f32.mrf.mxu0
    %v4536 = vadd.f32 0.0, %v4535
    %4537 = vmatmul.bf16.gmra.mxu0 %v2032
    %v4538 = vpop.f32.mrf.mxu0
    %v4539 = vadd.f32 0.0, %v4538
    %v4540 = vpop.f32.mrf.mxu0
    %v4541 = vadd.f32 0.0, %v4540
    %4542 = vmatmul.bf16.gmra.mxu0 %v2034
    %v4543 = vpop.f32.mrf.mxu0
    %v4544 = vadd.f32 0.0, %v4543
    %v4545 = vpop.f32.mrf.mxu0
    %v4546 = vadd.f32 0.0, %v4545
    %4547 = vmatmul.bf16.gmra.mxu0 %v2036
    %v4548 = vpop.f32.mrf.mxu0
    %v4549 = vadd.f32 0.0, %v4548
    %v4550 = vpop.f32.mrf.mxu0
    %v4551 = vadd.f32 0.0, %v4550
    %4552 = vmatmul.bf16.gmra.mxu0 %v2038
    %v4553 = vpop.f32.mrf.mxu0
    %v4554 = vadd.f32 0.0, %v4553
    %v4555 = vpop.f32.mrf.mxu0
    %v4556 = vadd.f32 0.0, %v4555
    %4557 = vmatmul.bf16.gmra.mxu0 %v2040
    %v4558 = vpop.f32.mrf.mxu0
    %v4559 = vadd.f32 0.0, %v4558
    %v4560 = vpop.f32.mrf.mxu0
    %v4561 = vadd.f32 0.0, %v4560
    %4562 = vmatmul.bf16.gmra.mxu0 %v2042
    %v4563 = vpop.f32.mrf.mxu0
    %v4564 = vadd.f32 0.0, %v4563
    %v4565 = vpop.f32.mrf.mxu0
    %v4566 = vadd.f32 0.0, %v4565
    %4567 = vmatmul.bf16.gmra.mxu0 %v2044
    %v4568 = vpop.f32.mrf.mxu0
    %v4569 = vadd.f32 0.0, %v4568
    %v4570 = vpop.f32.mrf.mxu0
    %v4571 = vadd.f32 0.0, %v4570
    %4572 = vmatmul.bf16.gmra.mxu0 %v2046
    %v4573 = vpop.f32.mrf.mxu0
    %v4574 = vadd.f32 0.0, %v4573
    %v4575 = vpop.f32.mrf.mxu0
    %v4576 = vadd.f32 0.0, %v4575
    %4577 = vmatmul.bf16.gmra.mxu0 %v2048
    %v4578 = vpop.f32.mrf.mxu0
    %v4579 = vadd.f32 0.0, %v4578
    %v4580 = vpop.f32.mrf.mxu0
    %v4581 = vadd.f32 0.0, %v4580
    %4582 = vmatmul.bf16.gmra.mxu0 %v2050
    %v4583 = vpop.f32.mrf.mxu0
    %v4584 = vadd.f32 0.0, %v4583
    %v4585 = vpop.f32.mrf.mxu0
    %v4586 = vadd.f32 0.0, %v4585
    %4587 = vmatmul.bf16.gmra.mxu0 %v2052
    %v4588 = vpop.f32.mrf.mxu0
    %v4589 = vadd.f32 0.0, %v4588
    %v4590 = vpop.f32.mrf.mxu0
    %v4591 = vadd.f32 0.0, %v4590
    %4592 = vmatmul.bf16.gmra.mxu0 %v2054
    %v4593 = vpop.f32.mrf.mxu0
    %v4594 = vadd.f32 0.0, %v4593
    %v4595 = vpop.f32.mrf.mxu0
    %v4596 = vadd.f32 0.0, %v4595
    %4597 = vmatmul.bf16.gmra.mxu0 %v2056
    %v4598 = vpop.f32.mrf.mxu0
    %v4599 = vadd.f32 0.0, %v4598
    %v4600 = vpop.f32.mrf.mxu0
    %v4601 = vadd.f32 0.0, %v4600
    %4602 = vmatmul.bf16.gmra.mxu0 %v2058
    %v4603 = vpop.f32.mrf.mxu0
    %v4604 = vadd.f32 0.0, %v4603
    %v4605 = vpop.f32.mrf.mxu0
    %v4606 = vadd.f32 0.0, %v4605
    %4607 = vmatmul.bf16.gmra.mxu0 %v2060
    %v4608 = vpop.f32.mrf.mxu0
    %v4609 = vadd.f32 0.0, %v4608
    %v4610 = vpop.f32.mrf.mxu0
    %v4611 = vadd.f32 0.0, %v4610
    %4612 = vmatmul.bf16.gmra.mxu0 %v2062
    %v4613 = vpop.f32.mrf.mxu0
    %v4614 = vadd.f32 0.0, %v4613
    %v4615 = vpop.f32.mrf.mxu0
    %v4616 = vadd.f32 0.0, %v4615
    %4617 = vmatmul.bf16.gmra.mxu0 %v2064
    %v4618 = vpop.f32.mrf.mxu0
    %v4619 = vadd.f32 0.0, %v4618
    %v4620 = vpop.f32.mrf.mxu0
    %v4621 = vadd.f32 0.0, %v4620
    %4622 = vmatmul.bf16.gmra.mxu0 %v2066
    %v4623 = vpop.f32.mrf.mxu0
    %v4624 = vadd.f32 0.0, %v4623
    %v4625 = vpop.f32.mrf.mxu0
    %v4626 = vadd.f32 0.0, %v4625
    %4627 = vmatmul.bf16.gmra.mxu0 %v2068
    %v4628 = vpop.f32.mrf.mxu0
    %v4629 = vadd.f32 0.0, %v4628
    %v4630 = vpop.f32.mrf.mxu0
    %v4631 = vadd.f32 0.0, %v4630
    %4632 = vdwg.mxu0
    %4633 = vmatpush.bf16.msra.mxu0 %v2660
    %4634 = vmatpush.bf16.msra.mxu0 %v2653
    %4635 = vmatpush.bf16.msra.mxu0 %v2646
    %4636 = vmatpush.bf16.msra.mxu0 %v2639
    %4637 = vmatpush.bf16.msra.mxu0 %v2632
    %4638 = vmatpush.bf16.msra.mxu0 %v2625
    %4639 = vmatpush.bf16.msra.mxu0 %v2618
    %4640 = vmatpush.bf16.msra.mxu0 %v2611
    %4641 = vmatmul.bf16.gmra.mxu0 %v2007
    %v4642 = vpop.f32.mrf.mxu0
    %v4643 = vadd.f32 %v4474, %v4642
    %v4644 = vpop.f32.mrf.mxu0
    %v4645 = vadd.f32 %v4476, %v4644
    %4646 = vmatmul.bf16.gmra.mxu0 %v2009
    %v4647 = vpop.f32.mrf.mxu0
    %v4648 = vadd.f32 %v4479, %v4647
    %v4649 = vpop.f32.mrf.mxu0
    %v4650 = vadd.f32 %v4481, %v4649
    %4651 = vmatmul.bf16.gmra.mxu0 %v2011
    %v4652 = vpop.f32.mrf.mxu0
    %v4653 = vadd.f32 %v4484, %v4652
    %v4654 = vpop.f32.mrf.mxu0
    %v4655 = vadd.f32 %v4486, %v4654
    %4656 = vmatmul.bf16.gmra.mxu0 %v2013
    %v4657 = vpop.f32.mrf.mxu0
    %v4658 = vadd.f32 %v4489, %v4657
    %v4659 = vpop.f32.mrf.mxu0
    %v4660 = vadd.f32 %v4491, %v4659
    %4661 = vmatmul.bf16.gmra.mxu0 %v2015
    %v4662 = vpop.f32.mrf.mxu0
    %v4663 = vadd.f32 %v4494, %v4662
    %v4664 = vpop.f32.mrf.mxu0
    %v4665 = vadd.f32 %v4496, %v4664
    %4666 = vmatmul.bf16.gmra.mxu0 %v2017
    %v4667 = vpop.f32.mrf.mxu0
    %v4668 = vadd.f32 %v4499, %v4667
    %v4669 = vpop.f32.mrf.mxu0
    %v4670 = vadd.f32 %v4501, %v4669
    %4671 = vmatmul.bf16.gmra.mxu0 %v2019
    %v4672 = vpop.f32.mrf.mxu0
    %v4673 = vadd.f32 %v4504, %v4672
    %v4674 = vpop.f32.mrf.mxu0
    %v4675 = vadd.f32 %v4506, %v4674
    %4676 = vmatmul.bf16.gmra.mxu0 %v2021
    %v4677 = vpop.f32.mrf.mxu0
    %v4678 = vadd.f32 %v4509, %v4677
    %v4679 = vpop.f32.mrf.mxu0
    %v4680 = vadd.f32 %v4511, %v4679
    %4681 = vmatmul.bf16.gmra.mxu0 %v2023
    %v4682 = vpop.f32.mrf.mxu0
    %v4683 = vadd.f32 %v4514, %v4682
    %v4684 = vpop.f32.mrf.mxu0
    %v4685 = vadd.f32 %v4516, %v4684
    %4686 = vmatmul.bf16.gmra.mxu0 %v2025
    %v4687 = vpop.f32.mrf.mxu0
    %v4688 = vadd.f32 %v4519, %v4687
    %v4689 = vpop.f32.mrf.mxu0
    %v4690 = vadd.f32 %v4521, %v4689
    %4691 = vmatmul.bf16.gmra.mxu0 %v2027
    %v4692 = vpop.f32.mrf.mxu0
    %v4693 = vadd.f32 %v4524, %v4692
    %v4694 = vpop.f32.mrf.mxu0
    %v4695 = vadd.f32 %v4526, %v4694
    %4696 = vmatmul.bf16.gmra.mxu0 %v2029
    %v4697 = vpop.f32.mrf.mxu0
    %v4698 = vadd.f32 %v4529, %v4697
    %v4699 = vpop.f32.mrf.mxu0
    %v4700 = vadd.f32 %v4531, %v4699
    %4701 = vmatmul.bf16.gmra.mxu0 %v2031
    %v4702 = vpop.f32.mrf.mxu0
    %v4703 = vadd.f32 %v4534, %v4702
    %v4704 = vpop.f32.mrf.mxu0
    %v4705 = vadd.f32 %v4536, %v4704
    %4706 = vmatmul.bf16.gmra.mxu0 %v2033
    %v4707 = vpop.f32.mrf.mxu0
    %v4708 = vadd.f32 %v4539, %v4707
    %v4709 = vpop.f32.mrf.mxu0
    %v4710 = vadd.f32 %v4541, %v4709
    %4711 = vmatmul.bf16.gmra.mxu0 %v2035
    %v4712 = vpop.f32.mrf.mxu0
    %v4713 = vadd.f32 %v4544, %v4712
    %v4714 = vpop.f32.mrf.mxu0
    %v4715 = vadd.f32 %v4546, %v4714
    %4716 = vmatmul.bf16.gmra.mxu0 %v2037
    %v4717 = vpop.f32.mrf.mxu0
    %v4718 = vadd.f32 %v4549, %v4717
    %v4719 = vpop.f32.mrf.mxu0
    %v4720 = vadd.f32 %v4551, %v4719
    %4721 = vmatmul.bf16.gmra.mxu0 %v2039
    %v4722 = vpop.f32.mrf.mxu0
    %v4723 = vadd.f32 %v4554, %v4722
    %v4724 = vpop.f32.mrf.mxu0
    %v4725 = vadd.f32 %v4556, %v4724
    %4726 = vmatmul.bf16.gmra.mxu0 %v2041
    %v4727 = vpop.f32.mrf.mxu0
    %v4728 = vadd.f32 %v4559, %v4727
    %v4729 = vpop.f32.mrf.mxu0
    %v4730 = vadd.f32 %v4561, %v4729
    %4731 = vmatmul.bf16.gmra.mxu0 %v2043
    %v4732 = vpop.f32.mrf.mxu0
    %v4733 = vadd.f32 %v4564, %v4732
    %v4734 = vpop.f32.mrf.mxu0
    %v4735 = vadd.f32 %v4566, %v4734
    %4736 = vmatmul.bf16.gmra.mxu0 %v2045
    %v4737 = vpop.f32.mrf.mxu0
    %v4738 = vadd.f32 %v4569, %v4737
    %v4739 = vpop.f32.mrf.mxu0
    %v4740 = vadd.f32 %v4571, %v4739
    %4741 = vmatmul.bf16.gmra.mxu0 %v2047
    %v4742 = vpop.f32.mrf.mxu0
    %v4743 = vadd.f32 %v4574, %v4742
    %v4744 = vpop.f32.mrf.mxu0
    %v4745 = vadd.f32 %v4576, %v4744
    %4746 = vmatmul.bf16.gmra.mxu0 %v2049
    %v4747 = vpop.f32.mrf.mxu0
    %v4748 = vadd.f32 %v4579, %v4747
    %v4749 = vpop.f32.mrf.mxu0
    %v4750 = vadd.f32 %v4581, %v4749
    %4751 = vmatmul.bf16.gmra.mxu0 %v2051
    %v4752 = vpop.f32.mrf.mxu0
    %v4753 = vadd.f32 %v4584, %v4752
    %v4754 = vpop.f32.mrf.mxu0
    %v4755 = vadd.f32 %v4586, %v4754
    %4756 = vmatmul.bf16.gmra.mxu0 %v2053
    %v4757 = vpop.f32.mrf.mxu0
    %v4758 = vadd.f32 %v4589, %v4757
    %v4759 = vpop.f32.mrf.mxu0
    %v4760 = vadd.f32 %v4591, %v4759
    %4761 = vmatmul.bf16.gmra.mxu0 %v2055
    %v4762 = vpop.f32.mrf.mxu0
    %v4763 = vadd.f32 %v4594, %v4762
    %v4764 = vpop.f32.mrf.mxu0
    %v4765 = vadd.f32 %v4596, %v4764
    %4766 = vmatmul.bf16.gmra.mxu0 %v2057
    %v4767 = vpop.f32.mrf.mxu0
    %v4768 = vadd.f32 %v4599, %v4767
    %v4769 = vpop.f32.mrf.mxu0
    %v4770 = vadd.f32 %v4601, %v4769
    %4771 = vmatmul.bf16.gmra.mxu0 %v2059
    %v4772 = vpop.f32.mrf.mxu0
    %v4773 = vadd.f32 %v4604, %v4772
    %v4774 = vpop.f32.mrf.mxu0
    %v4775 = vadd.f32 %v4606, %v4774
    %4776 = vmatmul.bf16.gmra.mxu0 %v2061
    %v4777 = vpop.f32.mrf.mxu0
    %v4778 = vadd.f32 %v4609, %v4777
    %v4779 = vpop.f32.mrf.mxu0
    %v4780 = vadd.f32 %v4611, %v4779
    %4781 = vmatmul.bf16.gmra.mxu0 %v2063
    %v4782 = vpop.f32.mrf.mxu0
    %v4783 = vadd.f32 %v4614, %v4782
    %v4784 = vpop.f32.mrf.mxu0
    %v4785 = vadd.f32 %v4616, %v4784
    %4786 = vmatmul.bf16.gmra.mxu0 %v2065
    %v4787 = vpop.f32.mrf.mxu0
    %v4788 = vadd.f32 %v4619, %v4787
    %v4789 = vpop.f32.mrf.mxu0
    %v4790 = vadd.f32 %v4621, %v4789
    %4791 = vmatmul.bf16.gmra.mxu0 %v2067
    %v4792 = vpop.f32.mrf.mxu0
    %v4793 = vadd.f32 %v4624, %v4792
    %v4794 = vpop.f32.mrf.mxu0
    %v4795 = vadd.f32 %v4626, %v4794
    %4796 = vmatmul.bf16.gmra.mxu0 %v2069
    %v4797 = vpop.f32.mrf.mxu0
    %v4798 = vadd.f32 %v4629, %v4797
    %v4799 = vpop.f32.mrf.mxu0
    %v4800 = vadd.f32 %v4631, %v4799
    %4801 = vdwg.mxu0
    %4802 = vmatpush.bf16.msra.mxu0 %v2605
    %4803 = vmatpush.bf16.msra.mxu0 %v2598
    %4804 = vmatpush.bf16.msra.mxu0 %v2591
    %4805 = vmatpush.bf16.msra.mxu0 %v2584
    %4806 = vmatpush.bf16.msra.mxu0 %v2577
    %4807 = vmatpush.bf16.msra.mxu0 %v2570
    %4808 = vmatpush.bf16.msra.mxu0 %v2563
    %4809 = vmatpush.bf16.msra.mxu0 %v2556
    %4810 = vmatmul.bf16.gmra.mxu0 %v2006
    %v4811 = vpop.f32.mrf.mxu0
    %v4812 = vadd.f32 0.0, %v4811
    %v4813 = vpop.f32.mrf.mxu0
    %v4814 = vadd.f32 0.0, %v4813
    %4815 = vmatmul.bf16.gmra.mxu0 %v2008
    %v4816 = vpop.f32.mrf.mxu0
    %v4817 = vadd.f32 0.0, %v4816
    %v4818 = vpop.f32.mrf.mxu0
    %v4819 = vadd.f32 0.0, %v4818
    %4820 = vmatmul.bf16.gmra.mxu0 %v2010
    %v4821 = vpop.f32.mrf.mxu0
    %v4822 = vadd.f32 0.0, %v4821
    %v4823 = vpop.f32.mrf.mxu0
    %v4824 = vadd.f32 0.0, %v4823
    %4825 = vmatmul.bf16.gmra.mxu0 %v2012
    %v4826 = vpop.f32.mrf.mxu0
    %v4827 = vadd.f32 0.0, %v4826
    %v4828 = vpop.f32.mrf.mxu0
    %v4829 = vadd.f32 0.0, %v4828
    %4830 = vmatmul.bf16.gmra.mxu0 %v2014
    %v4831 = vpop.f32.mrf.mxu0
    %v4832 = vadd.f32 0.0, %v4831
    %v4833 = vpop.f32.mrf.mxu0
    %v4834 = vadd.f32 0.0, %v4833
    %4835 = vmatmul.bf16.gmra.mxu0 %v2016
    %v4836 = vpop.f32.mrf.mxu0
    %v4837 = vadd.f32 0.0, %v4836
    %v4838 = vpop.f32.mrf.mxu0
    %v4839 = vadd.f32 0.0, %v4838
    %4840 = vmatmul.bf16.gmra.mxu0 %v2018
    %v4841 = vpop.f32.mrf.mxu0
    %v4842 = vadd.f32 0.0, %v4841
    %v4843 = vpop.f32.mrf.mxu0
    %v4844 = vadd.f32 0.0, %v4843
    %4845 = vmatmul.bf16.gmra.mxu0 %v2020
    %v4846 = vpop.f32.mrf.mxu0
    %v4847 = vadd.f32 0.0, %v4846
    %v4848 = vpop.f32.mrf.mxu0
    %v4849 = vadd.f32 0.0, %v4848
    %4850 = vmatmul.bf16.gmra.mxu0 %v2022
    %v4851 = vpop.f32.mrf.mxu0
    %v4852 = vadd.f32 0.0, %v4851
    %v4853 = vpop.f32.mrf.mxu0
    %v4854 = vadd.f32 0.0, %v4853
    %4855 = vmatmul.bf16.gmra.mxu0 %v2024
    %v4856 = vpop.f32.mrf.mxu0
    %v4857 = vadd.f32 0.0, %v4856
    %v4858 = vpop.f32.mrf.mxu0
    %v4859 = vadd.f32 0.0, %v4858
    %4860 = vmatmul.bf16.gmra.mxu0 %v2026
    %v4861 = vpop.f32.mrf.mxu0
    %v4862 = vadd.f32 0.0, %v4861
    %v4863 = vpop.f32.mrf.mxu0
    %v4864 = vadd.f32 0.0, %v4863
    %4865 = vmatmul.bf16.gmra.mxu0 %v2028
    %v4866 = vpop.f32.mrf.mxu0
    %v4867 = vadd.f32 0.0, %v4866
    %v4868 = vpop.f32.mrf.mxu0
    %v4869 = vadd.f32 0.0, %v4868
    %4870 = vmatmul.bf16.gmra.mxu0 %v2030
    %v4871 = vpop.f32.mrf.mxu0
    %v4872 = vadd.f32 0.0, %v4871
    %v4873 = vpop.f32.mrf.mxu0
    %v4874 = vadd.f32 0.0, %v4873
    %4875 = vmatmul.bf16.gmra.mxu0 %v2032
    %v4876 = vpop.f32.mrf.mxu0
    %v4877 = vadd.f32 0.0, %v4876
    %v4878 = vpop.f32.mrf.mxu0
    %v4879 = vadd.f32 0.0, %v4878
    %4880 = vmatmul.bf16.gmra.mxu0 %v2034
    %v4881 = vpop.f32.mrf.mxu0
    %v4882 = vadd.f32 0.0, %v4881
    %v4883 = vpop.f32.mrf.mxu0
    %v4884 = vadd.f32 0.0, %v4883
    %4885 = vmatmul.bf16.gmra.mxu0 %v2036
    %v4886 = vpop.f32.mrf.mxu0
    %v4887 = vadd.f32 0.0, %v4886
    %v4888 = vpop.f32.mrf.mxu0
    %v4889 = vadd.f32 0.0, %v4888
    %4890 = vmatmul.bf16.gmra.mxu0 %v2038
    %v4891 = vpop.f32.mrf.mxu0
    %v4892 = vadd.f32 0.0, %v4891
    %v4893 = vpop.f32.mrf.mxu0
    %v4894 = vadd.f32 0.0, %v4893
    %4895 = vmatmul.bf16.gmra.mxu0 %v2040
    %v4896 = vpop.f32.mrf.mxu0
    %v4897 = vadd.f32 0.0, %v4896
    %v4898 = vpop.f32.mrf.mxu0
    %v4899 = vadd.f32 0.0, %v4898
    %4900 = vmatmul.bf16.gmra.mxu0 %v2042
    %v4901 = vpop.f32.mrf.mxu0
    %v4902 = vadd.f32 0.0, %v4901
    %v4903 = vpop.f32.mrf.mxu0
    %v4904 = vadd.f32 0.0, %v4903
    %4905 = vmatmul.bf16.gmra.mxu0 %v2044
    %v4906 = vpop.f32.mrf.mxu0
    %v4907 = vadd.f32 0.0, %v4906
    %v4908 = vpop.f32.mrf.mxu0
    %v4909 = vadd.f32 0.0, %v4908
    %4910 = vmatmul.bf16.gmra.mxu0 %v2046
    %v4911 = vpop.f32.mrf.mxu0
    %v4912 = vadd.f32 0.0, %v4911
    %v4913 = vpop.f32.mrf.mxu0
    %v4914 = vadd.f32 0.0, %v4913
    %4915 = vmatmul.bf16.gmra.mxu0 %v2048
    %v4916 = vpop.f32.mrf.mxu0
    %v4917 = vadd.f32 0.0, %v4916
    %v4918 = vpop.f32.mrf.mxu0
    %v4919 = vadd.f32 0.0, %v4918
    %4920 = vmatmul.bf16.gmra.mxu0 %v2050
    %v4921 = vpop.f32.mrf.mxu0
    %v4922 = vadd.f32 0.0, %v4921
    %v4923 = vpop.f32.mrf.mxu0
    %v4924 = vadd.f32 0.0, %v4923
    %4925 = vmatmul.bf16.gmra.mxu0 %v2052
    %v4926 = vpop.f32.mrf.mxu0
    %v4927 = vadd.f32 0.0, %v4926
    %v4928 = vpop.f32.mrf.mxu0
    %v4929 = vadd.f32 0.0, %v4928
    %4930 = vmatmul.bf16.gmra.mxu0 %v2054
    %v4931 = vpop.f32.mrf.mxu0
    %v4932 = vadd.f32 0.0, %v4931
    %v4933 = vpop.f32.mrf.mxu0
    %v4934 = vadd.f32 0.0, %v4933
    %4935 = vmatmul.bf16.gmra.mxu0 %v2056
    %v4936 = vpop.f32.mrf.mxu0
    %v4937 = vadd.f32 0.0, %v4936
    %v4938 = vpop.f32.mrf.mxu0
    %v4939 = vadd.f32 0.0, %v4938
    %4940 = vmatmul.bf16.gmra.mxu0 %v2058
    %v4941 = vpop.f32.mrf.mxu0
    %v4942 = vadd.f32 0.0, %v4941
    %v4943 = vpop.f32.mrf.mxu0
    %v4944 = vadd.f32 0.0, %v4943
    %4945 = vmatmul.bf16.gmra.mxu0 %v2060
    %v4946 = vpop.f32.mrf.mxu0
    %v4947 = vadd.f32 0.0, %v4946
    %v4948 = vpop.f32.mrf.mxu0
    %v4949 = vadd.f32 0.0, %v4948
    %4950 = vmatmul.bf16.gmra.mxu0 %v2062
    %v4951 = vpop.f32.mrf.mxu0
    %v4952 = vadd.f32 0.0, %v4951
    %v4953 = vpop.f32.mrf.mxu0
    %v4954 = vadd.f32 0.0, %v4953
    %4955 = vmatmul.bf16.gmra.mxu0 %v2064
    %v4956 = vpop.f32.mrf.mxu0
    %v4957 = vadd.f32 0.0, %v4956
    %v4958 = vpop.f32.mrf.mxu0
    %v4959 = vadd.f32 0.0, %v4958
    %4960 = vmatmul.bf16.gmra.mxu0 %v2066
    %v4961 = vpop.f32.mrf.mxu0
    %v4962 = vadd.f32 0.0, %v4961
    %v4963 = vpop.f32.mrf.mxu0
    %v4964 = vadd.f32 0.0, %v4963
    %4965 = vmatmul.bf16.gmra.mxu0 %v2068
    %v4966 = vpop.f32.mrf.mxu0
    %v4967 = vadd.f32 0.0, %v4966
    %v4968 = vpop.f32.mrf.mxu0
    %v4969 = vadd.f32 0.0, %v4968
    %4970 = vdwg.mxu0
    %4971 = vmatpush.bf16.msra.mxu0 %v2661
    %4972 = vmatpush.bf16.msra.mxu0 %v2654
    %4973 = vmatpush.bf16.msra.mxu0 %v2647
    %4974 = vmatpush.bf16.msra.mxu0 %v2640
    %4975 = vmatpush.bf16.msra.mxu0 %v2633
    %4976 = vmatpush.bf16.msra.mxu0 %v2626
    %4977 = vmatpush.bf16.msra.mxu0 %v2619
    %4978 = vmatpush.bf16.msra.mxu0 %v2612
    %4979 = vmatmul.bf16.gmra.mxu0 %v2007
    %v4980 = vpop.f32.mrf.mxu0
    %v4981 = vadd.f32 %v4812, %v4980
    %v4982 = vpop.f32.mrf.mxu0
    %v4983 = vadd.f32 %v4814, %v4982
    %4984 = vmatmul.bf16.gmra.mxu0 %v2009
    %v4985 = vpop.f32.mrf.mxu0
    %v4986 = vadd.f32 %v4817, %v4985
    %v4987 = vpop.f32.mrf.mxu0
    %v4988 = vadd.f32 %v4819, %v4987
    %4989 = vmatmul.bf16.gmra.mxu0 %v2011
    %v4990 = vpop.f32.mrf.mxu0
    %v4991 = vadd.f32 %v4822, %v4990
    %v4992 = vpop.f32.mrf.mxu0
    %v4993 = vadd.f32 %v4824, %v4992
    %4994 = vmatmul.bf16.gmra.mxu0 %v2013
    %v4995 = vpop.f32.mrf.mxu0
    %v4996 = vadd.f32 %v4827, %v4995
    %v4997 = vpop.f32.mrf.mxu0
    %v4998 = vadd.f32 %v4829, %v4997
    %4999 = vmatmul.bf16.gmra.mxu0 %v2015
    %v5000 = vpop.f32.mrf.mxu0
    %v5001 = vadd.f32 %v4832, %v5000
    %v5002 = vpop.f32.mrf.mxu0
    %v5003 = vadd.f32 %v4834, %v5002
    %5004 = vmatmul.bf16.gmra.mxu0 %v2017
    %v5005 = vpop.f32.mrf.mxu0
    %v5006 = vadd.f32 %v4837, %v5005
    %v5007 = vpop.f32.mrf.mxu0
    %v5008 = vadd.f32 %v4839, %v5007
    %5009 = vmatmul.bf16.gmra.mxu0 %v2019
    %v5010 = vpop.f32.mrf.mxu0
    %v5011 = vadd.f32 %v4842, %v5010
    %v5012 = vpop.f32.mrf.mxu0
    %v5013 = vadd.f32 %v4844, %v5012
    %5014 = vmatmul.bf16.gmra.mxu0 %v2021
    %v5015 = vpop.f32.mrf.mxu0
    %v5016 = vadd.f32 %v4847, %v5015
    %v5017 = vpop.f32.mrf.mxu0
    %v5018 = vadd.f32 %v4849, %v5017
    %5019 = vmatmul.bf16.gmra.mxu0 %v2023
    %v5020 = vpop.f32.mrf.mxu0
    %v5021 = vadd.f32 %v4852, %v5020
    %v5022 = vpop.f32.mrf.mxu0
    %v5023 = vadd.f32 %v4854, %v5022
    %5024 = vmatmul.bf16.gmra.mxu0 %v2025
    %v5025 = vpop.f32.mrf.mxu0
    %v5026 = vadd.f32 %v4857, %v5025
    %v5027 = vpop.f32.mrf.mxu0
    %v5028 = vadd.f32 %v4859, %v5027
    %5029 = vmatmul.bf16.gmra.mxu0 %v2027
    %v5030 = vpop.f32.mrf.mxu0
    %v5031 = vadd.f32 %v4862, %v5030
    %v5032 = vpop.f32.mrf.mxu0
    %v5033 = vadd.f32 %v4864, %v5032
    %5034 = vmatmul.bf16.gmra.mxu0 %v2029
    %v5035 = vpop.f32.mrf.mxu0
    %v5036 = vadd.f32 %v4867, %v5035
    %v5037 = vpop.f32.mrf.mxu0
    %v5038 = vadd.f32 %v4869, %v5037
    %5039 = vmatmul.bf16.gmra.mxu0 %v2031
    %v5040 = vpop.f32.mrf.mxu0
    %v5041 = vadd.f32 %v4872, %v5040
    %v5042 = vpop.f32.mrf.mxu0
    %v5043 = vadd.f32 %v4874, %v5042
    %5044 = vmatmul.bf16.gmra.mxu0 %v2033
    %v5045 = vpop.f32.mrf.mxu0
    %v5046 = vadd.f32 %v4877, %v5045
    %v5047 = vpop.f32.mrf.mxu0
    %v5048 = vadd.f32 %v4879, %v5047
    %5049 = vmatmul.bf16.gmra.mxu0 %v2035
    %v5050 = vpop.f32.mrf.mxu0
    %v5051 = vadd.f32 %v4882, %v5050
    %v5052 = vpop.f32.mrf.mxu0
    %v5053 = vadd.f32 %v4884, %v5052
    %5054 = vmatmul.bf16.gmra.mxu0 %v2037
    %v5055 = vpop.f32.mrf.mxu0
    %v5056 = vadd.f32 %v4887, %v5055
    %v5057 = vpop.f32.mrf.mxu0
    %v5058 = vadd.f32 %v4889, %v5057
    %5059 = vmatmul.bf16.gmra.mxu0 %v2039
    %v5060 = vpop.f32.mrf.mxu0
    %v5061 = vadd.f32 %v4892, %v5060
    %v5062 = vpop.f32.mrf.mxu0
    %v5063 = vadd.f32 %v4894, %v5062
    %5064 = vmatmul.bf16.gmra.mxu0 %v2041
    %v5065 = vpop.f32.mrf.mxu0
    %v5066 = vadd.f32 %v4897, %v5065
    %v5067 = vpop.f32.mrf.mxu0
    %v5068 = vadd.f32 %v4899, %v5067
    %5069 = vmatmul.bf16.gmra.mxu0 %v2043
    %v5070 = vpop.f32.mrf.mxu0
    %v5071 = vadd.f32 %v4902, %v5070
    %v5072 = vpop.f32.mrf.mxu0
    %v5073 = vadd.f32 %v4904, %v5072
    %5074 = vmatmul.bf16.gmra.mxu0 %v2045
    %v5075 = vpop.f32.mrf.mxu0
    %v5076 = vadd.f32 %v4907, %v5075
    %v5077 = vpop.f32.mrf.mxu0
    %v5078 = vadd.f32 %v4909, %v5077
    %5079 = vmatmul.bf16.gmra.mxu0 %v2047
    %v5080 = vpop.f32.mrf.mxu0
    %v5081 = vadd.f32 %v4912, %v5080
    %v5082 = vpop.f32.mrf.mxu0
    %v5083 = vadd.f32 %v4914, %v5082
    %5084 = vmatmul.bf16.gmra.mxu0 %v2049
    %v5085 = vpop.f32.mrf.mxu0
    %v5086 = vadd.f32 %v4917, %v5085
    %v5087 = vpop.f32.mrf.mxu0
    %v5088 = vadd.f32 %v4919, %v5087
    %5089 = vmatmul.bf16.gmra.mxu0 %v2051
    %v5090 = vpop.f32.mrf.mxu0
    %v5091 = vadd.f32 %v4922, %v5090
    %v5092 = vpop.f32.mrf.mxu0
    %v5093 = vadd.f32 %v4924, %v5092
    %5094 = vmatmul.bf16.gmra.mxu0 %v2053
    %v5095 = vpop.f32.mrf.mxu0
    %v5096 = vadd.f32 %v4927, %v5095
    %v5097 = vpop.f32.mrf.mxu0
    %v5098 = vadd.f32 %v4929, %v5097
    %5099 = vmatmul.bf16.gmra.mxu0 %v2055
    %v5100 = vpop.f32.mrf.mxu0
    %v5101 = vadd.f32 %v4932, %v5100
    %v5102 = vpop.f32.mrf.mxu0
    %v5103 = vadd.f32 %v4934, %v5102
    %5104 = vmatmul.bf16.gmra.mxu0 %v2057
    %v5105 = vpop.f32.mrf.mxu0
    %v5106 = vadd.f32 %v4937, %v5105
    %v5107 = vpop.f32.mrf.mxu0
    %v5108 = vadd.f32 %v4939, %v5107
    %5109 = vmatmul.bf16.gmra.mxu0 %v2059
    %v5110 = vpop.f32.mrf.mxu0
    %v5111 = vadd.f32 %v4942, %v5110
    %v5112 = vpop.f32.mrf.mxu0
    %v5113 = vadd.f32 %v4944, %v5112
    %5114 = vmatmul.bf16.gmra.mxu0 %v2061
    %v5115 = vpop.f32.mrf.mxu0
    %v5116 = vadd.f32 %v4947, %v5115
    %v5117 = vpop.f32.mrf.mxu0
    %v5118 = vadd.f32 %v4949, %v5117
    %5119 = vmatmul.bf16.gmra.mxu0 %v2063
    %v5120 = vpop.f32.mrf.mxu0
    %v5121 = vadd.f32 %v4952, %v5120
    %v5122 = vpop.f32.mrf.mxu0
    %v5123 = vadd.f32 %v4954, %v5122
    %5124 = vmatmul.bf16.gmra.mxu0 %v2065
    %v5125 = vpop.f32.mrf.mxu0
    %v5126 = vadd.f32 %v4957, %v5125
    %v5127 = vpop.f32.mrf.mxu0
    %v5128 = vadd.f32 %v4959, %v5127
    %5129 = vmatmul.bf16.gmra.mxu0 %v2067
    %v5130 = vpop.f32.mrf.mxu0
    %v5131 = vadd.f32 %v4962, %v5130
    %v5132 = vpop.f32.mrf.mxu0
    %v5133 = vadd.f32 %v4964, %v5132
    %5134 = vmatmul.bf16.gmra.mxu0 %v2069
    %v5135 = vpop.f32.mrf.mxu0
    %v5136 = vadd.f32 %v4967, %v5135
    %v5137 = vpop.f32.mrf.mxu0
    %v5138 = vadd.f32 %v4969, %v5137
    %5139 = vdwg.mxu0
    %v5140 = vld [vmem:[#allocation10] sm:$0x7f]
    %v5142 = vperm.slane %v5140, 0
    %v5143 = vperm.slane %v5140, 1
    %v5144 = vperm.slane %v5140, 2
    %v5145 = vperm.slane %v5140, 3
    %v5146 = vperm.slane %v5140, 4
    %v5147 = vperm.slane %v5140, 5
    %v5148 = vperm.slane %v5140, 6
    %v5156 = vadd.f32 %v2953, %v5142
    %v5157 = vadd.f32 %v3291, %v5143
    %v5158 = vadd.f32 %v3629, %v5144
    %v5159 = vadd.f32 %v3967, %v5145
    %v5160 = vadd.f32 %v4305, %v5146
    %v5161 = vadd.f32 %v4643, %v5147
    %v5162 = vadd.f32 %v4981, %v5148
    %v5163 = vadd.f32 %v2955, %v5142
    %v5164 = vadd.f32 %v3293, %v5143
    %v5165 = vadd.f32 %v3631, %v5144
    %v5166 = vadd.f32 %v3969, %v5145
    %v5167 = vadd.f32 %v4307, %v5146
    %v5168 = vadd.f32 %v4645, %v5147
    %v5169 = vadd.f32 %v4983, %v5148
    %v5170 = vadd.f32 %v2958, %v5142
    %v5171 = vadd.f32 %v3296, %v5143
    %v5172 = vadd.f32 %v3634, %v5144
    %v5173 = vadd.f32 %v3972, %v5145
    %v5174 = vadd.f32 %v4310, %v5146
    %v5175 = vadd.f32 %v4648, %v5147
    %v5176 = vadd.f32 %v4986, %v5148
    %v5177 = vadd.f32 %v2960, %v5142
    %v5178 = vadd.f32 %v3298, %v5143
    %v5179 = vadd.f32 %v3636, %v5144
    %v5180 = vadd.f32 %v3974, %v5145
    %v5181 = vadd.f32 %v4312, %v5146
    %v5182 = vadd.f32 %v4650, %v5147
    %v5183 = vadd.f32 %v4988, %v5148
    %v5184 = vadd.f32 %v2963, %v5142
    %v5185 = vadd.f32 %v3301, %v5143
    %v5186 = vadd.f32 %v3639, %v5144
    %v5187 = vadd.f32 %v3977, %v5145
    %v5188 = vadd.f32 %v4315, %v5146
    %v5189 = vadd.f32 %v4653, %v5147
    %v5190 = vadd.f32 %v4991, %v5148
    %v5191 = vadd.f32 %v2965, %v5142
    %v5192 = vadd.f32 %v3303, %v5143
    %v5193 = vadd.f32 %v3641, %v5144
    %v5194 = vadd.f32 %v3979, %v5145
    %v5195 = vadd.f32 %v4317, %v5146
    %v5196 = vadd.f32 %v4655, %v5147
    %v5197 = vadd.f32 %v4993, %v5148
    %v5198 = vadd.f32 %v2968, %v5142
    %v5199 = vadd.f32 %v3306, %v5143
    %v5200 = vadd.f32 %v3644, %v5144
    %v5201 = vadd.f32 %v3982, %v5145
    %v5202 = vadd.f32 %v4320, %v5146
    %v5203 = vadd.f32 %v4658, %v5147
    %v5204 = vadd.f32 %v4996, %v5148
    %v5205 = vadd.f32 %v2970, %v5142
    %v5206 = vadd.f32 %v3308, %v5143
    %v5207 = vadd.f32 %v3646, %v5144
    %v5208 = vadd.f32 %v3984, %v5145
    %v5209 = vadd.f32 %v4322, %v5146
    %v5210 = vadd.f32 %v4660, %v5147
    %v5211 = vadd.f32 %v4998, %v5148
    %v5212 = vadd.f32 %v2973, %v5142
    %v5213 = vadd.f32 %v3311, %v5143
    %v5214 = vadd.f32 %v3649, %v5144
    %v5215 = vadd.f32 %v3987, %v5145
    %v5216 = vadd.f32 %v4325, %v5146
    %v5217 = vadd.f32 %v4663, %v5147
    %v5218 = vadd.f32 %v5001, %v5148
    %v5219 = vadd.f32 %v2975, %v5142
    %v5220 = vadd.f32 %v3313, %v5143
    %v5221 = vadd.f32 %v3651, %v5144
    %v5222 = vadd.f32 %v3989, %v5145
    %v5223 = vadd.f32 %v4327, %v5146
    %v5224 = vadd.f32 %v4665, %v5147
    %v5225 = vadd.f32 %v5003, %v5148
    %v5226 = vadd.f32 %v2978, %v5142
    %v5227 = vadd.f32 %v3316, %v5143
    %v5228 = vadd.f32 %v3654, %v5144
    %v5229 = vadd.f32 %v3992, %v5145
    %v5230 = vadd.f32 %v4330, %v5146
    %v5231 = vadd.f32 %v4668, %v5147
    %v5232 = vadd.f32 %v5006, %v5148
    %v5233 = vadd.f32 %v2980, %v5142
    %v5234 = vadd.f32 %v3318, %v5143
    %v5235 = vadd.f32 %v3656, %v5144
    %v5236 = vadd.f32 %v3994, %v5145
    %v5237 = vadd.f32 %v4332, %v5146
    %v5238 = vadd.f32 %v4670, %v5147
    %v5239 = vadd.f32 %v5008, %v5148
    %v5240 = vadd.f32 %v2983, %v5142
    %v5241 = vadd.f32 %v3321, %v5143
    %v5242 = vadd.f32 %v3659, %v5144
    %v5243 = vadd.f32 %v3997, %v5145
    %v5244 = vadd.f32 %v4335, %v5146
    %v5245 = vadd.f32 %v4673, %v5147
    %v5246 = vadd.f32 %v5011, %v5148
    %v5247 = vadd.f32 %v2985, %v5142
    %v5248 = vadd.f32 %v3323, %v5143
    %v5249 = vadd.f32 %v3661, %v5144
    %v5250 = vadd.f32 %v3999, %v5145
    %v5251 = vadd.f32 %v4337, %v5146
    %v5252 = vadd.f32 %v4675, %v5147
    %v5253 = vadd.f32 %v5013, %v5148
    %v5254 = vadd.f32 %v2988, %v5142
    %v5255 = vadd.f32 %v3326, %v5143
    %v5256 = vadd.f32 %v3664, %v5144
    %v5257 = vadd.f32 %v4002, %v5145
    %v5258 = vadd.f32 %v4340, %v5146
    %v5259 = vadd.f32 %v4678, %v5147
    %v5260 = vadd.f32 %v5016, %v5148
    %v5261 = vadd.f32 %v2990, %v5142
    %v5262 = vadd.f32 %v3328, %v5143
    %v5263 = vadd.f32 %v3666, %v5144
    %v5264 = vadd.f32 %v4004, %v5145
    %v5265 = vadd.f32 %v4342, %v5146
    %v5266 = vadd.f32 %v4680, %v5147
    %v5267 = vadd.f32 %v5018, %v5148
    %v5268 = vadd.f32 %v2993, %v5142
    %v5269 = vadd.f32 %v3331, %v5143
    %v5270 = vadd.f32 %v3669, %v5144
    %v5271 = vadd.f32 %v4007, %v5145
    %v5272 = vadd.f32 %v4345, %v5146
    %v5273 = vadd.f32 %v4683, %v5147
    %v5274 = vadd.f32 %v5021, %v5148
    %v5275 = vadd.f32 %v2995, %v5142
    %v5276 = vadd.f32 %v3333, %v5143
    %v5277 = vadd.f32 %v3671, %v5144
    %v5278 = vadd.f32 %v4009, %v5145
    %v5279 = vadd.f32 %v4347, %v5146
    %v5280 = vadd.f32 %v4685, %v5147
    %v5281 = vadd.f32 %v5023, %v5148
    %v5282 = vadd.f32 %v2998, %v5142
    %v5283 = vadd.f32 %v3336, %v5143
    %v5284 = vadd.f32 %v3674, %v5144
    %v5285 = vadd.f32 %v4012, %v5145
    %v5286 = vadd.f32 %v4350, %v5146
    %v5287 = vadd.f32 %v4688, %v5147
    %v5288 = vadd.f32 %v5026, %v5148
    %v5289 = vadd.f32 %v3000, %v5142
    %v5290 = vadd.f32 %v3338, %v5143
    %v5291 = vadd.f32 %v3676, %v5144
    %v5292 = vadd.f32 %v4014, %v5145
    %v5293 = vadd.f32 %v4352, %v5146
    %v5294 = vadd.f32 %v4690, %v5147
    %v5295 = vadd.f32 %v5028, %v5148
    %v5296 = vadd.f32 %v3003, %v5142
    %v5297 = vadd.f32 %v3341, %v5143
    %v5298 = vadd.f32 %v3679, %v5144
    %v5299 = vadd.f32 %v4017, %v5145
    %v5300 = vadd.f32 %v4355, %v5146
    %v5301 = vadd.f32 %v4693, %v5147
    %v5302 = vadd.f32 %v5031, %v5148
    %v5303 = vadd.f32 %v3005, %v5142
    %v5304 = vadd.f32 %v3343, %v5143
    %v5305 = vadd.f32 %v3681, %v5144
    %v5306 = vadd.f32 %v4019, %v5145
    %v5307 = vadd.f32 %v4357, %v5146
    %v5308 = vadd.f32 %v4695, %v5147
    %v5309 = vadd.f32 %v5033, %v5148
    %v5310 = vadd.f32 %v3008, %v5142
    %v5311 = vadd.f32 %v3346, %v5143
    %v5312 = vadd.f32 %v3684, %v5144
    %v5313 = vadd.f32 %v4022, %v5145
    %v5314 = vadd.f32 %v4360, %v5146
    %v5315 = vadd.f32 %v4698, %v5147
    %v5316 = vadd.f32 %v5036, %v5148
    %v5317 = vadd.f32 %v3010, %v5142
    %v5318 = vadd.f32 %v3348, %v5143
    %v5319 = vadd.f32 %v3686, %v5144
    %v5320 = vadd.f32 %v4024, %v5145
    %v5321 = vadd.f32 %v4362, %v5146
    %v5322 = vadd.f32 %v4700, %v5147
    %v5323 = vadd.f32 %v5038, %v5148
    %v5324 = vadd.f32 %v3013, %v5142
    %v5325 = vadd.f32 %v3351, %v5143
    %v5326 = vadd.f32 %v3689, %v5144
    %v5327 = vadd.f32 %v4027, %v5145
    %v5328 = vadd.f32 %v4365, %v5146
    %v5329 = vadd.f32 %v4703, %v5147
    %v5330 = vadd.f32 %v5041, %v5148
    %v5331 = vadd.f32 %v3015, %v5142
    %v5332 = vadd.f32 %v3353, %v5143
    %v5333 = vadd.f32 %v3691, %v5144
    %v5334 = vadd.f32 %v4029, %v5145
    %v5335 = vadd.f32 %v4367, %v5146
    %v5336 = vadd.f32 %v4705, %v5147
    %v5337 = vadd.f32 %v5043, %v5148
    %v5338 = vadd.f32 %v3018, %v5142
    %v5339 = vadd.f32 %v3356, %v5143
    %v5340 = vadd.f32 %v3694, %v5144
    %v5341 = vadd.f32 %v4032, %v5145
    %v5342 = vadd.f32 %v4370, %v5146
    %v5343 = vadd.f32 %v4708, %v5147
    %v5344 = vadd.f32 %v5046, %v5148
    %v5345 = vadd.f32 %v3020, %v5142
    %v5346 = vadd.f32 %v3358, %v5143
    %v5347 = vadd.f32 %v3696, %v5144
    %v5348 = vadd.f32 %v4034, %v5145
    %v5349 = vadd.f32 %v4372, %v5146
    %v5350 = vadd.f32 %v4710, %v5147
    %v5351 = vadd.f32 %v5048, %v5148
    %v5352 = vadd.f32 %v3023, %v5142
    %v5353 = vadd.f32 %v3361, %v5143
    %v5354 = vadd.f32 %v3699, %v5144
    %v5355 = vadd.f32 %v4037, %v5145
    %v5356 = vadd.f32 %v4375, %v5146
    %v5357 = vadd.f32 %v4713, %v5147
    %v5358 = vadd.f32 %v5051, %v5148
    %v5359 = vadd.f32 %v3025, %v5142
    %v5360 = vadd.f32 %v3363, %v5143
    %v5361 = vadd.f32 %v3701, %v5144
    %v5362 = vadd.f32 %v4039, %v5145
    %v5363 = vadd.f32 %v4377, %v5146
    %v5364 = vadd.f32 %v4715, %v5147
    %v5365 = vadd.f32 %v5053, %v5148
    %v5366 = vadd.f32 %v3028, %v5142
    %v5367 = vadd.f32 %v3366, %v5143
    %v5368 = vadd.f32 %v3704, %v5144
    %v5369 = vadd.f32 %v4042, %v5145
    %v5370 = vadd.f32 %v4380, %v5146
    %v5371 = vadd.f32 %v4718, %v5147
    %v5372 = vadd.f32 %v5056, %v5148
    %v5373 = vadd.f32 %v3030, %v5142
    %v5374 = vadd.f32 %v3368, %v5143
    %v5375 = vadd.f32 %v3706, %v5144
    %v5376 = vadd.f32 %v4044, %v5145
    %v5377 = vadd.f32 %v4382, %v5146
    %v5378 = vadd.f32 %v4720, %v5147
    %v5379 = vadd.f32 %v5058, %v5148
    %v5380 = vadd.f32 %v3033, %v5142
    %v5381 = vadd.f32 %v3371, %v5143
    %v5382 = vadd.f32 %v3709, %v5144
    %v5383 = vadd.f32 %v4047, %v5145
    %v5384 = vadd.f32 %v4385, %v5146
    %v5385 = vadd.f32 %v4723, %v5147
    %v5386 = vadd.f32 %v5061, %v5148
    %v5387 = vadd.f32 %v3035, %v5142
    %v5388 = vadd.f32 %v3373, %v5143
    %v5389 = vadd.f32 %v3711, %v5144
    %v5390 = vadd.f32 %v4049, %v5145
    %v5391 = vadd.f32 %v4387, %v5146
    %v5392 = vadd.f32 %v4725, %v5147
    %v5393 = vadd.f32 %v5063, %v5148
    %v5394 = vadd.f32 %v3038, %v5142
    %v5395 = vadd.f32 %v3376, %v5143
    %v5396 = vadd.f32 %v3714, %v5144
    %v5397 = vadd.f32 %v4052, %v5145
    %v5398 = vadd.f32 %v4390, %v5146
    %v5399 = vadd.f32 %v4728, %v5147
    %v5400 = vadd.f32 %v5066, %v5148
    %v5401 = vadd.f32 %v3040, %v5142
    %v5402 = vadd.f32 %v3378, %v5143
    %v5403 = vadd.f32 %v3716, %v5144
    %v5404 = vadd.f32 %v4054, %v5145
    %v5405 = vadd.f32 %v4392, %v5146
    %v5406 = vadd.f32 %v4730, %v5147
    %v5407 = vadd.f32 %v5068, %v5148
    %v5408 = vadd.f32 %v3043, %v5142
    %v5409 = vadd.f32 %v3381, %v5143
    %v5410 = vadd.f32 %v3719, %v5144
    %v5411 = vadd.f32 %v4057, %v5145
    %v5412 = vadd.f32 %v4395, %v5146
    %v5413 = vadd.f32 %v4733, %v5147
    %v5414 = vadd.f32 %v5071, %v5148
    %v5415 = vadd.f32 %v3045, %v5142
    %v5416 = vadd.f32 %v3383, %v5143
    %v5417 = vadd.f32 %v3721, %v5144
    %v5418 = vadd.f32 %v4059, %v5145
    %v5419 = vadd.f32 %v4397, %v5146
    %v5420 = vadd.f32 %v4735, %v5147
    %v5421 = vadd.f32 %v5073, %v5148
    %v5422 = vadd.f32 %v3048, %v5142
    %v5423 = vadd.f32 %v3386, %v5143
    %v5424 = vadd.f32 %v3724, %v5144
    %v5425 = vadd.f32 %v4062, %v5145
    %v5426 = vadd.f32 %v4400, %v5146
    %v5427 = vadd.f32 %v4738, %v5147
    %v5428 = vadd.f32 %v5076, %v5148
    %v5429 = vadd.f32 %v3050, %v5142
    %v5430 = vadd.f32 %v3388, %v5143
    %v5431 = vadd.f32 %v3726, %v5144
    %v5432 = vadd.f32 %v4064, %v5145
    %v5433 = vadd.f32 %v4402, %v5146
    %v5434 = vadd.f32 %v4740, %v5147
    %v5435 = vadd.f32 %v5078, %v5148
    %v5436 = vadd.f32 %v3053, %v5142
    %v5437 = vadd.f32 %v3391, %v5143
    %v5438 = vadd.f32 %v3729, %v5144
    %v5439 = vadd.f32 %v4067, %v5145
    %v5440 = vadd.f32 %v4405, %v5146
    %v5441 = vadd.f32 %v4743, %v5147
    %v5442 = vadd.f32 %v5081, %v5148
    %v5443 = vadd.f32 %v3055, %v5142
    %v5444 = vadd.f32 %v3393, %v5143
    %v5445 = vadd.f32 %v3731, %v5144
    %v5446 = vadd.f32 %v4069, %v5145
    %v5447 = vadd.f32 %v4407, %v5146
    %v5448 = vadd.f32 %v4745, %v5147
    %v5449 = vadd.f32 %v5083, %v5148
    %v5450 = vadd.f32 %v3058, %v5142
    %v5451 = vadd.f32 %v3396, %v5143
    %v5452 = vadd.f32 %v3734, %v5144
    %v5453 = vadd.f32 %v4072, %v5145
    %v5454 = vadd.f32 %v4410, %v5146
    %v5455 = vadd.f32 %v4748, %v5147
    %v5456 = vadd.f32 %v5086, %v5148
    %v5457 = vadd.f32 %v3060, %v5142
    %v5458 = vadd.f32 %v3398, %v5143
    %v5459 = vadd.f32 %v3736, %v5144
    %v5460 = vadd.f32 %v4074, %v5145
    %v5461 = vadd.f32 %v4412, %v5146
    %v5462 = vadd.f32 %v4750, %v5147
    %v5463 = vadd.f32 %v5088, %v5148
    %v5464 = vadd.f32 %v3063, %v5142
    %v5465 = vadd.f32 %v3401, %v5143
    %v5466 = vadd.f32 %v3739, %v5144
    %v5467 = vadd.f32 %v4077, %v5145
    %v5468 = vadd.f32 %v4415, %v5146
    %v5469 = vadd.f32 %v4753, %v5147
    %v5470 = vadd.f32 %v5091, %v5148
    %v5471 = vadd.f32 %v3065, %v5142
    %v5472 = vadd.f32 %v3403, %v5143
    %v5473 = vadd.f32 %v3741, %v5144
    %v5474 = vadd.f32 %v4079, %v5145
    %v5475 = vadd.f32 %v4417, %v5146
    %v5476 = vadd.f32 %v4755, %v5147
    %v5477 = vadd.f32 %v5093, %v5148
    %v5478 = vadd.f32 %v3068, %v5142
    %v5479 = vadd.f32 %v3406, %v5143
    %v5480 = vadd.f32 %v3744, %v5144
    %v5481 = vadd.f32 %v4082, %v5145
    %v5482 = vadd.f32 %v4420, %v5146
    %v5483 = vadd.f32 %v4758, %v5147
    %v5484 = vadd.f32 %v5096, %v5148
    %v5485 = vadd.f32 %v3070, %v5142
    %v5486 = vadd.f32 %v3408, %v5143
    %v5487 = vadd.f32 %v3746, %v5144
    %v5488 = vadd.f32 %v4084, %v5145
    %v5489 = vadd.f32 %v4422, %v5146
    %v5490 = vadd.f32 %v4760, %v5147
    %v5491 = vadd.f32 %v5098, %v5148
    %v5492 = vadd.f32 %v3073, %v5142
    %v5493 = vadd.f32 %v3411, %v5143
    %v5494 = vadd.f32 %v3749, %v5144
    %v5495 = vadd.f32 %v4087, %v5145
    %v5496 = vadd.f32 %v4425, %v5146
    %v5497 = vadd.f32 %v4763, %v5147
    %v5498 = vadd.f32 %v5101, %v5148
    %v5499 = vadd.f32 %v3075, %v5142
    %v5500 = vadd.f32 %v3413, %v5143
    %v5501 = vadd.f32 %v3751, %v5144
    %v5502 = vadd.f32 %v4089, %v5145
    %v5503 = vadd.f32 %v4427, %v5146
    %v5504 = vadd.f32 %v4765, %v5147
    %v5505 = vadd.f32 %v5103, %v5148
    %v5506 = vadd.f32 %v3078, %v5142
    %v5507 = vadd.f32 %v3416, %v5143
    %v5508 = vadd.f32 %v3754, %v5144
    %v5509 = vadd.f32 %v4092, %v5145
    %v5510 = vadd.f32 %v4430, %v5146
    %v5511 = vadd.f32 %v4768, %v5147
    %v5512 = vadd.f32 %v5106, %v5148
    %v5513 = vadd.f32 %v3080, %v5142
    %v5514 = vadd.f32 %v3418, %v5143
    %v5515 = vadd.f32 %v3756, %v5144
    %v5516 = vadd.f32 %v4094, %v5145
    %v5517 = vadd.f32 %v4432, %v5146
    %v5518 = vadd.f32 %v4770, %v5147
    %v5519 = vadd.f32 %v5108, %v5148
    %v5520 = vadd.f32 %v3083, %v5142
    %v5521 = vadd.f32 %v3421, %v5143
    %v5522 = vadd.f32 %v3759, %v5144
    %v5523 = vadd.f32 %v4097, %v5145
    %v5524 = vadd.f32 %v4435, %v5146
    %v5525 = vadd.f32 %v4773, %v5147
    %v5526 = vadd.f32 %v5111, %v5148
    %v5527 = vadd.f32 %v3085, %v5142
    %v5528 = vadd.f32 %v3423, %v5143
    %v5529 = vadd.f32 %v3761, %v5144
    %v5530 = vadd.f32 %v4099, %v5145
    %v5531 = vadd.f32 %v4437, %v5146
    %v5532 = vadd.f32 %v4775, %v5147
    %v5533 = vadd.f32 %v5113, %v5148
    %v5534 = vadd.f32 %v3088, %v5142
    %v5535 = vadd.f32 %v3426, %v5143
    %v5536 = vadd.f32 %v3764, %v5144
    %v5537 = vadd.f32 %v4102, %v5145
    %v5538 = vadd.f32 %v4440, %v5146
    %v5539 = vadd.f32 %v4778, %v5147
    %v5540 = vadd.f32 %v5116, %v5148
    %v5541 = vadd.f32 %v3090, %v5142
    %v5542 = vadd.f32 %v3428, %v5143
    %v5543 = vadd.f32 %v3766, %v5144
    %v5544 = vadd.f32 %v4104, %v5145
    %v5545 = vadd.f32 %v4442, %v5146
    %v5546 = vadd.f32 %v4780, %v5147
    %v5547 = vadd.f32 %v5118, %v5148
    %v5548 = vadd.f32 %v3093, %v5142
    %v5549 = vadd.f32 %v3431, %v5143
    %v5550 = vadd.f32 %v3769, %v5144
    %v5551 = vadd.f32 %v4107, %v5145
    %v5552 = vadd.f32 %v4445, %v5146
    %v5553 = vadd.f32 %v4783, %v5147
    %v5554 = vadd.f32 %v5121, %v5148
    %v5555 = vadd.f32 %v3095, %v5142
    %v5556 = vadd.f32 %v3433, %v5143
    %v5557 = vadd.f32 %v3771, %v5144
    %v5558 = vadd.f32 %v4109, %v5145
    %v5559 = vadd.f32 %v4447, %v5146
    %v5560 = vadd.f32 %v4785, %v5147
    %v5561 = vadd.f32 %v5123, %v5148
    %v5562 = vadd.f32 %v3098, %v5142
    %v5563 = vadd.f32 %v3436, %v5143
    %v5564 = vadd.f32 %v3774, %v5144
    %v5565 = vadd.f32 %v4112, %v5145
    %v5566 = vadd.f32 %v4450, %v5146
    %v5567 = vadd.f32 %v4788, %v5147
    %v5568 = vadd.f32 %v5126, %v5148
    %v5569 = vadd.f32 %v3100, %v5142
    %v5570 = vadd.f32 %v3438, %v5143
    %v5571 = vadd.f32 %v3776, %v5144
    %v5572 = vadd.f32 %v4114, %v5145
    %v5573 = vadd.f32 %v4452, %v5146
    %v5574 = vadd.f32 %v4790, %v5147
    %v5575 = vadd.f32 %v5128, %v5148
    %v5576 = vadd.f32 %v3103, %v5142
    %v5577 = vadd.f32 %v3441, %v5143
    %v5578 = vadd.f32 %v3779, %v5144
    %v5579 = vadd.f32 %v4117, %v5145
    %v5580 = vadd.f32 %v4455, %v5146
    %v5581 = vadd.f32 %v4793, %v5147
    %v5582 = vadd.f32 %v5131, %v5148
    %v5583 = vadd.f32 %v3105, %v5142
    %v5584 = vadd.f32 %v3443, %v5143
    %v5585 = vadd.f32 %v3781, %v5144
    %v5586 = vadd.f32 %v4119, %v5145
    %v5587 = vadd.f32 %v4457, %v5146
    %v5588 = vadd.f32 %v4795, %v5147
    %v5589 = vadd.f32 %v5133, %v5148
    %v5590 = vadd.f32 %v3108, %v5142
    %v5591 = vadd.f32 %v3446, %v5143
    %v5592 = vadd.f32 %v3784, %v5144
    %v5593 = vadd.f32 %v4122, %v5145
    %v5594 = vadd.f32 %v4460, %v5146
    %v5595 = vadd.f32 %v4798, %v5147
    %v5596 = vadd.f32 %v5136, %v5148
    %v5597 = vadd.f32 %v3110, %v5142
    %v5598 = vadd.f32 %v3448, %v5143
    %v5599 = vadd.f32 %v3786, %v5144
    %v5600 = vadd.f32 %v4124, %v5145
    %v5601 = vadd.f32 %v4462, %v5146
    %v5602 = vadd.f32 %v4800, %v5147
    %v5603 = vadd.f32 %v5138, %v5148
    %v5604 = vpack.c.bf16 %v5157, %v5156
    %v5605 = vpack.c.bf16 %v5159, %v5158
    %v5606 = vpack.c.bf16 %v5161, %v5160
    %v5607 = vpack.c.bf16 %v5162, %v5162
    %v5608 = vpack.c.bf16 %v5164, %v5163
    %v5609 = vpack.c.bf16 %v5166, %v5165
    %v5610 = vpack.c.bf16 %v5168, %v5167
    %v5611 = vpack.c.bf16 %v5169, %v5169
    %v5612 = vpack.c.bf16 %v5171, %v5170
    %v5613 = vpack.c.bf16 %v5173, %v5172
    %v5614 = vpack.c.bf16 %v5175, %v5174
    %v5615 = vpack.c.bf16 %v5176, %v5176
    %v5616 = vpack.c.bf16 %v5178, %v5177
    %v5617 = vpack.c.bf16 %v5180, %v5179
    %v5618 = vpack.c.bf16 %v5182, %v5181
    %v5619 = vpack.c.bf16 %v5183, %v5183
    %v5620 = vpack.c.bf16 %v5185, %v5184
    %v5621 = vpack.c.bf16 %v5187, %v5186
    %v5622 = vpack.c.bf16 %v5189, %v5188
    %v5623 = vpack.c.bf16 %v5190, %v5190
    %v5624 = vpack.c.bf16 %v5192, %v5191
    %v5625 = vpack.c.bf16 %v5194, %v5193
    %v5626 = vpack.c.bf16 %v5196, %v5195
    %v5627 = vpack.c.bf16 %v5197, %v5197
    %v5628 = vpack.c.bf16 %v5199, %v5198
    %v5629 = vpack.c.bf16 %v5201, %v5200
    %v5630 = vpack.c.bf16 %v5203, %v5202
    %v5631 = vpack.c.bf16 %v5204, %v5204
    %v5632 = vpack.c.bf16 %v5206, %v5205
    %v5633 = vpack.c.bf16 %v5208, %v5207
    %v5634 = vpack.c.bf16 %v5210, %v5209
    %v5635 = vpack.c.bf16 %v5211, %v5211
    %v5636 = vpack.c.bf16 %v5213, %v5212
    %v5637 = vpack.c.bf16 %v5215, %v5214
    %v5638 = vpack.c.bf16 %v5217, %v5216
    %v5639 = vpack.c.bf16 %v5218, %v5218
    %v5640 = vpack.c.bf16 %v5220, %v5219
    %v5641 = vpack.c.bf16 %v5222, %v5221
    %v5642 = vpack.c.bf16 %v5224, %v5223
    %v5643 = vpack.c.bf16 %v5225, %v5225
    %v5644 = vpack.c.bf16 %v5227, %v5226
    %v5645 = vpack.c.bf16 %v5229, %v5228
    %v5646 = vpack.c.bf16 %v5231, %v5230
    %v5647 = vpack.c.bf16 %v5232, %v5232
    %v5648 = vpack.c.bf16 %v5234, %v5233
    %v5649 = vpack.c.bf16 %v5236, %v5235
    %v5650 = vpack.c.bf16 %v5238, %v5237
    %v5651 = vpack.c.bf16 %v5239, %v5239
    %v5652 = vpack.c.bf16 %v5241, %v5240
    %v5653 = vpack.c.bf16 %v5243, %v5242
    %v5654 = vpack.c.bf16 %v5245, %v5244
    %v5655 = vpack.c.bf16 %v5246, %v5246
    %v5656 = vpack.c.bf16 %v5248, %v5247
    %v5657 = vpack.c.bf16 %v5250, %v5249
    %v5658 = vpack.c.bf16 %v5252, %v5251
    %v5659 = vpack.c.bf16 %v5253, %v5253
    %v5660 = vpack.c.bf16 %v5255, %v5254
    %v5661 = vpack.c.bf16 %v5257, %v5256
    %v5662 = vpack.c.bf16 %v5259, %v5258
    %v5663 = vpack.c.bf16 %v5260, %v5260
    %v5664 = vpack.c.bf16 %v5262, %v5261
    %v5665 = vpack.c.bf16 %v5264, %v5263
    %v5666 = vpack.c.bf16 %v5266, %v5265
    %v5667 = vpack.c.bf16 %v5267, %v5267
    %v5668 = vpack.c.bf16 %v5269, %v5268
    %v5669 = vpack.c.bf16 %v5271, %v5270
    %v5670 = vpack.c.bf16 %v5273, %v5272
    %v5671 = vpack.c.bf16 %v5274, %v5274
    %v5672 = vpack.c.bf16 %v5276, %v5275
    %v5673 = vpack.c.bf16 %v5278, %v5277
    %v5674 = vpack.c.bf16 %v5280, %v5279
    %v5675 = vpack.c.bf16 %v5281, %v5281
    %v5676 = vpack.c.bf16 %v5283, %v5282
    %v5677 = vpack.c.bf16 %v5285, %v5284
    %v5678 = vpack.c.bf16 %v5287, %v5286
    %v5679 = vpack.c.bf16 %v5288, %v5288
    %v5680 = vpack.c.bf16 %v5290, %v5289
    %v5681 = vpack.c.bf16 %v5292, %v5291
    %v5682 = vpack.c.bf16 %v5294, %v5293
    %v5683 = vpack.c.bf16 %v5295, %v5295
    %v5684 = vpack.c.bf16 %v5297, %v5296
    %v5685 = vpack.c.bf16 %v5299, %v5298
    %v5686 = vpack.c.bf16 %v5301, %v5300
    %v5687 = vpack.c.bf16 %v5302, %v5302
    %v5688 = vpack.c.bf16 %v5304, %v5303
    %v5689 = vpack.c.bf16 %v5306, %v5305
    %v5690 = vpack.c.bf16 %v5308, %v5307
    %v5691 = vpack.c.bf16 %v5309, %v5309
    %v5692 = vpack.c.bf16 %v5311, %v5310
    %v5693 = vpack.c.bf16 %v5313, %v5312
    %v5694 = vpack.c.bf16 %v5315, %v5314
    %v5695 = vpack.c.bf16 %v5316, %v5316
    %v5696 = vpack.c.bf16 %v5318, %v5317
    %v5697 = vpack.c.bf16 %v5320, %v5319
    %v5698 = vpack.c.bf16 %v5322, %v5321
    %v5699 = vpack.c.bf16 %v5323, %v5323
    %v5700 = vpack.c.bf16 %v5325, %v5324
    %v5701 = vpack.c.bf16 %v5327, %v5326
    %v5702 = vpack.c.bf16 %v5329, %v5328
    %v5703 = vpack.c.bf16 %v5330, %v5330
    %v5704 = vpack.c.bf16 %v5332, %v5331
    %v5705 = vpack.c.bf16 %v5334, %v5333
    %v5706 = vpack.c.bf16 %v5336, %v5335
    %v5707 = vpack.c.bf16 %v5337, %v5337
    %v5708 = vpack.c.bf16 %v5339, %v5338
    %v5709 = vpack.c.bf16 %v5341, %v5340
    %v5710 = vpack.c.bf16 %v5343, %v5342
    %v5711 = vpack.c.bf16 %v5344, %v5344
    %v5712 = vpack.c.bf16 %v5346, %v5345
    %v5713 = vpack.c.bf16 %v5348, %v5347
    %v5714 = vpack.c.bf16 %v5350, %v5349
    %v5715 = vpack.c.bf16 %v5351, %v5351
    %v5716 = vpack.c.bf16 %v5353, %v5352
    %v5717 = vpack.c.bf16 %v5355, %v5354
    %v5718 = vpack.c.bf16 %v5357, %v5356
    %v5719 = vpack.c.bf16 %v5358, %v5358
    %v5720 = vpack.c.bf16 %v5360, %v5359
    %v5721 = vpack.c.bf16 %v5362, %v5361
    %v5722 = vpack.c.bf16 %v5364, %v5363
    %v5723 = vpack.c.bf16 %v5365, %v5365
    %v5724 = vpack.c.bf16 %v5367, %v5366
    %v5725 = vpack.c.bf16 %v5369, %v5368
    %v5726 = vpack.c.bf16 %v5371, %v5370
    %v5727 = vpack.c.bf16 %v5372, %v5372
    %v5728 = vpack.c.bf16 %v5374, %v5373
    %v5729 = vpack.c.bf16 %v5376, %v5375
    %v5730 = vpack.c.bf16 %v5378, %v5377
    %v5731 = vpack.c.bf16 %v5379, %v5379
    %v5732 = vpack.c.bf16 %v5381, %v5380
    %v5733 = vpack.c.bf16 %v5383, %v5382
    %v5734 = vpack.c.bf16 %v5385, %v5384
    %v5735 = vpack.c.bf16 %v5386, %v5386
    %v5736 = vpack.c.bf16 %v5388, %v5387
    %v5737 = vpack.c.bf16 %v5390, %v5389
    %v5738 = vpack.c.bf16 %v5392, %v5391
    %v5739 = vpack.c.bf16 %v5393, %v5393
    %v5740 = vpack.c.bf16 %v5395, %v5394
    %v5741 = vpack.c.bf16 %v5397, %v5396
    %v5742 = vpack.c.bf16 %v5399, %v5398
    %v5743 = vpack.c.bf16 %v5400, %v5400
    %v5744 = vpack.c.bf16 %v5402, %v5401
    %v5745 = vpack.c.bf16 %v5404, %v5403
    %v5746 = vpack.c.bf16 %v5406, %v5405
    %v5747 = vpack.c.bf16 %v5407, %v5407
    %v5748 = vpack.c.bf16 %v5409, %v5408
    %v5749 = vpack.c.bf16 %v5411, %v5410
    %v5750 = vpack.c.bf16 %v5413, %v5412
    %v5751 = vpack.c.bf16 %v5414, %v5414
    %v5752 = vpack.c.bf16 %v5416, %v5415
    %v5753 = vpack.c.bf16 %v5418, %v5417
    %v5754 = vpack.c.bf16 %v5420, %v5419
    %v5755 = vpack.c.bf16 %v5421, %v5421
    %v5756 = vpack.c.bf16 %v5423, %v5422
    %v5757 = vpack.c.bf16 %v5425, %v5424
    %v5758 = vpack.c.bf16 %v5427, %v5426
    %v5759 = vpack.c.bf16 %v5428, %v5428
    %v5760 = vpack.c.bf16 %v5430, %v5429
    %v5761 = vpack.c.bf16 %v5432, %v5431
    %v5762 = vpack.c.bf16 %v5434, %v5433
    %v5763 = vpack.c.bf16 %v5435, %v5435
    %v5764 = vpack.c.bf16 %v5437, %v5436
    %v5765 = vpack.c.bf16 %v5439, %v5438
    %v5766 = vpack.c.bf16 %v5441, %v5440
    %v5767 = vpack.c.bf16 %v5442, %v5442
    %v5768 = vpack.c.bf16 %v5444, %v5443
    %v5769 = vpack.c.bf16 %v5446, %v5445
    %v5770 = vpack.c.bf16 %v5448, %v5447
    %v5771 = vpack.c.bf16 %v5449, %v5449
    %v5772 = vpack.c.bf16 %v5451, %v5450
    %v5773 = vpack.c.bf16 %v5453, %v5452
    %v5774 = vpack.c.bf16 %v5455, %v5454
    %v5775 = vpack.c.bf16 %v5456, %v5456
    %v5776 = vpack.c.bf16 %v5458, %v5457
    %v5777 = vpack.c.bf16 %v5460, %v5459
    %v5778 = vpack.c.bf16 %v5462, %v5461
    %v5779 = vpack.c.bf16 %v5463, %v5463
    %v5780 = vpack.c.bf16 %v5465, %v5464
    %v5781 = vpack.c.bf16 %v5467, %v5466
    %v5782 = vpack.c.bf16 %v5469, %v5468
    %v5783 = vpack.c.bf16 %v5470, %v5470
    %v5784 = vpack.c.bf16 %v5472, %v5471
    %v5785 = vpack.c.bf16 %v5474, %v5473
    %v5786 = vpack.c.bf16 %v5476, %v5475
    %v5787 = vpack.c.bf16 %v5477, %v5477
    %v5788 = vpack.c.bf16 %v5479, %v5478
    %v5789 = vpack.c.bf16 %v5481, %v5480
    %v5790 = vpack.c.bf16 %v5483, %v5482
    %v5791 = vpack.c.bf16 %v5484, %v5484
    %v5792 = vpack.c.bf16 %v5486, %v5485
    %v5793 = vpack.c.bf16 %v5488, %v5487
    %v5794 = vpack.c.bf16 %v5490, %v5489
    %v5795 = vpack.c.bf16 %v5491, %v5491
    %v5796 = vpack.c.bf16 %v5493, %v5492
    %v5797 = vpack.c.bf16 %v5495, %v5494
    %v5798 = vpack.c.bf16 %v5497, %v5496
    %v5799 = vpack.c.bf16 %v5498, %v5498
    %v5800 = vpack.c.bf16 %v5500, %v5499
    %v5801 = vpack.c.bf16 %v5502, %v5501
    %v5802 = vpack.c.bf16 %v5504, %v5503
    %v5803 = vpack.c.bf16 %v5505, %v5505
    %v5804 = vpack.c.bf16 %v5507, %v5506
    %v5805 = vpack.c.bf16 %v5509, %v5508
    %v5806 = vpack.c.bf16 %v5511, %v5510
    %v5807 = vpack.c.bf16 %v5512, %v5512
    %v5808 = vpack.c.bf16 %v5514, %v5513
    %v5809 = vpack.c.bf16 %v5516, %v5515
    %v5810 = vpack.c.bf16 %v5518, %v5517
    %v5811 = vpack.c.bf16 %v5519, %v5519
    %v5812 = vpack.c.bf16 %v5521, %v5520
    %v5813 = vpack.c.bf16 %v5523, %v5522
    %v5814 = vpack.c.bf16 %v5525, %v5524
    %v5815 = vpack.c.bf16 %v5526, %v5526
    %v5816 = vpack.c.bf16 %v5528, %v5527
    %v5817 = vpack.c.bf16 %v5530, %v5529
    %v5818 = vpack.c.bf16 %v5532, %v5531
    %v5819 = vpack.c.bf16 %v5533, %v5533
    %v5820 = vpack.c.bf16 %v5535, %v5534
    %v5821 = vpack.c.bf16 %v5537, %v5536
    %v5822 = vpack.c.bf16 %v5539, %v5538
    %v5823 = vpack.c.bf16 %v5540, %v5540
    %v5824 = vpack.c.bf16 %v5542, %v5541
    %v5825 = vpack.c.bf16 %v5544, %v5543
    %v5826 = vpack.c.bf16 %v5546, %v5545
    %v5827 = vpack.c.bf16 %v5547, %v5547
    %v5828 = vpack.c.bf16 %v5549, %v5548
    %v5829 = vpack.c.bf16 %v5551, %v5550
    %v5830 = vpack.c.bf16 %v5553, %v5552
    %v5831 = vpack.c.bf16 %v5554, %v5554
    %v5832 = vpack.c.bf16 %v5556, %v5555
    %v5833 = vpack.c.bf16 %v5558, %v5557
    %v5834 = vpack.c.bf16 %v5560, %v5559
    %v5835 = vpack.c.bf16 %v5561, %v5561
    %v5836 = vpack.c.bf16 %v5563, %v5562
    %v5837 = vpack.c.bf16 %v5565, %v5564
    %v5838 = vpack.c.bf16 %v5567, %v5566
    %v5839 = vpack.c.bf16 %v5568, %v5568
    %v5840 = vpack.c.bf16 %v5570, %v5569
    %v5841 = vpack.c.bf16 %v5572, %v5571
    %v5842 = vpack.c.bf16 %v5574, %v5573
    %v5843 = vpack.c.bf16 %v5575, %v5575
    %v5844 = vpack.c.bf16 %v5577, %v5576
    %v5845 = vpack.c.bf16 %v5579, %v5578
    %v5846 = vpack.c.bf16 %v5581, %v5580
    %v5847 = vpack.c.bf16 %v5582, %v5582
    %v5848 = vpack.c.bf16 %v5584, %v5583
    %v5849 = vpack.c.bf16 %v5586, %v5585
    %v5850 = vpack.c.bf16 %v5588, %v5587
    %v5851 = vpack.c.bf16 %v5589, %v5589
    %v5852 = vpack.c.bf16 %v5591, %v5590
    %v5853 = vpack.c.bf16 %v5593, %v5592
    %v5854 = vpack.c.bf16 %v5595, %v5594
    %v5855 = vpack.c.bf16 %v5596, %v5596
    %v5856 = vpack.c.bf16 %v5598, %v5597
    %v5857 = vpack.c.bf16 %v5600, %v5599
    %v5858 = vpack.c.bf16 %v5602, %v5601
    %v5859 = vpack.c.bf16 %v5603, %v5603
    %v5860 = vunpack.c.l.bf16 %v5604
    %v5861 = vunpack.c.h.bf16 %v5604
    %v5862 = vunpack.c.l.bf16 %v5605
    %v5863 = vunpack.c.h.bf16 %v5605
    %v5864 = vunpack.c.l.bf16 %v5606
    %v5865 = vunpack.c.h.bf16 %v5606
    %v5866 = vunpack.c.l.bf16 %v5607
    %v5867 = vunpack.c.l.bf16 %v5608
    %v5868 = vunpack.c.h.bf16 %v5608
    %v5869 = vunpack.c.l.bf16 %v5609
    %v5870 = vunpack.c.h.bf16 %v5609
    %v5871 = vunpack.c.l.bf16 %v5610
    %v5872 = vunpack.c.h.bf16 %v5610
    %v5873 = vunpack.c.l.bf16 %v5611
    %v5874 = vunpack.c.l.bf16 %v5612
    %v5875 = vunpack.c.h.bf16 %v5612
    %v5876 = vunpack.c.l.bf16 %v5613
    %v5877 = vunpack.c.h.bf16 %v5613
    %v5878 = vunpack.c.l.bf16 %v5614
    %v5879 = vunpack.c.h.bf16 %v5614
    %v5880 = vunpack.c.l.bf16 %v5615
    %v5881 = vunpack.c.l.bf16 %v5616
    %v5882 = vunpack.c.h.bf16 %v5616
    %v5883 = vunpack.c.l.bf16 %v5617
    %v5884 = vunpack.c.h.bf16 %v5617
    %v5885 = vunpack.c.l.bf16 %v5618
    %v5886 = vunpack.c.h.bf16 %v5618
    %v5887 = vunpack.c.l.bf16 %v5619
    %v5888 = vunpack.c.l.bf16 %v5620
    %v5889 = vunpack.c.h.bf16 %v5620
    %v5890 = vunpack.c.l.bf16 %v5621
    %v5891 = vunpack.c.h.bf16 %v5621
    %v5892 = vunpack.c.l.bf16 %v5622
    %v5893 = vunpack.c.h.bf16 %v5622
    %v5894 = vunpack.c.l.bf16 %v5623
    %v5895 = vunpack.c.l.bf16 %v5624
    %v5896 = vunpack.c.h.bf16 %v5624
    %v5897 = vunpack.c.l.bf16 %v5625
    %v5898 = vunpack.c.h.bf16 %v5625
    %v5899 = vunpack.c.l.bf16 %v5626
    %v5900 = vunpack.c.h.bf16 %v5626
    %v5901 = vunpack.c.l.bf16 %v5627
    %v5902 = vunpack.c.l.bf16 %v5628
    %v5903 = vunpack.c.h.bf16 %v5628
    %v5904 = vunpack.c.l.bf16 %v5629
    %v5905 = vunpack.c.h.bf16 %v5629
    %v5906 = vunpack.c.l.bf16 %v5630
    %v5907 = vunpack.c.h.bf16 %v5630
    %v5908 = vunpack.c.l.bf16 %v5631
    %v5909 = vunpack.c.l.bf16 %v5632
    %v5910 = vunpack.c.h.bf16 %v5632
    %v5911 = vunpack.c.l.bf16 %v5633
    %v5912 = vunpack.c.h.bf16 %v5633
    %v5913 = vunpack.c.l.bf16 %v5634
    %v5914 = vunpack.c.h.bf16 %v5634
    %v5915 = vunpack.c.l.bf16 %v5635
    %v5916 = vunpack.c.l.bf16 %v5636
    %v5917 = vunpack.c.h.bf16 %v5636
    %v5918 = vunpack.c.l.bf16 %v5637
    %v5919 = vunpack.c.h.bf16 %v5637
    %v5920 = vunpack.c.l.bf16 %v5638
    %v5921 = vunpack.c.h.bf16 %v5638
    %v5922 = vunpack.c.l.bf16 %v5639
    %v5923 = vunpack.c.l.bf16 %v5640
    %v5924 = vunpack.c.h.bf16 %v5640
    %v5925 = vunpack.c.l.bf16 %v5641
    %v5926 = vunpack.c.h.bf16 %v5641
    %v5927 = vunpack.c.l.bf16 %v5642
    %v5928 = vunpack.c.h.bf16 %v5642
    %v5929 = vunpack.c.l.bf16 %v5643
    %v5930 = vunpack.c.l.bf16 %v5644
    %v5931 = vunpack.c.h.bf16 %v5644
    %v5932 = vunpack.c.l.bf16 %v5645
    %v5933 = vunpack.c.h.bf16 %v5645
    %v5934 = vunpack.c.l.bf16 %v5646
    %v5935 = vunpack.c.h.bf16 %v5646
    %v5936 = vunpack.c.l.bf16 %v5647
    %v5937 = vunpack.c.l.bf16 %v5648
    %v5938 = vunpack.c.h.bf16 %v5648
    %v5939 = vunpack.c.l.bf16 %v5649
    %v5940 = vunpack.c.h.bf16 %v5649
    %v5941 = vunpack.c.l.bf16 %v5650
    %v5942 = vunpack.c.h.bf16 %v5650
    %v5943 = vunpack.c.l.bf16 %v5651
    %v5944 = vunpack.c.l.bf16 %v5652
    %v5945 = vunpack.c.h.bf16 %v5652
    %v5946 = vunpack.c.l.bf16 %v5653
    %v5947 = vunpack.c.h.bf16 %v5653
    %v5948 = vunpack.c.l.bf16 %v5654
    %v5949 = vunpack.c.h.bf16 %v5654
    %v5950 = vunpack.c.l.bf16 %v5655
    %v5951 = vunpack.c.l.bf16 %v5656
    %v5952 = vunpack.c.h.bf16 %v5656
    %v5953 = vunpack.c.l.bf16 %v5657
    %v5954 = vunpack.c.h.bf16 %v5657
    %v5955 = vunpack.c.l.bf16 %v5658
    %v5956 = vunpack.c.h.bf16 %v5658
    %v5957 = vunpack.c.l.bf16 %v5659
    %v5958 = vunpack.c.l.bf16 %v5660
    %v5959 = vunpack.c.h.bf16 %v5660
    %v5960 = vunpack.c.l.bf16 %v5661
    %v5961 = vunpack.c.h.bf16 %v5661
    %v5962 = vunpack.c.l.bf16 %v5662
    %v5963 = vunpack.c.h.bf16 %v5662
    %v5964 = vunpack.c.l.bf16 %v5663
    %v5965 = vunpack.c.l.bf16 %v5664
    %v5966 = vunpack.c.h.bf16 %v5664
    %v5967 = vunpack.c.l.bf16 %v5665
    %v5968 = vunpack.c.h.bf16 %v5665
    %v5969 = vunpack.c.l.bf16 %v5666
    %v5970 = vunpack.c.h.bf16 %v5666
    %v5971 = vunpack.c.l.bf16 %v5667
    %v5972 = vunpack.c.l.bf16 %v5668
    %v5973 = vunpack.c.h.bf16 %v5668
    %v5974 = vunpack.c.l.bf16 %v5669
    %v5975 = vunpack.c.h.bf16 %v5669
    %v5976 = vunpack.c.l.bf16 %v5670
    %v5977 = vunpack.c.h.bf16 %v5670
    %v5978 = vunpack.c.l.bf16 %v5671
    %v5979 = vunpack.c.l.bf16 %v5672
    %v5980 = vunpack.c.h.bf16 %v5672
    %v5981 = vunpack.c.l.bf16 %v5673
    %v5982 = vunpack.c.h.bf16 %v5673
    %v5983 = vunpack.c.l.bf16 %v5674
    %v5984 = vunpack.c.h.bf16 %v5674
    %v5985 = vunpack.c.l.bf16 %v5675
    %v5986 = vunpack.c.l.bf16 %v5676
    %v5987 = vunpack.c.h.bf16 %v5676
    %v5988 = vunpack.c.l.bf16 %v5677
    %v5989 = vunpack.c.h.bf16 %v5677
    %v5990 = vunpack.c.l.bf16 %v5678
    %v5991 = vunpack.c.h.bf16 %v5678
    %v5992 = vunpack.c.l.bf16 %v5679
    %v5993 = vunpack.c.l.bf16 %v5680
    %v5994 = vunpack.c.h.bf16 %v5680
    %v5995 = vunpack.c.l.bf16 %v5681
    %v5996 = vunpack.c.h.bf16 %v5681
    %v5997 = vunpack.c.l.bf16 %v5682
    %v5998 = vunpack.c.h.bf16 %v5682
    %v5999 = vunpack.c.l.bf16 %v5683
    %v6000 = vunpack.c.l.bf16 %v5684
    %v6001 = vunpack.c.h.bf16 %v5684
    %v6002 = vunpack.c.l.bf16 %v5685
    %v6003 = vunpack.c.h.bf16 %v5685
    %v6004 = vunpack.c.l.bf16 %v5686
    %v6005 = vunpack.c.h.bf16 %v5686
    %v6006 = vunpack.c.l.bf16 %v5687
    %v6007 = vunpack.c.l.bf16 %v5688
    %v6008 = vunpack.c.h.bf16 %v5688
    %v6009 = vunpack.c.l.bf16 %v5689
    %v6010 = vunpack.c.h.bf16 %v5689
    %v6011 = vunpack.c.l.bf16 %v5690
    %v6012 = vunpack.c.h.bf16 %v5690
    %v6013 = vunpack.c.l.bf16 %v5691
    %v6014 = vunpack.c.l.bf16 %v5692
    %v6015 = vunpack.c.h.bf16 %v5692
    %v6016 = vunpack.c.l.bf16 %v5693
    %v6017 = vunpack.c.h.bf16 %v5693
    %v6018 = vunpack.c.l.bf16 %v5694
    %v6019 = vunpack.c.h.bf16 %v5694
    %v6020 = vunpack.c.l.bf16 %v5695
    %v6021 = vunpack.c.l.bf16 %v5696
    %v6022 = vunpack.c.h.bf16 %v5696
    %v6023 = vunpack.c.l.bf16 %v5697
    %v6024 = vunpack.c.h.bf16 %v5697
    %v6025 = vunpack.c.l.bf16 %v5698
    %v6026 = vunpack.c.h.bf16 %v5698
    %v6027 = vunpack.c.l.bf16 %v5699
    %v6028 = vunpack.c.l.bf16 %v5700
    %v6029 = vunpack.c.h.bf16 %v5700
    %v6030 = vunpack.c.l.bf16 %v5701
    %v6031 = vunpack.c.h.bf16 %v5701
    %v6032 = vunpack.c.l.bf16 %v5702
    %v6033 = vunpack.c.h.bf16 %v5702
    %v6034 = vunpack.c.l.bf16 %v5703
    %v6035 = vunpack.c.l.bf16 %v5704
    %v6036 = vunpack.c.h.bf16 %v5704
    %v6037 = vunpack.c.l.bf16 %v5705
    %v6038 = vunpack.c.h.bf16 %v5705
    %v6039 = vunpack.c.l.bf16 %v5706
    %v6040 = vunpack.c.h.bf16 %v5706
    %v6041 = vunpack.c.l.bf16 %v5707
    %v6042 = vunpack.c.l.bf16 %v5708
    %v6043 = vunpack.c.h.bf16 %v5708
    %v6044 = vunpack.c.l.bf16 %v5709
    %v6045 = vunpack.c.h.bf16 %v5709
    %v6046 = vunpack.c.l.bf16 %v5710
    %v6047 = vunpack.c.h.bf16 %v5710
    %v6048 = vunpack.c.l.bf16 %v5711
    %v6049 = vunpack.c.l.bf16 %v5712
    %v6050 = vunpack.c.h.bf16 %v5712
    %v6051 = vunpack.c.l.bf16 %v5713
    %v6052 = vunpack.c.h.bf16 %v5713
    %v6053 = vunpack.c.l.bf16 %v5714
    %v6054 = vunpack.c.h.bf16 %v5714
    %v6055 = vunpack.c.l.bf16 %v5715
    %v6056 = vunpack.c.l.bf16 %v5716
    %v6057 = vunpack.c.h.bf16 %v5716
    %v6058 = vunpack.c.l.bf16 %v5717
    %v6059 = vunpack.c.h.bf16 %v5717
    %v6060 = vunpack.c.l.bf16 %v5718
    %v6061 = vunpack.c.h.bf16 %v5718
    %v6062 = vunpack.c.l.bf16 %v5719
    %v6063 = vunpack.c.l.bf16 %v5720
    %v6064 = vunpack.c.h.bf16 %v5720
    %v6065 = vunpack.c.l.bf16 %v5721
    %v6066 = vunpack.c.h.bf16 %v5721
    %v6067 = vunpack.c.l.bf16 %v5722
    %v6068 = vunpack.c.h.bf16 %v5722
    %v6069 = vunpack.c.l.bf16 %v5723
    %v6070 = vunpack.c.l.bf16 %v5724
    %v6071 = vunpack.c.h.bf16 %v5724
    %v6072 = vunpack.c.l.bf16 %v5725
    %v6073 = vunpack.c.h.bf16 %v5725
    %v6074 = vunpack.c.l.bf16 %v5726
    %v6075 = vunpack.c.h.bf16 %v5726
    %v6076 = vunpack.c.l.bf16 %v5727
    %v6077 = vunpack.c.l.bf16 %v5728
    %v6078 = vunpack.c.h.bf16 %v5728
    %v6079 = vunpack.c.l.bf16 %v5729
    %v6080 = vunpack.c.h.bf16 %v5729
    %v6081 = vunpack.c.l.bf16 %v5730
    %v6082 = vunpack.c.h.bf16 %v5730
    %v6083 = vunpack.c.l.bf16 %v5731
    %v6084 = vunpack.c.l.bf16 %v5732
    %v6085 = vunpack.c.h.bf16 %v5732
    %v6086 = vunpack.c.l.bf16 %v5733
    %v6087 = vunpack.c.h.bf16 %v5733
    %v6088 = vunpack.c.l.bf16 %v5734
    %v6089 = vunpack.c.h.bf16 %v5734
    %v6090 = vunpack.c.l.bf16 %v5735
    %v6091 = vunpack.c.l.bf16 %v5736
    %v6092 = vunpack.c.h.bf16 %v5736
    %v6093 = vunpack.c.l.bf16 %v5737
    %v6094 = vunpack.c.h.bf16 %v5737
    %v6095 = vunpack.c.l.bf16 %v5738
    %v6096 = vunpack.c.h.bf16 %v5738
    %v6097 = vunpack.c.l.bf16 %v5739
    %v6098 = vunpack.c.l.bf16 %v5740
    %v6099 = vunpack.c.h.bf16 %v5740
    %v6100 = vunpack.c.l.bf16 %v5741
    %v6101 = vunpack.c.h.bf16 %v5741
    %v6102 = vunpack.c.l.bf16 %v5742
    %v6103 = vunpack.c.h.bf16 %v5742
    %v6104 = vunpack.c.l.bf16 %v5743
    %v6105 = vunpack.c.l.bf16 %v5744
    %v6106 = vunpack.c.h.bf16 %v5744
    %v6107 = vunpack.c.l.bf16 %v5745
    %v6108 = vunpack.c.h.bf16 %v5745
    %v6109 = vunpack.c.l.bf16 %v5746
    %v6110 = vunpack.c.h.bf16 %v5746
    %v6111 = vunpack.c.l.bf16 %v5747
    %v6112 = vunpack.c.l.bf16 %v5748
    %v6113 = vunpack.c.h.bf16 %v5748
    %v6114 = vunpack.c.l.bf16 %v5749
    %v6115 = vunpack.c.h.bf16 %v5749
    %v6116 = vunpack.c.l.bf16 %v5750
    %v6117 = vunpack.c.h.bf16 %v5750
    %v6118 = vunpack.c.l.bf16 %v5751
    %v6119 = vunpack.c.l.bf16 %v5752
    %v6120 = vunpack.c.h.bf16 %v5752
    %v6121 = vunpack.c.l.bf16 %v5753
    %v6122 = vunpack.c.h.bf16 %v5753
    %v6123 = vunpack.c.l.bf16 %v5754
    %v6124 = vunpack.c.h.bf16 %v5754
    %v6125 = vunpack.c.l.bf16 %v5755
    %v6126 = vunpack.c.l.bf16 %v5756
    %v6127 = vunpack.c.h.bf16 %v5756
    %v6128 = vunpack.c.l.bf16 %v5757
    %v6129 = vunpack.c.h.bf16 %v5757
    %v6130 = vunpack.c.l.bf16 %v5758
    %v6131 = vunpack.c.h.bf16 %v5758
    %v6132 = vunpack.c.l.bf16 %v5759
    %v6133 = vunpack.c.l.bf16 %v5760
    %v6134 = vunpack.c.h.bf16 %v5760
    %v6135 = vunpack.c.l.bf16 %v5761
    %v6136 = vunpack.c.h.bf16 %v5761
    %v6137 = vunpack.c.l.bf16 %v5762
    %v6138 = vunpack.c.h.bf16 %v5762
    %v6139 = vunpack.c.l.bf16 %v5763
    %v6140 = vunpack.c.l.bf16 %v5764
    %v6141 = vunpack.c.h.bf16 %v5764
    %v6142 = vunpack.c.l.bf16 %v5765
    %v6143 = vunpack.c.h.bf16 %v5765
    %v6144 = vunpack.c.l.bf16 %v5766
    %v6145 = vunpack.c.h.bf16 %v5766
    %v6146 = vunpack.c.l.bf16 %v5767
    %v6147 = vunpack.c.l.bf16 %v5768
    %v6148 = vunpack.c.h.bf16 %v5768
    %v6149 = vunpack.c.l.bf16 %v5769
    %v6150 = vunpack.c.h.bf16 %v5769
    %v6151 = vunpack.c.l.bf16 %v5770
    %v6152 = vunpack.c.h.bf16 %v5770
    %v6153 = vunpack.c.l.bf16 %v5771
    %v6154 = vunpack.c.l.bf16 %v5772
    %v6155 = vunpack.c.h.bf16 %v5772
    %v6156 = vunpack.c.l.bf16 %v5773
    %v6157 = vunpack.c.h.bf16 %v5773
    %v6158 = vunpack.c.l.bf16 %v5774
    %v6159 = vunpack.c.h.bf16 %v5774
    %v6160 = vunpack.c.l.bf16 %v5775
    %v6161 = vunpack.c.l.bf16 %v5776
    %v6162 = vunpack.c.h.bf16 %v5776
    %v6163 = vunpack.c.l.bf16 %v5777
    %v6164 = vunpack.c.h.bf16 %v5777
    %v6165 = vunpack.c.l.bf16 %v5778
    %v6166 = vunpack.c.h.bf16 %v5778
    %v6167 = vunpack.c.l.bf16 %v5779
    %v6168 = vunpack.c.l.bf16 %v5780
    %v6169 = vunpack.c.h.bf16 %v5780
    %v6170 = vunpack.c.l.bf16 %v5781
    %v6171 = vunpack.c.h.bf16 %v5781
    %v6172 = vunpack.c.l.bf16 %v5782
    %v6173 = vunpack.c.h.bf16 %v5782
    %v6174 = vunpack.c.l.bf16 %v5783
    %v6175 = vunpack.c.l.bf16 %v5784
    %v6176 = vunpack.c.h.bf16 %v5784
    %v6177 = vunpack.c.l.bf16 %v5785
    %v6178 = vunpack.c.h.bf16 %v5785
    %v6179 = vunpack.c.l.bf16 %v5786
    %v6180 = vunpack.c.h.bf16 %v5786
    %v6181 = vunpack.c.l.bf16 %v5787
    %v6182 = vunpack.c.l.bf16 %v5788
    %v6183 = vunpack.c.h.bf16 %v5788
    %v6184 = vunpack.c.l.bf16 %v5789
    %v6185 = vunpack.c.h.bf16 %v5789
    %v6186 = vunpack.c.l.bf16 %v5790
    %v6187 = vunpack.c.h.bf16 %v5790
    %v6188 = vunpack.c.l.bf16 %v5791
    %v6189 = vunpack.c.l.bf16 %v5792
    %v6190 = vunpack.c.h.bf16 %v5792
    %v6191 = vunpack.c.l.bf16 %v5793
    %v6192 = vunpack.c.h.bf16 %v5793
    %v6193 = vunpack.c.l.bf16 %v5794
    %v6194 = vunpack.c.h.bf16 %v5794
    %v6195 = vunpack.c.l.bf16 %v5795
    %v6196 = vunpack.c.l.bf16 %v5796
    %v6197 = vunpack.c.h.bf16 %v5796
    %v6198 = vunpack.c.l.bf16 %v5797
    %v6199 = vunpack.c.h.bf16 %v5797
    %v6200 = vunpack.c.l.bf16 %v5798
    %v6201 = vunpack.c.h.bf16 %v5798
    %v6202 = vunpack.c.l.bf16 %v5799
    %v6203 = vunpack.c.l.bf16 %v5800
    %v6204 = vunpack.c.h.bf16 %v5800
    %v6205 = vunpack.c.l.bf16 %v5801
    %v6206 = vunpack.c.h.bf16 %v5801
    %v6207 = vunpack.c.l.bf16 %v5802
    %v6208 = vunpack.c.h.bf16 %v5802
    %v6209 = vunpack.c.l.bf16 %v5803
    %v6210 = vunpack.c.l.bf16 %v5804
    %v6211 = vunpack.c.h.bf16 %v5804
    %v6212 = vunpack.c.l.bf16 %v5805
    %v6213 = vunpack.c.h.bf16 %v5805
    %v6214 = vunpack.c.l.bf16 %v5806
    %v6215 = vunpack.c.h.bf16 %v5806
    %v6216 = vunpack.c.l.bf16 %v5807
    %v6217 = vunpack.c.l.bf16 %v5808
    %v6218 = vunpack.c.h.bf16 %v5808
    %v6219 = vunpack.c.l.bf16 %v5809
    %v6220 = vunpack.c.h.bf16 %v5809
    %v6221 = vunpack.c.l.bf16 %v5810
    %v6222 = vunpack.c.h.bf16 %v5810
    %v6223 = vunpack.c.l.bf16 %v5811
    %v6224 = vunpack.c.l.bf16 %v5812
    %v6225 = vunpack.c.h.bf16 %v5812
    %v6226 = vunpack.c.l.bf16 %v5813
    %v6227 = vunpack.c.h.bf16 %v5813
    %v6228 = vunpack.c.l.bf16 %v5814
    %v6229 = vunpack.c.h.bf16 %v5814
    %v6230 = vunpack.c.l.bf16 %v5815
    %v6231 = vunpack.c.l.bf16 %v5816
    %v6232 = vunpack.c.h.bf16 %v5816
    %v6233 = vunpack.c.l.bf16 %v5817
    %v6234 = vunpack.c.h.bf16 %v5817
    %v6235 = vunpack.c.l.bf16 %v5818
    %v6236 = vunpack.c.h.bf16 %v5818
    %v6237 = vunpack.c.l.bf16 %v5819
    %v6238 = vunpack.c.l.bf16 %v5820
    %v6239 = vunpack.c.h.bf16 %v5820
    %v6240 = vunpack.c.l.bf16 %v5821
    %v6241 = vunpack.c.h.bf16 %v5821
    %v6242 = vunpack.c.l.bf16 %v5822
    %v6243 = vunpack.c.h.bf16 %v5822
    %v6244 = vunpack.c.l.bf16 %v5823
    %v6245 = vunpack.c.l.bf16 %v5824
    %v6246 = vunpack.c.h.bf16 %v5824
    %v6247 = vunpack.c.l.bf16 %v5825
    %v6248 = vunpack.c.h.bf16 %v5825
    %v6249 = vunpack.c.l.bf16 %v5826
    %v6250 = vunpack.c.h.bf16 %v5826
    %v6251 = vunpack.c.l.bf16 %v5827
    %v6252 = vunpack.c.l.bf16 %v5828
    %v6253 = vunpack.c.h.bf16 %v5828
    %v6254 = vunpack.c.l.bf16 %v5829
    %v6255 = vunpack.c.h.bf16 %v5829
    %v6256 = vunpack.c.l.bf16 %v5830
    %v6257 = vunpack.c.h.bf16 %v5830
    %v6258 = vunpack.c.l.bf16 %v5831
    %v6259 = vunpack.c.l.bf16 %v5832
    %v6260 = vunpack.c.h.bf16 %v5832
    %v6261 = vunpack.c.l.bf16 %v5833
    %v6262 = vunpack.c.h.bf16 %v5833
    %v6263 = vunpack.c.l.bf16 %v5834
    %v6264 = vunpack.c.h.bf16 %v5834
    %v6265 = vunpack.c.l.bf16 %v5835
    %v6266 = vunpack.c.l.bf16 %v5836
    %v6267 = vunpack.c.h.bf16 %v5836
    %v6268 = vunpack.c.l.bf16 %v5837
    %v6269 = vunpack.c.h.bf16 %v5837
    %v6270 = vunpack.c.l.bf16 %v5838
    %v6271 = vunpack.c.h.bf16 %v5838
    %v6272 = vunpack.c.l.bf16 %v5839
    %v6273 = vunpack.c.l.bf16 %v5840
    %v6274 = vunpack.c.h.bf16 %v5840
    %v6275 = vunpack.c.l.bf16 %v5841
    %v6276 = vunpack.c.h.bf16 %v5841
    %v6277 = vunpack.c.l.bf16 %v5842
    %v6278 = vunpack.c.h.bf16 %v5842
    %v6279 = vunpack.c.l.bf16 %v5843
    %v6280 = vunpack.c.l.bf16 %v5844
    %v6281 = vunpack.c.h.bf16 %v5844
    %v6282 = vunpack.c.l.bf16 %v5845
    %v6283 = vunpack.c.h.bf16 %v5845
    %v6284 = vunpack.c.l.bf16 %v5846
    %v6285 = vunpack.c.h.bf16 %v5846
    %v6286 = vunpack.c.l.bf16 %v5847
    %v6287 = vunpack.c.l.bf16 %v5848
    %v6288 = vunpack.c.h.bf16 %v5848
    %v6289 = vunpack.c.l.bf16 %v5849
    %v6290 = vunpack.c.h.bf16 %v5849
    %v6291 = vunpack.c.l.bf16 %v5850
    %v6292 = vunpack.c.h.bf16 %v5850
    %v6293 = vunpack.c.l.bf16 %v5851
    %v6294 = vunpack.c.l.bf16 %v5852
    %v6295 = vunpack.c.h.bf16 %v5852
    %v6296 = vunpack.c.l.bf16 %v5853
    %v6297 = vunpack.c.h.bf16 %v5853
    %v6298 = vunpack.c.l.bf16 %v5854
    %v6299 = vunpack.c.h.bf16 %v5854
    %v6300 = vunpack.c.l.bf16 %v5855
    %v6301 = vunpack.c.l.bf16 %v5856
    %v6302 = vunpack.c.h.bf16 %v5856
    %v6303 = vunpack.c.l.bf16 %v5857
    %v6304 = vunpack.c.h.bf16 %v5857
    %v6305 = vunpack.c.l.bf16 %v5858
    %v6306 = vunpack.c.h.bf16 %v5858
    %v6307 = vunpack.c.l.bf16 %v5859
    %v6308 = vtanh.pop %v5860
    %v6309 = vtanh.pop %v5861
    %v6310 = vtanh.pop %v5862
    %v6311 = vtanh.pop %v5863
    %v6312 = vtanh.pop %v5864
    %v6313 = vtanh.pop %v5865
    %v6314 = vtanh.pop %v5866
    %v6315 = vtanh.pop %v5867
    %v6316 = vtanh.pop %v5868
    %v6317 = vtanh.pop %v5869
    %v6318 = vtanh.pop %v5870
    %v6319 = vtanh.pop %v5871
    %v6320 = vtanh.pop %v5872
    %v6321 = vtanh.pop %v5873
    %v6322 = vtanh.pop %v5874
    %v6323 = vtanh.pop %v5875
    %v6324 = vtanh.pop %v5876
    %v6325 = vtanh.pop %v5877
    %v6326 = vtanh.pop %v5878
    %v6327 = vtanh.pop %v5879
    %v6328 = vtanh.pop %v5880
    %v6329 = vtanh.pop %v5881
    %v6330 = vtanh.pop %v5882
    %v6331 = vtanh.pop %v5883
    %v6332 = vtanh.pop %v5884
    %v6333 = vtanh.pop %v5885
    %v6334 = vtanh.pop %v5886
    %v6335 = vtanh.pop %v5887
    %v6336 = vtanh.pop %v5888
    %v6337 = vtanh.pop %v5889
    %v6338 = vtanh.pop %v5890
    %v6339 = vtanh.pop %v5891
    %v6340 = vtanh.pop %v5892
    %v6341 = vtanh.pop %v5893
    %v6342 = vtanh.pop %v5894
    %v6343 = vtanh.pop %v5895
    %v6344 = vtanh.pop %v5896
    %v6345 = vtanh.pop %v5897
    %v6346 = vtanh.pop %v5898
    %v6347 = vtanh.pop %v5899
    %v6348 = vtanh.pop %v5900
    %v6349 = vtanh.pop %v5901
    %v6350 = vtanh.pop %v5902
    %v6351 = vtanh.pop %v5903
    %v6352 = vtanh.pop %v5904
    %v6353 = vtanh.pop %v5905
    %v6354 = vtanh.pop %v5906
    %v6355 = vtanh.pop %v5907
    %v6356 = vtanh.pop %v5908
    %v6357 = vtanh.pop %v5909
    %v6358 = vtanh.pop %v5910
    %v6359 = vtanh.pop %v5911
    %v6360 = vtanh.pop %v5912
    %v6361 = vtanh.pop %v5913
    %v6362 = vtanh.pop %v5914
    %v6363 = vtanh.pop %v5915
    %v6364 = vtanh.pop %v5916
    %v6365 = vtanh.pop %v5917
    %v6366 = vtanh.pop %v5918
    %v6367 = vtanh.pop %v5919
    %v6368 = vtanh.pop %v5920
    %v6369 = vtanh.pop %v5921
    %v6370 = vtanh.pop %v5922
    %v6371 = vtanh.pop %v5923
    %v6372 = vtanh.pop %v5924
    %v6373 = vtanh.pop %v5925
    %v6374 = vtanh.pop %v5926
    %v6375 = vtanh.pop %v5927
    %v6376 = vtanh.pop %v5928
    %v6377 = vtanh.pop %v5929
    %v6378 = vtanh.pop %v5930
    %v6379 = vtanh.pop %v5931
    %v6380 = vtanh.pop %v5932
    %v6381 = vtanh.pop %v5933
    %v6382 = vtanh.pop %v5934
    %v6383 = vtanh.pop %v5935
    %v6384 = vtanh.pop %v5936
    %v6385 = vtanh.pop %v5937
    %v6386 = vtanh.pop %v5938
    %v6387 = vtanh.pop %v5939
    %v6388 = vtanh.pop %v5940
    %v6389 = vtanh.pop %v5941
    %v6390 = vtanh.pop %v5942
    %v6391 = vtanh.pop %v5943
    %v6392 = vtanh.pop %v5944
    %v6393 = vtanh.pop %v5945
    %v6394 = vtanh.pop %v5946
    %v6395 = vtanh.pop %v5947
    %v6396 = vtanh.pop %v5948
    %v6397 = vtanh.pop %v5949
    %v6398 = vtanh.pop %v5950
    %v6399 = vtanh.pop %v5951
    %v6400 = vtanh.pop %v5952
    %v6401 = vtanh.pop %v5953
    %v6402 = vtanh.pop %v5954
    %v6403 = vtanh.pop %v5955
    %v6404 = vtanh.pop %v5956
    %v6405 = vtanh.pop %v5957
    %v6406 = vtanh.pop %v5958
    %v6407 = vtanh.pop %v5959
    %v6408 = vtanh.pop %v5960
    %v6409 = vtanh.pop %v5961
    %v6410 = vtanh.pop %v5962
    %v6411 = vtanh.pop %v5963
    %v6412 = vtanh.pop %v5964
    %v6413 = vtanh.pop %v5965
    %v6414 = vtanh.pop %v5966
    %v6415 = vtanh.pop %v5967
    %v6416 = vtanh.pop %v5968
    %v6417 = vtanh.pop %v5969
    %v6418 = vtanh.pop %v5970
    %v6419 = vtanh.pop %v5971
    %v6420 = vtanh.pop %v5972
    %v6421 = vtanh.pop %v5973
    %v6422 = vtanh.pop %v5974
    %v6423 = vtanh.pop %v5975
    %v6424 = vtanh.pop %v5976
    %v6425 = vtanh.pop %v5977
    %v6426 = vtanh.pop %v5978
    %v6427 = vtanh.pop %v5979
    %v6428 = vtanh.pop %v5980
    %v6429 = vtanh.pop %v5981
    %v6430 = vtanh.pop %v5982
    %v6431 = vtanh.pop %v5983
    %v6432 = vtanh.pop %v5984
    %v6433 = vtanh.pop %v5985
    %v6434 = vtanh.pop %v5986
    %v6435 = vtanh.pop %v5987
    %v6436 = vtanh.pop %v5988
    %v6437 = vtanh.pop %v5989
    %v6438 = vtanh.pop %v5990
    %v6439 = vtanh.pop %v5991
    %v6440 = vtanh.pop %v5992
    %v6441 = vtanh.pop %v5993
    %v6442 = vtanh.pop %v5994
    %v6443 = vtanh.pop %v5995
    %v6444 = vtanh.pop %v5996
    %v6445 = vtanh.pop %v5997
    %v6446 = vtanh.pop %v5998
    %v6447 = vtanh.pop %v5999
    %v6448 = vtanh.pop %v6000
    %v6449 = vtanh.pop %v6001
    %v6450 = vtanh.pop %v6002
    %v6451 = vtanh.pop %v6003
    %v6452 = vtanh.pop %v6004
    %v6453 = vtanh.pop %v6005
    %v6454 = vtanh.pop %v6006
    %v6455 = vtanh.pop %v6007
    %v6456 = vtanh.pop %v6008
    %v6457 = vtanh.pop %v6009
    %v6458 = vtanh.pop %v6010
    %v6459 = vtanh.pop %v6011
    %v6460 = vtanh.pop %v6012
    %v6461 = vtanh.pop %v6013
    %v6462 = vtanh.pop %v6014
    %v6463 = vtanh.pop %v6015
    %v6464 = vtanh.pop %v6016
    %v6465 = vtanh.pop %v6017
    %v6466 = vtanh.pop %v6018
    %v6467 = vtanh.pop %v6019
    %v6468 = vtanh.pop %v6020
    %v6469 = vtanh.pop %v6021
    %v6470 = vtanh.pop %v6022
    %v6471 = vtanh.pop %v6023
    %v6472 = vtanh.pop %v6024
    %v6473 = vtanh.pop %v6025
    %v6474 = vtanh.pop %v6026
    %v6475 = vtanh.pop %v6027
    %v6476 = vtanh.pop %v6028
    %v6477 = vtanh.pop %v6029
    %v6478 = vtanh.pop %v6030
    %v6479 = vtanh.pop %v6031
    %v6480 = vtanh.pop %v6032
    %v6481 = vtanh.pop %v6033
    %v6482 = vtanh.pop %v6034
    %v6483 = vtanh.pop %v6035
    %v6484 = vtanh.pop %v6036
    %v6485 = vtanh.pop %v6037
    %v6486 = vtanh.pop %v6038
    %v6487 = vtanh.pop %v6039
    %v6488 = vtanh.pop %v6040
    %v6489 = vtanh.pop %v6041
    %v6490 = vtanh.pop %v6042
    %v6491 = vtanh.pop %v6043
    %v6492 = vtanh.pop %v6044
    %v6493 = vtanh.pop %v6045
    %v6494 = vtanh.pop %v6046
    %v6495 = vtanh.pop %v6047
    %v6496 = vtanh.pop %v6048
    %v6497 = vtanh.pop %v6049
    %v6498 = vtanh.pop %v6050
    %v6499 = vtanh.pop %v6051
    %v6500 = vtanh.pop %v6052
    %v6501 = vtanh.pop %v6053
    %v6502 = vtanh.pop %v6054
    %v6503 = vtanh.pop %v6055
    %v6504 = vtanh.pop %v6056
    %v6505 = vtanh.pop %v6057
    %v6506 = vtanh.pop %v6058
    %v6507 = vtanh.pop %v6059
    %v6508 = vtanh.pop %v6060
    %v6509 = vtanh.pop %v6061
    %v6510 = vtanh.pop %v6062
    %v6511 = vtanh.pop %v6063
    %v6512 = vtanh.pop %v6064
    %v6513 = vtanh.pop %v6065
    %v6514 = vtanh.pop %v6066
    %v6515 = vtanh.pop %v6067
    %v6516 = vtanh.pop %v6068
    %v6517 = vtanh.pop %v6069
    %v6518 = vtanh.pop %v6070
    %v6519 = vtanh.pop %v6071
    %v6520 = vtanh.pop %v6072
    %v6521 = vtanh.pop %v6073
    %v6522 = vtanh.pop %v6074
    %v6523 = vtanh.pop %v6075
    %v6524 = vtanh.pop %v6076
    %v6525 = vtanh.pop %v6077
    %v6526 = vtanh.pop %v6078
    %v6527 = vtanh.pop %v6079
    %v6528 = vtanh.pop %v6080
    %v6529 = vtanh.pop %v6081
    %v6530 = vtanh.pop %v6082
    %v6531 = vtanh.pop %v6083
    %v6532 = vtanh.pop %v6084
    %v6533 = vtanh.pop %v6085
    %v6534 = vtanh.pop %v6086
    %v6535 = vtanh.pop %v6087
    %v6536 = vtanh.pop %v6088
    %v6537 = vtanh.pop %v6089
    %v6538 = vtanh.pop %v6090
    %v6539 = vtanh.pop %v6091
    %v6540 = vtanh.pop %v6092
    %v6541 = vtanh.pop %v6093
    %v6542 = vtanh.pop %v6094
    %v6543 = vtanh.pop %v6095
    %v6544 = vtanh.pop %v6096
    %v6545 = vtanh.pop %v6097
    %v6546 = vtanh.pop %v6098
    %v6547 = vtanh.pop %v6099
    %v6548 = vtanh.pop %v6100
    %v6549 = vtanh.pop %v6101
    %v6550 = vtanh.pop %v6102
    %v6551 = vtanh.pop %v6103
    %v6552 = vtanh.pop %v6104
    %v6553 = vtanh.pop %v6105
    %v6554 = vtanh.pop %v6106
    %v6555 = vtanh.pop %v6107
    %v6556 = vtanh.pop %v6108
    %v6557 = vtanh.pop %v6109
    %v6558 = vtanh.pop %v6110
    %v6559 = vtanh.pop %v6111
    %v6560 = vtanh.pop %v6112
    %v6561 = vtanh.pop %v6113
    %v6562 = vtanh.pop %v6114
    %v6563 = vtanh.pop %v6115
    %v6564 = vtanh.pop %v6116
    %v6565 = vtanh.pop %v6117
    %v6566 = vtanh.pop %v6118
    %v6567 = vtanh.pop %v6119
    %v6568 = vtanh.pop %v6120
    %v6569 = vtanh.pop %v6121
    %v6570 = vtanh.pop %v6122
    %v6571 = vtanh.pop %v6123
    %v6572 = vtanh.pop %v6124
    %v6573 = vtanh.pop %v6125
    %v6574 = vtanh.pop %v6126
    %v6575 = vtanh.pop %v6127
    %v6576 = vtanh.pop %v6128
    %v6577 = vtanh.pop %v6129
    %v6578 = vtanh.pop %v6130
    %v6579 = vtanh.pop %v6131
    %v6580 = vtanh.pop %v6132
    %v6581 = vtanh.pop %v6133
    %v6582 = vtanh.pop %v6134
    %v6583 = vtanh.pop %v6135
    %v6584 = vtanh.pop %v6136
    %v6585 = vtanh.pop %v6137
    %v6586 = vtanh.pop %v6138
    %v6587 = vtanh.pop %v6139
    %v6588 = vtanh.pop %v6140
    %v6589 = vtanh.pop %v6141
    %v6590 = vtanh.pop %v6142
    %v6591 = vtanh.pop %v6143
    %v6592 = vtanh.pop %v6144
    %v6593 = vtanh.pop %v6145
    %v6594 = vtanh.pop %v6146
    %v6595 = vtanh.pop %v6147
    %v6596 = vtanh.pop %v6148
    %v6597 = vtanh.pop %v6149
    %v6598 = vtanh.pop %v6150
    %v6599 = vtanh.pop %v6151
    %v6600 = vtanh.pop %v6152
    %v6601 = vtanh.pop %v6153
    %v6602 = vtanh.pop %v6154
    %v6603 = vtanh.pop %v6155
    %v6604 = vtanh.pop %v6156
    %v6605 = vtanh.pop %v6157
    %v6606 = vtanh.pop %v6158
    %v6607 = vtanh.pop %v6159
    %v6608 = vtanh.pop %v6160
    %v6609 = vtanh.pop %v6161
    %v6610 = vtanh.pop %v6162
    %v6611 = vtanh.pop %v6163
    %v6612 = vtanh.pop %v6164
    %v6613 = vtanh.pop %v6165
    %v6614 = vtanh.pop %v6166
    %v6615 = vtanh.pop %v6167
    %v6616 = vtanh.pop %v6168
    %v6617 = vtanh.pop %v6169
    %v6618 = vtanh.pop %v6170
    %v6619 = vtanh.pop %v6171
    %v6620 = vtanh.pop %v6172
    %v6621 = vtanh.pop %v6173
    %v6622 = vtanh.pop %v6174
    %v6623 = vtanh.pop %v6175
    %v6624 = vtanh.pop %v6176
    %v6625 = vtanh.pop %v6177
    %v6626 = vtanh.pop %v6178
    %v6627 = vtanh.pop %v6179
    %v6628 = vtanh.pop %v6180
    %v6629 = vtanh.pop %v6181
    %v6630 = vtanh.pop %v6182
    %v6631 = vtanh.pop %v6183
    %v6632 = vtanh.pop %v6184
    %v6633 = vtanh.pop %v6185
    %v6634 = vtanh.pop %v6186
    %v6635 = vtanh.pop %v6187
    %v6636 = vtanh.pop %v6188
    %v6637 = vtanh.pop %v6189
    %v6638 = vtanh.pop %v6190
    %v6639 = vtanh.pop %v6191
    %v6640 = vtanh.pop %v6192
    %v6641 = vtanh.pop %v6193
    %v6642 = vtanh.pop %v6194
    %v6643 = vtanh.pop %v6195
    %v6644 = vtanh.pop %v6196
    %v6645 = vtanh.pop %v6197
    %v6646 = vtanh.pop %v6198
    %v6647 = vtanh.pop %v6199
    %v6648 = vtanh.pop %v6200
    %v6649 = vtanh.pop %v6201
    %v6650 = vtanh.pop %v6202
    %v6651 = vtanh.pop %v6203
    %v6652 = vtanh.pop %v6204
    %v6653 = vtanh.pop %v6205
    %v6654 = vtanh.pop %v6206
    %v6655 = vtanh.pop %v6207
    %v6656 = vtanh.pop %v6208
    %v6657 = vtanh.pop %v6209
    %v6658 = vtanh.pop %v6210
    %v6659 = vtanh.pop %v6211
    %v6660 = vtanh.pop %v6212
    %v6661 = vtanh.pop %v6213
    %v6662 = vtanh.pop %v6214
    %v6663 = vtanh.pop %v6215
    %v6664 = vtanh.pop %v6216
    %v6665 = vtanh.pop %v6217
    %v6666 = vtanh.pop %v6218
    %v6667 = vtanh.pop %v6219
    %v6668 = vtanh.pop %v6220
    %v6669 = vtanh.pop %v6221
    %v6670 = vtanh.pop %v6222
    %v6671 = vtanh.pop %v6223
    %v6672 = vtanh.pop %v6224
    %v6673 = vtanh.pop %v6225
    %v6674 = vtanh.pop %v6226
    %v6675 = vtanh.pop %v6227
    %v6676 = vtanh.pop %v6228
    %v6677 = vtanh.pop %v6229
    %v6678 = vtanh.pop %v6230
    %v6679 = vtanh.pop %v6231
    %v6680 = vtanh.pop %v6232
    %v6681 = vtanh.pop %v6233
    %v6682 = vtanh.pop %v6234
    %v6683 = vtanh.pop %v6235
    %v6684 = vtanh.pop %v6236
    %v6685 = vtanh.pop %v6237
    %v6686 = vtanh.pop %v6238
    %v6687 = vtanh.pop %v6239
    %v6688 = vtanh.pop %v6240
    %v6689 = vtanh.pop %v6241
    %v6690 = vtanh.pop %v6242
    %v6691 = vtanh.pop %v6243
    %v6692 = vtanh.pop %v6244
    %v6693 = vtanh.pop %v6245
    %v6694 = vtanh.pop %v6246
    %v6695 = vtanh.pop %v6247
    %v6696 = vtanh.pop %v6248
    %v6697 = vtanh.pop %v6249
    %v6698 = vtanh.pop %v6250
    %v6699 = vtanh.pop %v6251
    %v6700 = vtanh.pop %v6252
    %v6701 = vtanh.pop %v6253
    %v6702 = vtanh.pop %v6254
    %v6703 = vtanh.pop %v6255
    %v6704 = vtanh.pop %v6256
    %v6705 = vtanh.pop %v6257
    %v6706 = vtanh.pop %v6258
    %v6707 = vtanh.pop %v6259
    %v6708 = vtanh.pop %v6260
    %v6709 = vtanh.pop %v6261
    %v6710 = vtanh.pop %v6262
    %v6711 = vtanh.pop %v6263
    %v6712 = vtanh.pop %v6264
    %v6713 = vtanh.pop %v6265
    %v6714 = vtanh.pop %v6266
    %v6715 = vtanh.pop %v6267
    %v6716 = vtanh.pop %v6268
    %v6717 = vtanh.pop %v6269
    %v6718 = vtanh.pop %v6270
    %v6719 = vtanh.pop %v6271
    %v6720 = vtanh.pop %v6272
    %v6721 = vtanh.pop %v6273
    %v6722 = vtanh.pop %v6274
    %v6723 = vtanh.pop %v6275
    %v6724 = vtanh.pop %v6276
    %v6725 = vtanh.pop %v6277
    %v6726 = vtanh.pop %v6278
    %v6727 = vtanh.pop %v6279
    %v6728 = vtanh.pop %v6280
    %v6729 = vtanh.pop %v6281
    %v6730 = vtanh.pop %v6282
    %v6731 = vtanh.pop %v6283
    %v6732 = vtanh.pop %v6284
    %v6733 = vtanh.pop %v6285
    %v6734 = vtanh.pop %v6286
    %v6735 = vtanh.pop %v6287
    %v6736 = vtanh.pop %v6288
    %v6737 = vtanh.pop %v6289
    %v6738 = vtanh.pop %v6290
    %v6739 = vtanh.pop %v6291
    %v6740 = vtanh.pop %v6292
    %v6741 = vtanh.pop %v6293
    %v6742 = vtanh.pop %v6294
    %v6743 = vtanh.pop %v6295
    %v6744 = vtanh.pop %v6296
    %v6745 = vtanh.pop %v6297
    %v6746 = vtanh.pop %v6298
    %v6747 = vtanh.pop %v6299
    %v6748 = vtanh.pop %v6300
    %v6749 = vtanh.pop %v6301
    %v6750 = vtanh.pop %v6302
    %v6751 = vtanh.pop %v6303
    %v6752 = vtanh.pop %v6304
    %v6753 = vtanh.pop %v6305
    %v6754 = vtanh.pop %v6306
    %v6755 = vtanh.pop %v6307
    %v6756 = vpack.c.bf16 %v6309, %v6308
    %v6757 = vpack.c.bf16 %v6311, %v6310
    %v6758 = vpack.c.bf16 %v6313, %v6312
    %v6759 = vpack.c.bf16 %v6314, %v6314
    %v6760 = vpack.c.bf16 %v6316, %v6315
    %v6761 = vpack.c.bf16 %v6318, %v6317
    %v6762 = vpack.c.bf16 %v6320, %v6319
    %v6763 = vpack.c.bf16 %v6321, %v6321
    %v6764 = vpack.c.bf16 %v6323, %v6322
    %v6765 = vpack.c.bf16 %v6325, %v6324
    %v6766 = vpack.c.bf16 %v6327, %v6326
    %v6767 = vpack.c.bf16 %v6328, %v6328
    %v6768 = vpack.c.bf16 %v6330, %v6329
    %v6769 = vpack.c.bf16 %v6332, %v6331
    %v6770 = vpack.c.bf16 %v6334, %v6333
    %v6771 = vpack.c.bf16 %v6335, %v6335
    %v6772 = vpack.c.bf16 %v6337, %v6336
    %v6773 = vpack.c.bf16 %v6339, %v6338
    %v6774 = vpack.c.bf16 %v6341, %v6340
    %v6775 = vpack.c.bf16 %v6342, %v6342
    %v6776 = vpack.c.bf16 %v6344, %v6343
    %v6777 = vpack.c.bf16 %v6346, %v6345
    %v6778 = vpack.c.bf16 %v6348, %v6347
    %v6779 = vpack.c.bf16 %v6349, %v6349
    %v6780 = vpack.c.bf16 %v6351, %v6350
    %v6781 = vpack.c.bf16 %v6353, %v6352
    %v6782 = vpack.c.bf16 %v6355, %v6354
    %v6783 = vpack.c.bf16 %v6356, %v6356
    %v6784 = vpack.c.bf16 %v6358, %v6357
    %v6785 = vpack.c.bf16 %v6360, %v6359
    %v6786 = vpack.c.bf16 %v6362, %v6361
    %v6787 = vpack.c.bf16 %v6363, %v6363
    %v6788 = vpack.c.bf16 %v6365, %v6364
    %v6789 = vpack.c.bf16 %v6367, %v6366
    %v6790 = vpack.c.bf16 %v6369, %v6368
    %v6791 = vpack.c.bf16 %v6370, %v6370
    %v6792 = vpack.c.bf16 %v6372, %v6371
    %v6793 = vpack.c.bf16 %v6374, %v6373
    %v6794 = vpack.c.bf16 %v6376, %v6375
    %v6795 = vpack.c.bf16 %v6377, %v6377
    %v6796 = vpack.c.bf16 %v6379, %v6378
    %v6797 = vpack.c.bf16 %v6381, %v6380
    %v6798 = vpack.c.bf16 %v6383, %v6382
    %v6799 = vpack.c.bf16 %v6384, %v6384
    %v6800 = vpack.c.bf16 %v6386, %v6385
    %v6801 = vpack.c.bf16 %v6388, %v6387
    %v6802 = vpack.c.bf16 %v6390, %v6389
    %v6803 = vpack.c.bf16 %v6391, %v6391
    %v6804 = vpack.c.bf16 %v6393, %v6392
    %v6805 = vpack.c.bf16 %v6395, %v6394
    %v6806 = vpack.c.bf16 %v6397, %v6396
    %v6807 = vpack.c.bf16 %v6398, %v6398
    %v6808 = vpack.c.bf16 %v6400, %v6399
    %v6809 = vpack.c.bf16 %v6402, %v6401
    %v6810 = vpack.c.bf16 %v6404, %v6403
    %v6811 = vpack.c.bf16 %v6405, %v6405
    %v6812 = vpack.c.bf16 %v6407, %v6406
    %v6813 = vpack.c.bf16 %v6409, %v6408
    %v6814 = vpack.c.bf16 %v6411, %v6410
    %v6815 = vpack.c.bf16 %v6412, %v6412
    %v6816 = vpack.c.bf16 %v6414, %v6413
    %v6817 = vpack.c.bf16 %v6416, %v6415
    %v6818 = vpack.c.bf16 %v6418, %v6417
    %v6819 = vpack.c.bf16 %v6419, %v6419
    %v6820 = vpack.c.bf16 %v6421, %v6420
    %v6821 = vpack.c.bf16 %v6423, %v6422
    %v6822 = vpack.c.bf16 %v6425, %v6424
    %v6823 = vpack.c.bf16 %v6426, %v6426
    %v6824 = vpack.c.bf16 %v6428, %v6427
    %v6825 = vpack.c.bf16 %v6430, %v6429
    %v6826 = vpack.c.bf16 %v6432, %v6431
    %v6827 = vpack.c.bf16 %v6433, %v6433
    %v6828 = vpack.c.bf16 %v6435, %v6434
    %v6829 = vpack.c.bf16 %v6437, %v6436
    %v6830 = vpack.c.bf16 %v6439, %v6438
    %v6831 = vpack.c.bf16 %v6440, %v6440
    %v6832 = vpack.c.bf16 %v6442, %v6441
    %v6833 = vpack.c.bf16 %v6444, %v6443
    %v6834 = vpack.c.bf16 %v6446, %v6445
    %v6835 = vpack.c.bf16 %v6447, %v6447
    %v6836 = vpack.c.bf16 %v6449, %v6448
    %v6837 = vpack.c.bf16 %v6451, %v6450
    %v6838 = vpack.c.bf16 %v6453, %v6452
    %v6839 = vpack.c.bf16 %v6454, %v6454
    %v6840 = vpack.c.bf16 %v6456, %v6455
    %v6841 = vpack.c.bf16 %v6458, %v6457
    %v6842 = vpack.c.bf16 %v6460, %v6459
    %v6843 = vpack.c.bf16 %v6461, %v6461
    %v6844 = vpack.c.bf16 %v6463, %v6462
    %v6845 = vpack.c.bf16 %v6465, %v6464
    %v6846 = vpack.c.bf16 %v6467, %v6466
    %v6847 = vpack.c.bf16 %v6468, %v6468
    %v6848 = vpack.c.bf16 %v6470, %v6469
    %v6849 = vpack.c.bf16 %v6472, %v6471
    %v6850 = vpack.c.bf16 %v6474, %v6473
    %v6851 = vpack.c.bf16 %v6475, %v6475
    %v6852 = vpack.c.bf16 %v6477, %v6476
    %v6853 = vpack.c.bf16 %v6479, %v6478
    %v6854 = vpack.c.bf16 %v6481, %v6480
    %v6855 = vpack.c.bf16 %v6482, %v6482
    %v6856 = vpack.c.bf16 %v6484, %v6483
    %v6857 = vpack.c.bf16 %v6486, %v6485
    %v6858 = vpack.c.bf16 %v6488, %v6487
    %v6859 = vpack.c.bf16 %v6489, %v6489
    %v6860 = vpack.c.bf16 %v6491, %v6490
    %v6861 = vpack.c.bf16 %v6493, %v6492
    %v6862 = vpack.c.bf16 %v6495, %v6494
    %v6863 = vpack.c.bf16 %v6496, %v6496
    %v6864 = vpack.c.bf16 %v6498, %v6497
    %v6865 = vpack.c.bf16 %v6500, %v6499
    %v6866 = vpack.c.bf16 %v6502, %v6501
    %v6867 = vpack.c.bf16 %v6503, %v6503
    %v6868 = vpack.c.bf16 %v6505, %v6504
    %v6869 = vpack.c.bf16 %v6507, %v6506
    %v6870 = vpack.c.bf16 %v6509, %v6508
    %v6871 = vpack.c.bf16 %v6510, %v6510
    %v6872 = vpack.c.bf16 %v6512, %v6511
    %v6873 = vpack.c.bf16 %v6514, %v6513
    %v6874 = vpack.c.bf16 %v6516, %v6515
    %v6875 = vpack.c.bf16 %v6517, %v6517
    %v6876 = vpack.c.bf16 %v6519, %v6518
    %v6877 = vpack.c.bf16 %v6521, %v6520
    %v6878 = vpack.c.bf16 %v6523, %v6522
    %v6879 = vpack.c.bf16 %v6524, %v6524
    %v6880 = vpack.c.bf16 %v6526, %v6525
    %v6881 = vpack.c.bf16 %v6528, %v6527
    %v6882 = vpack.c.bf16 %v6530, %v6529
    %v6883 = vpack.c.bf16 %v6531, %v6531
    %v6884 = vpack.c.bf16 %v6533, %v6532
    %v6885 = vpack.c.bf16 %v6535, %v6534
    %v6886 = vpack.c.bf16 %v6537, %v6536
    %v6887 = vpack.c.bf16 %v6538, %v6538
    %v6888 = vpack.c.bf16 %v6540, %v6539
    %v6889 = vpack.c.bf16 %v6542, %v6541
    %v6890 = vpack.c.bf16 %v6544, %v6543
    %v6891 = vpack.c.bf16 %v6545, %v6545
    %v6892 = vpack.c.bf16 %v6547, %v6546
    %v6893 = vpack.c.bf16 %v6549, %v6548
    %v6894 = vpack.c.bf16 %v6551, %v6550
    %v6895 = vpack.c.bf16 %v6552, %v6552
    %v6896 = vpack.c.bf16 %v6554, %v6553
    %v6897 = vpack.c.bf16 %v6556, %v6555
    %v6898 = vpack.c.bf16 %v6558, %v6557
    %v6899 = vpack.c.bf16 %v6559, %v6559
    %v6900 = vpack.c.bf16 %v6561, %v6560
    %v6901 = vpack.c.bf16 %v6563, %v6562
    %v6902 = vpack.c.bf16 %v6565, %v6564
    %v6903 = vpack.c.bf16 %v6566, %v6566
    %v6904 = vpack.c.bf16 %v6568, %v6567
    %v6905 = vpack.c.bf16 %v6570, %v6569
    %v6906 = vpack.c.bf16 %v6572, %v6571
    %v6907 = vpack.c.bf16 %v6573, %v6573
    %v6908 = vpack.c.bf16 %v6575, %v6574
    %v6909 = vpack.c.bf16 %v6577, %v6576
    %v6910 = vpack.c.bf16 %v6579, %v6578
    %v6911 = vpack.c.bf16 %v6580, %v6580
    %v6912 = vpack.c.bf16 %v6582, %v6581
    %v6913 = vpack.c.bf16 %v6584, %v6583
    %v6914 = vpack.c.bf16 %v6586, %v6585
    %v6915 = vpack.c.bf16 %v6587, %v6587
    %v6916 = vpack.c.bf16 %v6589, %v6588
    %v6917 = vpack.c.bf16 %v6591, %v6590
    %v6918 = vpack.c.bf16 %v6593, %v6592
    %v6919 = vpack.c.bf16 %v6594, %v6594
    %v6920 = vpack.c.bf16 %v6596, %v6595
    %v6921 = vpack.c.bf16 %v6598, %v6597
    %v6922 = vpack.c.bf16 %v6600, %v6599
    %v6923 = vpack.c.bf16 %v6601, %v6601
    %v6924 = vpack.c.bf16 %v6603, %v6602
    %v6925 = vpack.c.bf16 %v6605, %v6604
    %v6926 = vpack.c.bf16 %v6607, %v6606
    %v6927 = vpack.c.bf16 %v6608, %v6608
    %v6928 = vpack.c.bf16 %v6610, %v6609
    %v6929 = vpack.c.bf16 %v6612, %v6611
    %v6930 = vpack.c.bf16 %v6614, %v6613
    %v6931 = vpack.c.bf16 %v6615, %v6615
    %v6932 = vpack.c.bf16 %v6617, %v6616
    %v6933 = vpack.c.bf16 %v6619, %v6618
    %v6934 = vpack.c.bf16 %v6621, %v6620
    %v6935 = vpack.c.bf16 %v6622, %v6622
    %v6936 = vpack.c.bf16 %v6624, %v6623
    %v6937 = vpack.c.bf16 %v6626, %v6625
    %v6938 = vpack.c.bf16 %v6628, %v6627
    %v6939 = vpack.c.bf16 %v6629, %v6629
    %v6940 = vpack.c.bf16 %v6631, %v6630
    %v6941 = vpack.c.bf16 %v6633, %v6632
    %v6942 = vpack.c.bf16 %v6635, %v6634
    %v6943 = vpack.c.bf16 %v6636, %v6636
    %v6944 = vpack.c.bf16 %v6638, %v6637
    %v6945 = vpack.c.bf16 %v6640, %v6639
    %v6946 = vpack.c.bf16 %v6642, %v6641
    %v6947 = vpack.c.bf16 %v6643, %v6643
    %v6948 = vpack.c.bf16 %v6645, %v6644
    %v6949 = vpack.c.bf16 %v6647, %v6646
    %v6950 = vpack.c.bf16 %v6649, %v6648
    %v6951 = vpack.c.bf16 %v6650, %v6650
    %v6952 = vpack.c.bf16 %v6652, %v6651
    %v6953 = vpack.c.bf16 %v6654, %v6653
    %v6954 = vpack.c.bf16 %v6656, %v6655
    %v6955 = vpack.c.bf16 %v6657, %v6657
    %v6956 = vpack.c.bf16 %v6659, %v6658
    %v6957 = vpack.c.bf16 %v6661, %v6660
    %v6958 = vpack.c.bf16 %v6663, %v6662
    %v6959 = vpack.c.bf16 %v6664, %v6664
    %v6960 = vpack.c.bf16 %v6666, %v6665
    %v6961 = vpack.c.bf16 %v6668, %v6667
    %v6962 = vpack.c.bf16 %v6670, %v6669
    %v6963 = vpack.c.bf16 %v6671, %v6671
    %v6964 = vpack.c.bf16 %v6673, %v6672
    %v6965 = vpack.c.bf16 %v6675, %v6674
    %v6966 = vpack.c.bf16 %v6677, %v6676
    %v6967 = vpack.c.bf16 %v6678, %v6678
    %v6968 = vpack.c.bf16 %v6680, %v6679
    %v6969 = vpack.c.bf16 %v6682, %v6681
    %v6970 = vpack.c.bf16 %v6684, %v6683
    %v6971 = vpack.c.bf16 %v6685, %v6685
    %v6972 = vpack.c.bf16 %v6687, %v6686
    %v6973 = vpack.c.bf16 %v6689, %v6688
    %v6974 = vpack.c.bf16 %v6691, %v6690
    %v6975 = vpack.c.bf16 %v6692, %v6692
    %v6976 = vpack.c.bf16 %v6694, %v6693
    %v6977 = vpack.c.bf16 %v6696, %v6695
    %v6978 = vpack.c.bf16 %v6698, %v6697
    %v6979 = vpack.c.bf16 %v6699, %v6699
    %v6980 = vpack.c.bf16 %v6701, %v6700
    %v6981 = vpack.c.bf16 %v6703, %v6702
    %v6982 = vpack.c.bf16 %v6705, %v6704
    %v6983 = vpack.c.bf16 %v6706, %v6706
    %v6984 = vpack.c.bf16 %v6708, %v6707
    %v6985 = vpack.c.bf16 %v6710, %v6709
    %v6986 = vpack.c.bf16 %v6712, %v6711
    %v6987 = vpack.c.bf16 %v6713, %v6713
    %v6988 = vpack.c.bf16 %v6715, %v6714
    %v6989 = vpack.c.bf16 %v6717, %v6716
    %v6990 = vpack.c.bf16 %v6719, %v6718
    %v6991 = vpack.c.bf16 %v6720, %v6720
    %v6992 = vpack.c.bf16 %v6722, %v6721
    %v6993 = vpack.c.bf16 %v6724, %v6723
    %v6994 = vpack.c.bf16 %v6726, %v6725
    %v6995 = vpack.c.bf16 %v6727, %v6727
    %v6996 = vpack.c.bf16 %v6729, %v6728
    %v6997 = vpack.c.bf16 %v6731, %v6730
    %v6998 = vpack.c.bf16 %v6733, %v6732
    %v6999 = vpack.c.bf16 %v6734, %v6734
    %v7000 = vpack.c.bf16 %v6736, %v6735
    %v7001 = vpack.c.bf16 %v6738, %v6737
    %v7002 = vpack.c.bf16 %v6740, %v6739
    %v7003 = vpack.c.bf16 %v6741, %v6741
    %v7004 = vpack.c.bf16 %v6743, %v6742
    %v7005 = vpack.c.bf16 %v6745, %v6744
    %v7006 = vpack.c.bf16 %v6747, %v6746
    %v7007 = vpack.c.bf16 %v6748, %v6748
    %v7008 = vpack.c.bf16 %v6750, %v6749
    %v7009 = vpack.c.bf16 %v6752, %v6751
    %v7010 = vpack.c.bf16 %v6754, %v6753
    %v7011 = vpack.c.bf16 %v6755, %v6755
    %7012 = vst [vmem:[%s7] sm:$0xff] %v6756
    %7013 = vst [vmem:[%s7 + $0x8] sm:$0xff] %v6757
    %7014 = vst [vmem:[%s7 + $0x10] sm:$0xff] %v6758
    %vm7015 = vcmask 125952
    %7016 = vst.msk [vmem:[%s7 + $0x18] sm:$0xf] %vm7015, %v6759
    %7017 = vst [vmem:[%s7 + $0x1c] sm:$0xff] %v6760
    %7018 = vst [vmem:[%s7 + $0x24] sm:$0xff] %v6761
    %7019 = vst [vmem:[%s7 + $0x2c] sm:$0xff] %v6762
    %7020 = vst.msk [vmem:[%s7 + $0x34] sm:$0xf] %vm7015, %v6763
    %7021 = vst [vmem:[%s7 + $0x38] sm:$0xff] %v6764
    %7022 = vst [vmem:[%s7 + $0x40] sm:$0xff] %v6765
    %7023 = vst [vmem:[%s7 + $0x48] sm:$0xff] %v6766
    %7024 = vst.msk [vmem:[%s7 + $0x50] sm:$0xf] %vm7015, %v6767
    %7025 = vst [vmem:[%s7 + $0x54] sm:$0xff] %v6768
    %7026 = vst [vmem:[%s7 + $0x5c] sm:$0xff] %v6769
    %7027 = vst [vmem:[%s7 + $0x64] sm:$0xff] %v6770
    %7028 = vst.msk [vmem:[%s7 + $0x6c] sm:$0xf] %vm7015, %v6771
    %7029 = vst [vmem:[%s7 + $0x70] sm:$0xff] %v6772
    %7030 = vst [vmem:[%s7 + $0x78] sm:$0xff] %v6773
    %7031 = vst [vmem:[%s7 + $0x80] sm:$0xff] %v6774
    %7032 = vst.msk [vmem:[%s7 + $0x88] sm:$0xf] %vm7015, %v6775
    %7033 = vst [vmem:[%s7 + $0x8c] sm:$0xff] %v6776
    %7034 = vst [vmem:[%s7 + $0x94] sm:$0xff] %v6777
    %7035 = vst [vmem:[%s7 + $0x9c] sm:$0xff] %v6778
    %7036 = vst.msk [vmem:[%s7 + $0xa4] sm:$0xf] %vm7015, %v6779
    %7037 = vst [vmem:[%s7 + $0xa8] sm:$0xff] %v6780
    %7038 = vst [vmem:[%s7 + $0xb0] sm:$0xff] %v6781
    %7039 = vst [vmem:[%s7 + $0xb8] sm:$0xff] %v6782
    %7040 = vst.msk [vmem:[%s7 + $0xc0] sm:$0xf] %vm7015, %v6783
    %7041 = vst [vmem:[%s7 + $0xc4] sm:$0xff] %v6784
    %7042 = vst [vmem:[%s7 + $0xcc] sm:$0xff] %v6785
    %7043 = vst [vmem:[%s7 + $0xd4] sm:$0xff] %v6786
    %7044 = vst.msk [vmem:[%s7 + $0xdc] sm:$0xf] %vm7015, %v6787
    %7045 = vst [vmem:[%s7 + $0xe0] sm:$0xff] %v6788
    %7046 = vst [vmem:[%s7 + $0xe8] sm:$0xff] %v6789
    %7047 = vst [vmem:[%s7 + $0xf0] sm:$0xff] %v6790
    %7048 = vst.msk [vmem:[%s7 + $0xf8] sm:$0xf] %vm7015, %v6791
    %7049 = vst [vmem:[%s7 + $0xfc] sm:$0xff] %v6792
    %7050 = vst [vmem:[%s7 + $0x104] sm:$0xff] %v6793
    %7051 = vst [vmem:[%s7 + $0x10c] sm:$0xff] %v6794
    %7052 = vst.msk [vmem:[%s7 + $0x114] sm:$0xf] %vm7015, %v6795
    %7053 = vst [vmem:[%s7 + $0x118] sm:$0xff] %v6796
    %7054 = vst [vmem:[%s7 + $0x120] sm:$0xff] %v6797
    %7055 = vst [vmem:[%s7 + $0x128] sm:$0xff] %v6798
    %7056 = vst.msk [vmem:[%s7 + $0x130] sm:$0xf] %vm7015, %v6799
    %7057 = vst [vmem:[%s7 + $0x134] sm:$0xff] %v6800
    %7058 = vst [vmem:[%s7 + $0x13c] sm:$0xff] %v6801
    %7059 = vst [vmem:[%s7 + $0x144] sm:$0xff] %v6802
    %7060 = vst.msk [vmem:[%s7 + $0x14c] sm:$0xf] %vm7015, %v6803
    %7061 = vst [vmem:[%s7 + $0x150] sm:$0xff] %v6804
    %7062 = vst [vmem:[%s7 + $0x158] sm:$0xff] %v6805
    %7063 = vst [vmem:[%s7 + $0x160] sm:$0xff] %v6806
    %7064 = vst.msk [vmem:[%s7 + $0x168] sm:$0xf] %vm7015, %v6807
    %7065 = vst [vmem:[%s7 + $0x16c] sm:$0xff] %v6808
    %7066 = vst [vmem:[%s7 + $0x174] sm:$0xff] %v6809
    %7067 = vst [vmem:[%s7 + $0x17c] sm:$0xff] %v6810
    %7068 = vst.msk [vmem:[%s7 + $0x184] sm:$0xf] %vm7015, %v6811
    %7069 = vst [vmem:[%s7 + $0x188] sm:$0xff] %v6812
    %7070 = vst [vmem:[%s7 + $0x190] sm:$0xff] %v6813
    %7071 = vst [vmem:[%s7 + $0x198] sm:$0xff] %v6814
    %7072 = vst.msk [vmem:[%s7 + $0x1a0] sm:$0xf] %vm7015, %v6815
    %7073 = vst [vmem:[%s7 + $0x1a4] sm:$0xff] %v6816
    %7074 = vst [vmem:[%s7 + $0x1ac] sm:$0xff] %v6817
    %7075 = vst [vmem:[%s7 + $0x1b4] sm:$0xff] %v6818
    %7076 = vst.msk [vmem:[%s7 + $0x1bc] sm:$0xf] %vm7015, %v6819
    %7077 = vst [vmem:[%s7 + $0x1c0] sm:$0xff] %v6820
    %7078 = vst [vmem:[%s7 + $0x1c8] sm:$0xff] %v6821
    %7079 = vst [vmem:[%s7 + $0x1d0] sm:$0xff] %v6822
    %7080 = vst.msk [vmem:[%s7 + $0x1d8] sm:$0xf] %vm7015, %v6823
    %7081 = vst [vmem:[%s7 + $0x1dc] sm:$0xff] %v6824
    %7082 = vst [vmem:[%s7 + $0x1e4] sm:$0xff] %v6825
    %7083 = vst [vmem:[%s7 + $0x1ec] sm:$0xff] %v6826
    %7084 = vst.msk [vmem:[%s7 + $0x1f4] sm:$0xf] %vm7015, %v6827
    %7085 = vst [vmem:[%s7 + $0x1f8] sm:$0xff] %v6828
    %7086 = vst [vmem:[%s7 + $0x200] sm:$0xff] %v6829
    %7087 = vst [vmem:[%s7 + $0x208] sm:$0xff] %v6830
    %7088 = vst.msk [vmem:[%s7 + $0x210] sm:$0xf] %vm7015, %v6831
    %7089 = vst [vmem:[%s7 + $0x214] sm:$0xff] %v6832
    %7090 = vst [vmem:[%s7 + $0x21c] sm:$0xff] %v6833
    %7091 = vst [vmem:[%s7 + $0x224] sm:$0xff] %v6834
    %7092 = vst.msk [vmem:[%s7 + $0x22c] sm:$0xf] %vm7015, %v6835
    %7093 = vst [vmem:[%s7 + $0x230] sm:$0xff] %v6836
    %7094 = vst [vmem:[%s7 + $0x238] sm:$0xff] %v6837
    %7095 = vst [vmem:[%s7 + $0x240] sm:$0xff] %v6838
    %7096 = vst.msk [vmem:[%s7 + $0x248] sm:$0xf] %vm7015, %v6839
    %7097 = vst [vmem:[%s7 + $0x24c] sm:$0xff] %v6840
    %7098 = vst [vmem:[%s7 + $0x254] sm:$0xff] %v6841
    %7099 = vst [vmem:[%s7 + $0x25c] sm:$0xff] %v6842
    %7100 = vst.msk [vmem:[%s7 + $0x264] sm:$0xf] %vm7015, %v6843
    %7101 = vst [vmem:[%s7 + $0x268] sm:$0xff] %v6844
    %7102 = vst [vmem:[%s7 + $0x270] sm:$0xff] %v6845
    %7103 = vst [vmem:[%s7 + $0x278] sm:$0xff] %v6846
    %7104 = vst.msk [vmem:[%s7 + $0x280] sm:$0xf] %vm7015, %v6847
    %7105 = vst [vmem:[%s7 + $0x284] sm:$0xff] %v6848
    %7106 = vst [vmem:[%s7 + $0x28c] sm:$0xff] %v6849
    %7107 = vst [vmem:[%s7 + $0x294] sm:$0xff] %v6850
    %7108 = vst.msk [vmem:[%s7 + $0x29c] sm:$0xf] %vm7015, %v6851
    %7109 = vst [vmem:[%s7 + $0x2a0] sm:$0xff] %v6852
    %7110 = vst [vmem:[%s7 + $0x2a8] sm:$0xff] %v6853
    %7111 = vst [vmem:[%s7 + $0x2b0] sm:$0xff] %v6854
    %7112 = vst.msk [vmem:[%s7 + $0x2b8] sm:$0xf] %vm7015, %v6855
    %7113 = vst [vmem:[%s7 + $0x2bc] sm:$0xff] %v6856
    %7114 = vst [vmem:[%s7 + $0x2c4] sm:$0xff] %v6857
    %7115 = vst [vmem:[%s7 + $0x2cc] sm:$0xff] %v6858
    %7116 = vst.msk [vmem:[%s7 + $0x2d4] sm:$0xf] %vm7015, %v6859
    %7117 = vst [vmem:[%s7 + $0x2d8] sm:$0xff] %v6860
    %7118 = vst [vmem:[%s7 + $0x2e0] sm:$0xff] %v6861
    %7119 = vst [vmem:[%s7 + $0x2e8] sm:$0xff] %v6862
    %7120 = vst.msk [vmem:[%s7 + $0x2f0] sm:$0xf] %vm7015, %v6863
    %7121 = vst [vmem:[%s7 + $0x2f4] sm:$0xff] %v6864
    %7122 = vst [vmem:[%s7 + $0x2fc] sm:$0xff] %v6865
    %7123 = vst [vmem:[%s7 + $0x304] sm:$0xff] %v6866
    %7124 = vst.msk [vmem:[%s7 + $0x30c] sm:$0xf] %vm7015, %v6867
    %7125 = vst [vmem:[%s7 + $0x310] sm:$0xff] %v6868
    %7126 = vst [vmem:[%s7 + $0x318] sm:$0xff] %v6869
    %7127 = vst [vmem:[%s7 + $0x320] sm:$0xff] %v6870
    %7128 = vst.msk [vmem:[%s7 + $0x328] sm:$0xf] %vm7015, %v6871
    %7129 = vst [vmem:[%s7 + $0x32c] sm:$0xff] %v6872
    %7130 = vst [vmem:[%s7 + $0x334] sm:$0xff] %v6873
    %7131 = vst [vmem:[%s7 + $0x33c] sm:$0xff] %v6874
    %7132 = vst.msk [vmem:[%s7 + $0x344] sm:$0xf] %vm7015, %v6875
    %7133 = vst [vmem:[%s7 + $0x348] sm:$0xff] %v6876
    %7134 = vst [vmem:[%s7 + $0x350] sm:$0xff] %v6877
    %7135 = vst [vmem:[%s7 + $0x358] sm:$0xff] %v6878
    %7136 = vst.msk [vmem:[%s7 + $0x360] sm:$0xf] %vm7015, %v6879
    %7137 = vst [vmem:[%s7 + $0x364] sm:$0xff] %v6880
    %7138 = vst [vmem:[%s7 + $0x36c] sm:$0xff] %v6881
    %7139 = vst [vmem:[%s7 + $0x374] sm:$0xff] %v6882
    %7140 = vst.msk [vmem:[%s7 + $0x37c] sm:$0xf] %vm7015, %v6883
    %7141 = vst [vmem:[%s7 + $0x380] sm:$0xff] %v6884
    %7142 = vst [vmem:[%s7 + $0x388] sm:$0xff] %v6885
    %7143 = vst [vmem:[%s7 + $0x390] sm:$0xff] %v6886
    %7144 = vst.msk [vmem:[%s7 + $0x398] sm:$0xf] %vm7015, %v6887
    %7145 = vst [vmem:[%s7 + $0x39c] sm:$0xff] %v6888
    %7146 = vst [vmem:[%s7 + $0x3a4] sm:$0xff] %v6889
    %7147 = vst [vmem:[%s7 + $0x3ac] sm:$0xff] %v6890
    %7148 = vst.msk [vmem:[%s7 + $0x3b4] sm:$0xf] %vm7015, %v6891
    %7149 = vst [vmem:[%s7 + $0x3b8] sm:$0xff] %v6892
    %7150 = vst [vmem:[%s7 + $0x3c0] sm:$0xff] %v6893
    %7151 = vst [vmem:[%s7 + $0x3c8] sm:$0xff] %v6894
    %7152 = vst.msk [vmem:[%s7 + $0x3d0] sm:$0xf] %vm7015, %v6895
    %7153 = vst [vmem:[%s7 + $0x3d4] sm:$0xff] %v6896
    %7154 = vst [vmem:[%s7 + $0x3dc] sm:$0xff] %v6897
    %7155 = vst [vmem:[%s7 + $0x3e4] sm:$0xff] %v6898
    %7156 = vst.msk [vmem:[%s7 + $0x3ec] sm:$0xf] %vm7015, %v6899
    %7157 = vst [vmem:[%s7 + $0x3f0] sm:$0xff] %v6900
    %7158 = vst [vmem:[%s7 + $0x3f8] sm:$0xff] %v6901
    %7159 = vst [vmem:[%s7 + $0x400] sm:$0xff] %v6902
    %7160 = vst.msk [vmem:[%s7 + $0x408] sm:$0xf] %vm7015, %v6903
    %7161 = vst [vmem:[%s7 + $0x40c] sm:$0xff] %v6904
    %7162 = vst [vmem:[%s7 + $0x414] sm:$0xff] %v6905
    %7163 = vst [vmem:[%s7 + $0x41c] sm:$0xff] %v6906
    %7164 = vst.msk [vmem:[%s7 + $0x424] sm:$0xf] %vm7015, %v6907
    %7165 = vst [vmem:[%s7 + $0x428] sm:$0xff] %v6908
    %7166 = vst [vmem:[%s7 + $0x430] sm:$0xff] %v6909
    %7167 = vst [vmem:[%s7 + $0x438] sm:$0xff] %v6910
    %7168 = vst.msk [vmem:[%s7 + $0x440] sm:$0xf] %vm7015, %v6911
    %7169 = vst [vmem:[%s7 + $0x444] sm:$0xff] %v6912
    %7170 = vst [vmem:[%s7 + $0x44c] sm:$0xff] %v6913
    %7171 = vst [vmem:[%s7 + $0x454] sm:$0xff] %v6914
    %7172 = vst.msk [vmem:[%s7 + $0x45c] sm:$0xf] %vm7015, %v6915
    %7173 = vst [vmem:[%s7 + $0x460] sm:$0xff] %v6916
    %7174 = vst [vmem:[%s7 + $0x468] sm:$0xff] %v6917
    %7175 = vst [vmem:[%s7 + $0x470] sm:$0xff] %v6918
    %7176 = vst.msk [vmem:[%s7 + $0x478] sm:$0xf] %vm7015, %v6919
    %7177 = vst [vmem:[%s7 + $0x47c] sm:$0xff] %v6920
    %7178 = vst [vmem:[%s7 + $0x484] sm:$0xff] %v6921
    %7179 = vst [vmem:[%s7 + $0x48c] sm:$0xff] %v6922
    %7180 = vst.msk [vmem:[%s7 + $0x494] sm:$0xf] %vm7015, %v6923
    %7181 = vst [vmem:[%s7 + $0x498] sm:$0xff] %v6924
    %7182 = vst [vmem:[%s7 + $0x4a0] sm:$0xff] %v6925
    %7183 = vst [vmem:[%s7 + $0x4a8] sm:$0xff] %v6926
    %7184 = vst.msk [vmem:[%s7 + $0x4b0] sm:$0xf] %vm7015, %v6927
    %7185 = vst [vmem:[%s7 + $0x4b4] sm:$0xff] %v6928
    %7186 = vst [vmem:[%s7 + $0x4bc] sm:$0xff] %v6929
    %7187 = vst [vmem:[%s7 + $0x4c4] sm:$0xff] %v6930
    %7188 = vst.msk [vmem:[%s7 + $0x4cc] sm:$0xf] %vm7015, %v6931
    %7189 = vst [vmem:[%s7 + $0x4d0] sm:$0xff] %v6932
    %7190 = vst [vmem:[%s7 + $0x4d8] sm:$0xff] %v6933
    %7191 = vst [vmem:[%s7 + $0x4e0] sm:$0xff] %v6934
    %7192 = vst.msk [vmem:[%s7 + $0x4e8] sm:$0xf] %vm7015, %v6935
    %7193 = vst [vmem:[%s7 + $0x4ec] sm:$0xff] %v6936
    %7194 = vst [vmem:[%s7 + $0x4f4] sm:$0xff] %v6937
    %7195 = vst [vmem:[%s7 + $0x4fc] sm:$0xff] %v6938
    %7196 = vst.msk [vmem:[%s7 + $0x504] sm:$0xf] %vm7015, %v6939
    %7197 = vst [vmem:[%s7 + $0x508] sm:$0xff] %v6940
    %7198 = vst [vmem:[%s7 + $0x510] sm:$0xff] %v6941
    %7199 = vst [vmem:[%s7 + $0x518] sm:$0xff] %v6942
    %7200 = vst.msk [vmem:[%s7 + $0x520] sm:$0xf] %vm7015, %v6943
    %7201 = vst [vmem:[%s7 + $0x524] sm:$0xff] %v6944
    %7202 = vst [vmem:[%s7 + $0x52c] sm:$0xff] %v6945
    %7203 = vst [vmem:[%s7 + $0x534] sm:$0xff] %v6946
    %7204 = vst.msk [vmem:[%s7 + $0x53c] sm:$0xf] %vm7015, %v6947
    %7205 = vst [vmem:[%s7 + $0x540] sm:$0xff] %v6948
    %7206 = vst [vmem:[%s7 + $0x548] sm:$0xff] %v6949
    %7207 = vst [vmem:[%s7 + $0x550] sm:$0xff] %v6950
    %7208 = vst.msk [vmem:[%s7 + $0x558] sm:$0xf] %vm7015, %v6951
    %7209 = vst [vmem:[%s7 + $0x55c] sm:$0xff] %v6952
    %7210 = vst [vmem:[%s7 + $0x564] sm:$0xff] %v6953
    %7211 = vst [vmem:[%s7 + $0x56c] sm:$0xff] %v6954
    %7212 = vst.msk [vmem:[%s7 + $0x574] sm:$0xf] %vm7015, %v6955
    %7213 = vst [vmem:[%s7 + $0x578] sm:$0xff] %v6956
    %7214 = vst [vmem:[%s7 + $0x580] sm:$0xff] %v6957
    %7215 = vst [vmem:[%s7 + $0x588] sm:$0xff] %v6958
    %7216 = vst.msk [vmem:[%s7 + $0x590] sm:$0xf] %vm7015, %v6959
    %7217 = vst [vmem:[%s7 + $0x594] sm:$0xff] %v6960
    %7218 = vst [vmem:[%s7 + $0x59c] sm:$0xff] %v6961
    %7219 = vst [vmem:[%s7 + $0x5a4] sm:$0xff] %v6962
    %7220 = vst.msk [vmem:[%s7 + $0x5ac] sm:$0xf] %vm7015, %v6963
    %7221 = vst [vmem:[%s7 + $0x5b0] sm:$0xff] %v6964
    %7222 = vst [vmem:[%s7 + $0x5b8] sm:$0xff] %v6965
    %7223 = vst [vmem:[%s7 + $0x5c0] sm:$0xff] %v6966
    %7224 = vst.msk [vmem:[%s7 + $0x5c8] sm:$0xf] %vm7015, %v6967
    %7225 = vst [vmem:[%s7 + $0x5cc] sm:$0xff] %v6968
    %7226 = vst [vmem:[%s7 + $0x5d4] sm:$0xff] %v6969
    %7227 = vst [vmem:[%s7 + $0x5dc] sm:$0xff] %v6970
    %7228 = vst.msk [vmem:[%s7 + $0x5e4] sm:$0xf] %vm7015, %v6971
    %7229 = vst [vmem:[%s7 + $0x5e8] sm:$0xff] %v6972
    %7230 = vst [vmem:[%s7 + $0x5f0] sm:$0xff] %v6973
    %7231 = vst [vmem:[%s7 + $0x5f8] sm:$0xff] %v6974
    %7232 = vst.msk [vmem:[%s7 + $0x600] sm:$0xf] %vm7015, %v6975
    %7233 = vst [vmem:[%s7 + $0x604] sm:$0xff] %v6976
    %7234 = vst [vmem:[%s7 + $0x60c] sm:$0xff] %v6977
    %7235 = vst [vmem:[%s7 + $0x614] sm:$0xff] %v6978
    %7236 = vst.msk [vmem:[%s7 + $0x61c] sm:$0xf] %vm7015, %v6979
    %7237 = vst [vmem:[%s7 + $0x620] sm:$0xff] %v6980
    %7238 = vst [vmem:[%s7 + $0x628] sm:$0xff] %v6981
    %7239 = vst [vmem:[%s7 + $0x630] sm:$0xff] %v6982
    %7240 = vst.msk [vmem:[%s7 + $0x638] sm:$0xf] %vm7015, %v6983
    %7241 = vst [vmem:[%s7 + $0x63c] sm:$0xff] %v6984
    %7242 = vst [vmem:[%s7 + $0x644] sm:$0xff] %v6985
    %7243 = vst [vmem:[%s7 + $0x64c] sm:$0xff] %v6986
    %7244 = vst.msk [vmem:[%s7 + $0x654] sm:$0xf] %vm7015, %v6987
    %7245 = vst [vmem:[%s7 + $0x658] sm:$0xff] %v6988
    %7246 = vst [vmem:[%s7 + $0x660] sm:$0xff] %v6989
    %7247 = vst [vmem:[%s7 + $0x668] sm:$0xff] %v6990
    %7248 = vst.msk [vmem:[%s7 + $0x670] sm:$0xf] %vm7015, %v6991
    %7249 = vst [vmem:[%s7 + $0x674] sm:$0xff] %v6992
    %7250 = vst [vmem:[%s7 + $0x67c] sm:$0xff] %v6993
    %7251 = vst [vmem:[%s7 + $0x684] sm:$0xff] %v6994
    %7252 = vst.msk [vmem:[%s7 + $0x68c] sm:$0xf] %vm7015, %v6995
    %7253 = vst [vmem:[%s7 + $0x690] sm:$0xff] %v6996
    %7254 = vst [vmem:[%s7 + $0x698] sm:$0xff] %v6997
    %7255 = vst [vmem:[%s7 + $0x6a0] sm:$0xff] %v6998
    %7256 = vst.msk [vmem:[%s7 + $0x6a8] sm:$0xf] %vm7015, %v6999
    %7257 = vst [vmem:[%s7 + $0x6ac] sm:$0xff] %v7000
    %7258 = vst [vmem:[%s7 + $0x6b4] sm:$0xff] %v7001
    %7259 = vst [vmem:[%s7 + $0x6bc] sm:$0xff] %v7002
    %7260 = vst.msk [vmem:[%s7 + $0x6c4] sm:$0xf] %vm7015, %v7003
    %7261 = vst [vmem:[%s7 + $0x6c8] sm:$0xff] %v7004
    %7262 = vst [vmem:[%s7 + $0x6d0] sm:$0xff] %v7005
    %7263 = vst [vmem:[%s7 + $0x6d8] sm:$0xff] %v7006
    %7264 = vst.msk [vmem:[%s7 + $0x6e0] sm:$0xf] %vm7015, %v7007
    %7265 = vst [vmem:[%s7 + $0x6e4] sm:$0xff] %v7008
    %7266 = vst [vmem:[%s7 + $0x6ec] sm:$0xff] %v7009
    %7267 = vst [vmem:[%s7 + $0x6f4] sm:$0xff] %v7010
    %7268 = vst.msk [vmem:[%s7 + $0x6fc] sm:$0xf] %vm7015, %v7011
    // Predicated region
    $region54: #{tpu_custom_call.1} parent=1 // pred_check
      _
    $region55: #{tpu_custom_call.1} parent=1 // pred_check_branch
      %7270 = sbr.rel (0) target = $region57
    $region56: #{tpu_custom_call.1} parent=1 // pred_region
      _
    $region57: #{tpu_custom_call.1} parent=1 // pred_fallthru
      _
    // Predicated region
    $region58: #{tpu_custom_call.1} parent=1 // pred_check
      _
    $region59: #{tpu_custom_call.1} parent=1 // pred_check_branch
      %7272 = sbr.rel (0) target = $region61
    $region60: #{tpu_custom_call.1} parent=1 // pred_region
      _
    $region61: #{tpu_custom_call.1} parent=1 // pred_fallthru
      _
    %7273 = vsyncpa [#allocation3], 1
    %7274 = vsyncpa [#allocation5], 1
    %7275 = vsyncpa [#allocation8], 1
    %7276 = vsyncpa [#allocation11], 1

</llo_original>
